<compile_context>
chip_gen: v5e
topology: v5e:2x2
jax: 0.10.0
libtpu: 0.0.40
codegen_flags: <defaults>
</compile_context>

<pallas_src>
import jax
import jax.numpy as jnp
from jax import lax
from jax.experimental import pallas as pl
from jax.experimental.pallas import tpu as pltpu

HIDDEN = 64          # trunk channel width of the PyTorch module
ROWS_PER_STRIP = 8   # strip height for the strip-mined ResBlocks / last conv


def fused_cnn_kernel(cols_ref, w0_ref, b0_ref, wdw_ref, wpw_ref, wl_ref,
                     bl_ref, o_ref, act_a, act_b):
    """Whole cnn_layer forward for one grid step (G packed images), VMEM resident.

    cols_ref: (1, H*W, 18*G)  im2col of the zero-padded 2-channel input(s)
    w0_ref:   (18*G, C)       first-conv weight (block-diag over packed images)
    b0_ref:   (1, C)
    wdw_ref:  (3, 3, 3, C)    depthwise 3x3 weights of the 3 ResBlocks
    wpw_ref:  (3, C, C)       pointwise 1x1 weights (block-diag over images)
    wl_ref:   (3, 3, CO, C)   last-conv weight, pre-transposed to (out, in)
    bl_ref:   (CO, 1)
    o_ref:    (1, CO, H*W)    lane-dense output (spatial on lanes)
    act_a/b:  VMEM scratch (H, W, C) ping-pong activation buffers
    with C = 64*G and CO = 2*G.
    """
    H, W, C = act_a.shape
    HW = H * W
    CO = o_ref.shape[1]
    RS = ROWS_PER_STRIP if H % ROWS_PER_STRIP == 0 else H
    NS = H // RS

    # ---------- first conv: one (HW, 18G) @ (18G, C) MXU matmul + bias + ReLU
    a0 = jnp.dot(cols_ref[0], w0_ref[...], preferred_element_type=jnp.float32)
    act_a[...] = jnp.maximum(a0 + b0_ref[...], 0.0).reshape(H, W, C)

    bufs = (act_a, act_b)

    def circular_rows(src, lo, hi):
        """Rows lo..hi-1 of src (VMEM ref), wrapped circularly in H. Static bounds."""
        if lo < 0:
            return jnp.concatenate([src[H + lo:H, :, :], src[0:hi, :, :]], axis=0)
        if hi > H:
            return jnp.concatenate([src[lo:H, :, :], src[0:hi - H, :, :]], axis=0)
        return src[lo:hi, :, :]

    # ---------- 3 ResBlocks: circular depthwise 3x3 -> 1x1 -> ReLU, + identity.
    # Strip-mined over RS-row strips; activation stays in the VMEM ping-pong
    # pair (the shortcut is re-read from VMEM, never held live in vregs).
    for blk in range(3):
        src = bufs[blk % 2]
        dst = bufs[(blk + 1) % 2]
        for s in range(NS):
            r0 = s * RS
            dw = jnp.zeros((RS, W, C), jnp.float32)
            for ky in range(3):
                rows = circular_rows(src, r0 + ky - 1, r0 + RS + ky - 1)
                for kx in range(3):
                    shift = (1 - kx) % W              # circular shift along W
                    win = rows if shift == 0 else pltpu.roll(rows, shift, axis=1)
                    dw = dw + win * wdw_ref[blk, ky, kx][None, None, :]
            pw = jnp.dot(dw.reshape(RS * W, C), wpw_ref[blk],
                         preferred_element_type=jnp.float32)
            pw = jnp.maximum(pw, 0.0).reshape(RS, W, C)
            dst[r0:r0 + RS, :, :] = pw + src[r0:r0 + RS, :, :]   # identity shortcut

    # ---------- last conv: 3x3, zero padding, C -> CO, bias, no ReLU.
    # Accumulated directly in (CO, RS*W) orientation so the final store is a
    # lane-dense (CO, HW) slab instead of a masked width-2 store.
    src = bufs[3 % 2]
    zero_col = jnp.zeros((RS, 1, C), jnp.float32)
    strips = []
    for s in range(NS):
        r0 = s * RS
        acc = jnp.zeros((CO, RS * W), jnp.float32)
        for ky in range(3):
            lo, hi = r0 + ky - 1, r0 + RS + ky - 1
            if lo < 0:
                rows = jnp.concatenate(
                    [jnp.zeros((-lo, W, C), jnp.float32), src[0:hi, :, :]], axis=0)
            elif hi > H:
                rows = jnp.concatenate(
                    [src[lo:H, :, :], jnp.zeros((hi - H, W, C), jnp.float32)], axis=0)
            else:
                rows = src[lo:hi, :, :]
            for kx in range(3):
                if kx == 0:        # shift right, zero at x=0
                    win = jnp.concatenate([zero_col, rows[:, 0:W - 1, :]], axis=1)
                elif kx == 2:      # shift left, zero at x=W-1
                    win = jnp.concatenate([rows[:, 1:W, :], zero_col], axis=1)
                else:
                    win = rows
                # (CO, C) x (RS*W, C) contracted on C  ->  (CO, RS*W)
                acc = acc + lax.dot_general(
                    wl_ref[ky, kx], win.reshape(RS * W, C),
                    dimension_numbers=(((1,), (1,)), ((), ())),
                    preferred_element_type=jnp.float32)
        strips.append(acc)
    full = strips[0] if NS == 1 else jnp.concatenate(strips, axis=1)
    o_ref[0] = (full + bl_ref[...]).astype(o_ref.dtype)


def _im2col3x3(x_nhwc):
    """(N, H, W, Cin) -> (N, H*W, 9*Cin) zero-padded 3x3 tap columns."""
    N, H, W, Cin = x_nhwc.shape
    xp = jnp.pad(x_nhwc, ((0, 0), (1, 1), (1, 1), (0, 0)))
    cols = jnp.concatenate(
        [xp[:, ky:ky + H, kx:kx + W, :] for ky in range(3) for kx in range(3)],
        axis=-1)                                      # (N, H, W, 9*Cin)
    return cols.reshape(N, H * W, 9 * Cin)


def _block_diag(m, g):
    """(a, b) -> (g*a, g*b) block diagonal built from g identical blocks."""
    if g == 1:
        return m
    a, b = m.shape
    out = jnp.zeros((g * a, g * b), m.dtype)
    for k in range(g):
        out = out.at[k * a:(k + 1) * a, k * b:(k + 1) * b].set(m)
    return out


def _images_per_grid_step(n):
    """Pack 2 images into the 128-lane channel axis on single-TC chips (v5e/v6e);
    keep 1 image per grid step on dual-TC v7x so both TensorCores get work."""
    try:
        kind = jax.devices()[0].device_kind.lower()
    except Exception:
        kind = ""
    dual_tc = ("v7" in kind) or ("7x" in kind)
    if (not dual_tc) and n % 2 == 0:
        return 2
    return 1


def cnn_layer_forward_impl(x_nchw, params):
    N, Cin, H, W = x_nchw.shape
    C = HIDDEN
    assert Cin == 2, Cin
    assert H % 8 == 0 and W % 8 == 0, (H, W)   # keep (8,128)-friendly layouts

    G = _images_per_grid_step(N)               # images packed per grid step
    NB = N // G
    CG, COG = C * G, 2 * G

    x = jnp.transpose(x_nchw, (0, 2, 3, 1))    # NCHW -> NHWC (boundary layout)
    cols = _im2col3x3(x)                       # (N, HW, 18)
    cols = cols.reshape(NB, G, H * W, 9 * Cin).transpose(0, 2, 1, 3)
    cols = cols.reshape(NB, H * W, G * 9 * Cin)          # (NB, HW, 18G)

    # ---- pack weights (block-diagonal over the G images sharing the lanes).
    # NOTE: synthetic layouts.  Real PyTorch weights are (Cout, Cin, kH, kW)
    # and must be permuted into these (kH, kW, Cin, Cout)-style layouts first.
    w0 = _block_diag(params["w0"].reshape(9 * Cin, C), G)            # (18G, CG)
    b0 = jnp.tile(params["b0"], G).reshape(1, CG)
    wdw = jnp.tile(params["wdw"], (1, 1, 1, G))                      # (3,3,3,CG)
    wpw = jnp.stack([_block_diag(params["wpw"][i], G) for i in range(3)])
    wl_t = jnp.transpose(params["w_last"], (0, 1, 3, 2))             # (3,3,2,C)
    wl = jnp.stack([jnp.stack([_block_diag(wl_t[ky, kx], G)
                               for kx in range(3)]) for ky in range(3)])
    bl = jnp.tile(params["b_last"], G).reshape(COG, 1)

    out = pl.pallas_call(
        fused_cnn_kernel,
        out_shape=jax.ShapeDtypeStruct((NB, COG, H * W), x.dtype),
        grid=(NB,),
        in_specs=[
            pl.BlockSpec((1, H * W, G * 9 * Cin), lambda n: (n, 0, 0)),
            pl.BlockSpec((G * 9 * Cin, CG), lambda n: (0, 0)),
            pl.BlockSpec((1, CG), lambda n: (0, 0)),
            pl.BlockSpec((3, 3, 3, CG), lambda n: (0, 0, 0, 0)),
            pl.BlockSpec((3, CG, CG), lambda n: (0, 0, 0)),
            pl.BlockSpec((3, 3, COG, CG), lambda n: (0, 0, 0, 0)),
            pl.BlockSpec((COG, 1), lambda n: (0, 0)),
        ],
        out_specs=pl.BlockSpec((1, COG, H * W), lambda n: (n, 0, 0)),
        scratch_shapes=[
            pltpu.VMEM((H, W, CG), jnp.float32),
            pltpu.VMEM((H, W, CG), jnp.float32),
        ],
        compiler_params=pltpu.CompilerParams(
            dimension_semantics=("parallel",)),
    )(cols, w0, b0, wdw, wpw, wl, bl)

    # (NB, 2G, HW) -> (N, 2, H, W): pure reshape (channel blocks are g-major).
    return out.reshape(NB, G, 2, H, W).reshape(N, 2, H, W)


cnn_layer_forward = jax.jit(cnn_layer_forward_impl)


def init_params(key, hidden=HIDDEN):
    # NOTE: synthetic weights.  Real PyTorch weights are (Cout, Cin, kH, kW)
    # and would need transposing into these (kH, kW, Cin, Cout)-style layouts.
    ks = jax.random.split(key, 6)
    return {
        "w0": 0.1 * jax.random.normal(ks[0], (3, 3, 2, hidden), jnp.float32),
        "b0": 0.1 * jax.random.normal(ks[1], (hidden,), jnp.float32),
        "wdw": 0.1 * jax.random.normal(ks[2], (3, 3, 3, hidden), jnp.float32),
        "wpw": 0.1 * jax.random.normal(ks[3], (3, hidden, hidden), jnp.float32),
        "w_last": 0.1 * jax.random.normal(ks[4], (3, 3, hidden, 2), jnp.float32),
        "b_last": 0.1 * jax.random.normal(ks[5], (2,), jnp.float32),
    }


if __name__ == "__main__":
    key = jax.random.PRNGKey(0)
    k_x, k_p = jax.random.split(key)

    N, C_in, H, W = 2, 2, 16, 16          # num_rows = num_cols = 16
    x = jax.random.normal(k_x, (N, C_in, H, W), jnp.float32)
    params = init_params(k_p)

    out = cnn_layer_forward(x, params)
    jax.block_until_ready(out)
    assert out.shape == (N, 2, H, W), out.shape
    assert bool(jnp.all(jnp.isfinite(out)))
    print("KERNEL_OK")
</pallas_src>

<mosaic_0001>
module attributes {stable_mosaic.version = 11 : i64} {
  func.func @fused_cnn_kernel(%arg0: i32, %arg1: memref<1x256x36xf32, #tpu.memory_space<vmem>>, %arg2: memref<36x128xf32, #tpu.memory_space<vmem>>, %arg3: memref<1x128xf32, #tpu.memory_space<vmem>>, %arg4: memref<3x3x3x128xf32, #tpu.memory_space<vmem>>, %arg5: memref<3x128x128xf32, #tpu.memory_space<vmem>>, %arg6: memref<3x3x4x128xf32, #tpu.memory_space<vmem>>, %arg7: memref<4x1xf32, #tpu.memory_space<vmem>>, %arg8: memref<1x4x256xf32, #tpu.memory_space<vmem>>, %arg9: memref<16x16x128xf32, #tpu.memory_space<vmem>>, %arg10: memref<16x16x128xf32, #tpu.memory_space<vmem>>) attributes {dimension_semantics = [#tpu.dimension_semantics<parallel>], iteration_bounds = array<i64: 1>, scalar_prefetch = 0 : i64, scratch_operands = 2 : i64, tpu.core_type = #tpu.core_type<tc>, window_params = [{transform_indices = @transform_0, window_bounds = array<i64: 1, 256, 36>}, {pipeline_mode = #tpu.pipeline_mode<synchronous>, transform_indices = @transform_1, window_bounds = array<i64: 36, 128>}, {pipeline_mode = #tpu.pipeline_mode<synchronous>, transform_indices = @transform_2, window_bounds = array<i64: 1, 128>}, {pipeline_mode = #tpu.pipeline_mode<synchronous>, transform_indices = @transform_3, window_bounds = array<i64: 3, 3, 3, 128>}, {pipeline_mode = #tpu.pipeline_mode<synchronous>, transform_indices = @transform_4, window_bounds = array<i64: 3, 128, 128>}, {pipeline_mode = #tpu.pipeline_mode<synchronous>, transform_indices = @transform_5, window_bounds = array<i64: 3, 3, 4, 128>}, {pipeline_mode = #tpu.pipeline_mode<synchronous>, transform_indices = @transform_6, window_bounds = array<i64: 4, 1>}, {transform_indices = @transform_7, window_bounds = array<i64: 1, 4, 256>}]} {
    %c0 = arith.constant 0 : index
    %c0_0 = arith.constant 0 : index
    %c0_1 = arith.constant 0 : index
    %0 = vector.load %arg1[%c0, %c0_0, %c0_1] : memref<1x256x36xf32, #tpu.memory_space<vmem>>, vector<1x256x36xf32>
    %1 = vector.shape_cast %0 : vector<1x256x36xf32> to vector<256x36xf32>
    %c0_2 = arith.constant 0 : index
    %c0_3 = arith.constant 0 : index
    %2 = vector.load %arg2[%c0_2, %c0_3] : memref<36x128xf32, #tpu.memory_space<vmem>>, vector<36x128xf32>
    %cst = arith.constant dense<0.000000e+00> : vector<256x128xf32>
    %3 = tpu.matmul %1, %2, %cst {dimension_numbers = #tpu.dot_dimension_numbers<[1], [0], [0], [1], [0, 0, 1, 1], [], []>} : vector<256x36xf32>, vector<36x128xf32>, vector<256x128xf32> -> vector<256x128xf32>
    %c0_4 = arith.constant 0 : index
    %c0_5 = arith.constant 0 : index
    %4 = vector.load %arg3[%c0_4, %c0_5] : memref<1x128xf32, #tpu.memory_space<vmem>>, vector<1x128xf32>
    %5 = vector.broadcast %4 : vector<1x128xf32> to vector<256x128xf32>
    %6 = arith.addf %3, %5 : vector<256x128xf32>
    %cst_6 = arith.constant 0.000000e+00 : f32
    %7 = vector.broadcast %cst_6 : f32 to vector<256x128xf32>
    %8 = arith.maximumf %6, %7 : vector<256x128xf32>
    %9 = vector.shape_cast %8 : vector<256x128xf32> to vector<16x16x128xf32>
    %c0_7 = arith.constant 0 : index
    %c0_8 = arith.constant 0 : index
    %c0_9 = arith.constant 0 : index
    %10 = vector.load %arg9[%c0_7, %c0_8, %c0_9] : memref<16x16x128xf32, #tpu.memory_space<vmem>>, vector<16x16x128xf32>
    tpu.vector_store %arg9[%c0_7, %c0_8, %c0_9], %9 {strides = array<i32>} : memref<16x16x128xf32, #tpu.memory_space<vmem>>, vector<16x16x128xf32>,
    %cst_10 = arith.constant 0.000000e+00 : f32
    %11 = vector.broadcast %cst_10 : f32 to vector<8x16x128xf32>
    %c15 = arith.constant 15 : index
    %c0_11 = arith.constant 0 : index
    %c0_12 = arith.constant 0 : index
    %12 = vector.load %arg9[%c15, %c0_11, %c0_12] : memref<16x16x128xf32, #tpu.memory_space<vmem>>, vector<1x16x128xf32>
    %c0_13 = arith.constant 0 : index
    %c0_14 = arith.constant 0 : index
    %c0_15 = arith.constant 0 : index
    %13 = vector.load %arg9[%c0_13, %c0_14, %c0_15] : memref<16x16x128xf32, #tpu.memory_space<vmem>>, vector<7x16x128xf32>
    %14 = tpu.concatenate %12, %13 in 0 : vector<1x16x128xf32>, vector<7x16x128xf32> -> vector<8x16x128xf32>
    %c1_i32 = arith.constant 1 : i32
    %15 = tpu.dynamic_rotate %14 by %c1_i32 dim 1 : vector<8x16x128xf32>, i32 -> vector<8x16x128xf32>
    %c0_16 = arith.constant 0 : index
    %c0_17 = arith.constant 0 : index
    %c0_18 = arith.constant 0 : index
    %c0_19 = arith.constant 0 : index
    %16 = vector.load %arg4[%c0_16, %c0_17, %c0_18, %c0_19] : memref<3x3x3x128xf32, #tpu.memory_space<vmem>>, vector<1x1x1x128xf32>
    %17 = vector.shape_cast %16 : vector<1x1x1x128xf32> to vector<128xf32>
    %18 = vector.shape_cast %17 : vector<128xf32> to vector<1x1x128xf32>
    %19 = vector.broadcast %18 : vector<1x1x128xf32> to vector<8x16x128xf32>
    %20 = arith.mulf %15, %19 : vector<8x16x128xf32>
    %21 = arith.addf %11, %20 : vector<8x16x128xf32>
    %c0_20 = arith.constant 0 : index
    %c0_21 = arith.constant 0 : index
    %c1 = arith.constant 1 : index
    %c0_22 = arith.constant 0 : index
    %22 = vector.load %arg4[%c0_20, %c0_21, %c1, %c0_22] : memref<3x3x3x128xf32, #tpu.memory_space<vmem>>, vector<1x1x1x128xf32>
    %23 = vector.shape_cast %22 : vector<1x1x1x128xf32> to vector<128xf32>
    %24 = vector.shape_cast %23 : vector<128xf32> to vector<1x1x128xf32>
    %25 = vector.broadcast %24 : vector<1x1x128xf32> to vector<8x16x128xf32>
    %26 = arith.mulf %14, %25 : vector<8x16x128xf32>
    %27 = arith.addf %21, %26 : vector<8x16x128xf32>
    %c15_i32 = arith.constant 15 : i32
    %28 = tpu.dynamic_rotate %14 by %c15_i32 dim 1 : vector<8x16x128xf32>, i32 -> vector<8x16x128xf32>
    %c0_23 = arith.constant 0 : index
    %c0_24 = arith.constant 0 : index
    %c2 = arith.constant 2 : index
    %c0_25 = arith.constant 0 : index
    %29 = vector.load %arg4[%c0_23, %c0_24, %c2, %c0_25] : memref<3x3x3x128xf32, #tpu.memory_space<vmem>>, vector<1x1x1x128xf32>
    %30 = vector.shape_cast %29 : vector<1x1x1x128xf32> to vector<128xf32>
    %31 = vector.shape_cast %30 : vector<128xf32> to vector<1x1x128xf32>
    %32 = vector.broadcast %31 : vector<1x1x128xf32> to vector<8x16x128xf32>
    %33 = arith.mulf %28, %32 : vector<8x16x128xf32>
    %34 = arith.addf %27, %33 : vector<8x16x128xf32>
    %c0_26 = arith.constant 0 : index
    %c0_27 = arith.constant 0 : index
    %c0_28 = arith.constant 0 : index
    %35 = vector.load %arg9[%c0_26, %c0_27, %c0_28] : memref<16x16x128xf32, #tpu.memory_space<vmem>>, vector<8x16x128xf32>
    %c1_i32_29 = arith.constant 1 : i32
    %36 = tpu.dynamic_rotate %35 by %c1_i32_29 dim 1 : vector<8x16x128xf32>, i32 -> vector<8x16x128xf32>
    %c0_30 = arith.constant 0 : index
    %c1_31 = arith.constant 1 : index
    %c0_32 = arith.constant 0 : index
    %c0_33 = arith.constant 0 : index
    %37 = vector.load %arg4[%c0_30, %c1_31, %c0_32, %c0_33] : memref<3x3x3x128xf32, #tpu.memory_space<vmem>>, vector<1x1x1x128xf32>
    %38 = vector.shape_cast %37 : vector<1x1x1x128xf32> to vector<128xf32>
    %39 = vector.shape_cast %38 : vector<128xf32> to vector<1x1x128xf32>
    %40 = vector.broadcast %39 : vector<1x1x128xf32> to vector<8x16x128xf32>
    %41 = arith.mulf %36, %40 : vector<8x16x128xf32>
    %42 = arith.addf %34, %41 : vector<8x16x128xf32>
    %c0_34 = arith.constant 0 : index
    %c1_35 = arith.constant 1 : index
    %c1_36 = arith.constant 1 : index
    %c0_37 = arith.constant 0 : index
    %43 = vector.load %arg4[%c0_34, %c1_35, %c1_36, %c0_37] : memref<3x3x3x128xf32, #tpu.memory_space<vmem>>, vector<1x1x1x128xf32>
    %44 = vector.shape_cast %43 : vector<1x1x1x128xf32> to vector<128xf32>
    %45 = vector.shape_cast %44 : vector<128xf32> to vector<1x1x128xf32>
    %46 = vector.broadcast %45 : vector<1x1x128xf32> to vector<8x16x128xf32>
    %47 = arith.mulf %35, %46 : vector<8x16x128xf32>
    %48 = arith.addf %42, %47 : vector<8x16x128xf32>
    %c15_i32_38 = arith.constant 15 : i32
    %49 = tpu.dynamic_rotate %35 by %c15_i32_38 dim 1 : vector<8x16x128xf32>, i32 -> vector<8x16x128xf32>
    %c0_39 = arith.constant 0 : index
    %c1_40 = arith.constant 1 : index
    %c2_41 = arith.constant 2 : index
    %c0_42 = arith.constant 0 : index
    %50 = vector.load %arg4[%c0_39, %c1_40, %c2_41, %c0_42] : memref<3x3x3x128xf32, #tpu.memory_space<vmem>>, vector<1x1x1x128xf32>
    %51 = vector.shape_cast %50 : vector<1x1x1x128xf32> to vector<128xf32>
    %52 = vector.shape_cast %51 : vector<128xf32> to vector<1x1x128xf32>
    %53 = vector.broadcast %52 : vector<1x1x128xf32> to vector<8x16x128xf32>
    %54 = arith.mulf %49, %53 : vector<8x16x128xf32>
    %55 = arith.addf %48, %54 : vector<8x16x128xf32>
    %c1_43 = arith.constant 1 : index
    %c0_44 = arith.constant 0 : index
    %c0_45 = arith.constant 0 : index
    %56 = vector.load %arg9[%c1_43, %c0_44, %c0_45] : memref<16x16x128xf32, #tpu.memory_space<vmem>>, vector<8x16x128xf32>
    %c1_i32_46 = arith.constant 1 : i32
    %57 = tpu.dynamic_rotate %56 by %c1_i32_46 dim 1 : vector<8x16x128xf32>, i32 -> vector<8x16x128xf32>
    %c0_47 = arith.constant 0 : index
    %c2_48 = arith.constant 2 : index
    %c0_49 = arith.constant 0 : index
    %c0_50 = arith.constant 0 : index
    %58 = vector.load %arg4[%c0_47, %c2_48, %c0_49, %c0_50] : memref<3x3x3x128xf32, #tpu.memory_space<vmem>>, vector<1x1x1x128xf32>
    %59 = vector.shape_cast %58 : vector<1x1x1x128xf32> to vector<128xf32>
    %60 = vector.shape_cast %59 : vector<128xf32> to vector<1x1x128xf32>
    %61 = vector.broadcast %60 : vector<1x1x128xf32> to vector<8x16x128xf32>
    %62 = arith.mulf %57, %61 : vector<8x16x128xf32>
    %63 = arith.addf %55, %62 : vector<8x16x128xf32>
    %c0_51 = arith.constant 0 : index
    %c2_52 = arith.constant 2 : index
    %c1_53 = arith.constant 1 : index
    %c0_54 = arith.constant 0 : index
    %64 = vector.load %arg4[%c0_51, %c2_52, %c1_53, %c0_54] : memref<3x3x3x128xf32, #tpu.memory_space<vmem>>, vector<1x1x1x128xf32>
    %65 = vector.shape_cast %64 : vector<1x1x1x128xf32> to vector<128xf32>
    %66 = vector.shape_cast %65 : vector<128xf32> to vector<1x1x128xf32>
    %67 = vector.broadcast %66 : vector<1x1x128xf32> to vector<8x16x128xf32>
    %68 = arith.mulf %56, %67 : vector<8x16x128xf32>
    %69 = arith.addf %63, %68 : vector<8x16x128xf32>
    %c15_i32_55 = arith.constant 15 : i32
    %70 = tpu.dynamic_rotate %56 by %c15_i32_55 dim 1 : vector<8x16x128xf32>, i32 -> vector<8x16x128xf32>
    %c0_56 = arith.constant 0 : index
    %c2_57 = arith.constant 2 : index
    %c2_58 = arith.constant 2 : index
    %c0_59 = arith.constant 0 : index
    %71 = vector.load %arg4[%c0_56, %c2_57, %c2_58, %c0_59] : memref<3x3x3x128xf32, #tpu.memory_space<vmem>>, vector<1x1x1x128xf32>
    %72 = vector.shape_cast %71 : vector<1x1x1x128xf32> to vector<128xf32>
    %73 = vector.shape_cast %72 : vector<128xf32> to vector<1x1x128xf32>
    %74 = vector.broadcast %73 : vector<1x1x128xf32> to vector<8x16x128xf32>
    %75 = arith.mulf %70, %74 : vector<8x16x128xf32>
    %76 = arith.addf %69, %75 : vector<8x16x128xf32>
    %77 = vector.shape_cast %76 : vector<8x16x128xf32> to vector<128x128xf32>
    %c0_60 = arith.constant 0 : index
    %c0_61 = arith.constant 0 : index
    %c0_62 = arith.constant 0 : index
    %78 = vector.load %arg5[%c0_60, %c0_61, %c0_62] : memref<3x128x128xf32, #tpu.memory_space<vmem>>, vector<1x128x128xf32>
    %79 = vector.shape_cast %78 : vector<1x128x128xf32> to vector<128x128xf32>
    %cst_63 = arith.constant dense<0.000000e+00> : vector<128x128xf32>
    %80 = tpu.matmul %77, %79, %cst_63 {dimension_numbers = #tpu.dot_dimension_numbers<[1], [0], [0], [1], [0, 0, 1, 1], [], []>} : vector<128x128xf32>, vector<128x128xf32>, vector<128x128xf32> -> vector<128x128xf32>
    %cst_64 = arith.constant 0.000000e+00 : f32
    %81 = vector.broadcast %cst_64 : f32 to vector<128x128xf32>
    %82 = arith.maximumf %80, %81 : vector<128x128xf32>
    %83 = vector.shape_cast %82 : vector<128x128xf32> to vector<8x16x128xf32>
    %c0_65 = arith.constant 0 : index
    %c0_66 = arith.constant 0 : index
    %c0_67 = arith.constant 0 : index
    %84 = vector.load %arg9[%c0_65, %c0_66, %c0_67] : memref<16x16x128xf32, #tpu.memory_space<vmem>>, vector<8x16x128xf32>
    %85 = arith.addf %83, %84 : vector<8x16x128xf32>
    %c0_68 = arith.constant 0 : index
    %c0_69 = arith.constant 0 : index
    %c0_70 = arith.constant 0 : index
    %86 = vector.load %arg10[%c0_68, %c0_69, %c0_70] : memref<16x16x128xf32, #tpu.memory_space<vmem>>, vector<8x16x128xf32>
    tpu.vector_store %arg10[%c0_68, %c0_69, %c0_70], %85 {strides = array<i32>} : memref<16x16x128xf32, #tpu.memory_space<vmem>>, vector<8x16x128xf32>,
    %cst_71 = arith.constant 0.000000e+00 : f32
    %87 = vector.broadcast %cst_71 : f32 to vector<8x16x128xf32>
    %c7 = arith.constant 7 : index
    %c0_72 = arith.constant 0 : index
    %c0_73 = arith.constant 0 : index
    %88 = vector.load %arg9[%c7, %c0_72, %c0_73] : memref<16x16x128xf32, #tpu.memory_space<vmem>>, vector<8x16x128xf32>
    %c1_i32_74 = arith.constant 1 : i32
    %89 = tpu.dynamic_rotate %88 by %c1_i32_74 dim 1 : vector<8x16x128xf32>, i32 -> vector<8x16x128xf32>
    %c0_75 = arith.constant 0 : index
    %c0_76 = arith.constant 0 : index
    %c0_77 = arith.constant 0 : index
    %c0_78 = arith.constant 0 : index
    %90 = vector.load %arg4[%c0_75, %c0_76, %c0_77, %c0_78] : memref<3x3x3x128xf32, #tpu.memory_space<vmem>>, vector<1x1x1x128xf32>
    %91 = vector.shape_cast %90 : vector<1x1x1x128xf32> to vector<128xf32>
    %92 = vector.shape_cast %91 : vector<128xf32> to vector<1x1x128xf32>
    %93 = vector.broadcast %92 : vector<1x1x128xf32> to vector<8x16x128xf32>
    %94 = arith.mulf %89, %93 : vector<8x16x128xf32>
    %95 = arith.addf %87, %94 : vector<8x16x128xf32>
    %c0_79 = arith.constant 0 : index
    %c0_80 = arith.constant 0 : index
    %c1_81 = arith.constant 1 : index
    %c0_82 = arith.constant 0 : index
    %96 = vector.load %arg4[%c0_79, %c0_80, %c1_81, %c0_82] : memref<3x3x3x128xf32, #tpu.memory_space<vmem>>, vector<1x1x1x128xf32>
    %97 = vector.shape_cast %96 : vector<1x1x1x128xf32> to vector<128xf32>
    %98 = vector.shape_cast %97 : vector<128xf32> to vector<1x1x128xf32>
    %99 = vector.broadcast %98 : vector<1x1x128xf32> to vector<8x16x128xf32>
    %100 = arith.mulf %88, %99 : vector<8x16x128xf32>
    %101 = arith.addf %95, %100 : vector<8x16x128xf32>
    %c15_i32_83 = arith.constant 15 : i32
    %102 = tpu.dynamic_rotate %88 by %c15_i32_83 dim 1 : vector<8x16x128xf32>, i32 -> vector<8x16x128xf32>
    %c0_84 = arith.constant 0 : index
    %c0_85 = arith.constant 0 : index
    %c2_86 = arith.constant 2 : index
    %c0_87 = arith.constant 0 : index
    %103 = vector.load %arg4[%c0_84, %c0_85, %c2_86, %c0_87] : memref<3x3x3x128xf32, #tpu.memory_space<vmem>>, vector<1x1x1x128xf32>
    %104 = vector.shape_cast %103 : vector<1x1x1x128xf32> to vector<128xf32>
    %105 = vector.shape_cast %104 : vector<128xf32> to vector<1x1x128xf32>
    %106 = vector.broadcast %105 : vector<1x1x128xf32> to vector<8x16x128xf32>
    %107 = arith.mulf %102, %106 : vector<8x16x128xf32>
    %108 = arith.addf %101, %107 : vector<8x16x128xf32>
    %c8 = arith.constant 8 : index
    %c0_88 = arith.constant 0 : index
    %c0_89 = arith.constant 0 : index
    %109 = vector.load %arg9[%c8, %c0_88, %c0_89] : memref<16x16x128xf32, #tpu.memory_space<vmem>>, vector<8x16x128xf32>
    %c1_i32_90 = arith.constant 1 : i32
    %110 = tpu.dynamic_rotate %109 by %c1_i32_90 dim 1 : vector<8x16x128xf32>, i32 -> vector<8x16x128xf32>
    %c0_91 = arith.constant 0 : index
    %c1_92 = arith.constant 1 : index
    %c0_93 = arith.constant 0 : index
    %c0_94 = arith.constant 0 : index
    %111 = vector.load %arg4[%c0_91, %c1_92, %c0_93, %c0_94] : memref<3x3x3x128xf32, #tpu.memory_space<vmem>>, vector<1x1x1x128xf32>
    %112 = vector.shape_cast %111 : vector<1x1x1x128xf32> to vector<128xf32>
    %113 = vector.shape_cast %112 : vector<128xf32> to vector<1x1x128xf32>
    %114 = vector.broadcast %113 : vector<1x1x128xf32> to vector<8x16x128xf32>
    %115 = arith.mulf %110, %114 : vector<8x16x128xf32>
    %116 = arith.addf %108, %115 : vector<8x16x128xf32>
    %c0_95 = arith.constant 0 : index
    %c1_96 = arith.constant 1 : index
    %c1_97 = arith.constant 1 : index
    %c0_98 = arith.constant 0 : index
    %117 = vector.load %arg4[%c0_95, %c1_96, %c1_97, %c0_98] : memref<3x3x3x128xf32, #tpu.memory_space<vmem>>, vector<1x1x1x128xf32>
    %118 = vector.shape_cast %117 : vector<1x1x1x128xf32> to vector<128xf32>
    %119 = vector.shape_cast %118 : vector<128xf32> to vector<1x1x128xf32>
    %120 = vector.broadcast %119 : vector<1x1x128xf32> to vector<8x16x128xf32>
    %121 = arith.mulf %109, %120 : vector<8x16x128xf32>
    %122 = arith.addf %116, %121 : vector<8x16x128xf32>
    %c15_i32_99 = arith.constant 15 : i32
    %123 = tpu.dynamic_rotate %109 by %c15_i32_99 dim 1 : vector<8x16x128xf32>, i32 -> vector<8x16x128xf32>
    %c0_100 = arith.constant 0 : index
    %c1_101 = arith.constant 1 : index
    %c2_102 = arith.constant 2 : index
    %c0_103 = arith.constant 0 : index
    %124 = vector.load %arg4[%c0_100, %c1_101, %c2_102, %c0_103] : memref<3x3x3x128xf32, #tpu.memory_space<vmem>>, vector<1x1x1x128xf32>
    %125 = vector.shape_cast %124 : vector<1x1x1x128xf32> to vector<128xf32>
    %126 = vector.shape_cast %125 : vector<128xf32> to vector<1x1x128xf32>
    %127 = vector.broadcast %126 : vector<1x1x128xf32> to vector<8x16x128xf32>
    %128 = arith.mulf %123, %127 : vector<8x16x128xf32>
    %129 = arith.addf %122, %128 : vector<8x16x128xf32>
    %c9 = arith.constant 9 : index
    %c0_104 = arith.constant 0 : index
    %c0_105 = arith.constant 0 : index
    %130 = vector.load %arg9[%c9, %c0_104, %c0_105] : memref<16x16x128xf32, #tpu.memory_space<vmem>>, vector<7x16x128xf32>
    %c0_106 = arith.constant 0 : index
    %c0_107 = arith.constant 0 : index
    %c0_108 = arith.constant 0 : index
    %131 = vector.load %arg9[%c0_106, %c0_107, %c0_108] : memref<16x16x128xf32, #tpu.memory_space<vmem>>, vector<1x16x128xf32>
    %132 = tpu.concatenate %130, %131 in 0 : vector<7x16x128xf32>, vector<1x16x128xf32> -> vector<8x16x128xf32>
    %c1_i32_109 = arith.constant 1 : i32
    %133 = tpu.dynamic_rotate %132 by %c1_i32_109 dim 1 : vector<8x16x128xf32>, i32 -> vector<8x16x128xf32>
    %c0_110 = arith.constant 0 : index
    %c2_111 = arith.constant 2 : index
    %c0_112 = arith.constant 0 : index
    %c0_113 = arith.constant 0 : index
    %134 = vector.load %arg4[%c0_110, %c2_111, %c0_112, %c0_113] : memref<3x3x3x128xf32, #tpu.memory_space<vmem>>, vector<1x1x1x128xf32>
    %135 = vector.shape_cast %134 : vector<1x1x1x128xf32> to vector<128xf32>
    %136 = vector.shape_cast %135 : vector<128xf32> to vector<1x1x128xf32>
    %137 = vector.broadcast %136 : vector<1x1x128xf32> to vector<8x16x128xf32>
    %138 = arith.mulf %133, %137 : vector<8x16x128xf32>
    %139 = arith.addf %129, %138 : vector<8x16x128xf32>
    %c0_114 = arith.constant 0 : index
    %c2_115 = arith.constant 2 : index
    %c1_116 = arith.constant 1 : index
    %c0_117 = arith.constant 0 : index
    %140 = vector.load %arg4[%c0_114, %c2_115, %c1_116, %c0_117] : memref<3x3x3x128xf32, #tpu.memory_space<vmem>>, vector<1x1x1x128xf32>
    %141 = vector.shape_cast %140 : vector<1x1x1x128xf32> to vector<128xf32>
    %142 = vector.shape_cast %141 : vector<128xf32> to vector<1x1x128xf32>
    %143 = vector.broadcast %142 : vector<1x1x128xf32> to vector<8x16x128xf32>
    %144 = arith.mulf %132, %143 : vector<8x16x128xf32>
    %145 = arith.addf %139, %144 : vector<8x16x128xf32>
    %c15_i32_118 = arith.constant 15 : i32
    %146 = tpu.dynamic_rotate %132 by %c15_i32_118 dim 1 : vector<8x16x128xf32>, i32 -> vector<8x16x128xf32>
    %c0_119 = arith.constant 0 : index
    %c2_120 = arith.constant 2 : index
    %c2_121 = arith.constant 2 : index
    %c0_122 = arith.constant 0 : index
    %147 = vector.load %arg4[%c0_119, %c2_120, %c2_121, %c0_122] : memref<3x3x3x128xf32, #tpu.memory_space<vmem>>, vector<1x1x1x128xf32>
    %148 = vector.shape_cast %147 : vector<1x1x1x128xf32> to vector<128xf32>
    %149 = vector.shape_cast %148 : vector<128xf32> to vector<1x1x128xf32>
    %150 = vector.broadcast %149 : vector<1x1x128xf32> to vector<8x16x128xf32>
    %151 = arith.mulf %146, %150 : vector<8x16x128xf32>
    %152 = arith.addf %145, %151 : vector<8x16x128xf32>
    %153 = vector.shape_cast %152 : vector<8x16x128xf32> to vector<128x128xf32>
    %c0_123 = arith.constant 0 : index
    %c0_124 = arith.constant 0 : index
    %c0_125 = arith.constant 0 : index
    %154 = vector.load %arg5[%c0_123, %c0_124, %c0_125] : memref<3x128x128xf32, #tpu.memory_space<vmem>>, vector<1x128x128xf32>
    %155 = vector.shape_cast %154 : vector<1x128x128xf32> to vector<128x128xf32>
    %cst_126 = arith.constant dense<0.000000e+00> : vector<128x128xf32>
    %156 = tpu.matmul %153, %155, %cst_126 {dimension_numbers = #tpu.dot_dimension_numbers<[1], [0], [0], [1], [0, 0, 1, 1], [], []>} : vector<128x128xf32>, vector<128x128xf32>, vector<128x128xf32> -> vector<128x128xf32>
    %cst_127 = arith.constant 0.000000e+00 : f32
    %157 = vector.broadcast %cst_127 : f32 to vector<128x128xf32>
    %158 = arith.maximumf %156, %157 : vector<128x128xf32>
    %159 = vector.shape_cast %158 : vector<128x128xf32> to vector<8x16x128xf32>
    %c8_128 = arith.constant 8 : index
    %c0_129 = arith.constant 0 : index
    %c0_130 = arith.constant 0 : index
    %160 = vector.load %arg9[%c8_128, %c0_129, %c0_130] : memref<16x16x128xf32, #tpu.memory_space<vmem>>, vector<8x16x128xf32>
    %161 = arith.addf %159, %160 : vector<8x16x128xf32>
    %c8_131 = arith.constant 8 : index
    %c0_132 = arith.constant 0 : index
    %c0_133 = arith.constant 0 : index
    %162 = vector.load %arg10[%c8_131, %c0_132, %c0_133] : memref<16x16x128xf32, #tpu.memory_space<vmem>>, vector<8x16x128xf32>
    tpu.vector_store %arg10[%c8_131, %c0_132, %c0_133], %161 {strides = array<i32>} : memref<16x16x128xf32, #tpu.memory_space<vmem>>, vector<8x16x128xf32>,
    %cst_134 = arith.constant 0.000000e+00 : f32
    %163 = vector.broadcast %cst_134 : f32 to vector<8x16x128xf32>
    %c15_135 = arith.constant 15 : index
    %c0_136 = arith.constant 0 : index
    %c0_137 = arith.constant 0 : index
    %164 = vector.load %arg10[%c15_135, %c0_136, %c0_137] : memref<16x16x128xf32, #tpu.memory_space<vmem>>, vector<1x16x128xf32>
    %c0_138 = arith.constant 0 : index
    %c0_139 = arith.constant 0 : index
    %c0_140 = arith.constant 0 : index
    %165 = vector.load %arg10[%c0_138, %c0_139, %c0_140] : memref<16x16x128xf32, #tpu.memory_space<vmem>>, vector<7x16x128xf32>
    %166 = tpu.concatenate %164, %165 in 0 : vector<1x16x128xf32>, vector<7x16x128xf32> -> vector<8x16x128xf32>
    %c1_i32_141 = arith.constant 1 : i32
    %167 = tpu.dynamic_rotate %166 by %c1_i32_141 dim 1 : vector<8x16x128xf32>, i32 -> vector<8x16x128xf32>
    %c1_142 = arith.constant 1 : index
    %c0_143 = arith.constant 0 : index
    %c0_144 = arith.constant 0 : index
    %c0_145 = arith.constant 0 : index
    %168 = vector.load %arg4[%c1_142, %c0_143, %c0_144, %c0_145] : memref<3x3x3x128xf32, #tpu.memory_space<vmem>>, vector<1x1x1x128xf32>
    %169 = vector.shape_cast %168 : vector<1x1x1x128xf32> to vector<128xf32>
    %170 = vector.shape_cast %169 : vector<128xf32> to vector<1x1x128xf32>
    %171 = vector.broadcast %170 : vector<1x1x128xf32> to vector<8x16x128xf32>
    %172 = arith.mulf %167, %171 : vector<8x16x128xf32>
    %173 = arith.addf %163, %172 : vector<8x16x128xf32>
    %c1_146 = arith.constant 1 : index
    %c0_147 = arith.constant 0 : index
    %c1_148 = arith.constant 1 : index
    %c0_149 = arith.constant 0 : index
    %174 = vector.load %arg4[%c1_146, %c0_147, %c1_148, %c0_149] : memref<3x3x3x128xf32, #tpu.memory_space<vmem>>, vector<1x1x1x128xf32>
    %175 = vector.shape_cast %174 : vector<1x1x1x128xf32> to vector<128xf32>
    %176 = vector.shape_cast %175 : vector<128xf32> to vector<1x1x128xf32>
    %177 = vector.broadcast %176 : vector<1x1x128xf32> to vector<8x16x128xf32>
    %178 = arith.mulf %166, %177 : vector<8x16x128xf32>
    %179 = arith.addf %173, %178 : vector<8x16x128xf32>
    %c15_i32_150 = arith.constant 15 : i32
    %180 = tpu.dynamic_rotate %166 by %c15_i32_150 dim 1 : vector<8x16x128xf32>, i32 -> vector<8x16x128xf32>
    %c1_151 = arith.constant 1 : index
    %c0_152 = arith.constant 0 : index
    %c2_153 = arith.constant 2 : index
    %c0_154 = arith.constant 0 : index
    %181 = vector.load %arg4[%c1_151, %c0_152, %c2_153, %c0_154] : memref<3x3x3x128xf32, #tpu.memory_space<vmem>>, vector<1x1x1x128xf32>
    %182 = vector.shape_cast %181 : vector<1x1x1x128xf32> to vector<128xf32>
    %183 = vector.shape_cast %182 : vector<128xf32> to vector<1x1x128xf32>
    %184 = vector.broadcast %183 : vector<1x1x128xf32> to vector<8x16x128xf32>
    %185 = arith.mulf %180, %184 : vector<8x16x128xf32>
    %186 = arith.addf %179, %185 : vector<8x16x128xf32>
    %c0_155 = arith.constant 0 : index
    %c0_156 = arith.constant 0 : index
    %c0_157 = arith.constant 0 : index
    %187 = vector.load %arg10[%c0_155, %c0_156, %c0_157] : memref<16x16x128xf32, #tpu.memory_space<vmem>>, vector<8x16x128xf32>
    %c1_i32_158 = arith.constant 1 : i32
    %188 = tpu.dynamic_rotate %187 by %c1_i32_158 dim 1 : vector<8x16x128xf32>, i32 -> vector<8x16x128xf32>
    %c1_159 = arith.constant 1 : index
    %c1_160 = arith.constant 1 : index
    %c0_161 = arith.constant 0 : index
    %c0_162 = arith.constant 0 : index
    %189 = vector.load %arg4[%c1_159, %c1_160, %c0_161, %c0_162] : memref<3x3x3x128xf32, #tpu.memory_space<vmem>>, vector<1x1x1x128xf32>
    %190 = vector.shape_cast %189 : vector<1x1x1x128xf32> to vector<128xf32>
    %191 = vector.shape_cast %190 : vector<128xf32> to vector<1x1x128xf32>
    %192 = vector.broadcast %191 : vector<1x1x128xf32> to vector<8x16x128xf32>
    %193 = arith.mulf %188, %192 : vector<8x16x128xf32>
    %194 = arith.addf %186, %193 : vector<8x16x128xf32>
    %c1_163 = arith.constant 1 : index
    %c1_164 = arith.constant 1 : index
    %c1_165 = arith.constant 1 : index
    %c0_166 = arith.constant 0 : index
    %195 = vector.load %arg4[%c1_163, %c1_164, %c1_165, %c0_166] : memref<3x3x3x128xf32, #tpu.memory_space<vmem>>, vector<1x1x1x128xf32>
    %196 = vector.shape_cast %195 : vector<1x1x1x128xf32> to vector<128xf32>
    %197 = vector.shape_cast %196 : vector<128xf32> to vector<1x1x128xf32>
    %198 = vector.broadcast %197 : vector<1x1x128xf32> to vector<8x16x128xf32>
    %199 = arith.mulf %187, %198 : vector<8x16x128xf32>
    %200 = arith.addf %194, %199 : vector<8x16x128xf32>
    %c15_i32_167 = arith.constant 15 : i32
    %201 = tpu.dynamic_rotate %187 by %c15_i32_167 dim 1 : vector<8x16x128xf32>, i32 -> vector<8x16x128xf32>
    %c1_168 = arith.constant 1 : index
    %c1_169 = arith.constant 1 : index
    %c2_170 = arith.constant 2 : index
    %c0_171 = arith.constant 0 : index
    %202 = vector.load %arg4[%c1_168, %c1_169, %c2_170, %c0_171] : memref<3x3x3x128xf32, #tpu.memory_space<vmem>>, vector<1x1x1x128xf32>
    %203 = vector.shape_cast %202 : vector<1x1x1x128xf32> to vector<128xf32>
    %204 = vector.shape_cast %203 : vector<128xf32> to vector<1x1x128xf32>
    %205 = vector.broadcast %204 : vector<1x1x128xf32> to vector<8x16x128xf32>
    %206 = arith.mulf %201, %205 : vector<8x16x128xf32>
    %207 = arith.addf %200, %206 : vector<8x16x128xf32>
    %c1_172 = arith.constant 1 : index
    %c0_173 = arith.constant 0 : index
    %c0_174 = arith.constant 0 : index
    %208 = vector.load %arg10[%c1_172, %c0_173, %c0_174] : memref<16x16x128xf32, #tpu.memory_space<vmem>>, vector<8x16x128xf32>
    %c1_i32_175 = arith.constant 1 : i32
    %209 = tpu.dynamic_rotate %208 by %c1_i32_175 dim 1 : vector<8x16x128xf32>, i32 -> vector<8x16x128xf32>
    %c1_176 = arith.constant 1 : index
    %c2_177 = arith.constant 2 : index
    %c0_178 = arith.constant 0 : index
    %c0_179 = arith.constant 0 : index
    %210 = vector.load %arg4[%c1_176, %c2_177, %c0_178, %c0_179] : memref<3x3x3x128xf32, #tpu.memory_space<vmem>>, vector<1x1x1x128xf32>
    %211 = vector.shape_cast %210 : vector<1x1x1x128xf32> to vector<128xf32>
    %212 = vector.shape_cast %211 : vector<128xf32> to vector<1x1x128xf32>
    %213 = vector.broadcast %212 : vector<1x1x128xf32> to vector<8x16x128xf32>
    %214 = arith.mulf %209, %213 : vector<8x16x128xf32>
    %215 = arith.addf %207, %214 : vector<8x16x128xf32>
    %c1_180 = arith.constant 1 : index
    %c2_181 = arith.constant 2 : index
    %c1_182 = arith.constant 1 : index
    %c0_183 = arith.constant 0 : index
    %216 = vector.load %arg4[%c1_180, %c2_181, %c1_182, %c0_183] : memref<3x3x3x128xf32, #tpu.memory_space<vmem>>, vector<1x1x1x128xf32>
    %217 = vector.shape_cast %216 : vector<1x1x1x128xf32> to vector<128xf32>
    %218 = vector.shape_cast %217 : vector<128xf32> to vector<1x1x128xf32>
    %219 = vector.broadcast %218 : vector<1x1x128xf32> to vector<8x16x128xf32>
    %220 = arith.mulf %208, %219 : vector<8x16x128xf32>
    %221 = arith.addf %215, %220 : vector<8x16x128xf32>
    %c15_i32_184 = arith.constant 15 : i32
    %222 = tpu.dynamic_rotate %208 by %c15_i32_184 dim 1 : vector<8x16x128xf32>, i32 -> vector<8x16x128xf32>
    %c1_185 = arith.constant 1 : index
    %c2_186 = arith.constant 2 : index
    %c2_187 = arith.constant 2 : index
    %c0_188 = arith.constant 0 : index
    %223 = vector.load %arg4[%c1_185, %c2_186, %c2_187, %c0_188] : memref<3x3x3x128xf32, #tpu.memory_space<vmem>>, vector<1x1x1x128xf32>
    %224 = vector.shape_cast %223 : vector<1x1x1x128xf32> to vector<128xf32>
    %225 = vector.shape_cast %224 : vector<128xf32> to vector<1x1x128xf32>
    %226 = vector.broadcast %225 : vector<1x1x128xf32> to vector<8x16x128xf32>
    %227 = arith.mulf %222, %226 : vector<8x16x128xf32>
    %228 = arith.addf %221, %227 : vector<8x16x128xf32>
    %229 = vector.shape_cast %228 : vector<8x16x128xf32> to vector<128x128xf32>
    %c1_189 = arith.constant 1 : index
    %c0_190 = arith.constant 0 : index
    %c0_191 = arith.constant 0 : index
    %230 = vector.load %arg5[%c1_189, %c0_190, %c0_191] : memref<3x128x128xf32, #tpu.memory_space<vmem>>, vector<1x128x128xf32>
    %231 = vector.shape_cast %230 : vector<1x128x128xf32> to vector<128x128xf32>
    %cst_192 = arith.constant dense<0.000000e+00> : vector<128x128xf32>
    %232 = tpu.matmul %229, %231, %cst_192 {dimension_numbers = #tpu.dot_dimension_numbers<[1], [0], [0], [1], [0, 0, 1, 1], [], []>} : vector<128x128xf32>, vector<128x128xf32>, vector<128x128xf32> -> vector<128x128xf32>
    %cst_193 = arith.constant 0.000000e+00 : f32
    %233 = vector.broadcast %cst_193 : f32 to vector<128x128xf32>
    %234 = arith.maximumf %232, %233 : vector<128x128xf32>
    %235 = vector.shape_cast %234 : vector<128x128xf32> to vector<8x16x128xf32>
    %c0_194 = arith.constant 0 : index
    %c0_195 = arith.constant 0 : index
    %c0_196 = arith.constant 0 : index
    %236 = vector.load %arg10[%c0_194, %c0_195, %c0_196] : memref<16x16x128xf32, #tpu.memory_space<vmem>>, vector<8x16x128xf32>
    %237 = arith.addf %235, %236 : vector<8x16x128xf32>
    %c0_197 = arith.constant 0 : index
    %c0_198 = arith.constant 0 : index
    %c0_199 = arith.constant 0 : index
    %238 = vector.load %arg9[%c0_197, %c0_198, %c0_199] : memref<16x16x128xf32, #tpu.memory_space<vmem>>, vector<8x16x128xf32>
    tpu.vector_store %arg9[%c0_197, %c0_198, %c0_199], %237 {strides = array<i32>} : memref<16x16x128xf32, #tpu.memory_space<vmem>>, vector<8x16x128xf32>,
    %cst_200 = arith.constant 0.000000e+00 : f32
    %239 = vector.broadcast %cst_200 : f32 to vector<8x16x128xf32>
    %c7_201 = arith.constant 7 : index
    %c0_202 = arith.constant 0 : index
    %c0_203 = arith.constant 0 : index
    %240 = vector.load %arg10[%c7_201, %c0_202, %c0_203] : memref<16x16x128xf32, #tpu.memory_space<vmem>>, vector<8x16x128xf32>
    %c1_i32_204 = arith.constant 1 : i32
    %241 = tpu.dynamic_rotate %240 by %c1_i32_204 dim 1 : vector<8x16x128xf32>, i32 -> vector<8x16x128xf32>
    %c1_205 = arith.constant 1 : index
    %c0_206 = arith.constant 0 : index
    %c0_207 = arith.constant 0 : index
    %c0_208 = arith.constant 0 : index
    %242 = vector.load %arg4[%c1_205, %c0_206, %c0_207, %c0_208] : memref<3x3x3x128xf32, #tpu.memory_space<vmem>>, vector<1x1x1x128xf32>
    %243 = vector.shape_cast %242 : vector<1x1x1x128xf32> to vector<128xf32>
    %244 = vector.shape_cast %243 : vector<128xf32> to vector<1x1x128xf32>
    %245 = vector.broadcast %244 : vector<1x1x128xf32> to vector<8x16x128xf32>
    %246 = arith.mulf %241, %245 : vector<8x16x128xf32>
    %247 = arith.addf %239, %246 : vector<8x16x128xf32>
    %c1_209 = arith.constant 1 : index
    %c0_210 = arith.constant 0 : index
    %c1_211 = arith.constant 1 : index
    %c0_212 = arith.constant 0 : index
    %248 = vector.load %arg4[%c1_209, %c0_210, %c1_211, %c0_212] : memref<3x3x3x128xf32, #tpu.memory_space<vmem>>, vector<1x1x1x128xf32>
    %249 = vector.shape_cast %248 : vector<1x1x1x128xf32> to vector<128xf32>
    %250 = vector.shape_cast %249 : vector<128xf32> to vector<1x1x128xf32>
    %251 = vector.broadcast %250 : vector<1x1x128xf32> to vector<8x16x128xf32>
    %252 = arith.mulf %240, %251 : vector<8x16x128xf32>
    %253 = arith.addf %247, %252 : vector<8x16x128xf32>
    %c15_i32_213 = arith.constant 15 : i32
    %254 = tpu.dynamic_rotate %240 by %c15_i32_213 dim 1 : vector<8x16x128xf32>, i32 -> vector<8x16x128xf32>
    %c1_214 = arith.constant 1 : index
    %c0_215 = arith.constant 0 : index
    %c2_216 = arith.constant 2 : index
    %c0_217 = arith.constant 0 : index
    %255 = vector.load %arg4[%c1_214, %c0_215, %c2_216, %c0_217] : memref<3x3x3x128xf32, #tpu.memory_space<vmem>>, vector<1x1x1x128xf32>
    %256 = vector.shape_cast %255 : vector<1x1x1x128xf32> to vector<128xf32>
    %257 = vector.shape_cast %256 : vector<128xf32> to vector<1x1x128xf32>
    %258 = vector.broadcast %257 : vector<1x1x128xf32> to vector<8x16x128xf32>
    %259 = arith.mulf %254, %258 : vector<8x16x128xf32>
    %260 = arith.addf %253, %259 : vector<8x16x128xf32>
    %c8_218 = arith.constant 8 : index
    %c0_219 = arith.constant 0 : index
    %c0_220 = arith.constant 0 : index
    %261 = vector.load %arg10[%c8_218, %c0_219, %c0_220] : memref<16x16x128xf32, #tpu.memory_space<vmem>>, vector<8x16x128xf32>
    %c1_i32_221 = arith.constant 1 : i32
    %262 = tpu.dynamic_rotate %261 by %c1_i32_221 dim 1 : vector<8x16x128xf32>, i32 -> vector<8x16x128xf32>
    %c1_222 = arith.constant 1 : index
    %c1_223 = arith.constant 1 : index
    %c0_224 = arith.constant 0 : index
    %c0_225 = arith.constant 0 : index
    %263 = vector.load %arg4[%c1_222, %c1_223, %c0_224, %c0_225] : memref<3x3x3x128xf32, #tpu.memory_space<vmem>>, vector<1x1x1x128xf32>
    %264 = vector.shape_cast %263 : vector<1x1x1x128xf32> to vector<128xf32>
    %265 = vector.shape_cast %264 : vector<128xf32> to vector<1x1x128xf32>
    %266 = vector.broadcast %265 : vector<1x1x128xf32> to vector<8x16x128xf32>
    %267 = arith.mulf %262, %266 : vector<8x16x128xf32>
    %268 = arith.addf %260, %267 : vector<8x16x128xf32>
    %c1_226 = arith.constant 1 : index
    %c1_227 = arith.constant 1 : index
    %c1_228 = arith.constant 1 : index
    %c0_229 = arith.constant 0 : index
    %269 = vector.load %arg4[%c1_226, %c1_227, %c1_228, %c0_229] : memref<3x3x3x128xf32, #tpu.memory_space<vmem>>, vector<1x1x1x128xf32>
    %270 = vector.shape_cast %269 : vector<1x1x1x128xf32> to vector<128xf32>
    %271 = vector.shape_cast %270 : vector<128xf32> to vector<1x1x128xf32>
    %272 = vector.broadcast %271 : vector<1x1x128xf32> to vector<8x16x128xf32>
    %273 = arith.mulf %261, %272 : vector<8x16x128xf32>
    %274 = arith.addf %268, %273 : vector<8x16x128xf32>
    %c15_i32_230 = arith.constant 15 : i32
    %275 = tpu.dynamic_rotate %261 by %c15_i32_230 dim 1 : vector<8x16x128xf32>, i32 -> vector<8x16x128xf32>
    %c1_231 = arith.constant 1 : index
    %c1_232 = arith.constant 1 : index
    %c2_233 = arith.constant 2 : index
    %c0_234 = arith.constant 0 : index
    %276 = vector.load %arg4[%c1_231, %c1_232, %c2_233, %c0_234] : memref<3x3x3x128xf32, #tpu.memory_space<vmem>>, vector<1x1x1x128xf32>
    %277 = vector.shape_cast %276 : vector<1x1x1x128xf32> to vector<128xf32>
    %278 = vector.shape_cast %277 : vector<128xf32> to vector<1x1x128xf32>
    %279 = vector.broadcast %278 : vector<1x1x128xf32> to vector<8x16x128xf32>
    %280 = arith.mulf %275, %279 : vector<8x16x128xf32>
    %281 = arith.addf %274, %280 : vector<8x16x128xf32>
    %c9_235 = arith.constant 9 : index
    %c0_236 = arith.constant 0 : index
    %c0_237 = arith.constant 0 : index
    %282 = vector.load %arg10[%c9_235, %c0_236, %c0_237] : memref<16x16x128xf32, #tpu.memory_space<vmem>>, vector<7x16x128xf32>
    %c0_238 = arith.constant 0 : index
    %c0_239 = arith.constant 0 : index
    %c0_240 = arith.constant 0 : index
    %283 = vector.load %arg10[%c0_238, %c0_239, %c0_240] : memref<16x16x128xf32, #tpu.memory_space<vmem>>, vector<1x16x128xf32>
    %284 = tpu.concatenate %282, %283 in 0 : vector<7x16x128xf32>, vector<1x16x128xf32> -> vector<8x16x128xf32>
    %c1_i32_241 = arith.constant 1 : i32
    %285 = tpu.dynamic_rotate %284 by %c1_i32_241 dim 1 : vector<8x16x128xf32>, i32 -> vector<8x16x128xf32>
    %c1_242 = arith.constant 1 : index
    %c2_243 = arith.constant 2 : index
    %c0_244 = arith.constant 0 : index
    %c0_245 = arith.constant 0 : index
    %286 = vector.load %arg4[%c1_242, %c2_243, %c0_244, %c0_245] : memref<3x3x3x128xf32, #tpu.memory_space<vmem>>, vector<1x1x1x128xf32>
    %287 = vector.shape_cast %286 : vector<1x1x1x128xf32> to vector<128xf32>
    %288 = vector.shape_cast %287 : vector<128xf32> to vector<1x1x128xf32>
    %289 = vector.broadcast %288 : vector<1x1x128xf32> to vector<8x16x128xf32>
    %290 = arith.mulf %285, %289 : vector<8x16x128xf32>
    %291 = arith.addf %281, %290 : vector<8x16x128xf32>
    %c1_246 = arith.constant 1 : index
    %c2_247 = arith.constant 2 : index
    %c1_248 = arith.constant 1 : index
    %c0_249 = arith.constant 0 : index
    %292 = vector.load %arg4[%c1_246, %c2_247, %c1_248, %c0_249] : memref<3x3x3x128xf32, #tpu.memory_space<vmem>>, vector<1x1x1x128xf32>
    %293 = vector.shape_cast %292 : vector<1x1x1x128xf32> to vector<128xf32>
    %294 = vector.shape_cast %293 : vector<128xf32> to vector<1x1x128xf32>
    %295 = vector.broadcast %294 : vector<1x1x128xf32> to vector<8x16x128xf32>
    %296 = arith.mulf %284, %295 : vector<8x16x128xf32>
    %297 = arith.addf %291, %296 : vector<8x16x128xf32>
    %c15_i32_250 = arith.constant 15 : i32
    %298 = tpu.dynamic_rotate %284 by %c15_i32_250 dim 1 : vector<8x16x128xf32>, i32 -> vector<8x16x128xf32>
    %c1_251 = arith.constant 1 : index
    %c2_252 = arith.constant 2 : index
    %c2_253 = arith.constant 2 : index
    %c0_254 = arith.constant 0 : index
    %299 = vector.load %arg4[%c1_251, %c2_252, %c2_253, %c0_254] : memref<3x3x3x128xf32, #tpu.memory_space<vmem>>, vector<1x1x1x128xf32>
    %300 = vector.shape_cast %299 : vector<1x1x1x128xf32> to vector<128xf32>
    %301 = vector.shape_cast %300 : vector<128xf32> to vector<1x1x128xf32>
    %302 = vector.broadcast %301 : vector<1x1x128xf32> to vector<8x16x128xf32>
    %303 = arith.mulf %298, %302 : vector<8x16x128xf32>
    %304 = arith.addf %297, %303 : vector<8x16x128xf32>
    %305 = vector.shape_cast %304 : vector<8x16x128xf32> to vector<128x128xf32>
    %c1_255 = arith.constant 1 : index
    %c0_256 = arith.constant 0 : index
    %c0_257 = arith.constant 0 : index
    %306 = vector.load %arg5[%c1_255, %c0_256, %c0_257] : memref<3x128x128xf32, #tpu.memory_space<vmem>>, vector<1x128x128xf32>
    %307 = vector.shape_cast %306 : vector<1x128x128xf32> to vector<128x128xf32>
    %cst_258 = arith.constant dense<0.000000e+00> : vector<128x128xf32>
    %308 = tpu.matmul %305, %307, %cst_258 {dimension_numbers = #tpu.dot_dimension_numbers<[1], [0], [0], [1], [0, 0, 1, 1], [], []>} : vector<128x128xf32>, vector<128x128xf32>, vector<128x128xf32> -> vector<128x128xf32>
    %cst_259 = arith.constant 0.000000e+00 : f32
    %309 = vector.broadcast %cst_259 : f32 to vector<128x128xf32>
    %310 = arith.maximumf %308, %309 : vector<128x128xf32>
    %311 = vector.shape_cast %310 : vector<128x128xf32> to vector<8x16x128xf32>
    %c8_260 = arith.constant 8 : index
    %c0_261 = arith.constant 0 : index
    %c0_262 = arith.constant 0 : index
    %312 = vector.load %arg10[%c8_260, %c0_261, %c0_262] : memref<16x16x128xf32, #tpu.memory_space<vmem>>, vector<8x16x128xf32>
    %313 = arith.addf %311, %312 : vector<8x16x128xf32>
    %c8_263 = arith.constant 8 : index
    %c0_264 = arith.constant 0 : index
    %c0_265 = arith.constant 0 : index
    %314 = vector.load %arg9[%c8_263, %c0_264, %c0_265] : memref<16x16x128xf32, #tpu.memory_space<vmem>>, vector<8x16x128xf32>
    tpu.vector_store %arg9[%c8_263, %c0_264, %c0_265], %313 {strides = array<i32>} : memref<16x16x128xf32, #tpu.memory_space<vmem>>, vector<8x16x128xf32>,
    %cst_266 = arith.constant 0.000000e+00 : f32
    %315 = vector.broadcast %cst_266 : f32 to vector<8x16x128xf32>
    %c15_267 = arith.constant 15 : index
    %c0_268 = arith.constant 0 : index
    %c0_269 = arith.constant 0 : index
    %316 = vector.load %arg9[%c15_267, %c0_268, %c0_269] : memref<16x16x128xf32, #tpu.memory_space<vmem>>, vector<1x16x128xf32>
    %c0_270 = arith.constant 0 : index
    %c0_271 = arith.constant 0 : index
    %c0_272 = arith.constant 0 : index
    %317 = vector.load %arg9[%c0_270, %c0_271, %c0_272] : memref<16x16x128xf32, #tpu.memory_space<vmem>>, vector<7x16x128xf32>
    %318 = tpu.concatenate %316, %317 in 0 : vector<1x16x128xf32>, vector<7x16x128xf32> -> vector<8x16x128xf32>
    %c1_i32_273 = arith.constant 1 : i32
    %319 = tpu.dynamic_rotate %318 by %c1_i32_273 dim 1 : vector<8x16x128xf32>, i32 -> vector<8x16x128xf32>
    %c2_274 = arith.constant 2 : index
    %c0_275 = arith.constant 0 : index
    %c0_276 = arith.constant 0 : index
    %c0_277 = arith.constant 0 : index
    %320 = vector.load %arg4[%c2_274, %c0_275, %c0_276, %c0_277] : memref<3x3x3x128xf32, #tpu.memory_space<vmem>>, vector<1x1x1x128xf32>
    %321 = vector.shape_cast %320 : vector<1x1x1x128xf32> to vector<128xf32>
    %322 = vector.shape_cast %321 : vector<128xf32> to vector<1x1x128xf32>
    %323 = vector.broadcast %322 : vector<1x1x128xf32> to vector<8x16x128xf32>
    %324 = arith.mulf %319, %323 : vector<8x16x128xf32>
    %325 = arith.addf %315, %324 : vector<8x16x128xf32>
    %c2_278 = arith.constant 2 : index
    %c0_279 = arith.constant 0 : index
    %c1_280 = arith.constant 1 : index
    %c0_281 = arith.constant 0 : index
    %326 = vector.load %arg4[%c2_278, %c0_279, %c1_280, %c0_281] : memref<3x3x3x128xf32, #tpu.memory_space<vmem>>, vector<1x1x1x128xf32>
    %327 = vector.shape_cast %326 : vector<1x1x1x128xf32> to vector<128xf32>
    %328 = vector.shape_cast %327 : vector<128xf32> to vector<1x1x128xf32>
    %329 = vector.broadcast %328 : vector<1x1x128xf32> to vector<8x16x128xf32>
    %330 = arith.mulf %318, %329 : vector<8x16x128xf32>
    %331 = arith.addf %325, %330 : vector<8x16x128xf32>
    %c15_i32_282 = arith.constant 15 : i32
    %332 = tpu.dynamic_rotate %318 by %c15_i32_282 dim 1 : vector<8x16x128xf32>, i32 -> vector<8x16x128xf32>
    %c2_283 = arith.constant 2 : index
    %c0_284 = arith.constant 0 : index
    %c2_285 = arith.constant 2 : index
    %c0_286 = arith.constant 0 : index
    %333 = vector.load %arg4[%c2_283, %c0_284, %c2_285, %c0_286] : memref<3x3x3x128xf32, #tpu.memory_space<vmem>>, vector<1x1x1x128xf32>
    %334 = vector.shape_cast %333 : vector<1x1x1x128xf32> to vector<128xf32>
    %335 = vector.shape_cast %334 : vector<128xf32> to vector<1x1x128xf32>
    %336 = vector.broadcast %335 : vector<1x1x128xf32> to vector<8x16x128xf32>
    %337 = arith.mulf %332, %336 : vector<8x16x128xf32>
    %338 = arith.addf %331, %337 : vector<8x16x128xf32>
    %c0_287 = arith.constant 0 : index
    %c0_288 = arith.constant 0 : index
    %c0_289 = arith.constant 0 : index
    %339 = vector.load %arg9[%c0_287, %c0_288, %c0_289] : memref<16x16x128xf32, #tpu.memory_space<vmem>>, vector<8x16x128xf32>
    %c1_i32_290 = arith.constant 1 : i32
    %340 = tpu.dynamic_rotate %339 by %c1_i32_290 dim 1 : vector<8x16x128xf32>, i32 -> vector<8x16x128xf32>
    %c2_291 = arith.constant 2 : index
    %c1_292 = arith.constant 1 : index
    %c0_293 = arith.constant 0 : index
    %c0_294 = arith.constant 0 : index
    %341 = vector.load %arg4[%c2_291, %c1_292, %c0_293, %c0_294] : memref<3x3x3x128xf32, #tpu.memory_space<vmem>>, vector<1x1x1x128xf32>
    %342 = vector.shape_cast %341 : vector<1x1x1x128xf32> to vector<128xf32>
    %343 = vector.shape_cast %342 : vector<128xf32> to vector<1x1x128xf32>
    %344 = vector.broadcast %343 : vector<1x1x128xf32> to vector<8x16x128xf32>
    %345 = arith.mulf %340, %344 : vector<8x16x128xf32>
    %346 = arith.addf %338, %345 : vector<8x16x128xf32>
    %c2_295 = arith.constant 2 : index
    %c1_296 = arith.constant 1 : index
    %c1_297 = arith.constant 1 : index
    %c0_298 = arith.constant 0 : index
    %347 = vector.load %arg4[%c2_295, %c1_296, %c1_297, %c0_298] : memref<3x3x3x128xf32, #tpu.memory_space<vmem>>, vector<1x1x1x128xf32>
    %348 = vector.shape_cast %347 : vector<1x1x1x128xf32> to vector<128xf32>
    %349 = vector.shape_cast %348 : vector<128xf32> to vector<1x1x128xf32>
    %350 = vector.broadcast %349 : vector<1x1x128xf32> to vector<8x16x128xf32>
    %351 = arith.mulf %339, %350 : vector<8x16x128xf32>
    %352 = arith.addf %346, %351 : vector<8x16x128xf32>
    %c15_i32_299 = arith.constant 15 : i32
    %353 = tpu.dynamic_rotate %339 by %c15_i32_299 dim 1 : vector<8x16x128xf32>, i32 -> vector<8x16x128xf32>
    %c2_300 = arith.constant 2 : index
    %c1_301 = arith.constant 1 : index
    %c2_302 = arith.constant 2 : index
    %c0_303 = arith.constant 0 : index
    %354 = vector.load %arg4[%c2_300, %c1_301, %c2_302, %c0_303] : memref<3x3x3x128xf32, #tpu.memory_space<vmem>>, vector<1x1x1x128xf32>
    %355 = vector.shape_cast %354 : vector<1x1x1x128xf32> to vector<128xf32>
    %356 = vector.shape_cast %355 : vector<128xf32> to vector<1x1x128xf32>
    %357 = vector.broadcast %356 : vector<1x1x128xf32> to vector<8x16x128xf32>
    %358 = arith.mulf %353, %357 : vector<8x16x128xf32>
    %359 = arith.addf %352, %358 : vector<8x16x128xf32>
    %c1_304 = arith.constant 1 : index
    %c0_305 = arith.constant 0 : index
    %c0_306 = arith.constant 0 : index
    %360 = vector.load %arg9[%c1_304, %c0_305, %c0_306] : memref<16x16x128xf32, #tpu.memory_space<vmem>>, vector<8x16x128xf32>
    %c1_i32_307 = arith.constant 1 : i32
    %361 = tpu.dynamic_rotate %360 by %c1_i32_307 dim 1 : vector<8x16x128xf32>, i32 -> vector<8x16x128xf32>
    %c2_308 = arith.constant 2 : index
    %c2_309 = arith.constant 2 : index
    %c0_310 = arith.constant 0 : index
    %c0_311 = arith.constant 0 : index
    %362 = vector.load %arg4[%c2_308, %c2_309, %c0_310, %c0_311] : memref<3x3x3x128xf32, #tpu.memory_space<vmem>>, vector<1x1x1x128xf32>
    %363 = vector.shape_cast %362 : vector<1x1x1x128xf32> to vector<128xf32>
    %364 = vector.shape_cast %363 : vector<128xf32> to vector<1x1x128xf32>
    %365 = vector.broadcast %364 : vector<1x1x128xf32> to vector<8x16x128xf32>
    %366 = arith.mulf %361, %365 : vector<8x16x128xf32>
    %367 = arith.addf %359, %366 : vector<8x16x128xf32>
    %c2_312 = arith.constant 2 : index
    %c2_313 = arith.constant 2 : index
    %c1_314 = arith.constant 1 : index
    %c0_315 = arith.constant 0 : index
    %368 = vector.load %arg4[%c2_312, %c2_313, %c1_314, %c0_315] : memref<3x3x3x128xf32, #tpu.memory_space<vmem>>, vector<1x1x1x128xf32>
    %369 = vector.shape_cast %368 : vector<1x1x1x128xf32> to vector<128xf32>
    %370 = vector.shape_cast %369 : vector<128xf32> to vector<1x1x128xf32>
    %371 = vector.broadcast %370 : vector<1x1x128xf32> to vector<8x16x128xf32>
    %372 = arith.mulf %360, %371 : vector<8x16x128xf32>
    %373 = arith.addf %367, %372 : vector<8x16x128xf32>
    %c15_i32_316 = arith.constant 15 : i32
    %374 = tpu.dynamic_rotate %360 by %c15_i32_316 dim 1 : vector<8x16x128xf32>, i32 -> vector<8x16x128xf32>
    %c2_317 = arith.constant 2 : index
    %c2_318 = arith.constant 2 : index
    %c2_319 = arith.constant 2 : index
    %c0_320 = arith.constant 0 : index
    %375 = vector.load %arg4[%c2_317, %c2_318, %c2_319, %c0_320] : memref<3x3x3x128xf32, #tpu.memory_space<vmem>>, vector<1x1x1x128xf32>
    %376 = vector.shape_cast %375 : vector<1x1x1x128xf32> to vector<128xf32>
    %377 = vector.shape_cast %376 : vector<128xf32> to vector<1x1x128xf32>
    %378 = vector.broadcast %377 : vector<1x1x128xf32> to vector<8x16x128xf32>
    %379 = arith.mulf %374, %378 : vector<8x16x128xf32>
    %380 = arith.addf %373, %379 : vector<8x16x128xf32>
    %381 = vector.shape_cast %380 : vector<8x16x128xf32> to vector<128x128xf32>
    %c2_321 = arith.constant 2 : index
    %c0_322 = arith.constant 0 : index
    %c0_323 = arith.constant 0 : index
    %382 = vector.load %arg5[%c2_321, %c0_322, %c0_323] : memref<3x128x128xf32, #tpu.memory_space<vmem>>, vector<1x128x128xf32>
    %383 = vector.shape_cast %382 : vector<1x128x128xf32> to vector<128x128xf32>
    %cst_324 = arith.constant dense<0.000000e+00> : vector<128x128xf32>
    %384 = tpu.matmul %381, %383, %cst_324 {dimension_numbers = #tpu.dot_dimension_numbers<[1], [0], [0], [1], [0, 0, 1, 1], [], []>} : vector<128x128xf32>, vector<128x128xf32>, vector<128x128xf32> -> vector<128x128xf32>
    %cst_325 = arith.constant 0.000000e+00 : f32
    %385 = vector.broadcast %cst_325 : f32 to vector<128x128xf32>
    %386 = arith.maximumf %384, %385 : vector<128x128xf32>
    %387 = vector.shape_cast %386 : vector<128x128xf32> to vector<8x16x128xf32>
    %c0_326 = arith.constant 0 : index
    %c0_327 = arith.constant 0 : index
    %c0_328 = arith.constant 0 : index
    %388 = vector.load %arg9[%c0_326, %c0_327, %c0_328] : memref<16x16x128xf32, #tpu.memory_space<vmem>>, vector<8x16x128xf32>
    %389 = arith.addf %387, %388 : vector<8x16x128xf32>
    %c0_329 = arith.constant 0 : index
    %c0_330 = arith.constant 0 : index
    %c0_331 = arith.constant 0 : index
    %390 = vector.load %arg10[%c0_329, %c0_330, %c0_331] : memref<16x16x128xf32, #tpu.memory_space<vmem>>, vector<8x16x128xf32>
    tpu.vector_store %arg10[%c0_329, %c0_330, %c0_331], %389 {strides = array<i32>} : memref<16x16x128xf32, #tpu.memory_space<vmem>>, vector<8x16x128xf32>,
    %cst_332 = arith.constant 0.000000e+00 : f32
    %391 = vector.broadcast %cst_332 : f32 to vector<8x16x128xf32>
    %c7_333 = arith.constant 7 : index
    %c0_334 = arith.constant 0 : index
    %c0_335 = arith.constant 0 : index
    %392 = vector.load %arg9[%c7_333, %c0_334, %c0_335] : memref<16x16x128xf32, #tpu.memory_space<vmem>>, vector<8x16x128xf32>
    %c1_i32_336 = arith.constant 1 : i32
    %393 = tpu.dynamic_rotate %392 by %c1_i32_336 dim 1 : vector<8x16x128xf32>, i32 -> vector<8x16x128xf32>
    %c2_337 = arith.constant 2 : index
    %c0_338 = arith.constant 0 : index
    %c0_339 = arith.constant 0 : index
    %c0_340 = arith.constant 0 : index
    %394 = vector.load %arg4[%c2_337, %c0_338, %c0_339, %c0_340] : memref<3x3x3x128xf32, #tpu.memory_space<vmem>>, vector<1x1x1x128xf32>
    %395 = vector.shape_cast %394 : vector<1x1x1x128xf32> to vector<128xf32>
    %396 = vector.shape_cast %395 : vector<128xf32> to vector<1x1x128xf32>
    %397 = vector.broadcast %396 : vector<1x1x128xf32> to vector<8x16x128xf32>
    %398 = arith.mulf %393, %397 : vector<8x16x128xf32>
    %399 = arith.addf %391, %398 : vector<8x16x128xf32>
    %c2_341 = arith.constant 2 : index
    %c0_342 = arith.constant 0 : index
    %c1_343 = arith.constant 1 : index
    %c0_344 = arith.constant 0 : index
    %400 = vector.load %arg4[%c2_341, %c0_342, %c1_343, %c0_344] : memref<3x3x3x128xf32, #tpu.memory_space<vmem>>, vector<1x1x1x128xf32>
    %401 = vector.shape_cast %400 : vector<1x1x1x128xf32> to vector<128xf32>
    %402 = vector.shape_cast %401 : vector<128xf32> to vector<1x1x128xf32>
    %403 = vector.broadcast %402 : vector<1x1x128xf32> to vector<8x16x128xf32>
    %404 = arith.mulf %392, %403 : vector<8x16x128xf32>
    %405 = arith.addf %399, %404 : vector<8x16x128xf32>
    %c15_i32_345 = arith.constant 15 : i32
    %406 = tpu.dynamic_rotate %392 by %c15_i32_345 dim 1 : vector<8x16x128xf32>, i32 -> vector<8x16x128xf32>
    %c2_346 = arith.constant 2 : index
    %c0_347 = arith.constant 0 : index
    %c2_348 = arith.constant 2 : index
    %c0_349 = arith.constant 0 : index
    %407 = vector.load %arg4[%c2_346, %c0_347, %c2_348, %c0_349] : memref<3x3x3x128xf32, #tpu.memory_space<vmem>>, vector<1x1x1x128xf32>
    %408 = vector.shape_cast %407 : vector<1x1x1x128xf32> to vector<128xf32>
    %409 = vector.shape_cast %408 : vector<128xf32> to vector<1x1x128xf32>
    %410 = vector.broadcast %409 : vector<1x1x128xf32> to vector<8x16x128xf32>
    %411 = arith.mulf %406, %410 : vector<8x16x128xf32>
    %412 = arith.addf %405, %411 : vector<8x16x128xf32>
    %c8_350 = arith.constant 8 : index
    %c0_351 = arith.constant 0 : index
    %c0_352 = arith.constant 0 : index
    %413 = vector.load %arg9[%c8_350, %c0_351, %c0_352] : memref<16x16x128xf32, #tpu.memory_space<vmem>>, vector<8x16x128xf32>
    %c1_i32_353 = arith.constant 1 : i32
    %414 = tpu.dynamic_rotate %413 by %c1_i32_353 dim 1 : vector<8x16x128xf32>, i32 -> vector<8x16x128xf32>
    %c2_354 = arith.constant 2 : index
    %c1_355 = arith.constant 1 : index
    %c0_356 = arith.constant 0 : index
    %c0_357 = arith.constant 0 : index
    %415 = vector.load %arg4[%c2_354, %c1_355, %c0_356, %c0_357] : memref<3x3x3x128xf32, #tpu.memory_space<vmem>>, vector<1x1x1x128xf32>
    %416 = vector.shape_cast %415 : vector<1x1x1x128xf32> to vector<128xf32>
    %417 = vector.shape_cast %416 : vector<128xf32> to vector<1x1x128xf32>
    %418 = vector.broadcast %417 : vector<1x1x128xf32> to vector<8x16x128xf32>
    %419 = arith.mulf %414, %418 : vector<8x16x128xf32>
    %420 = arith.addf %412, %419 : vector<8x16x128xf32>
    %c2_358 = arith.constant 2 : index
    %c1_359 = arith.constant 1 : index
    %c1_360 = arith.constant 1 : index
    %c0_361 = arith.constant 0 : index
    %421 = vector.load %arg4[%c2_358, %c1_359, %c1_360, %c0_361] : memref<3x3x3x128xf32, #tpu.memory_space<vmem>>, vector<1x1x1x128xf32>
    %422 = vector.shape_cast %421 : vector<1x1x1x128xf32> to vector<128xf32>
    %423 = vector.shape_cast %422 : vector<128xf32> to vector<1x1x128xf32>
    %424 = vector.broadcast %423 : vector<1x1x128xf32> to vector<8x16x128xf32>
    %425 = arith.mulf %413, %424 : vector<8x16x128xf32>
    %426 = arith.addf %420, %425 : vector<8x16x128xf32>
    %c15_i32_362 = arith.constant 15 : i32
    %427 = tpu.dynamic_rotate %413 by %c15_i32_362 dim 1 : vector<8x16x128xf32>, i32 -> vector<8x16x128xf32>
    %c2_363 = arith.constant 2 : index
    %c1_364 = arith.constant 1 : index
    %c2_365 = arith.constant 2 : index
    %c0_366 = arith.constant 0 : index
    %428 = vector.load %arg4[%c2_363, %c1_364, %c2_365, %c0_366] : memref<3x3x3x128xf32, #tpu.memory_space<vmem>>, vector<1x1x1x128xf32>
    %429 = vector.shape_cast %428 : vector<1x1x1x128xf32> to vector<128xf32>
    %430 = vector.shape_cast %429 : vector<128xf32> to vector<1x1x128xf32>
    %431 = vector.broadcast %430 : vector<1x1x128xf32> to vector<8x16x128xf32>
    %432 = arith.mulf %427, %431 : vector<8x16x128xf32>
    %433 = arith.addf %426, %432 : vector<8x16x128xf32>
    %c9_367 = arith.constant 9 : index
    %c0_368 = arith.constant 0 : index
    %c0_369 = arith.constant 0 : index
    %434 = vector.load %arg9[%c9_367, %c0_368, %c0_369] : memref<16x16x128xf32, #tpu.memory_space<vmem>>, vector<7x16x128xf32>
    %c0_370 = arith.constant 0 : index
    %c0_371 = arith.constant 0 : index
    %c0_372 = arith.constant 0 : index
    %435 = vector.load %arg9[%c0_370, %c0_371, %c0_372] : memref<16x16x128xf32, #tpu.memory_space<vmem>>, vector<1x16x128xf32>
    %436 = tpu.concatenate %434, %435 in 0 : vector<7x16x128xf32>, vector<1x16x128xf32> -> vector<8x16x128xf32>
    %c1_i32_373 = arith.constant 1 : i32
    %437 = tpu.dynamic_rotate %436 by %c1_i32_373 dim 1 : vector<8x16x128xf32>, i32 -> vector<8x16x128xf32>
    %c2_374 = arith.constant 2 : index
    %c2_375 = arith.constant 2 : index
    %c0_376 = arith.constant 0 : index
    %c0_377 = arith.constant 0 : index
    %438 = vector.load %arg4[%c2_374, %c2_375, %c0_376, %c0_377] : memref<3x3x3x128xf32, #tpu.memory_space<vmem>>, vector<1x1x1x128xf32>
    %439 = vector.shape_cast %438 : vector<1x1x1x128xf32> to vector<128xf32>
    %440 = vector.shape_cast %439 : vector<128xf32> to vector<1x1x128xf32>
    %441 = vector.broadcast %440 : vector<1x1x128xf32> to vector<8x16x128xf32>
    %442 = arith.mulf %437, %441 : vector<8x16x128xf32>
    %443 = arith.addf %433, %442 : vector<8x16x128xf32>
    %c2_378 = arith.constant 2 : index
    %c2_379 = arith.constant 2 : index
    %c1_380 = arith.constant 1 : index
    %c0_381 = arith.constant 0 : index
    %444 = vector.load %arg4[%c2_378, %c2_379, %c1_380, %c0_381] : memref<3x3x3x128xf32, #tpu.memory_space<vmem>>, vector<1x1x1x128xf32>
    %445 = vector.shape_cast %444 : vector<1x1x1x128xf32> to vector<128xf32>
    %446 = vector.shape_cast %445 : vector<128xf32> to vector<1x1x128xf32>
    %447 = vector.broadcast %446 : vector<1x1x128xf32> to vector<8x16x128xf32>
    %448 = arith.mulf %436, %447 : vector<8x16x128xf32>
    %449 = arith.addf %443, %448 : vector<8x16x128xf32>
    %c15_i32_382 = arith.constant 15 : i32
    %450 = tpu.dynamic_rotate %436 by %c15_i32_382 dim 1 : vector<8x16x128xf32>, i32 -> vector<8x16x128xf32>
    %c2_383 = arith.constant 2 : index
    %c2_384 = arith.constant 2 : index
    %c2_385 = arith.constant 2 : index
    %c0_386 = arith.constant 0 : index
    %451 = vector.load %arg4[%c2_383, %c2_384, %c2_385, %c0_386] : memref<3x3x3x128xf32, #tpu.memory_space<vmem>>, vector<1x1x1x128xf32>
    %452 = vector.shape_cast %451 : vector<1x1x1x128xf32> to vector<128xf32>
    %453 = vector.shape_cast %452 : vector<128xf32> to vector<1x1x128xf32>
    %454 = vector.broadcast %453 : vector<1x1x128xf32> to vector<8x16x128xf32>
    %455 = arith.mulf %450, %454 : vector<8x16x128xf32>
    %456 = arith.addf %449, %455 : vector<8x16x128xf32>
    %457 = vector.shape_cast %456 : vector<8x16x128xf32> to vector<128x128xf32>
    %c2_387 = arith.constant 2 : index
    %c0_388 = arith.constant 0 : index
    %c0_389 = arith.constant 0 : index
    %458 = vector.load %arg5[%c2_387, %c0_388, %c0_389] : memref<3x128x128xf32, #tpu.memory_space<vmem>>, vector<1x128x128xf32>
    %459 = vector.shape_cast %458 : vector<1x128x128xf32> to vector<128x128xf32>
    %cst_390 = arith.constant dense<0.000000e+00> : vector<128x128xf32>
    %460 = tpu.matmul %457, %459, %cst_390 {dimension_numbers = #tpu.dot_dimension_numbers<[1], [0], [0], [1], [0, 0, 1, 1], [], []>} : vector<128x128xf32>, vector<128x128xf32>, vector<128x128xf32> -> vector<128x128xf32>
    %cst_391 = arith.constant 0.000000e+00 : f32
    %461 = vector.broadcast %cst_391 : f32 to vector<128x128xf32>
    %462 = arith.maximumf %460, %461 : vector<128x128xf32>
    %463 = vector.shape_cast %462 : vector<128x128xf32> to vector<8x16x128xf32>
    %c8_392 = arith.constant 8 : index
    %c0_393 = arith.constant 0 : index
    %c0_394 = arith.constant 0 : index
    %464 = vector.load %arg9[%c8_392, %c0_393, %c0_394] : memref<16x16x128xf32, #tpu.memory_space<vmem>>, vector<8x16x128xf32>
    %465 = arith.addf %463, %464 : vector<8x16x128xf32>
    %c8_395 = arith.constant 8 : index
    %c0_396 = arith.constant 0 : index
    %c0_397 = arith.constant 0 : index
    %466 = vector.load %arg10[%c8_395, %c0_396, %c0_397] : memref<16x16x128xf32, #tpu.memory_space<vmem>>, vector<8x16x128xf32>
    tpu.vector_store %arg10[%c8_395, %c0_396, %c0_397], %465 {strides = array<i32>} : memref<16x16x128xf32, #tpu.memory_space<vmem>>, vector<8x16x128xf32>,
    %cst_398 = arith.constant 0.000000e+00 : f32
    %467 = vector.broadcast %cst_398 : f32 to vector<8x1x128xf32>
    %cst_399 = arith.constant 0.000000e+00 : f32
    %468 = vector.broadcast %cst_399 : f32 to vector<4x128xf32>
    %cst_400 = arith.constant 0.000000e+00 : f32
    %469 = vector.broadcast %cst_400 : f32 to vector<1x16x128xf32>
    %c0_401 = arith.constant 0 : index
    %c0_402 = arith.constant 0 : index
    %c0_403 = arith.constant 0 : index
    %470 = vector.load %arg10[%c0_401, %c0_402, %c0_403] : memref<16x16x128xf32, #tpu.memory_space<vmem>>, vector<7x16x128xf32>
    %471 = tpu.concatenate %469, %470 in 0 : vector<1x16x128xf32>, vector<7x16x128xf32> -> vector<8x16x128xf32>
    %472 = vector.extract_strided_slice %471 {offsets = [0, 0, 0], sizes = [8, 15, 128], strides = [1, 1, 1]} : vector<8x16x128xf32> to vector<8x15x128xf32>
    %473 = tpu.concatenate %467, %472 in 1 : vector<8x1x128xf32>, vector<8x15x128xf32> -> vector<8x16x128xf32>
    %c0_404 = arith.constant 0 : index
    %c0_405 = arith.constant 0 : index
    %c0_406 = arith.constant 0 : index
    %c0_407 = arith.constant 0 : index
    %474 = vector.load %arg6[%c0_404, %c0_405, %c0_406, %c0_407] : memref<3x3x4x128xf32, #tpu.memory_space<vmem>>, vector<1x1x4x128xf32>
    %475 = vector.shape_cast %474 : vector<1x1x4x128xf32> to vector<4x128xf32>
    %476 = vector.shape_cast %473 : vector<8x16x128xf32> to vector<128x128xf32>
    %cst_408 = arith.constant dense<0.000000e+00> : vector<4x128xf32>
    %477 = tpu.matmul %475, %476, %cst_408 {dimension_numbers = #tpu.dot_dimension_numbers<[1], [1], [0], [0], [0, 0, 1, 0], [], []>} : vector<4x128xf32>, vector<128x128xf32>, vector<4x128xf32> -> vector<4x128xf32>
    %478 = arith.addf %468, %477 : vector<4x128xf32>
    %c0_409 = arith.constant 0 : index
    %c1_410 = arith.constant 1 : index
    %c0_411 = arith.constant 0 : index
    %c0_412 = arith.constant 0 : index
    %479 = vector.load %arg6[%c0_409, %c1_410, %c0_411, %c0_412] : memref<3x3x4x128xf32, #tpu.memory_space<vmem>>, vector<1x1x4x128xf32>
    %480 = vector.shape_cast %479 : vector<1x1x4x128xf32> to vector<4x128xf32>
    %481 = vector.shape_cast %471 : vector<8x16x128xf32> to vector<128x128xf32>
    %cst_413 = arith.constant dense<0.000000e+00> : vector<4x128xf32>
    %482 = tpu.matmul %480, %481, %cst_413 {dimension_numbers = #tpu.dot_dimension_numbers<[1], [1], [0], [0], [0, 0, 1, 0], [], []>} : vector<4x128xf32>, vector<128x128xf32>, vector<4x128xf32> -> vector<4x128xf32>
    %483 = arith.addf %478, %482 : vector<4x128xf32>
    %484 = vector.extract_strided_slice %471 {offsets = [0, 1, 0], sizes = [8, 15, 128], strides = [1, 1, 1]} : vector<8x16x128xf32> to vector<8x15x128xf32>
    %485 = tpu.concatenate %484, %467 in 1 : vector<8x15x128xf32>, vector<8x1x128xf32> -> vector<8x16x128xf32>
    %c0_414 = arith.constant 0 : index
    %c2_415 = arith.constant 2 : index
    %c0_416 = arith.constant 0 : index
    %c0_417 = arith.constant 0 : index
    %486 = vector.load %arg6[%c0_414, %c2_415, %c0_416, %c0_417] : memref<3x3x4x128xf32, #tpu.memory_space<vmem>>, vector<1x1x4x128xf32>
    %487 = vector.shape_cast %486 : vector<1x1x4x128xf32> to vector<4x128xf32>
    %488 = vector.shape_cast %485 : vector<8x16x128xf32> to vector<128x128xf32>
    %cst_418 = arith.constant dense<0.000000e+00> : vector<4x128xf32>
    %489 = tpu.matmul %487, %488, %cst_418 {dimension_numbers = #tpu.dot_dimension_numbers<[1], [1], [0], [0], [0, 0, 1, 0], [], []>} : vector<4x128xf32>, vector<128x128xf32>, vector<4x128xf32> -> vector<4x128xf32>
    %490 = arith.addf %483, %489 : vector<4x128xf32>
    %c0_419 = arith.constant 0 : index
    %c0_420 = arith.constant 0 : index
    %c0_421 = arith.constant 0 : index
    %491 = vector.load %arg10[%c0_419, %c0_420, %c0_421] : memref<16x16x128xf32, #tpu.memory_space<vmem>>, vector<8x16x128xf32>
    %492 = vector.extract_strided_slice %491 {offsets = [0, 0, 0], sizes = [8, 15, 128], strides = [1, 1, 1]} : vector<8x16x128xf32> to vector<8x15x128xf32>
    %493 = tpu.concatenate %467, %492 in 1 : vector<8x1x128xf32>, vector<8x15x128xf32> -> vector<8x16x128xf32>
    %c1_422 = arith.constant 1 : index
    %c0_423 = arith.constant 0 : index
    %c0_424 = arith.constant 0 : index
    %c0_425 = arith.constant 0 : index
    %494 = vector.load %arg6[%c1_422, %c0_423, %c0_424, %c0_425] : memref<3x3x4x128xf32, #tpu.memory_space<vmem>>, vector<1x1x4x128xf32>
    %495 = vector.shape_cast %494 : vector<1x1x4x128xf32> to vector<4x128xf32>
    %496 = vector.shape_cast %493 : vector<8x16x128xf32> to vector<128x128xf32>
    %cst_426 = arith.constant dense<0.000000e+00> : vector<4x128xf32>
    %497 = tpu.matmul %495, %496, %cst_426 {dimension_numbers = #tpu.dot_dimension_numbers<[1], [1], [0], [0], [0, 0, 1, 0], [], []>} : vector<4x128xf32>, vector<128x128xf32>, vector<4x128xf32> -> vector<4x128xf32>
    %498 = arith.addf %490, %497 : vector<4x128xf32>
    %c1_427 = arith.constant 1 : index
    %c1_428 = arith.constant 1 : index
    %c0_429 = arith.constant 0 : index
    %c0_430 = arith.constant 0 : index
    %499 = vector.load %arg6[%c1_427, %c1_428, %c0_429, %c0_430] : memref<3x3x4x128xf32, #tpu.memory_space<vmem>>, vector<1x1x4x128xf32>
    %500 = vector.shape_cast %499 : vector<1x1x4x128xf32> to vector<4x128xf32>
    %501 = vector.shape_cast %491 : vector<8x16x128xf32> to vector<128x128xf32>
    %cst_431 = arith.constant dense<0.000000e+00> : vector<4x128xf32>
    %502 = tpu.matmul %500, %501, %cst_431 {dimension_numbers = #tpu.dot_dimension_numbers<[1], [1], [0], [0], [0, 0, 1, 0], [], []>} : vector<4x128xf32>, vector<128x128xf32>, vector<4x128xf32> -> vector<4x128xf32>
    %503 = arith.addf %498, %502 : vector<4x128xf32>
    %504 = vector.extract_strided_slice %491 {offsets = [0, 1, 0], sizes = [8, 15, 128], strides = [1, 1, 1]} : vector<8x16x128xf32> to vector<8x15x128xf32>
    %505 = tpu.concatenate %504, %467 in 1 : vector<8x15x128xf32>, vector<8x1x128xf32> -> vector<8x16x128xf32>
    %c1_432 = arith.constant 1 : index
    %c2_433 = arith.constant 2 : index
    %c0_434 = arith.constant 0 : index
    %c0_435 = arith.constant 0 : index
    %506 = vector.load %arg6[%c1_432, %c2_433, %c0_434, %c0_435] : memref<3x3x4x128xf32, #tpu.memory_space<vmem>>, vector<1x1x4x128xf32>
    %507 = vector.shape_cast %506 : vector<1x1x4x128xf32> to vector<4x128xf32>
    %508 = vector.shape_cast %505 : vector<8x16x128xf32> to vector<128x128xf32>
    %cst_436 = arith.constant dense<0.000000e+00> : vector<4x128xf32>
    %509 = tpu.matmul %507, %508, %cst_436 {dimension_numbers = #tpu.dot_dimension_numbers<[1], [1], [0], [0], [0, 0, 1, 0], [], []>} : vector<4x128xf32>, vector<128x128xf32>, vector<4x128xf32> -> vector<4x128xf32>
    %510 = arith.addf %503, %509 : vector<4x128xf32>
    %c1_437 = arith.constant 1 : index
    %c0_438 = arith.constant 0 : index
    %c0_439 = arith.constant 0 : index
    %511 = vector.load %arg10[%c1_437, %c0_438, %c0_439] : memref<16x16x128xf32, #tpu.memory_space<vmem>>, vector<8x16x128xf32>
    %512 = vector.extract_strided_slice %511 {offsets = [0, 0, 0], sizes = [8, 15, 128], strides = [1, 1, 1]} : vector<8x16x128xf32> to vector<8x15x128xf32>
    %513 = tpu.concatenate %467, %512 in 1 : vector<8x1x128xf32>, vector<8x15x128xf32> -> vector<8x16x128xf32>
    %c2_440 = arith.constant 2 : index
    %c0_441 = arith.constant 0 : index
    %c0_442 = arith.constant 0 : index
    %c0_443 = arith.constant 0 : index
    %514 = vector.load %arg6[%c2_440, %c0_441, %c0_442, %c0_443] : memref<3x3x4x128xf32, #tpu.memory_space<vmem>>, vector<1x1x4x128xf32>
    %515 = vector.shape_cast %514 : vector<1x1x4x128xf32> to vector<4x128xf32>
    %516 = vector.shape_cast %513 : vector<8x16x128xf32> to vector<128x128xf32>
    %cst_444 = arith.constant dense<0.000000e+00> : vector<4x128xf32>
    %517 = tpu.matmul %515, %516, %cst_444 {dimension_numbers = #tpu.dot_dimension_numbers<[1], [1], [0], [0], [0, 0, 1, 0], [], []>} : vector<4x128xf32>, vector<128x128xf32>, vector<4x128xf32> -> vector<4x128xf32>
    %518 = arith.addf %510, %517 : vector<4x128xf32>
    %c2_445 = arith.constant 2 : index
    %c1_446 = arith.constant 1 : index
    %c0_447 = arith.constant 0 : index
    %c0_448 = arith.constant 0 : index
    %519 = vector.load %arg6[%c2_445, %c1_446, %c0_447, %c0_448] : memref<3x3x4x128xf32, #tpu.memory_space<vmem>>, vector<1x1x4x128xf32>
    %520 = vector.shape_cast %519 : vector<1x1x4x128xf32> to vector<4x128xf32>
    %521 = vector.shape_cast %511 : vector<8x16x128xf32> to vector<128x128xf32>
    %cst_449 = arith.constant dense<0.000000e+00> : vector<4x128xf32>
    %522 = tpu.matmul %520, %521, %cst_449 {dimension_numbers = #tpu.dot_dimension_numbers<[1], [1], [0], [0], [0, 0, 1, 0], [], []>} : vector<4x128xf32>, vector<128x128xf32>, vector<4x128xf32> -> vector<4x128xf32>
    %523 = arith.addf %518, %522 : vector<4x128xf32>
    %524 = vector.extract_strided_slice %511 {offsets = [0, 1, 0], sizes = [8, 15, 128], strides = [1, 1, 1]} : vector<8x16x128xf32> to vector<8x15x128xf32>
    %525 = tpu.concatenate %524, %467 in 1 : vector<8x15x128xf32>, vector<8x1x128xf32> -> vector<8x16x128xf32>
    %c2_450 = arith.constant 2 : index
    %c2_451 = arith.constant 2 : index
    %c0_452 = arith.constant 0 : index
    %c0_453 = arith.constant 0 : index
    %526 = vector.load %arg6[%c2_450, %c2_451, %c0_452, %c0_453] : memref<3x3x4x128xf32, #tpu.memory_space<vmem>>, vector<1x1x4x128xf32>
    %527 = vector.shape_cast %526 : vector<1x1x4x128xf32> to vector<4x128xf32>
    %528 = vector.shape_cast %525 : vector<8x16x128xf32> to vector<128x128xf32>
    %cst_454 = arith.constant dense<0.000000e+00> : vector<4x128xf32>
    %529 = tpu.matmul %527, %528, %cst_454 {dimension_numbers = #tpu.dot_dimension_numbers<[1], [1], [0], [0], [0, 0, 1, 0], [], []>} : vector<4x128xf32>, vector<128x128xf32>, vector<4x128xf32> -> vector<4x128xf32>
    %530 = arith.addf %523, %529 : vector<4x128xf32>
    %cst_455 = arith.constant 0.000000e+00 : f32
    %531 = vector.broadcast %cst_455 : f32 to vector<4x128xf32>
    %c7_456 = arith.constant 7 : index
    %c0_457 = arith.constant 0 : index
    %c0_458 = arith.constant 0 : index
    %532 = vector.load %arg10[%c7_456, %c0_457, %c0_458] : memref<16x16x128xf32, #tpu.memory_space<vmem>>, vector<8x16x128xf32>
    %533 = vector.extract_strided_slice %532 {offsets = [0, 0, 0], sizes = [8, 15, 128], strides = [1, 1, 1]} : vector<8x16x128xf32> to vector<8x15x128xf32>
    %534 = tpu.concatenate %467, %533 in 1 : vector<8x1x128xf32>, vector<8x15x128xf32> -> vector<8x16x128xf32>
    %c0_459 = arith.constant 0 : index
    %c0_460 = arith.constant 0 : index
    %c0_461 = arith.constant 0 : index
    %c0_462 = arith.constant 0 : index
    %535 = vector.load %arg6[%c0_459, %c0_460, %c0_461, %c0_462] : memref<3x3x4x128xf32, #tpu.memory_space<vmem>>, vector<1x1x4x128xf32>
    %536 = vector.shape_cast %535 : vector<1x1x4x128xf32> to vector<4x128xf32>
    %537 = vector.shape_cast %534 : vector<8x16x128xf32> to vector<128x128xf32>
    %cst_463 = arith.constant dense<0.000000e+00> : vector<4x128xf32>
    %538 = tpu.matmul %536, %537, %cst_463 {dimension_numbers = #tpu.dot_dimension_numbers<[1], [1], [0], [0], [0, 0, 1, 0], [], []>} : vector<4x128xf32>, vector<128x128xf32>, vector<4x128xf32> -> vector<4x128xf32>
    %539 = arith.addf %531, %538 : vector<4x128xf32>
    %c0_464 = arith.constant 0 : index
    %c1_465 = arith.constant 1 : index
    %c0_466 = arith.constant 0 : index
    %c0_467 = arith.constant 0 : index
    %540 = vector.load %arg6[%c0_464, %c1_465, %c0_466, %c0_467] : memref<3x3x4x128xf32, #tpu.memory_space<vmem>>, vector<1x1x4x128xf32>
    %541 = vector.shape_cast %540 : vector<1x1x4x128xf32> to vector<4x128xf32>
    %542 = vector.shape_cast %532 : vector<8x16x128xf32> to vector<128x128xf32>
    %cst_468 = arith.constant dense<0.000000e+00> : vector<4x128xf32>
    %543 = tpu.matmul %541, %542, %cst_468 {dimension_numbers = #tpu.dot_dimension_numbers<[1], [1], [0], [0], [0, 0, 1, 0], [], []>} : vector<4x128xf32>, vector<128x128xf32>, vector<4x128xf32> -> vector<4x128xf32>
    %544 = arith.addf %539, %543 : vector<4x128xf32>
    %545 = vector.extract_strided_slice %532 {offsets = [0, 1, 0], sizes = [8, 15, 128], strides = [1, 1, 1]} : vector<8x16x128xf32> to vector<8x15x128xf32>
    %546 = tpu.concatenate %545, %467 in 1 : vector<8x15x128xf32>, vector<8x1x128xf32> -> vector<8x16x128xf32>
    %c0_469 = arith.constant 0 : index
    %c2_470 = arith.constant 2 : index
    %c0_471 = arith.constant 0 : index
    %c0_472 = arith.constant 0 : index
    %547 = vector.load %arg6[%c0_469, %c2_470, %c0_471, %c0_472] : memref<3x3x4x128xf32, #tpu.memory_space<vmem>>, vector<1x1x4x128xf32>
    %548 = vector.shape_cast %547 : vector<1x1x4x128xf32> to vector<4x128xf32>
    %549 = vector.shape_cast %546 : vector<8x16x128xf32> to vector<128x128xf32>
    %cst_473 = arith.constant dense<0.000000e+00> : vector<4x128xf32>
    %550 = tpu.matmul %548, %549, %cst_473 {dimension_numbers = #tpu.dot_dimension_numbers<[1], [1], [0], [0], [0, 0, 1, 0], [], []>} : vector<4x128xf32>, vector<128x128xf32>, vector<4x128xf32> -> vector<4x128xf32>
    %551 = arith.addf %544, %550 : vector<4x128xf32>
    %c8_474 = arith.constant 8 : index
    %c0_475 = arith.constant 0 : index
    %c0_476 = arith.constant 0 : index
    %552 = vector.load %arg10[%c8_474, %c0_475, %c0_476] : memref<16x16x128xf32, #tpu.memory_space<vmem>>, vector<8x16x128xf32>
    %553 = vector.extract_strided_slice %552 {offsets = [0, 0, 0], sizes = [8, 15, 128], strides = [1, 1, 1]} : vector<8x16x128xf32> to vector<8x15x128xf32>
    %554 = tpu.concatenate %467, %553 in 1 : vector<8x1x128xf32>, vector<8x15x128xf32> -> vector<8x16x128xf32>
    %c1_477 = arith.constant 1 : index
    %c0_478 = arith.constant 0 : index
    %c0_479 = arith.constant 0 : index
    %c0_480 = arith.constant 0 : index
    %555 = vector.load %arg6[%c1_477, %c0_478, %c0_479, %c0_480] : memref<3x3x4x128xf32, #tpu.memory_space<vmem>>, vector<1x1x4x128xf32>
    %556 = vector.shape_cast %555 : vector<1x1x4x128xf32> to vector<4x128xf32>
    %557 = vector.shape_cast %554 : vector<8x16x128xf32> to vector<128x128xf32>
    %cst_481 = arith.constant dense<0.000000e+00> : vector<4x128xf32>
    %558 = tpu.matmul %556, %557, %cst_481 {dimension_numbers = #tpu.dot_dimension_numbers<[1], [1], [0], [0], [0, 0, 1, 0], [], []>} : vector<4x128xf32>, vector<128x128xf32>, vector<4x128xf32> -> vector<4x128xf32>
    %559 = arith.addf %551, %558 : vector<4x128xf32>
    %c1_482 = arith.constant 1 : index
    %c1_483 = arith.constant 1 : index
    %c0_484 = arith.constant 0 : index
    %c0_485 = arith.constant 0 : index
    %560 = vector.load %arg6[%c1_482, %c1_483, %c0_484, %c0_485] : memref<3x3x4x128xf32, #tpu.memory_space<vmem>>, vector<1x1x4x128xf32>
    %561 = vector.shape_cast %560 : vector<1x1x4x128xf32> to vector<4x128xf32>
    %562 = vector.shape_cast %552 : vector<8x16x128xf32> to vector<128x128xf32>
    %cst_486 = arith.constant dense<0.000000e+00> : vector<4x128xf32>
    %563 = tpu.matmul %561, %562, %cst_486 {dimension_numbers = #tpu.dot_dimension_numbers<[1], [1], [0], [0], [0, 0, 1, 0], [], []>} : vector<4x128xf32>, vector<128x128xf32>, vector<4x128xf32> -> vector<4x128xf32>
    %564 = arith.addf %559, %563 : vector<4x128xf32>
    %565 = vector.extract_strided_slice %552 {offsets = [0, 1, 0], sizes = [8, 15, 128], strides = [1, 1, 1]} : vector<8x16x128xf32> to vector<8x15x128xf32>
    %566 = tpu.concatenate %565, %467 in 1 : vector<8x15x128xf32>, vector<8x1x128xf32> -> vector<8x16x128xf32>
    %c1_487 = arith.constant 1 : index
    %c2_488 = arith.constant 2 : index
    %c0_489 = arith.constant 0 : index
    %c0_490 = arith.constant 0 : index
    %567 = vector.load %arg6[%c1_487, %c2_488, %c0_489, %c0_490] : memref<3x3x4x128xf32, #tpu.memory_space<vmem>>, vector<1x1x4x128xf32>
    %568 = vector.shape_cast %567 : vector<1x1x4x128xf32> to vector<4x128xf32>
    %569 = vector.shape_cast %566 : vector<8x16x128xf32> to vector<128x128xf32>
    %cst_491 = arith.constant dense<0.000000e+00> : vector<4x128xf32>
    %570 = tpu.matmul %568, %569, %cst_491 {dimension_numbers = #tpu.dot_dimension_numbers<[1], [1], [0], [0], [0, 0, 1, 0], [], []>} : vector<4x128xf32>, vector<128x128xf32>, vector<4x128xf32> -> vector<4x128xf32>
    %571 = arith.addf %564, %570 : vector<4x128xf32>
    %c9_492 = arith.constant 9 : index
    %c0_493 = arith.constant 0 : index
    %c0_494 = arith.constant 0 : index
    %572 = vector.load %arg10[%c9_492, %c0_493, %c0_494] : memref<16x16x128xf32, #tpu.memory_space<vmem>>, vector<7x16x128xf32>
    %cst_495 = arith.constant 0.000000e+00 : f32
    %573 = vector.broadcast %cst_495 : f32 to vector<1x16x128xf32>
    %574 = tpu.concatenate %572, %573 in 0 : vector<7x16x128xf32>, vector<1x16x128xf32> -> vector<8x16x128xf32>
    %575 = vector.extract_strided_slice %574 {offsets = [0, 0, 0], sizes = [8, 15, 128], strides = [1, 1, 1]} : vector<8x16x128xf32> to vector<8x15x128xf32>
    %576 = tpu.concatenate %467, %575 in 1 : vector<8x1x128xf32>, vector<8x15x128xf32> -> vector<8x16x128xf32>
    %c2_496 = arith.constant 2 : index
    %c0_497 = arith.constant 0 : index
    %c0_498 = arith.constant 0 : index
    %c0_499 = arith.constant 0 : index
    %577 = vector.load %arg6[%c2_496, %c0_497, %c0_498, %c0_499] : memref<3x3x4x128xf32, #tpu.memory_space<vmem>>, vector<1x1x4x128xf32>
    %578 = vector.shape_cast %577 : vector<1x1x4x128xf32> to vector<4x128xf32>
    %579 = vector.shape_cast %576 : vector<8x16x128xf32> to vector<128x128xf32>
    %cst_500 = arith.constant dense<0.000000e+00> : vector<4x128xf32>
    %580 = tpu.matmul %578, %579, %cst_500 {dimension_numbers = #tpu.dot_dimension_numbers<[1], [1], [0], [0], [0, 0, 1, 0], [], []>} : vector<4x128xf32>, vector<128x128xf32>, vector<4x128xf32> -> vector<4x128xf32>
    %581 = arith.addf %571, %580 : vector<4x128xf32>
    %c2_501 = arith.constant 2 : index
    %c1_502 = arith.constant 1 : index
    %c0_503 = arith.constant 0 : index
    %c0_504 = arith.constant 0 : index
    %582 = vector.load %arg6[%c2_501, %c1_502, %c0_503, %c0_504] : memref<3x3x4x128xf32, #tpu.memory_space<vmem>>, vector<1x1x4x128xf32>
    %583 = vector.shape_cast %582 : vector<1x1x4x128xf32> to vector<4x128xf32>
    %584 = vector.shape_cast %574 : vector<8x16x128xf32> to vector<128x128xf32>
    %cst_505 = arith.constant dense<0.000000e+00> : vector<4x128xf32>
    %585 = tpu.matmul %583, %584, %cst_505 {dimension_numbers = #tpu.dot_dimension_numbers<[1], [1], [0], [0], [0, 0, 1, 0], [], []>} : vector<4x128xf32>, vector<128x128xf32>, vector<4x128xf32> -> vector<4x128xf32>
    %586 = arith.addf %581, %585 : vector<4x128xf32>
    %587 = vector.extract_strided_slice %574 {offsets = [0, 1, 0], sizes = [8, 15, 128], strides = [1, 1, 1]} : vector<8x16x128xf32> to vector<8x15x128xf32>
    %588 = tpu.concatenate %587, %467 in 1 : vector<8x15x128xf32>, vector<8x1x128xf32> -> vector<8x16x128xf32>
    %c2_506 = arith.constant 2 : index
    %c2_507 = arith.constant 2 : index
    %c0_508 = arith.constant 0 : index
    %c0_509 = arith.constant 0 : index
    %589 = vector.load %arg6[%c2_506, %c2_507, %c0_508, %c0_509] : memref<3x3x4x128xf32, #tpu.memory_space<vmem>>, vector<1x1x4x128xf32>
    %590 = vector.shape_cast %589 : vector<1x1x4x128xf32> to vector<4x128xf32>
    %591 = vector.shape_cast %588 : vector<8x16x128xf32> to vector<128x128xf32>
    %cst_510 = arith.constant dense<0.000000e+00> : vector<4x128xf32>
    %592 = tpu.matmul %590, %591, %cst_510 {dimension_numbers = #tpu.dot_dimension_numbers<[1], [1], [0], [0], [0, 0, 1, 0], [], []>} : vector<4x128xf32>, vector<128x128xf32>, vector<4x128xf32> -> vector<4x128xf32>
    %593 = arith.addf %586, %592 : vector<4x128xf32>
    %594 = tpu.concatenate %530, %593 in 1 : vector<4x128xf32>, vector<4x128xf32> -> vector<4x256xf32>
    %c0_511 = arith.constant 0 : index
    %c0_512 = arith.constant 0 : index
    %595 = vector.load %arg7[%c0_511, %c0_512] : memref<4x1xf32, #tpu.memory_space<vmem>>, vector<4x1xf32>
    %596 = vector.broadcast %595 : vector<4x1xf32> to vector<4x256xf32>
    %597 = arith.addf %594, %596 : vector<4x256xf32>
    %c0_513 = arith.constant 0 : index
    %c0_514 = arith.constant 0 : index
    %c0_515 = arith.constant 0 : index
    %598 = vector.load %arg8[%c0_513, %c0_514, %c0_515] : memref<1x4x256xf32, #tpu.memory_space<vmem>>, vector<1x4x256xf32>
    %599 = vector.shape_cast %598 : vector<1x4x256xf32> to vector<4x256xf32>
    %600 = vector.shape_cast %597 : vector<4x256xf32> to vector<1x4x256xf32>
    tpu.vector_store %arg8[%c0_513, %c0_514, %c0_515], %600 {strides = array<i32>} : memref<1x4x256xf32, #tpu.memory_space<vmem>>, vector<1x4x256xf32>,
    return
  }
  func.func @transform_0(%arg0: i32) -> (i32, i32, i32) {
    %c0_i32 = arith.constant 0 : i32
    %c0_i32_0 = arith.constant 0 : i32
    %c0_i32_1 = arith.constant 0 : i32
    return %arg0, %c0_i32, %c0_i32_0 : i32, i32, i32
  }
  func.func @transform_1(%arg0: i32) -> (i32, i32) {
    %c0_i32 = arith.constant 0 : i32
    %c0_i32_0 = arith.constant 0 : i32
    %c0_i32_1 = arith.constant 0 : i32
    return %c0_i32, %c0_i32_0 : i32, i32
  }
  func.func @transform_2(%arg0: i32) -> (i32, i32) {
    %c0_i32 = arith.constant 0 : i32
    %c0_i32_0 = arith.constant 0 : i32
    %c0_i32_1 = arith.constant 0 : i32
    return %c0_i32, %c0_i32_0 : i32, i32
  }
  func.func @transform_3(%arg0: i32) -> (i32, i32, i32, i32) {
    %c0_i32 = arith.constant 0 : i32
    %c0_i32_0 = arith.constant 0 : i32
    %c0_i32_1 = arith.constant 0 : i32
    %c0_i32_2 = arith.constant 0 : i32
    %c0_i32_3 = arith.constant 0 : i32
    return %c0_i32, %c0_i32_0, %c0_i32_1, %c0_i32_2 : i32, i32, i32, i32
  }
  func.func @transform_4(%arg0: i32) -> (i32, i32, i32) {
    %c0_i32 = arith.constant 0 : i32
    %c0_i32_0 = arith.constant 0 : i32
    %c0_i32_1 = arith.constant 0 : i32
    %c0_i32_2 = arith.constant 0 : i32
    return %c0_i32, %c0_i32_0, %c0_i32_1 : i32, i32, i32
  }
  func.func @transform_5(%arg0: i32) -> (i32, i32, i32, i32) {
    %c0_i32 = arith.constant 0 : i32
    %c0_i32_0 = arith.constant 0 : i32
    %c0_i32_1 = arith.constant 0 : i32
    %c0_i32_2 = arith.constant 0 : i32
    %c0_i32_3 = arith.constant 0 : i32
    return %c0_i32, %c0_i32_0, %c0_i32_1, %c0_i32_2 : i32, i32, i32, i32
  }
  func.func @transform_6(%arg0: i32) -> (i32, i32) {
    %c0_i32 = arith.constant 0 : i32
    %c0_i32_0 = arith.constant 0 : i32
    %c0_i32_1 = arith.constant 0 : i32
    return %c0_i32, %c0_i32_0 : i32, i32
  }
  func.func @transform_7(%arg0: i32) -> (i32, i32, i32) {
    %c0_i32 = arith.constant 0 : i32
    %c0_i32_0 = arith.constant 0 : i32
    %c0_i32_1 = arith.constant 0 : i32
    return %arg0, %c0_i32, %c0_i32_0 : i32, i32, i32
  }
}

</mosaic_0001>

<llo_original>
// kernel: tile.18
$region0: #{tile.18}
  #allocation0 [shape = 's32[1]{0}', space=sflag, size = 0x4, scoped, tag = 'scoped memory for tile.18']
  %s0 = inlined_call_operand.vmem [shape: f32[64], index: 0, kind: input, shape index: {}]
  %s1 = inlined_call_operand.vmem [shape: f32[2,64], index: 1, kind: output, shape index: {}]
  // Predicated region
  $region2: #{tile.18} parent=0 // pred_check
    _
  $region3: #{tile.18} parent=0 // pred_check_branch
    %3 = sbr.rel (0) target = $region5
  $region4: #{tile.18} parent=0 // pred_region
    _
  $region5: #{tile.18} parent=0 // pred_fallthru
    _
  %v4 = vld [vmem:[%s0] ss:$0 sm:$0xff]
  %5 = vst [vmem:[%s1] sm:$0x3] %v4

// kernel: tile.19
$region0: #{tile.19}
  %s0 = inlined_call_operand.vmem [shape: f32[2,64], index: 0, kind: input, shape index: {}]
  %s1 = inlined_call_operand.vmem [shape: f32[1,128], index: 1, kind: output, shape index: {}]
  $region1: #{tile.19} parent=0
    #allocation0 [shape = 'u8[4096]{0}', space=vmem, size = 0x1000, scoped, tag = 'scoped mem for output reshape']
    #allocation1 [shape = 'u8[4096]{0}', space=vmem, size = 0x1000, scoped, tag = 'scoped mem for input reshape']
    %s3 = ssub.s32 4, 1
    %v4 = vld [vmem:[%s0] sm:%s3]
    %5 = vst [vmem:[#allocation1] sm:%s3] %v4
    %v6 = vld [vmem:[#allocation1] sm:$0x1]
    %vm7 = vcmask 523264
    %8 = vst.msk [vmem:[#allocation0] sm:$0x1] %vm7, %v6
    %s9 = scalar_lea.vmem [#allocation1], 1
    %v10 = vld [vmem:[%s9] sm:$0x1]
    %11 = vrot.lane.b32.xlu0 %v10, 64
    %v12 = vpop.permute.xlu0 %11
    %vm13 = vcmask 1048064
    %14 = vst.msk [vmem:[#allocation0] sm:$0x1] %vm13, %v12
    %s16 = ssub.s32 2, 1
    %v17 = vld [vmem:[#allocation0] sm:%s16]
    %s19 = ssub.s32 2, 1
    %20 = vst [vmem:[%s1] sm:%s19] %v17

// kernel: tile.24
$region0: #{tile.24}
  %s0 = inlined_call_operand.vmem [shape: f32[3,3,3,2,64], index: 0, kind: input, shape index: {}]
  %s1 = inlined_call_operand.vmem [shape: f32[3,3,3,128], index: 1, kind: output, shape index: {}]
  $region1: #{tile.24} parent=0
    #allocation0 [shape = 'u8[36864]{0}', space=vmem, size = 0x9000, scoped, tag = 'scoped mem for output reshape']
    #allocation1 [shape = 'u8[110592]{0}', space=vmem, size = 0x1b000, scoped, tag = 'scoped mem for input reshape']
    %s3 = ssub.s32 4, 1
    %s4 = scalar_lea.vmem %s0, 52
    %v5 = vld [vmem:[%s4] sm:%s3]
    %s6 = scalar_lea.vmem [#allocation1], 208
    %7 = vst [vmem:[%s6] sm:%s3] %v5
    %s8 = scalar_lea.vmem %s0, 50
    %v9 = vld [vmem:[%s8] sm:%s3]
    %s10 = scalar_lea.vmem [#allocation1], 200
    %11 = vst [vmem:[%s10] sm:%s3] %v9
    %s12 = scalar_lea.vmem %s0, 48
    %v13 = vld [vmem:[%s12] sm:%s3]
    %s14 = scalar_lea.vmem [#allocation1], 192
    %15 = vst [vmem:[%s14] sm:%s3] %v13
    %s16 = scalar_lea.vmem %s0, 46
    %v17 = vld [vmem:[%s16] sm:%s3]
    %s18 = scalar_lea.vmem [#allocation1], 184
    %19 = vst [vmem:[%s18] sm:%s3] %v17
    %s20 = scalar_lea.vmem %s0, 44
    %v21 = vld [vmem:[%s20] sm:%s3]
    %s22 = scalar_lea.vmem [#allocation1], 176
    %23 = vst [vmem:[%s22] sm:%s3] %v21
    %s24 = scalar_lea.vmem %s0, 42
    %v25 = vld [vmem:[%s24] sm:%s3]
    %s26 = scalar_lea.vmem [#allocation1], 168
    %27 = vst [vmem:[%s26] sm:%s3] %v25
    %s28 = scalar_lea.vmem %s0, 40
    %v29 = vld [vmem:[%s28] sm:%s3]
    %s30 = scalar_lea.vmem [#allocation1], 160
    %31 = vst [vmem:[%s30] sm:%s3] %v29
    %s32 = scalar_lea.vmem %s0, 38
    %v33 = vld [vmem:[%s32] sm:%s3]
    %s34 = scalar_lea.vmem [#allocation1], 152
    %35 = vst [vmem:[%s34] sm:%s3] %v33
    %s36 = scalar_lea.vmem %s0, 36
    %v37 = vld [vmem:[%s36] sm:%s3]
    %s38 = scalar_lea.vmem [#allocation1], 144
    %39 = vst [vmem:[%s38] sm:%s3] %v37
    %s40 = scalar_lea.vmem %s0, 34
    %v41 = vld [vmem:[%s40] sm:%s3]
    %s42 = scalar_lea.vmem [#allocation1], 136
    %43 = vst [vmem:[%s42] sm:%s3] %v41
    %s44 = scalar_lea.vmem %s0, 32
    %v45 = vld [vmem:[%s44] sm:%s3]
    %s46 = scalar_lea.vmem [#allocation1], 128
    %47 = vst [vmem:[%s46] sm:%s3] %v45
    %s48 = scalar_lea.vmem %s0, 30
    %v49 = vld [vmem:[%s48] sm:%s3]
    %s50 = scalar_lea.vmem [#allocation1], 120
    %51 = vst [vmem:[%s50] sm:%s3] %v49
    %s52 = scalar_lea.vmem %s0, 28
    %v53 = vld [vmem:[%s52] sm:%s3]
    %s54 = scalar_lea.vmem [#allocation1], 112
    %55 = vst [vmem:[%s54] sm:%s3] %v53
    %s56 = scalar_lea.vmem %s0, 26
    %v57 = vld [vmem:[%s56] sm:%s3]
    %s58 = scalar_lea.vmem [#allocation1], 104
    %59 = vst [vmem:[%s58] sm:%s3] %v57
    %s60 = scalar_lea.vmem %s0, 24
    %v61 = vld [vmem:[%s60] sm:%s3]
    %s62 = scalar_lea.vmem [#allocation1], 96
    %63 = vst [vmem:[%s62] sm:%s3] %v61
    %s64 = scalar_lea.vmem %s0, 22
    %v65 = vld [vmem:[%s64] sm:%s3]
    %s66 = scalar_lea.vmem [#allocation1], 88
    %67 = vst [vmem:[%s66] sm:%s3] %v65
    %s68 = scalar_lea.vmem %s0, 20
    %v69 = vld [vmem:[%s68] sm:%s3]
    %s70 = scalar_lea.vmem [#allocation1], 80
    %71 = vst [vmem:[%s70] sm:%s3] %v69
    %s72 = scalar_lea.vmem %s0, 18
    %v73 = vld [vmem:[%s72] sm:%s3]
    %s74 = scalar_lea.vmem [#allocation1], 72
    %75 = vst [vmem:[%s74] sm:%s3] %v73
    %s76 = scalar_lea.vmem %s0, 16
    %v77 = vld [vmem:[%s76] sm:%s3]
    %s78 = scalar_lea.vmem [#allocation1], 64
    %79 = vst [vmem:[%s78] sm:%s3] %v77
    %s80 = scalar_lea.vmem %s0, 14
    %v81 = vld [vmem:[%s80] sm:%s3]
    %s82 = scalar_lea.vmem [#allocation1], 56
    %83 = vst [vmem:[%s82] sm:%s3] %v81
    %s84 = scalar_lea.vmem %s0, 12
    %v85 = vld [vmem:[%s84] sm:%s3]
    %s86 = scalar_lea.vmem [#allocation1], 48
    %87 = vst [vmem:[%s86] sm:%s3] %v85
    %s88 = scalar_lea.vmem %s0, 10
    %v89 = vld [vmem:[%s88] sm:%s3]
    %s90 = scalar_lea.vmem [#allocation1], 40
    %91 = vst [vmem:[%s90] sm:%s3] %v89
    %s92 = scalar_lea.vmem %s0, 8
    %v93 = vld [vmem:[%s92] sm:%s3]
    %s94 = scalar_lea.vmem [#allocation1], 32
    %95 = vst [vmem:[%s94] sm:%s3] %v93
    %s96 = scalar_lea.vmem %s0, 6
    %v97 = vld [vmem:[%s96] sm:%s3]
    %s98 = scalar_lea.vmem [#allocation1], 24
    %99 = vst [vmem:[%s98] sm:%s3] %v97
    %s100 = scalar_lea.vmem %s0, 4
    %v101 = vld [vmem:[%s100] sm:%s3]
    %s102 = scalar_lea.vmem [#allocation1], 16
    %103 = vst [vmem:[%s102] sm:%s3] %v101
    %s104 = scalar_lea.vmem %s0, 2
    %v105 = vld [vmem:[%s104] sm:%s3]
    %s106 = scalar_lea.vmem [#allocation1], 8
    %107 = vst [vmem:[%s106] sm:%s3] %v105
    %v108 = vld [vmem:[%s0] sm:%s3]
    %109 = vst [vmem:[#allocation1] sm:%s3] %v108
    %v110 = vld [vmem:[#allocation1] ss:$8 sm:$0xf]
    %v111 = vld [vmem:[#allocation1] ss:$8 sm:$0xf0]
    %vm112 = vcmask 1047556
    %v113 = vsel %vm112, %v111, %v110
    %vm114 = vcmask 523264
    %115 = vst.msk [vmem:[#allocation0] sm:$0x7] %vm114, %v113
    %s116 = scalar_lea.vmem [#allocation0], 5
    %117 = vst.msk [vmem:[%s116] sm:$0x38] %vm114, %v113
    %s118 = scalar_lea.vmem [#allocation0], 10
    %119 = vst.msk [vmem:[%s118] sm:$0xc0] %vm114, %v113
    %s120 = scalar_lea.vmem [#allocation1], 64
    %v121 = vld [vmem:[%s120] ss:$8 sm:$0xf]
    %s122 = scalar_lea.vmem [#allocation1], 64
    %v123 = vld [vmem:[%s122] ss:$8 sm:$0xf0]
    %vm124 = vcmask 1047556
    %v125 = vsel %vm124, %v123, %v121
    %vm126 = vcmask 523264
    %s127 = scalar_lea.vmem [#allocation0], 18
    %128 = vst.msk [vmem:[%s127] ss:$6 sm:$0x3] %vm126, %v125
    %s129 = scalar_lea.vmem [#allocation0], 23
    %130 = vst.msk [vmem:[%s129] sm:$0xc] %vm126, %v125
    %s131 = scalar_lea.vmem [#allocation0], 28
    %132 = vst.msk [vmem:[%s131] sm:$0x70] %vm126, %v125
    %s133 = scalar_lea.vmem [#allocation0], 33
    %134 = vst.msk [vmem:[%s133] sm:$0x80] %vm126, %v125
    %s135 = scalar_lea.vmem [#allocation1], 128
    %v136 = vld [vmem:[%s135] ss:$8 sm:$0xf]
    %s137 = scalar_lea.vmem [#allocation1], 128
    %v138 = vld [vmem:[%s137] ss:$8 sm:$0xf0]
    %vm139 = vcmask 1047556
    %v140 = vsel %vm139, %v138, %v136
    %vm141 = vcmask 523264
    %s142 = scalar_lea.vmem [#allocation0], 41
    %143 = vst.msk [vmem:[%s142] sm:$0x3] %vm141, %v140
    %s144 = scalar_lea.vmem [#allocation0], 46
    %145 = vst.msk [vmem:[%s144] sm:$0x1c] %vm141, %v140
    %s146 = scalar_lea.vmem [#allocation0], 51
    %147 = vst.msk [vmem:[%s146] sm:$0xe0] %vm141, %v140
    %s148 = scalar_lea.vmem [#allocation1], 192
    %v149 = vld [vmem:[%s148] ss:$8 sm:$0x7]
    %vm150 = vcmask 523264
    %s151 = scalar_lea.vmem [#allocation0], 64
    %152 = vst.msk [vmem:[%s151] sm:$0x7] %vm150, %v149
    %s153 = scalar_lea.vmem [#allocation1], 1
    %v154 = vld [vmem:[%s153] ss:$8 sm:$0xf]
    %s155 = scalar_lea.vmem [#allocation1], 1
    %v156 = vld [vmem:[%s155] ss:$8 sm:$0xf0]
    %vm157 = vcmask 1047556
    %v158 = vsel %vm157, %v156, %v154
    %159 = vrot.lane.b32.xlu0 %v158, 64
    %v160 = vpop.permute.xlu0 %159
    %vm161 = vcmask 1048064
    %162 = vst.msk [vmem:[#allocation0] sm:$0x7] %vm161, %v160
    %s163 = scalar_lea.vmem [#allocation0], 5
    %164 = vst.msk [vmem:[%s163] sm:$0x38] %vm161, %v160
    %s165 = scalar_lea.vmem [#allocation0], 10
    %166 = vst.msk [vmem:[%s165] sm:$0xc0] %vm161, %v160
    %s167 = scalar_lea.vmem [#allocation1], 97
    %v168 = vld [vmem:[%s167] ss:$8 sm:$0xf]
    %s169 = scalar_lea.vmem [#allocation1], 97
    %v170 = vld [vmem:[%s169] ss:$8 sm:$0xf0]
    %vm171 = vcmask 1047556
    %v172 = vsel %vm171, %v170, %v168
    %173 = vrot.lane.b32.xlu0 %v172, 64
    %v174 = vpop.permute.xlu0 %173
    %vm175 = vcmask 1048064
    %s176 = scalar_lea.vmem [#allocation0], 32
    %177 = vst.msk [vmem:[%s176] sm:$0x7] %vm175, %v174
    %s178 = scalar_lea.vmem [#allocation0], 37
    %179 = vst.msk [vmem:[%s178] sm:$0x38] %vm175, %v174
    %s180 = scalar_lea.vmem [#allocation0], 42
    %181 = vst.msk [vmem:[%s180] sm:$0xc0] %vm175, %v174
    %s182 = scalar_lea.vmem [#allocation1], 193
    %v183 = vld [vmem:[%s182] ss:$8 sm:$0x7]
    %s184 = scalar_lea.vmem [#allocation1], 41
    %v185 = vld [vmem:[%s184] ss:$8 sm:$0x78]
    %vm186 = vcmask 1046531
    %v187 = vsel %vm186, %v185, %v183
    %s188 = scalar_lea.vmem [#allocation1], 154
    %v189 = vld [vmem:[%s188] sm:$0x80]
    %vm190 = vcmask 1047559
    %v191 = vsel %vm190, %v189, %v187
    %192 = vrot.lane.b32.xlu0 %v191, 64
    %v193 = vpop.permute.xlu0 %192
    %vm194 = vcmask 1048064
    %s195 = scalar_lea.vmem [#allocation0], 64
    %196 = vst.msk [vmem:[%s195] sm:$0x7] %vm194, %v193
    %197 = vst.msk [vmem:[#allocation0] ss:$6 sm:$0x18] %vm194, %v193
    %s198 = scalar_lea.vmem [#allocation0], 20
    %199 = vst.msk [vmem:[%s198] sm:$0x60] %vm194, %v193
    %s200 = scalar_lea.vmem [#allocation0], 43
    %201 = vst.msk [vmem:[%s200] sm:$0x80] %vm194, %v193
    %s202 = scalar_lea.vmem [#allocation1], 169
    %v203 = vld [vmem:[%s202] ss:$8 sm:$0x7]
    %204 = vrot.lane.b32.xlu0 %v203, 64
    %v205 = vpop.permute.xlu0 %204
    %vm206 = vcmask 1048064
    %s207 = scalar_lea.vmem [#allocation0], 56
    %208 = vst.msk [vmem:[%s207] sm:$0x7] %vm206, %v205
    %s210 = ssub.s32 16, 1
    %v211 = vld [vmem:[#allocation0] sm:%s210]
    %s213 = ssub.s32 16, 1
    %214 = vst [vmem:[%s1] sm:%s213] %v211
    %s215 = scalar_lea.vmem [#allocation0], 8
    %v216 = vld [vmem:[%s215] sm:%s210]
    %s218 = ssub.s32 16, 1
    %s219 = scalar_lea.vmem %s1, 4
    %220 = vst [vmem:[%s219] sm:%s218] %v216
    %s221 = scalar_lea.vmem [#allocation0], 16
    %v222 = vld [vmem:[%s221] sm:%s210]
    %s224 = ssub.s32 16, 1
    %s225 = scalar_lea.vmem %s1, 8
    %226 = vst [vmem:[%s225] sm:%s224] %v222
    %s227 = scalar_lea.vmem [#allocation0], 24
    %v228 = vld [vmem:[%s227] sm:%s210]
    %s230 = ssub.s32 16, 1
    %s231 = scalar_lea.vmem %s1, 12
    %232 = vst [vmem:[%s231] sm:%s230] %v228
    %s233 = scalar_lea.vmem [#allocation0], 32
    %v234 = vld [vmem:[%s233] sm:%s210]
    %s236 = ssub.s32 16, 1
    %s237 = scalar_lea.vmem %s1, 16
    %238 = vst [vmem:[%s237] sm:%s236] %v234
    %s239 = scalar_lea.vmem [#allocation0], 40
    %v240 = vld [vmem:[%s239] sm:%s210]
    %s242 = ssub.s32 16, 1
    %s243 = scalar_lea.vmem %s1, 20
    %244 = vst [vmem:[%s243] sm:%s242] %v240
    %s245 = scalar_lea.vmem [#allocation0], 48
    %v246 = vld [vmem:[%s245] sm:%s210]
    %s248 = ssub.s32 16, 1
    %s249 = scalar_lea.vmem %s1, 24
    %250 = vst [vmem:[%s249] sm:%s248] %v246
    %s251 = scalar_lea.vmem [#allocation0], 56
    %v252 = vld [vmem:[%s251] sm:%s210]
    %s254 = ssub.s32 16, 1
    %s255 = scalar_lea.vmem %s1, 28
    %256 = vst [vmem:[%s255] sm:%s254] %v252
    %s257 = scalar_lea.vmem [#allocation0], 64
    %v258 = vld [vmem:[%s257] sm:%s210]
    %s260 = ssub.s32 16, 1
    %s261 = scalar_lea.vmem %s1, 32
    %262 = vst [vmem:[%s261] sm:%s260] %v258

// kernel: tile.28
$region0: #{tile.28}
  #allocation0 [shape = 's32[1]{0}', space=sflag, size = 0x4, scoped, tag = 'scoped memory for tile.28']
  %s0 = inlined_call_operand.vmem [shape: f32[2], index: 0, kind: input, shape index: {}]
  %s1 = inlined_call_operand.vmem [shape: f32[2,2], index: 1, kind: output, shape index: {}]
  // Predicated region
  $region2: #{tile.28} parent=0 // pred_check
    _
  $region3: #{tile.28} parent=0 // pred_check_branch
    %3 = sbr.rel (0) target = $region5
  $region4: #{tile.28} parent=0 // pred_region
    _
  $region5: #{tile.28} parent=0 // pred_fallthru
    _
  %v4 = vld [vmem:[%s0] ss:$0 sm:$0xff]
  %5 = vst [vmem:[%s1] sm:$0x3] %v4

// kernel: tile.0
$region0: #{tile.0}
  %s0 = inlined_call_operand.vmem [shape: f32[2,2], index: 0, kind: input, shape index: {}]
  %s1 = inlined_call_operand.vmem [shape: f32[4,1], index: 1, kind: output, shape index: {}]
  $region1: #{tile.0} parent=0
    #allocation0 [shape = 'u8[4096]{0}', space=vmem, size = 0x1000, scoped, tag = 'scoped mem for output reshape']
    #allocation1 [shape = 'u8[4096]{0}', space=vmem, size = 0x1000, scoped, tag = 'scoped mem for input reshape']
    %s3 = ssub.s32 4, 1
    %v4 = vld [vmem:[%s0] sm:%s3]
    %5 = vst [vmem:[#allocation1] sm:%s3] %v4
    %v6 = vld [vmem:[#allocation1] sm:$0x3]
    %vm7 = vcmask 7168
    %8 = vst.msk [vmem:[#allocation0] ss:$2 sm:$0x3] %vm7, %v6
    %v9 = vld [vmem:[#allocation1] sm:$0x3]
    %10 = vrot.lane.b32.xlu0 %v9, 127
    %v11 = vpop.permute.xlu0 %10
    %vm12 = vcmask 7168
    %s13 = scalar_lea.vmem [#allocation0], 1
    %14 = vst.msk [vmem:[%s13] ss:$2 sm:$0x3] %vm12, %v11
    %s16 = ssub.s32 16, 1
    %v17 = vld [vmem:[#allocation0] sm:%s16]
    %s19 = ssub.s32 16, 1
    %20 = vst [vmem:[%s1] sm:%s19] %v17

// kernel: cnn_layer_forward_impl.1
$region0: #{cnn_layer_forward_impl.1}
  #allocation0 [shape = 'u32[]', space=smem, size = 0x4, offset = 0x4, fixed_abs, tag = 'smem constant byte address 0x4 - core index']
  #allocation1 [shape = 'u32[72,128]{1,0:T(1,128)}', space=vmem, size = 0x9000, scoped, tag = 'internal scratch']
  #allocation2 [shape = 'f32[16,16,128]{2,1,0:T(8,128)}', space=vmem, size = 0x20000, scoped, tag = 'scratch operand']
  #allocation3 [shape = 'f32[16,16,128]{2,1,0:T(8,128)}', space=vmem, size = 0x20000, scoped, tag = 'scratch operand']
  %s0 = inlined_call_operand.vmem [shape: f32[1,256,36], index: 0, kind: input, shape index: {}]
  %s1 = inlined_call_operand.vmem [shape: f32[36,128], index: 1, kind: input, shape index: {}]
  %s2 = inlined_call_operand.vmem [shape: f32[1,128], index: 2, kind: input, shape index: {}]
  %s3 = inlined_call_operand.vmem [shape: f32[3,3,3,128], index: 3, kind: input, shape index: {}]
  %s4 = inlined_call_operand.vmem [shape: f32[3,128,128], index: 4, kind: input, shape index: {}]
  %s5 = inlined_call_operand.vmem [shape: f32[3,3,4,128], index: 5, kind: input, shape index: {}]
  %s6 = inlined_call_operand.vmem [shape: f32[4,1], index: 6, kind: input, shape index: {}]
  %s7 = inlined_call_operand.vmem [shape: f32[1,4,256], index: 7, kind: output, shape index: {}]
  %s8 = sld [smem:[#allocation0]]
  $region38: #{cnn_layer_forward_impl.1} parent=0
    _
  %s10 = ssub.s32 1, %s8
  %s11 = scalar_select 0, %s10, %s8
  // Predicated region
  $region2: #{cnn_layer_forward_impl.1} parent=0 // pred_check
    _
  $region3: #{cnn_layer_forward_impl.1} parent=0 // pred_check_branch
    %13 = sbr.rel (0) target = $region5
  $region4: #{cnn_layer_forward_impl.1} parent=0 // pred_region
    _
  $region5: #{cnn_layer_forward_impl.1} parent=0 // pred_fallthru
    _
  // Predicated region
  $region6: #{cnn_layer_forward_impl.1} parent=0 // pred_check
    _
  $region7: #{cnn_layer_forward_impl.1} parent=0 // pred_check_branch
    %15 = sbr.rel (0) target = $region9
  $region8: #{cnn_layer_forward_impl.1} parent=0 // pred_region
    _
  $region9: #{cnn_layer_forward_impl.1} parent=0 // pred_fallthru
    _
  // Predicated region
  $region10: #{cnn_layer_forward_impl.1} parent=0 // pred_check
    _
  $region11: #{cnn_layer_forward_impl.1} parent=0 // pred_check_branch
    %17 = sbr.rel (0) target = $region13
  $region12: #{cnn_layer_forward_impl.1} parent=0 // pred_region
    _
  $region13: #{cnn_layer_forward_impl.1} parent=0 // pred_fallthru
    _
  // Predicated region
  $region14: #{cnn_layer_forward_impl.1} parent=0 // pred_check
    _
  $region15: #{cnn_layer_forward_impl.1} parent=0 // pred_check_branch
    %19 = sbr.rel (0) target = $region17
  $region16: #{cnn_layer_forward_impl.1} parent=0 // pred_region
    _
  $region17: #{cnn_layer_forward_impl.1} parent=0 // pred_fallthru
    _
  // Predicated region
  $region18: #{cnn_layer_forward_impl.1} parent=0 // pred_check
    _
  $region19: #{cnn_layer_forward_impl.1} parent=0 // pred_check_branch
    %21 = sbr.rel (0) target = $region21
  $region20: #{cnn_layer_forward_impl.1} parent=0 // pred_region
    _
  $region21: #{cnn_layer_forward_impl.1} parent=0 // pred_fallthru
    _
  // Predicated region
  $region22: #{cnn_layer_forward_impl.1} parent=0 // pred_check
    _
  $region23: #{cnn_layer_forward_impl.1} parent=0 // pred_check_branch
    %23 = sbr.rel (0) target = $region25
  $region24: #{cnn_layer_forward_impl.1} parent=0 // pred_region
    _
  $region25: #{cnn_layer_forward_impl.1} parent=0 // pred_fallthru
    _
  // Predicated region
  $region26: #{cnn_layer_forward_impl.1} parent=0 // pred_check
    _
  $region27: #{cnn_layer_forward_impl.1} parent=0 // pred_check_branch
    %25 = sbr.rel (0) target = $region29
  $region28: #{cnn_layer_forward_impl.1} parent=0 // pred_region
    _
  $region29: #{cnn_layer_forward_impl.1} parent=0 // pred_fallthru
    _
  %v26 = vld [vmem:[%s0] sm:$0xff]
  %v27 = vld [vmem:[%s0 + $0x8] sm:$0xff]
  %v28 = vld [vmem:[%s0 + $0x10] sm:$0xff]
  %v29 = vld [vmem:[%s0 + $0x18] sm:$0xff]
  %v30 = vld [vmem:[%s0 + $0x20] sm:$0xff]
  %v31 = vld [vmem:[%s0 + $0x28] sm:$0xff]
  %v32 = vld [vmem:[%s0 + $0x30] sm:$0xff]
  %v33 = vld [vmem:[%s0 + $0x38] sm:$0xff]
  %v34 = vld [vmem:[%s0 + $0x40] sm:$0xff]
  %v35 = vld [vmem:[%s0 + $0x48] sm:$0xff]
  %v36 = vld [vmem:[%s0 + $0x50] sm:$0xff]
  %v37 = vld [vmem:[%s0 + $0x58] sm:$0xff]
  %v38 = vld [vmem:[%s0 + $0x60] sm:$0xff]
  %v39 = vld [vmem:[%s0 + $0x68] sm:$0xff]
  %v40 = vld [vmem:[%s0 + $0x70] sm:$0xff]
  %v41 = vld [vmem:[%s0 + $0x78] sm:$0xff]
  %v42 = vld [vmem:[%s0 + $0x80] sm:$0xff]
  %v43 = vld [vmem:[%s0 + $0x88] sm:$0xff]
  %v44 = vld [vmem:[%s0 + $0x90] sm:$0xff]
  %v45 = vld [vmem:[%s0 + $0x98] sm:$0xff]
  %v46 = vld [vmem:[%s0 + $0xa0] sm:$0xff]
  %v47 = vld [vmem:[%s0 + $0xa8] sm:$0xff]
  %v48 = vld [vmem:[%s0 + $0xb0] sm:$0xff]
  %v49 = vld [vmem:[%s0 + $0xb8] sm:$0xff]
  %v50 = vld [vmem:[%s0 + $0xc0] sm:$0xff]
  %v51 = vld [vmem:[%s0 + $0xc8] sm:$0xff]
  %v52 = vld [vmem:[%s0 + $0xd0] sm:$0xff]
  %v53 = vld [vmem:[%s0 + $0xd8] sm:$0xff]
  %v54 = vld [vmem:[%s0 + $0xe0] sm:$0xff]
  %v55 = vld [vmem:[%s0 + $0xe8] sm:$0xff]
  %v56 = vld [vmem:[%s0 + $0xf0] sm:$0xff]
  %v57 = vld [vmem:[%s0 + $0xf8] sm:$0xff]
  %v58 = vld [vmem:[%s1] sm:$0xff]
  %v59 = vld [vmem:[%s1 + $0x8] sm:$0xff]
  %v60 = vld [vmem:[%s1 + $0x10] sm:$0xff]
  %v61 = vld [vmem:[%s1 + $0x18] sm:$0xff]
  %v62 = vld [vmem:[%s1 + $0x20] sm:$0xf]
  %v63 = vld [vmem:[%s2] sm:$0x1]
  %v65 = vperm.slane %v63, 0
  %vm67 = vcmask 293888
  %v69 = vsel %vm67, %v26, 0
  %v72 = vsel %vm67, %v27, 0
  %v75 = vsel %vm67, %v28, 0
  %v78 = vsel %vm67, %v29, 0
  %v81 = vsel %vm67, %v30, 0
  %v84 = vsel %vm67, %v31, 0
  %v87 = vsel %vm67, %v32, 0
  %v90 = vsel %vm67, %v33, 0
  %v93 = vsel %vm67, %v34, 0
  %v96 = vsel %vm67, %v35, 0
  %v99 = vsel %vm67, %v36, 0
  %v102 = vsel %vm67, %v37, 0
  %v105 = vsel %vm67, %v38, 0
  %v108 = vsel %vm67, %v39, 0
  %v111 = vsel %vm67, %v40, 0
  %v114 = vsel %vm67, %v41, 0
  %v117 = vsel %vm67, %v42, 0
  %v120 = vsel %vm67, %v43, 0
  %v123 = vsel %vm67, %v44, 0
  %v126 = vsel %vm67, %v45, 0
  %v129 = vsel %vm67, %v46, 0
  %v132 = vsel %vm67, %v47, 0
  %v135 = vsel %vm67, %v48, 0
  %v138 = vsel %vm67, %v49, 0
  %v141 = vsel %vm67, %v50, 0
  %v144 = vsel %vm67, %v51, 0
  %v147 = vsel %vm67, %v52, 0
  %v150 = vsel %vm67, %v53, 0
  %v153 = vsel %vm67, %v54, 0
  %v156 = vsel %vm67, %v55, 0
  %v159 = vsel %vm67, %v56, 0
  %v162 = vsel %vm67, %v57, 0
  %vm164 = vcmask 1043456
  %v166 = vsel %vm164, %v62, 0
  %168 = vmatpush.msra.mxu0 0.0
  %169 = vmatpush.msra.mxu0 0.0
  %170 = vmatpush.msra.mxu0 0.0
  %171 = vmatpush.msra.mxu0 0.0
  %172 = vmatpush.msra.mxu0 0.0
  %173 = vmatpush.msra.mxu0 0.0
  %174 = vmatpush.msra.mxu0 0.0
  %175 = vmatpush.msra.mxu0 0.0
  %176 = vmatpush.msra.mxu0 0.0
  %177 = vmatpush.msra.mxu0 0.0
  %178 = vmatpush.msra.mxu0 0.0
  %179 = vmatpush.msra.mxu0 %v166
  %180 = vmatpush.msra.mxu0 %v61
  %181 = vmatpush.msra.mxu0 %v60
  %182 = vmatpush.msra.mxu0 %v59
  %183 = vmatpush.msra.mxu0 %v58
  %184 = vmatmul.f32.gmra.mxu0 %v69
  %v185 = vpop.f32.mrf.mxu0
  %v186 = vadd.f32 %v65, %v185
  %187 = vmatmul.f32.gmra.mxu0 %v72
  %v188 = vpop.f32.mrf.mxu0
  %v189 = vadd.f32 %v65, %v188
  %190 = vmatmul.f32.gmra.mxu0 %v75
  %v191 = vpop.f32.mrf.mxu0
  %v192 = vadd.f32 %v65, %v191
  %193 = vmatmul.f32.gmra.mxu0 %v78
  %v194 = vpop.f32.mrf.mxu0
  %v195 = vadd.f32 %v65, %v194
  %196 = vmatmul.f32.gmra.mxu0 %v81
  %v197 = vpop.f32.mrf.mxu0
  %v198 = vadd.f32 %v65, %v197
  %199 = vmatmul.f32.gmra.mxu0 %v84
  %v200 = vpop.f32.mrf.mxu0
  %v201 = vadd.f32 %v65, %v200
  %202 = vmatmul.f32.gmra.mxu0 %v87
  %v203 = vpop.f32.mrf.mxu0
  %v204 = vadd.f32 %v65, %v203
  %205 = vmatmul.f32.gmra.mxu0 %v90
  %v206 = vpop.f32.mrf.mxu0
  %v207 = vadd.f32 %v65, %v206
  %208 = vmatmul.f32.gmra.mxu0 %v93
  %v209 = vpop.f32.mrf.mxu0
  %v210 = vadd.f32 %v65, %v209
  %211 = vmatmul.f32.gmra.mxu0 %v96
  %v212 = vpop.f32.mrf.mxu0
  %v213 = vadd.f32 %v65, %v212
  %214 = vmatmul.f32.gmra.mxu0 %v99
  %v215 = vpop.f32.mrf.mxu0
  %v216 = vadd.f32 %v65, %v215
  %217 = vmatmul.f32.gmra.mxu0 %v102
  %v218 = vpop.f32.mrf.mxu0
  %v219 = vadd.f32 %v65, %v218
  %220 = vmatmul.f32.gmra.mxu0 %v105
  %v221 = vpop.f32.mrf.mxu0
  %v222 = vadd.f32 %v65, %v221
  %223 = vmatmul.f32.gmra.mxu0 %v108
  %v224 = vpop.f32.mrf.mxu0
  %v225 = vadd.f32 %v65, %v224
  %226 = vmatmul.f32.gmra.mxu0 %v111
  %v227 = vpop.f32.mrf.mxu0
  %v228 = vadd.f32 %v65, %v227
  %229 = vmatmul.f32.gmra.mxu0 %v114
  %v230 = vpop.f32.mrf.mxu0
  %v231 = vadd.f32 %v65, %v230
  %232 = vmatmul.f32.gmra.mxu0 %v117
  %v233 = vpop.f32.mrf.mxu0
  %v234 = vadd.f32 %v65, %v233
  %235 = vmatmul.f32.gmra.mxu0 %v120
  %v236 = vpop.f32.mrf.mxu0
  %v237 = vadd.f32 %v65, %v236
  %238 = vmatmul.f32.gmra.mxu0 %v123
  %v239 = vpop.f32.mrf.mxu0
  %v240 = vadd.f32 %v65, %v239
  %241 = vmatmul.f32.gmra.mxu0 %v126
  %v242 = vpop.f32.mrf.mxu0
  %v243 = vadd.f32 %v65, %v242
  %244 = vmatmul.f32.gmra.mxu0 %v129
  %v245 = vpop.f32.mrf.mxu0
  %v246 = vadd.f32 %v65, %v245
  %247 = vmatmul.f32.gmra.mxu0 %v132
  %v248 = vpop.f32.mrf.mxu0
  %v249 = vadd.f32 %v65, %v248
  %250 = vmatmul.f32.gmra.mxu0 %v135
  %v251 = vpop.f32.mrf.mxu0
  %v252 = vadd.f32 %v65, %v251
  %253 = vmatmul.f32.gmra.mxu0 %v138
  %v254 = vpop.f32.mrf.mxu0
  %v255 = vadd.f32 %v65, %v254
  %256 = vmatmul.f32.gmra.mxu0 %v141
  %v257 = vpop.f32.mrf.mxu0
  %v258 = vadd.f32 %v65, %v257
  %259 = vmatmul.f32.gmra.mxu0 %v144
  %v260 = vpop.f32.mrf.mxu0
  %v261 = vadd.f32 %v65, %v260
  %262 = vmatmul.f32.gmra.mxu0 %v147
  %v263 = vpop.f32.mrf.mxu0
  %v264 = vadd.f32 %v65, %v263
  %265 = vmatmul.f32.gmra.mxu0 %v150
  %v266 = vpop.f32.mrf.mxu0
  %v267 = vadd.f32 %v65, %v266
  %268 = vmatmul.f32.gmra.mxu0 %v153
  %v269 = vpop.f32.mrf.mxu0
  %v270 = vadd.f32 %v65, %v269
  %271 = vmatmul.f32.gmra.mxu0 %v156
  %v272 = vpop.f32.mrf.mxu0
  %v273 = vadd.f32 %v65, %v272
  %274 = vmatmul.f32.gmra.mxu0 %v159
  %v275 = vpop.f32.mrf.mxu0
  %v276 = vadd.f32 %v65, %v275
  %277 = vmatmul.f32.gmra.mxu0 %v162
  %v278 = vpop.f32.mrf.mxu0
  %v279 = vadd.f32 %v65, %v278
  %280 = vdwg.mxu0
  %v281 = vmax.f32 %v186, 0.0
  %v282 = vmax.f32 %v189, 0.0
  %v283 = vmax.f32 %v192, 0.0
  %v284 = vmax.f32 %v195, 0.0
  %v285 = vmax.f32 %v198, 0.0
  %v286 = vmax.f32 %v201, 0.0
  %v287 = vmax.f32 %v204, 0.0
  %v288 = vmax.f32 %v207, 0.0
  %v289 = vmax.f32 %v210, 0.0
  %v290 = vmax.f32 %v213, 0.0
  %v291 = vmax.f32 %v216, 0.0
  %v292 = vmax.f32 %v219, 0.0
  %v293 = vmax.f32 %v222, 0.0
  %v294 = vmax.f32 %v225, 0.0
  %v295 = vmax.f32 %v228, 0.0
  %v296 = vmax.f32 %v231, 0.0
  %v297 = vmax.f32 %v234, 0.0
  %v298 = vmax.f32 %v237, 0.0
  %v299 = vmax.f32 %v240, 0.0
  %v300 = vmax.f32 %v243, 0.0
  %v301 = vmax.f32 %v246, 0.0
  %v302 = vmax.f32 %v249, 0.0
  %v303 = vmax.f32 %v252, 0.0
  %v304 = vmax.f32 %v255, 0.0
  %v305 = vmax.f32 %v258, 0.0
  %v306 = vmax.f32 %v261, 0.0
  %v307 = vmax.f32 %v264, 0.0
  %v308 = vmax.f32 %v267, 0.0
  %v309 = vmax.f32 %v270, 0.0
  %v310 = vmax.f32 %v273, 0.0
  %v311 = vmax.f32 %v276, 0.0
  %v312 = vmax.f32 %v279, 0.0
  %313 = vst [vmem:[#allocation2] sm:$0xff] %v281
  %314 = vst [vmem:[#allocation2 + $0x8] sm:$0xff] %v282
  %315 = vst [vmem:[#allocation2 + $0x10] sm:$0xff] %v283
  %316 = vst [vmem:[#allocation2 + $0x18] sm:$0xff] %v284
  %317 = vst [vmem:[#allocation2 + $0x20] sm:$0xff] %v285
  %318 = vst [vmem:[#allocation2 + $0x28] sm:$0xff] %v286
  %319 = vst [vmem:[#allocation2 + $0x30] sm:$0xff] %v287
  %320 = vst [vmem:[#allocation2 + $0x38] sm:$0xff] %v288
  %321 = vst [vmem:[#allocation2 + $0x40] sm:$0xff] %v289
  %322 = vst [vmem:[#allocation2 + $0x48] sm:$0xff] %v290
  %323 = vst [vmem:[#allocation2 + $0x50] sm:$0xff] %v291
  %324 = vst [vmem:[#allocation2 + $0x58] sm:$0xff] %v292
  %325 = vst [vmem:[#allocation2 + $0x60] sm:$0xff] %v293
  %326 = vst [vmem:[#allocation2 + $0x68] sm:$0xff] %v294
  %327 = vst [vmem:[#allocation2 + $0x70] sm:$0xff] %v295
  %328 = vst [vmem:[#allocation2 + $0x78] sm:$0xff] %v296
  %329 = vst [vmem:[#allocation2 + $0x80] sm:$0xff] %v297
  %330 = vst [vmem:[#allocation2 + $0x88] sm:$0xff] %v298
  %331 = vst [vmem:[#allocation2 + $0x90] sm:$0xff] %v299
  %332 = vst [vmem:[#allocation2 + $0x98] sm:$0xff] %v300
  %333 = vst [vmem:[#allocation2 + $0xa0] sm:$0xff] %v301
  %334 = vst [vmem:[#allocation2 + $0xa8] sm:$0xff] %v302
  %335 = vst [vmem:[#allocation2 + $0xb0] sm:$0xff] %v303
  %336 = vst [vmem:[#allocation2 + $0xb8] sm:$0xff] %v304
  %337 = vst [vmem:[#allocation2 + $0xc0] sm:$0xff] %v305
  %338 = vst [vmem:[#allocation2 + $0xc8] sm:$0xff] %v306
  %339 = vst [vmem:[#allocation2 + $0xd0] sm:$0xff] %v307
  %340 = vst [vmem:[#allocation2 + $0xd8] sm:$0xff] %v308
  %341 = vst [vmem:[#allocation2 + $0xe0] sm:$0xff] %v309
  %342 = vst [vmem:[#allocation2 + $0xe8] sm:$0xff] %v310
  %343 = vst [vmem:[#allocation2 + $0xf0] sm:$0xff] %v311
  %344 = vst [vmem:[#allocation2 + $0xf8] sm:$0xff] %v312
  %s345 = scalar_lea.vmem [#allocation2], 240
  %v346 = vld [vmem:[%s345] sm:$0xff]
  %v347 = vld [vmem:[%s345 + $0x8] sm:$0xff]
  %v348 = vld [vmem:[#allocation2] sm:$0xff]
  %v349 = vld [vmem:[#allocation2 + $0x8] sm:$0xff]
  %v350 = vld [vmem:[#allocation2 + $0x10] sm:$0xff]
  %v351 = vld [vmem:[#allocation2 + $0x18] sm:$0xff]
  %v352 = vld [vmem:[#allocation2 + $0x20] sm:$0xff]
  %v353 = vld [vmem:[#allocation2 + $0x28] sm:$0xff]
  %v354 = vld [vmem:[#allocation2 + $0x30] sm:$0xff]
  %v355 = vld [vmem:[#allocation2 + $0x38] sm:$0xff]
  %v356 = vld [vmem:[#allocation2 + $0x40] sm:$0xff]
  %v357 = vld [vmem:[#allocation2 + $0x48] sm:$0xff]
  %v358 = vld [vmem:[#allocation2 + $0x50] sm:$0xff]
  %v359 = vld [vmem:[#allocation2 + $0x58] sm:$0xff]
  %v360 = vld [vmem:[#allocation2 + $0x60] sm:$0xff]
  %v361 = vld [vmem:[#allocation2 + $0x68] sm:$0xff]
  %v362 = vrot.slane %v346, 7
  %v363 = vrot.slane %v348, 7
  %v364 = vrot.slane %v350, 7
  %v365 = vrot.slane %v352, 7
  %v366 = vrot.slane %v354, 7
  %v367 = vrot.slane %v356, 7
  %v368 = vrot.slane %v358, 7
  %v369 = vrot.slane %v360, 7
  %v370 = vrot.slane %v347, 7
  %v371 = vrot.slane %v349, 7
  %v372 = vrot.slane %v351, 7
  %v373 = vrot.slane %v353, 7
  %v374 = vrot.slane %v355, 7
  %v375 = vrot.slane %v357, 7
  %v376 = vrot.slane %v359, 7
  %v377 = vrot.slane %v361, 7
  %v378 = vlaneseq
  %v379 = vshrl.u32 %v378, 7
  %vm380 = vcmp.lt.s32.totalorder %v379, 1
  %v381 = vsel %vm380, %v362, %v370
  %v382 = vsel %vm380, %v363, %v371
  %v383 = vsel %vm380, %v364, %v372
  %v384 = vsel %vm380, %v365, %v373
  %v385 = vsel %vm380, %v366, %v374
  %v386 = vsel %vm380, %v367, %v375
  %v387 = vsel %vm380, %v368, %v376
  %v388 = vsel %vm380, %v369, %v377
  %v389 = vsel %vm380, %v370, %v362
  %v390 = vsel %vm380, %v371, %v363
  %v391 = vsel %vm380, %v372, %v364
  %v392 = vsel %vm380, %v373, %v365
  %v393 = vsel %vm380, %v374, %v366
  %v394 = vsel %vm380, %v375, %v367
  %v395 = vsel %vm380, %v376, %v368
  %v396 = vsel %vm380, %v377, %v369
  %v397 = vld [vmem:[%s3] sm:$0x1]
  %v398 = vperm.slane %v397, 0
  %v399 = vmul.f32 %v389, %v398
  %v400 = vmul.f32 %v381, %v398
  %v401 = vmul.f32 %v390, %v398
  %v402 = vmul.f32 %v382, %v398
  %v403 = vmul.f32 %v391, %v398
  %v404 = vmul.f32 %v383, %v398
  %v405 = vmul.f32 %v392, %v398
  %v406 = vmul.f32 %v384, %v398
  %v407 = vmul.f32 %v393, %v398
  %v408 = vmul.f32 %v385, %v398
  %v409 = vmul.f32 %v394, %v398
  %v410 = vmul.f32 %v386, %v398
  %v411 = vmul.f32 %v395, %v398
  %v412 = vmul.f32 %v387, %v398
  %v413 = vmul.f32 %v396, %v398
  %v414 = vmul.f32 %v388, %v398
  %v415 = vadd.f32 %v399, 0.0
  %v416 = vadd.f32 %v400, 0.0
  %v417 = vadd.f32 %v401, 0.0
  %v418 = vadd.f32 %v402, 0.0
  %v419 = vadd.f32 %v403, 0.0
  %v420 = vadd.f32 %v404, 0.0
  %v421 = vadd.f32 %v405, 0.0
  %v422 = vadd.f32 %v406, 0.0
  %v423 = vadd.f32 %v407, 0.0
  %v424 = vadd.f32 %v408, 0.0
  %v425 = vadd.f32 %v409, 0.0
  %v426 = vadd.f32 %v410, 0.0
  %v427 = vadd.f32 %v411, 0.0
  %v428 = vadd.f32 %v412, 0.0
  %v429 = vadd.f32 %v413, 0.0
  %v430 = vadd.f32 %v414, 0.0
  %v431 = vld [vmem:[%s3 + $0x1] sm:$0x1]
  %v432 = vperm.slane %v431, 0
  %v433 = vmul.f32 %v346, %v432
  %v434 = vmul.f32 %v347, %v432
  %v435 = vmul.f32 %v348, %v432
  %v436 = vmul.f32 %v349, %v432
  %v437 = vmul.f32 %v350, %v432
  %v438 = vmul.f32 %v351, %v432
  %v439 = vmul.f32 %v352, %v432
  %v440 = vmul.f32 %v353, %v432
  %v441 = vmul.f32 %v354, %v432
  %v442 = vmul.f32 %v355, %v432
  %v443 = vmul.f32 %v356, %v432
  %v444 = vmul.f32 %v357, %v432
  %v445 = vmul.f32 %v358, %v432
  %v446 = vmul.f32 %v359, %v432
  %v447 = vmul.f32 %v360, %v432
  %v448 = vmul.f32 %v361, %v432
  %v449 = vadd.f32 %v415, %v433
  %v450 = vadd.f32 %v416, %v434
  %v451 = vadd.f32 %v417, %v435
  %v452 = vadd.f32 %v418, %v436
  %v453 = vadd.f32 %v419, %v437
  %v454 = vadd.f32 %v420, %v438
  %v455 = vadd.f32 %v421, %v439
  %v456 = vadd.f32 %v422, %v440
  %v457 = vadd.f32 %v423, %v441
  %v458 = vadd.f32 %v424, %v442
  %v459 = vadd.f32 %v425, %v443
  %v460 = vadd.f32 %v426, %v444
  %v461 = vadd.f32 %v427, %v445
  %v462 = vadd.f32 %v428, %v446
  %v463 = vadd.f32 %v429, %v447
  %v464 = vadd.f32 %v430, %v448
  %v465 = vrot.slane %v346, 1
  %v466 = vrot.slane %v348, 1
  %v467 = vrot.slane %v350, 1
  %v468 = vrot.slane %v352, 1
  %v469 = vrot.slane %v354, 1
  %v470 = vrot.slane %v356, 1
  %v471 = vrot.slane %v358, 1
  %v472 = vrot.slane %v360, 1
  %v473 = vrot.slane %v347, 1
  %v474 = vrot.slane %v349, 1
  %v475 = vrot.slane %v351, 1
  %v476 = vrot.slane %v353, 1
  %v477 = vrot.slane %v355, 1
  %v478 = vrot.slane %v357, 1
  %v479 = vrot.slane %v359, 1
  %v480 = vrot.slane %v361, 1
  %vm481 = vcmp.lt.s32.totalorder %v379, 7
  %v482 = vsel %vm481, %v465, %v473
  %v483 = vsel %vm481, %v466, %v474
  %v484 = vsel %vm481, %v467, %v475
  %v485 = vsel %vm481, %v468, %v476
  %v486 = vsel %vm481, %v469, %v477
  %v487 = vsel %vm481, %v470, %v478
  %v488 = vsel %vm481, %v471, %v479
  %v489 = vsel %vm481, %v472, %v480
  %v490 = vsel %vm481, %v473, %v465
  %v491 = vsel %vm481, %v474, %v466
  %v492 = vsel %vm481, %v475, %v467
  %v493 = vsel %vm481, %v476, %v468
  %v494 = vsel %vm481, %v477, %v469
  %v495 = vsel %vm481, %v478, %v470
  %v496 = vsel %vm481, %v479, %v471
  %v497 = vsel %vm481, %v480, %v472
  %v498 = vld [vmem:[%s3 + $0x2] sm:$0x1]
  %v499 = vperm.slane %v498, 0
  %v500 = vmul.f32 %v482, %v499
  %v501 = vmul.f32 %v490, %v499
  %v502 = vmul.f32 %v483, %v499
  %v503 = vmul.f32 %v491, %v499
  %v504 = vmul.f32 %v484, %v499
  %v505 = vmul.f32 %v492, %v499
  %v506 = vmul.f32 %v485, %v499
  %v507 = vmul.f32 %v493, %v499
  %v508 = vmul.f32 %v486, %v499
  %v509 = vmul.f32 %v494, %v499
  %v510 = vmul.f32 %v487, %v499
  %v511 = vmul.f32 %v495, %v499
  %v512 = vmul.f32 %v488, %v499
  %v513 = vmul.f32 %v496, %v499
  %v514 = vmul.f32 %v489, %v499
  %v515 = vmul.f32 %v497, %v499
  %v516 = vadd.f32 %v449, %v500
  %v517 = vadd.f32 %v450, %v501
  %v518 = vadd.f32 %v451, %v502
  %v519 = vadd.f32 %v452, %v503
  %v520 = vadd.f32 %v453, %v504
  %v521 = vadd.f32 %v454, %v505
  %v522 = vadd.f32 %v455, %v506
  %v523 = vadd.f32 %v456, %v507
  %v524 = vadd.f32 %v457, %v508
  %v525 = vadd.f32 %v458, %v509
  %v526 = vadd.f32 %v459, %v510
  %v527 = vadd.f32 %v460, %v511
  %v528 = vadd.f32 %v461, %v512
  %v529 = vadd.f32 %v462, %v513
  %v530 = vadd.f32 %v463, %v514
  %v531 = vadd.f32 %v464, %v515
  %v532 = vld [vmem:[#allocation2] sm:$0xff]
  %v533 = vld [vmem:[#allocation2 + $0x8] sm:$0xff]
  %v534 = vld [vmem:[#allocation2 + $0x10] sm:$0xff]
  %v535 = vld [vmem:[#allocation2 + $0x18] sm:$0xff]
  %v536 = vld [vmem:[#allocation2 + $0x20] sm:$0xff]
  %v537 = vld [vmem:[#allocation2 + $0x28] sm:$0xff]
  %v538 = vld [vmem:[#allocation2 + $0x30] sm:$0xff]
  %v539 = vld [vmem:[#allocation2 + $0x38] sm:$0xff]
  %v540 = vld [vmem:[#allocation2 + $0x40] sm:$0xff]
  %v541 = vld [vmem:[#allocation2 + $0x48] sm:$0xff]
  %v542 = vld [vmem:[#allocation2 + $0x50] sm:$0xff]
  %v543 = vld [vmem:[#allocation2 + $0x58] sm:$0xff]
  %v544 = vld [vmem:[#allocation2 + $0x60] sm:$0xff]
  %v545 = vld [vmem:[#allocation2 + $0x68] sm:$0xff]
  %v546 = vld [vmem:[#allocation2 + $0x70] sm:$0xff]
  %v547 = vld [vmem:[#allocation2 + $0x78] sm:$0xff]
  %v548 = vrot.slane %v532, 7
  %v549 = vrot.slane %v534, 7
  %v550 = vrot.slane %v536, 7
  %v551 = vrot.slane %v538, 7
  %v552 = vrot.slane %v540, 7
  %v553 = vrot.slane %v542, 7
  %v554 = vrot.slane %v544, 7
  %v555 = vrot.slane %v546, 7
  %v556 = vrot.slane %v533, 7
  %v557 = vrot.slane %v535, 7
  %v558 = vrot.slane %v537, 7
  %v559 = vrot.slane %v539, 7
  %v560 = vrot.slane %v541, 7
  %v561 = vrot.slane %v543, 7
  %v562 = vrot.slane %v545, 7
  %v563 = vrot.slane %v547, 7
  %v564 = vsel %vm380, %v548, %v556
  %v565 = vsel %vm380, %v549, %v557
  %v566 = vsel %vm380, %v550, %v558
  %v567 = vsel %vm380, %v551, %v559
  %v568 = vsel %vm380, %v552, %v560
  %v569 = vsel %vm380, %v553, %v561
  %v570 = vsel %vm380, %v554, %v562
  %v571 = vsel %vm380, %v555, %v563
  %v572 = vsel %vm380, %v556, %v548
  %v573 = vsel %vm380, %v557, %v549
  %v574 = vsel %vm380, %v558, %v550
  %v575 = vsel %vm380, %v559, %v551
  %v576 = vsel %vm380, %v560, %v552
  %v577 = vsel %vm380, %v561, %v553
  %v578 = vsel %vm380, %v562, %v554
  %v579 = vsel %vm380, %v563, %v555
  %s580 = scalar_lea.vmem %s3, 4
  %v581 = vld [vmem:[%s580] sm:$0x1]
  %v582 = vperm.slane %v581, 0
  %v583 = vmul.f32 %v572, %v582
  %v584 = vmul.f32 %v564, %v582
  %v585 = vmul.f32 %v573, %v582
  %v586 = vmul.f32 %v565, %v582
  %v587 = vmul.f32 %v574, %v582
  %v588 = vmul.f32 %v566, %v582
  %v589 = vmul.f32 %v575, %v582
  %v590 = vmul.f32 %v567, %v582
  %v591 = vmul.f32 %v576, %v582
  %v592 = vmul.f32 %v568, %v582
  %v593 = vmul.f32 %v577, %v582
  %v594 = vmul.f32 %v569, %v582
  %v595 = vmul.f32 %v578, %v582
  %v596 = vmul.f32 %v570, %v582
  %v597 = vmul.f32 %v579, %v582
  %v598 = vmul.f32 %v571, %v582
  %v599 = vadd.f32 %v516, %v583
  %v600 = vadd.f32 %v517, %v584
  %v601 = vadd.f32 %v518, %v585
  %v602 = vadd.f32 %v519, %v586
  %v603 = vadd.f32 %v520, %v587
  %v604 = vadd.f32 %v521, %v588
  %v605 = vadd.f32 %v522, %v589
  %v606 = vadd.f32 %v523, %v590
  %v607 = vadd.f32 %v524, %v591
  %v608 = vadd.f32 %v525, %v592
  %v609 = vadd.f32 %v526, %v593
  %v610 = vadd.f32 %v527, %v594
  %v611 = vadd.f32 %v528, %v595
  %v612 = vadd.f32 %v529, %v596
  %v613 = vadd.f32 %v530, %v597
  %v614 = vadd.f32 %v531, %v598
  %v615 = vld [vmem:[%s580 + $0x1] sm:$0x1]
  %v616 = vperm.slane %v615, 0
  %v617 = vmul.f32 %v532, %v616
  %v618 = vmul.f32 %v533, %v616
  %v619 = vmul.f32 %v534, %v616
  %v620 = vmul.f32 %v535, %v616
  %v621 = vmul.f32 %v536, %v616
  %v622 = vmul.f32 %v537, %v616
  %v623 = vmul.f32 %v538, %v616
  %v624 = vmul.f32 %v539, %v616
  %v625 = vmul.f32 %v540, %v616
  %v626 = vmul.f32 %v541, %v616
  %v627 = vmul.f32 %v542, %v616
  %v628 = vmul.f32 %v543, %v616
  %v629 = vmul.f32 %v544, %v616
  %v630 = vmul.f32 %v545, %v616
  %v631 = vmul.f32 %v546, %v616
  %v632 = vmul.f32 %v547, %v616
  %v633 = vadd.f32 %v599, %v617
  %v634 = vadd.f32 %v600, %v618
  %v635 = vadd.f32 %v601, %v619
  %v636 = vadd.f32 %v602, %v620
  %v637 = vadd.f32 %v603, %v621
  %v638 = vadd.f32 %v604, %v622
  %v639 = vadd.f32 %v605, %v623
  %v640 = vadd.f32 %v606, %v624
  %v641 = vadd.f32 %v607, %v625
  %v642 = vadd.f32 %v608, %v626
  %v643 = vadd.f32 %v609, %v627
  %v644 = vadd.f32 %v610, %v628
  %v645 = vadd.f32 %v611, %v629
  %v646 = vadd.f32 %v612, %v630
  %v647 = vadd.f32 %v613, %v631
  %v648 = vadd.f32 %v614, %v632
  %v649 = vrot.slane %v532, 1
  %v650 = vrot.slane %v534, 1
  %v651 = vrot.slane %v536, 1
  %v652 = vrot.slane %v538, 1
  %v653 = vrot.slane %v540, 1
  %v654 = vrot.slane %v542, 1
  %v655 = vrot.slane %v544, 1
  %v656 = vrot.slane %v546, 1
  %v657 = vrot.slane %v533, 1
  %v658 = vrot.slane %v535, 1
  %v659 = vrot.slane %v537, 1
  %v660 = vrot.slane %v539, 1
  %v661 = vrot.slane %v541, 1
  %v662 = vrot.slane %v543, 1
  %v663 = vrot.slane %v545, 1
  %v664 = vrot.slane %v547, 1
  %v665 = vsel %vm481, %v649, %v657
  %v666 = vsel %vm481, %v650, %v658
  %v667 = vsel %vm481, %v651, %v659
  %v668 = vsel %vm481, %v652, %v660
  %v669 = vsel %vm481, %v653, %v661
  %v670 = vsel %vm481, %v654, %v662
  %v671 = vsel %vm481, %v655, %v663
  %v672 = vsel %vm481, %v656, %v664
  %v673 = vsel %vm481, %v657, %v649
  %v674 = vsel %vm481, %v658, %v650
  %v675 = vsel %vm481, %v659, %v651
  %v676 = vsel %vm481, %v660, %v652
  %v677 = vsel %vm481, %v661, %v653
  %v678 = vsel %vm481, %v662, %v654
  %v679 = vsel %vm481, %v663, %v655
  %v680 = vsel %vm481, %v664, %v656
  %v681 = vld [vmem:[%s580 + $0x2] sm:$0x1]
  %v682 = vperm.slane %v681, 0
  %v683 = vmul.f32 %v665, %v682
  %v684 = vmul.f32 %v673, %v682
  %v685 = vmul.f32 %v666, %v682
  %v686 = vmul.f32 %v674, %v682
  %v687 = vmul.f32 %v667, %v682
  %v688 = vmul.f32 %v675, %v682
  %v689 = vmul.f32 %v668, %v682
  %v690 = vmul.f32 %v676, %v682
  %v691 = vmul.f32 %v669, %v682
  %v692 = vmul.f32 %v677, %v682
  %v693 = vmul.f32 %v670, %v682
  %v694 = vmul.f32 %v678, %v682
  %v695 = vmul.f32 %v671, %v682
  %v696 = vmul.f32 %v679, %v682
  %v697 = vmul.f32 %v672, %v682
  %v698 = vmul.f32 %v680, %v682
  %v699 = vadd.f32 %v633, %v683
  %v700 = vadd.f32 %v634, %v684
  %v701 = vadd.f32 %v635, %v685
  %v702 = vadd.f32 %v636, %v686
  %v703 = vadd.f32 %v637, %v687
  %v704 = vadd.f32 %v638, %v688
  %v705 = vadd.f32 %v639, %v689
  %v706 = vadd.f32 %v640, %v690
  %v707 = vadd.f32 %v641, %v691
  %v708 = vadd.f32 %v642, %v692
  %v709 = vadd.f32 %v643, %v693
  %v710 = vadd.f32 %v644, %v694
  %v711 = vadd.f32 %v645, %v695
  %v712 = vadd.f32 %v646, %v696
  %v713 = vadd.f32 %v647, %v697
  %v714 = vadd.f32 %v648, %v698
  %s715 = scalar_lea.vmem [#allocation2], 16
  %v716 = vld [vmem:[%s715] sm:$0xff]
  %v717 = vld [vmem:[%s715 + $0x8] sm:$0xff]
  %v718 = vld [vmem:[%s715 + $0x10] sm:$0xff]
  %v719 = vld [vmem:[%s715 + $0x18] sm:$0xff]
  %v720 = vld [vmem:[%s715 + $0x20] sm:$0xff]
  %v721 = vld [vmem:[%s715 + $0x28] sm:$0xff]
  %v722 = vld [vmem:[%s715 + $0x30] sm:$0xff]
  %v723 = vld [vmem:[%s715 + $0x38] sm:$0xff]
  %v724 = vld [vmem:[%s715 + $0x40] sm:$0xff]
  %v725 = vld [vmem:[%s715 + $0x48] sm:$0xff]
  %v726 = vld [vmem:[%s715 + $0x50] sm:$0xff]
  %v727 = vld [vmem:[%s715 + $0x58] sm:$0xff]
  %v728 = vld [vmem:[%s715 + $0x60] sm:$0xff]
  %v729 = vld [vmem:[%s715 + $0x68] sm:$0xff]
  %v730 = vld [vmem:[%s715 + $0x70] sm:$0xff]
  %v731 = vld [vmem:[%s715 + $0x78] sm:$0xff]
  %v732 = vrot.slane %v716, 7
  %v733 = vrot.slane %v718, 7
  %v734 = vrot.slane %v720, 7
  %v735 = vrot.slane %v722, 7
  %v736 = vrot.slane %v724, 7
  %v737 = vrot.slane %v726, 7
  %v738 = vrot.slane %v728, 7
  %v739 = vrot.slane %v730, 7
  %v740 = vrot.slane %v717, 7
  %v741 = vrot.slane %v719, 7
  %v742 = vrot.slane %v721, 7
  %v743 = vrot.slane %v723, 7
  %v744 = vrot.slane %v725, 7
  %v745 = vrot.slane %v727, 7
  %v746 = vrot.slane %v729, 7
  %v747 = vrot.slane %v731, 7
  %v748 = vsel %vm380, %v732, %v740
  %v749 = vsel %vm380, %v733, %v741
  %v750 = vsel %vm380, %v734, %v742
  %v751 = vsel %vm380, %v735, %v743
  %v752 = vsel %vm380, %v736, %v744
  %v753 = vsel %vm380, %v737, %v745
  %v754 = vsel %vm380, %v738, %v746
  %v755 = vsel %vm380, %v739, %v747
  %v756 = vsel %vm380, %v740, %v732
  %v757 = vsel %vm380, %v741, %v733
  %v758 = vsel %vm380, %v742, %v734
  %v759 = vsel %vm380, %v743, %v735
  %v760 = vsel %vm380, %v744, %v736
  %v761 = vsel %vm380, %v745, %v737
  %v762 = vsel %vm380, %v746, %v738
  %v763 = vsel %vm380, %v747, %v739
  %s764 = scalar_lea.vmem %s3, 8
  %v765 = vld [vmem:[%s764] sm:$0x1]
  %v766 = vperm.slane %v765, 0
  %v767 = vmul.f32 %v756, %v766
  %v768 = vmul.f32 %v748, %v766
  %v769 = vmul.f32 %v757, %v766
  %v770 = vmul.f32 %v749, %v766
  %v771 = vmul.f32 %v758, %v766
  %v772 = vmul.f32 %v750, %v766
  %v773 = vmul.f32 %v759, %v766
  %v774 = vmul.f32 %v751, %v766
  %v775 = vmul.f32 %v760, %v766
  %v776 = vmul.f32 %v752, %v766
  %v777 = vmul.f32 %v761, %v766
  %v778 = vmul.f32 %v753, %v766
  %v779 = vmul.f32 %v762, %v766
  %v780 = vmul.f32 %v754, %v766
  %v781 = vmul.f32 %v763, %v766
  %v782 = vmul.f32 %v755, %v766
  %v783 = vadd.f32 %v699, %v767
  %v784 = vadd.f32 %v700, %v768
  %v785 = vadd.f32 %v701, %v769
  %v786 = vadd.f32 %v702, %v770
  %v787 = vadd.f32 %v703, %v771
  %v788 = vadd.f32 %v704, %v772
  %v789 = vadd.f32 %v705, %v773
  %v790 = vadd.f32 %v706, %v774
  %v791 = vadd.f32 %v707, %v775
  %v792 = vadd.f32 %v708, %v776
  %v793 = vadd.f32 %v709, %v777
  %v794 = vadd.f32 %v710, %v778
  %v795 = vadd.f32 %v711, %v779
  %v796 = vadd.f32 %v712, %v780
  %v797 = vadd.f32 %v713, %v781
  %v798 = vadd.f32 %v714, %v782
  %v799 = vld [vmem:[%s764 + $0x1] sm:$0x1]
  %v800 = vperm.slane %v799, 0
  %v801 = vmul.f32 %v716, %v800
  %v802 = vmul.f32 %v717, %v800
  %v803 = vmul.f32 %v718, %v800
  %v804 = vmul.f32 %v719, %v800
  %v805 = vmul.f32 %v720, %v800
  %v806 = vmul.f32 %v721, %v800
  %v807 = vmul.f32 %v722, %v800
  %v808 = vmul.f32 %v723, %v800
  %v809 = vmul.f32 %v724, %v800
  %v810 = vmul.f32 %v725, %v800
  %v811 = vmul.f32 %v726, %v800
  %v812 = vmul.f32 %v727, %v800
  %v813 = vmul.f32 %v728, %v800
  %v814 = vmul.f32 %v729, %v800
  %v815 = vmul.f32 %v730, %v800
  %v816 = vmul.f32 %v731, %v800
  %v817 = vadd.f32 %v783, %v801
  %v818 = vadd.f32 %v784, %v802
  %v819 = vadd.f32 %v785, %v803
  %v820 = vadd.f32 %v786, %v804
  %v821 = vadd.f32 %v787, %v805
  %v822 = vadd.f32 %v788, %v806
  %v823 = vadd.f32 %v789, %v807
  %v824 = vadd.f32 %v790, %v808
  %v825 = vadd.f32 %v791, %v809
  %v826 = vadd.f32 %v792, %v810
  %v827 = vadd.f32 %v793, %v811
  %v828 = vadd.f32 %v794, %v812
  %v829 = vadd.f32 %v795, %v813
  %v830 = vadd.f32 %v796, %v814
  %v831 = vadd.f32 %v797, %v815
  %v832 = vadd.f32 %v798, %v816
  %v833 = vrot.slane %v716, 1
  %v834 = vrot.slane %v718, 1
  %v835 = vrot.slane %v720, 1
  %v836 = vrot.slane %v722, 1
  %v837 = vrot.slane %v724, 1
  %v838 = vrot.slane %v726, 1
  %v839 = vrot.slane %v728, 1
  %v840 = vrot.slane %v730, 1
  %v841 = vrot.slane %v717, 1
  %v842 = vrot.slane %v719, 1
  %v843 = vrot.slane %v721, 1
  %v844 = vrot.slane %v723, 1
  %v845 = vrot.slane %v725, 1
  %v846 = vrot.slane %v727, 1
  %v847 = vrot.slane %v729, 1
  %v848 = vrot.slane %v731, 1
  %v849 = vsel %vm481, %v833, %v841
  %v850 = vsel %vm481, %v834, %v842
  %v851 = vsel %vm481, %v835, %v843
  %v852 = vsel %vm481, %v836, %v844
  %v853 = vsel %vm481, %v837, %v845
  %v854 = vsel %vm481, %v838, %v846
  %v855 = vsel %vm481, %v839, %v847
  %v856 = vsel %vm481, %v840, %v848
  %v857 = vsel %vm481, %v841, %v833
  %v858 = vsel %vm481, %v842, %v834
  %v859 = vsel %vm481, %v843, %v835
  %v860 = vsel %vm481, %v844, %v836
  %v861 = vsel %vm481, %v845, %v837
  %v862 = vsel %vm481, %v846, %v838
  %v863 = vsel %vm481, %v847, %v839
  %v864 = vsel %vm481, %v848, %v840
  %v865 = vld [vmem:[%s764 + $0x2] sm:$0x1]
  %v866 = vperm.slane %v865, 0
  %v867 = vmul.f32 %v849, %v866
  %v868 = vmul.f32 %v857, %v866
  %v869 = vmul.f32 %v850, %v866
  %v870 = vmul.f32 %v858, %v866
  %v871 = vmul.f32 %v851, %v866
  %v872 = vmul.f32 %v859, %v866
  %v873 = vmul.f32 %v852, %v866
  %v874 = vmul.f32 %v860, %v866
  %v875 = vmul.f32 %v853, %v866
  %v876 = vmul.f32 %v861, %v866
  %v877 = vmul.f32 %v854, %v866
  %v878 = vmul.f32 %v862, %v866
  %v879 = vmul.f32 %v855, %v866
  %v880 = vmul.f32 %v863, %v866
  %v881 = vmul.f32 %v856, %v866
  %v882 = vmul.f32 %v864, %v866
  %v883 = vadd.f32 %v817, %v867
  %v884 = vadd.f32 %v818, %v868
  %v885 = vadd.f32 %v819, %v869
  %v886 = vadd.f32 %v820, %v870
  %v887 = vadd.f32 %v821, %v871
  %v888 = vadd.f32 %v822, %v872
  %v889 = vadd.f32 %v823, %v873
  %v890 = vadd.f32 %v824, %v874
  %v891 = vadd.f32 %v825, %v875
  %v892 = vadd.f32 %v826, %v876
  %v893 = vadd.f32 %v827, %v877
  %v894 = vadd.f32 %v828, %v878
  %v895 = vadd.f32 %v829, %v879
  %v896 = vadd.f32 %v830, %v880
  %v897 = vadd.f32 %v831, %v881
  %v898 = vadd.f32 %v832, %v882
  %v899 = vld [vmem:[%s4] sm:$0xff]
  %v900 = vld [vmem:[%s4 + $0x8] sm:$0xff]
  %v901 = vld [vmem:[%s4 + $0x10] sm:$0xff]
  %v902 = vld [vmem:[%s4 + $0x18] sm:$0xff]
  %v903 = vld [vmem:[%s4 + $0x20] sm:$0xff]
  %v904 = vld [vmem:[%s4 + $0x28] sm:$0xff]
  %v905 = vld [vmem:[%s4 + $0x30] sm:$0xff]
  %v906 = vld [vmem:[%s4 + $0x38] sm:$0xff]
  %v907 = vld [vmem:[%s4 + $0x40] sm:$0xff]
  %v908 = vld [vmem:[%s4 + $0x48] sm:$0xff]
  %v909 = vld [vmem:[%s4 + $0x50] sm:$0xff]
  %v910 = vld [vmem:[%s4 + $0x58] sm:$0xff]
  %v911 = vld [vmem:[%s4 + $0x60] sm:$0xff]
  %v912 = vld [vmem:[%s4 + $0x68] sm:$0xff]
  %v913 = vld [vmem:[%s4 + $0x70] sm:$0xff]
  %v914 = vld [vmem:[%s4 + $0x78] sm:$0xff]
  %915 = vmatpush.msra.mxu0 %v914
  %916 = vmatpush.msra.mxu0 %v913
  %917 = vmatpush.msra.mxu0 %v912
  %918 = vmatpush.msra.mxu0 %v911
  %919 = vmatpush.msra.mxu0 %v910
  %920 = vmatpush.msra.mxu0 %v909
  %921 = vmatpush.msra.mxu0 %v908
  %922 = vmatpush.msra.mxu0 %v907
  %923 = vmatpush.msra.mxu0 %v906
  %924 = vmatpush.msra.mxu0 %v905
  %925 = vmatpush.msra.mxu0 %v904
  %926 = vmatpush.msra.mxu0 %v903
  %927 = vmatpush.msra.mxu0 %v902
  %928 = vmatpush.msra.mxu0 %v901
  %929 = vmatpush.msra.mxu0 %v900
  %930 = vmatpush.msra.mxu0 %v899
  %931 = vmatmul.f32.gmra.mxu0 %v883
  %v932 = vpop.f32.mrf.mxu0
  %v933 = vadd.f32 0.0, %v932
  %934 = vmatmul.f32.gmra.mxu0 %v884
  %v935 = vpop.f32.mrf.mxu0
  %v936 = vadd.f32 0.0, %v935
  %937 = vmatmul.f32.gmra.mxu0 %v885
  %v938 = vpop.f32.mrf.mxu0
  %v939 = vadd.f32 0.0, %v938
  %940 = vmatmul.f32.gmra.mxu0 %v886
  %v941 = vpop.f32.mrf.mxu0
  %v942 = vadd.f32 0.0, %v941
  %943 = vmatmul.f32.gmra.mxu0 %v887
  %v944 = vpop.f32.mrf.mxu0
  %v945 = vadd.f32 0.0, %v944
  %946 = vmatmul.f32.gmra.mxu0 %v888
  %v947 = vpop.f32.mrf.mxu0
  %v948 = vadd.f32 0.0, %v947
  %949 = vmatmul.f32.gmra.mxu0 %v889
  %v950 = vpop.f32.mrf.mxu0
  %v951 = vadd.f32 0.0, %v950
  %952 = vmatmul.f32.gmra.mxu0 %v890
  %v953 = vpop.f32.mrf.mxu0
  %v954 = vadd.f32 0.0, %v953
  %955 = vmatmul.f32.gmra.mxu0 %v891
  %v956 = vpop.f32.mrf.mxu0
  %v957 = vadd.f32 0.0, %v956
  %958 = vmatmul.f32.gmra.mxu0 %v892
  %v959 = vpop.f32.mrf.mxu0
  %v960 = vadd.f32 0.0, %v959
  %961 = vmatmul.f32.gmra.mxu0 %v893
  %v962 = vpop.f32.mrf.mxu0
  %v963 = vadd.f32 0.0, %v962
  %964 = vmatmul.f32.gmra.mxu0 %v894
  %v965 = vpop.f32.mrf.mxu0
  %v966 = vadd.f32 0.0, %v965
  %967 = vmatmul.f32.gmra.mxu0 %v895
  %v968 = vpop.f32.mrf.mxu0
  %v969 = vadd.f32 0.0, %v968
  %970 = vmatmul.f32.gmra.mxu0 %v896
  %v971 = vpop.f32.mrf.mxu0
  %v972 = vadd.f32 0.0, %v971
  %973 = vmatmul.f32.gmra.mxu0 %v897
  %v974 = vpop.f32.mrf.mxu0
  %v975 = vadd.f32 0.0, %v974
  %976 = vmatmul.f32.gmra.mxu0 %v898
  %v977 = vpop.f32.mrf.mxu0
  %v978 = vadd.f32 0.0, %v977
  %979 = vdwg.mxu0
  %v980 = vmax.f32 %v933, 0.0
  %v981 = vmax.f32 %v936, 0.0
  %v982 = vmax.f32 %v939, 0.0
  %v983 = vmax.f32 %v942, 0.0
  %v984 = vmax.f32 %v945, 0.0
  %v985 = vmax.f32 %v948, 0.0
  %v986 = vmax.f32 %v951, 0.0
  %v987 = vmax.f32 %v954, 0.0
  %v988 = vmax.f32 %v957, 0.0
  %v989 = vmax.f32 %v960, 0.0
  %v990 = vmax.f32 %v963, 0.0
  %v991 = vmax.f32 %v966, 0.0
  %v992 = vmax.f32 %v969, 0.0
  %v993 = vmax.f32 %v972, 0.0
  %v994 = vmax.f32 %v975, 0.0
  %v995 = vmax.f32 %v978, 0.0
  %v996 = vadd.f32 %v980, %v532
  %v997 = vadd.f32 %v981, %v533
  %v998 = vadd.f32 %v982, %v534
  %v999 = vadd.f32 %v983, %v535
  %v1000 = vadd.f32 %v984, %v536
  %v1001 = vadd.f32 %v985, %v537
  %v1002 = vadd.f32 %v986, %v538
  %v1003 = vadd.f32 %v987, %v539
  %v1004 = vadd.f32 %v988, %v540
  %v1005 = vadd.f32 %v989, %v541
  %v1006 = vadd.f32 %v990, %v542
  %v1007 = vadd.f32 %v991, %v543
  %v1008 = vadd.f32 %v992, %v544
  %v1009 = vadd.f32 %v993, %v545
  %v1010 = vadd.f32 %v994, %v546
  %v1011 = vadd.f32 %v995, %v547
  %1012 = vst [vmem:[#allocation3] sm:$0xff] %v996
  %1013 = vst [vmem:[#allocation3 + $0x8] sm:$0xff] %v997
  %1014 = vst [vmem:[#allocation3 + $0x10] sm:$0xff] %v998
  %1015 = vst [vmem:[#allocation3 + $0x18] sm:$0xff] %v999
  %1016 = vst [vmem:[#allocation3 + $0x20] sm:$0xff] %v1000
  %1017 = vst [vmem:[#allocation3 + $0x28] sm:$0xff] %v1001
  %1018 = vst [vmem:[#allocation3 + $0x30] sm:$0xff] %v1002
  %1019 = vst [vmem:[#allocation3 + $0x38] sm:$0xff] %v1003
  %1020 = vst [vmem:[#allocation3 + $0x40] sm:$0xff] %v1004
  %1021 = vst [vmem:[#allocation3 + $0x48] sm:$0xff] %v1005
  %1022 = vst [vmem:[#allocation3 + $0x50] sm:$0xff] %v1006
  %1023 = vst [vmem:[#allocation3 + $0x58] sm:$0xff] %v1007
  %1024 = vst [vmem:[#allocation3 + $0x60] sm:$0xff] %v1008
  %1025 = vst [vmem:[#allocation3 + $0x68] sm:$0xff] %v1009
  %1026 = vst [vmem:[#allocation3 + $0x70] sm:$0xff] %v1010
  %1027 = vst [vmem:[#allocation3 + $0x78] sm:$0xff] %v1011
  %s1028 = scalar_lea.vmem [#allocation2], 112
  %v1029 = vld [vmem:[%s1028] sm:$0xff]
  %v1030 = vld [vmem:[%s1028 + $0x8] sm:$0xff]
  %v1031 = vld [vmem:[%s1028 + $0x10] sm:$0xff]
  %v1032 = vld [vmem:[%s1028 + $0x18] sm:$0xff]
  %v1033 = vld [vmem:[%s1028 + $0x20] sm:$0xff]
  %v1034 = vld [vmem:[%s1028 + $0x28] sm:$0xff]
  %v1035 = vld [vmem:[%s1028 + $0x30] sm:$0xff]
  %v1036 = vld [vmem:[%s1028 + $0x38] sm:$0xff]
  %v1037 = vld [vmem:[%s1028 + $0x40] sm:$0xff]
  %v1038 = vld [vmem:[%s1028 + $0x48] sm:$0xff]
  %v1039 = vld [vmem:[%s1028 + $0x50] sm:$0xff]
  %v1040 = vld [vmem:[%s1028 + $0x58] sm:$0xff]
  %v1041 = vld [vmem:[%s1028 + $0x60] sm:$0xff]
  %v1042 = vld [vmem:[%s1028 + $0x68] sm:$0xff]
  %v1043 = vld [vmem:[%s1028 + $0x70] sm:$0xff]
  %v1044 = vld [vmem:[%s1028 + $0x78] sm:$0xff]
  %v1045 = vrot.slane %v1029, 7
  %v1046 = vrot.slane %v1031, 7
  %v1047 = vrot.slane %v1033, 7
  %v1048 = vrot.slane %v1035, 7
  %v1049 = vrot.slane %v1037, 7
  %v1050 = vrot.slane %v1039, 7
  %v1051 = vrot.slane %v1041, 7
  %v1052 = vrot.slane %v1043, 7
  %v1053 = vrot.slane %v1030, 7
  %v1054 = vrot.slane %v1032, 7
  %v1055 = vrot.slane %v1034, 7
  %v1056 = vrot.slane %v1036, 7
  %v1057 = vrot.slane %v1038, 7
  %v1058 = vrot.slane %v1040, 7
  %v1059 = vrot.slane %v1042, 7
  %v1060 = vrot.slane %v1044, 7
  %v1061 = vsel %vm380, %v1045, %v1053
  %v1062 = vsel %vm380, %v1046, %v1054
  %v1063 = vsel %vm380, %v1047, %v1055
  %v1064 = vsel %vm380, %v1048, %v1056
  %v1065 = vsel %vm380, %v1049, %v1057
  %v1066 = vsel %vm380, %v1050, %v1058
  %v1067 = vsel %vm380, %v1051, %v1059
  %v1068 = vsel %vm380, %v1052, %v1060
  %v1069 = vsel %vm380, %v1053, %v1045
  %v1070 = vsel %vm380, %v1054, %v1046
  %v1071 = vsel %vm380, %v1055, %v1047
  %v1072 = vsel %vm380, %v1056, %v1048
  %v1073 = vsel %vm380, %v1057, %v1049
  %v1074 = vsel %vm380, %v1058, %v1050
  %v1075 = vsel %vm380, %v1059, %v1051
  %v1076 = vsel %vm380, %v1060, %v1052
  %v1077 = vld [vmem:[%s3] sm:$0x1]
  %v1078 = vperm.slane %v1077, 0
  %v1079 = vmul.f32 %v1069, %v1078
  %v1080 = vmul.f32 %v1061, %v1078
  %v1081 = vmul.f32 %v1070, %v1078
  %v1082 = vmul.f32 %v1062, %v1078
  %v1083 = vmul.f32 %v1071, %v1078
  %v1084 = vmul.f32 %v1063, %v1078
  %v1085 = vmul.f32 %v1072, %v1078
  %v1086 = vmul.f32 %v1064, %v1078
  %v1087 = vmul.f32 %v1073, %v1078
  %v1088 = vmul.f32 %v1065, %v1078
  %v1089 = vmul.f32 %v1074, %v1078
  %v1090 = vmul.f32 %v1066, %v1078
  %v1091 = vmul.f32 %v1075, %v1078
  %v1092 = vmul.f32 %v1067, %v1078
  %v1093 = vmul.f32 %v1076, %v1078
  %v1094 = vmul.f32 %v1068, %v1078
  %v1095 = vadd.f32 %v1079, 0.0
  %v1096 = vadd.f32 %v1080, 0.0
  %v1097 = vadd.f32 %v1081, 0.0
  %v1098 = vadd.f32 %v1082, 0.0
  %v1099 = vadd.f32 %v1083, 0.0
  %v1100 = vadd.f32 %v1084, 0.0
  %v1101 = vadd.f32 %v1085, 0.0
  %v1102 = vadd.f32 %v1086, 0.0
  %v1103 = vadd.f32 %v1087, 0.0
  %v1104 = vadd.f32 %v1088, 0.0
  %v1105 = vadd.f32 %v1089, 0.0
  %v1106 = vadd.f32 %v1090, 0.0
  %v1107 = vadd.f32 %v1091, 0.0
  %v1108 = vadd.f32 %v1092, 0.0
  %v1109 = vadd.f32 %v1093, 0.0
  %v1110 = vadd.f32 %v1094, 0.0
  %v1111 = vld [vmem:[%s3 + $0x1] sm:$0x1]
  %v1112 = vperm.slane %v1111, 0
  %v1113 = vmul.f32 %v1029, %v1112
  %v1114 = vmul.f32 %v1030, %v1112
  %v1115 = vmul.f32 %v1031, %v1112
  %v1116 = vmul.f32 %v1032, %v1112
  %v1117 = vmul.f32 %v1033, %v1112
  %v1118 = vmul.f32 %v1034, %v1112
  %v1119 = vmul.f32 %v1035, %v1112
  %v1120 = vmul.f32 %v1036, %v1112
  %v1121 = vmul.f32 %v1037, %v1112
  %v1122 = vmul.f32 %v1038, %v1112
  %v1123 = vmul.f32 %v1039, %v1112
  %v1124 = vmul.f32 %v1040, %v1112
  %v1125 = vmul.f32 %v1041, %v1112
  %v1126 = vmul.f32 %v1042, %v1112
  %v1127 = vmul.f32 %v1043, %v1112
  %v1128 = vmul.f32 %v1044, %v1112
  %v1129 = vadd.f32 %v1095, %v1113
  %v1130 = vadd.f32 %v1096, %v1114
  %v1131 = vadd.f32 %v1097, %v1115
  %v1132 = vadd.f32 %v1098, %v1116
  %v1133 = vadd.f32 %v1099, %v1117
  %v1134 = vadd.f32 %v1100, %v1118
  %v1135 = vadd.f32 %v1101, %v1119
  %v1136 = vadd.f32 %v1102, %v1120
  %v1137 = vadd.f32 %v1103, %v1121
  %v1138 = vadd.f32 %v1104, %v1122
  %v1139 = vadd.f32 %v1105, %v1123
  %v1140 = vadd.f32 %v1106, %v1124
  %v1141 = vadd.f32 %v1107, %v1125
  %v1142 = vadd.f32 %v1108, %v1126
  %v1143 = vadd.f32 %v1109, %v1127
  %v1144 = vadd.f32 %v1110, %v1128
  %v1145 = vrot.slane %v1029, 1
  %v1146 = vrot.slane %v1031, 1
  %v1147 = vrot.slane %v1033, 1
  %v1148 = vrot.slane %v1035, 1
  %v1149 = vrot.slane %v1037, 1
  %v1150 = vrot.slane %v1039, 1
  %v1151 = vrot.slane %v1041, 1
  %v1152 = vrot.slane %v1043, 1
  %v1153 = vrot.slane %v1030, 1
  %v1154 = vrot.slane %v1032, 1
  %v1155 = vrot.slane %v1034, 1
  %v1156 = vrot.slane %v1036, 1
  %v1157 = vrot.slane %v1038, 1
  %v1158 = vrot.slane %v1040, 1
  %v1159 = vrot.slane %v1042, 1
  %v1160 = vrot.slane %v1044, 1
  %v1161 = vsel %vm481, %v1145, %v1153
  %v1162 = vsel %vm481, %v1146, %v1154
  %v1163 = vsel %vm481, %v1147, %v1155
  %v1164 = vsel %vm481, %v1148, %v1156
  %v1165 = vsel %vm481, %v1149, %v1157
  %v1166 = vsel %vm481, %v1150, %v1158
  %v1167 = vsel %vm481, %v1151, %v1159
  %v1168 = vsel %vm481, %v1152, %v1160
  %v1169 = vsel %vm481, %v1153, %v1145
  %v1170 = vsel %vm481, %v1154, %v1146
  %v1171 = vsel %vm481, %v1155, %v1147
  %v1172 = vsel %vm481, %v1156, %v1148
  %v1173 = vsel %vm481, %v1157, %v1149
  %v1174 = vsel %vm481, %v1158, %v1150
  %v1175 = vsel %vm481, %v1159, %v1151
  %v1176 = vsel %vm481, %v1160, %v1152
  %v1177 = vld [vmem:[%s3 + $0x2] sm:$0x1]
  %v1178 = vperm.slane %v1177, 0
  %v1179 = vmul.f32 %v1161, %v1178
  %v1180 = vmul.f32 %v1169, %v1178
  %v1181 = vmul.f32 %v1162, %v1178
  %v1182 = vmul.f32 %v1170, %v1178
  %v1183 = vmul.f32 %v1163, %v1178
  %v1184 = vmul.f32 %v1171, %v1178
  %v1185 = vmul.f32 %v1164, %v1178
  %v1186 = vmul.f32 %v1172, %v1178
  %v1187 = vmul.f32 %v1165, %v1178
  %v1188 = vmul.f32 %v1173, %v1178
  %v1189 = vmul.f32 %v1166, %v1178
  %v1190 = vmul.f32 %v1174, %v1178
  %v1191 = vmul.f32 %v1167, %v1178
  %v1192 = vmul.f32 %v1175, %v1178
  %v1193 = vmul.f32 %v1168, %v1178
  %v1194 = vmul.f32 %v1176, %v1178
  %v1195 = vadd.f32 %v1129, %v1179
  %v1196 = vadd.f32 %v1130, %v1180
  %v1197 = vadd.f32 %v1131, %v1181
  %v1198 = vadd.f32 %v1132, %v1182
  %v1199 = vadd.f32 %v1133, %v1183
  %v1200 = vadd.f32 %v1134, %v1184
  %v1201 = vadd.f32 %v1135, %v1185
  %v1202 = vadd.f32 %v1136, %v1186
  %v1203 = vadd.f32 %v1137, %v1187
  %v1204 = vadd.f32 %v1138, %v1188
  %v1205 = vadd.f32 %v1139, %v1189
  %v1206 = vadd.f32 %v1140, %v1190
  %v1207 = vadd.f32 %v1141, %v1191
  %v1208 = vadd.f32 %v1142, %v1192
  %v1209 = vadd.f32 %v1143, %v1193
  %v1210 = vadd.f32 %v1144, %v1194
  %s1211 = scalar_lea.vmem [#allocation2], 128
  %v1212 = vld [vmem:[%s1211] sm:$0xff]
  %v1213 = vld [vmem:[%s1211 + $0x8] sm:$0xff]
  %v1214 = vld [vmem:[%s1211 + $0x10] sm:$0xff]
  %v1215 = vld [vmem:[%s1211 + $0x18] sm:$0xff]
  %v1216 = vld [vmem:[%s1211 + $0x20] sm:$0xff]
  %v1217 = vld [vmem:[%s1211 + $0x28] sm:$0xff]
  %v1218 = vld [vmem:[%s1211 + $0x30] sm:$0xff]
  %v1219 = vld [vmem:[%s1211 + $0x38] sm:$0xff]
  %v1220 = vld [vmem:[%s1211 + $0x40] sm:$0xff]
  %v1221 = vld [vmem:[%s1211 + $0x48] sm:$0xff]
  %v1222 = vld [vmem:[%s1211 + $0x50] sm:$0xff]
  %v1223 = vld [vmem:[%s1211 + $0x58] sm:$0xff]
  %v1224 = vld [vmem:[%s1211 + $0x60] sm:$0xff]
  %v1225 = vld [vmem:[%s1211 + $0x68] sm:$0xff]
  %v1226 = vld [vmem:[%s1211 + $0x70] sm:$0xff]
  %v1227 = vld [vmem:[%s1211 + $0x78] sm:$0xff]
  %v1228 = vrot.slane %v1212, 7
  %v1229 = vrot.slane %v1214, 7
  %v1230 = vrot.slane %v1216, 7
  %v1231 = vrot.slane %v1218, 7
  %v1232 = vrot.slane %v1220, 7
  %v1233 = vrot.slane %v1222, 7
  %v1234 = vrot.slane %v1224, 7
  %v1235 = vrot.slane %v1226, 7
  %v1236 = vrot.slane %v1213, 7
  %v1237 = vrot.slane %v1215, 7
  %v1238 = vrot.slane %v1217, 7
  %v1239 = vrot.slane %v1219, 7
  %v1240 = vrot.slane %v1221, 7
  %v1241 = vrot.slane %v1223, 7
  %v1242 = vrot.slane %v1225, 7
  %v1243 = vrot.slane %v1227, 7
  %v1244 = vsel %vm380, %v1228, %v1236
  %v1245 = vsel %vm380, %v1229, %v1237
  %v1246 = vsel %vm380, %v1230, %v1238
  %v1247 = vsel %vm380, %v1231, %v1239
  %v1248 = vsel %vm380, %v1232, %v1240
  %v1249 = vsel %vm380, %v1233, %v1241
  %v1250 = vsel %vm380, %v1234, %v1242
  %v1251 = vsel %vm380, %v1235, %v1243
  %v1252 = vsel %vm380, %v1236, %v1228
  %v1253 = vsel %vm380, %v1237, %v1229
  %v1254 = vsel %vm380, %v1238, %v1230
  %v1255 = vsel %vm380, %v1239, %v1231
  %v1256 = vsel %vm380, %v1240, %v1232
  %v1257 = vsel %vm380, %v1241, %v1233
  %v1258 = vsel %vm380, %v1242, %v1234
  %v1259 = vsel %vm380, %v1243, %v1235
  %v1260 = vld [vmem:[%s580] sm:$0x1]
  %v1261 = vperm.slane %v1260, 0
  %v1262 = vmul.f32 %v1252, %v1261
  %v1263 = vmul.f32 %v1244, %v1261
  %v1264 = vmul.f32 %v1253, %v1261
  %v1265 = vmul.f32 %v1245, %v1261
  %v1266 = vmul.f32 %v1254, %v1261
  %v1267 = vmul.f32 %v1246, %v1261
  %v1268 = vmul.f32 %v1255, %v1261
  %v1269 = vmul.f32 %v1247, %v1261
  %v1270 = vmul.f32 %v1256, %v1261
  %v1271 = vmul.f32 %v1248, %v1261
  %v1272 = vmul.f32 %v1257, %v1261
  %v1273 = vmul.f32 %v1249, %v1261
  %v1274 = vmul.f32 %v1258, %v1261
  %v1275 = vmul.f32 %v1250, %v1261
  %v1276 = vmul.f32 %v1259, %v1261
  %v1277 = vmul.f32 %v1251, %v1261
  %v1278 = vadd.f32 %v1195, %v1262
  %v1279 = vadd.f32 %v1196, %v1263
  %v1280 = vadd.f32 %v1197, %v1264
  %v1281 = vadd.f32 %v1198, %v1265
  %v1282 = vadd.f32 %v1199, %v1266
  %v1283 = vadd.f32 %v1200, %v1267
  %v1284 = vadd.f32 %v1201, %v1268
  %v1285 = vadd.f32 %v1202, %v1269
  %v1286 = vadd.f32 %v1203, %v1270
  %v1287 = vadd.f32 %v1204, %v1271
  %v1288 = vadd.f32 %v1205, %v1272
  %v1289 = vadd.f32 %v1206, %v1273
  %v1290 = vadd.f32 %v1207, %v1274
  %v1291 = vadd.f32 %v1208, %v1275
  %v1292 = vadd.f32 %v1209, %v1276
  %v1293 = vadd.f32 %v1210, %v1277
  %v1294 = vld [vmem:[%s580 + $0x1] sm:$0x1]
  %v1295 = vperm.slane %v1294, 0
  %v1296 = vmul.f32 %v1212, %v1295
  %v1297 = vmul.f32 %v1213, %v1295
  %v1298 = vmul.f32 %v1214, %v1295
  %v1299 = vmul.f32 %v1215, %v1295
  %v1300 = vmul.f32 %v1216, %v1295
  %v1301 = vmul.f32 %v1217, %v1295
  %v1302 = vmul.f32 %v1218, %v1295
  %v1303 = vmul.f32 %v1219, %v1295
  %v1304 = vmul.f32 %v1220, %v1295
  %v1305 = vmul.f32 %v1221, %v1295
  %v1306 = vmul.f32 %v1222, %v1295
  %v1307 = vmul.f32 %v1223, %v1295
  %v1308 = vmul.f32 %v1224, %v1295
  %v1309 = vmul.f32 %v1225, %v1295
  %v1310 = vmul.f32 %v1226, %v1295
  %v1311 = vmul.f32 %v1227, %v1295
  %v1312 = vadd.f32 %v1278, %v1296
  %v1313 = vadd.f32 %v1279, %v1297
  %v1314 = vadd.f32 %v1280, %v1298
  %v1315 = vadd.f32 %v1281, %v1299
  %v1316 = vadd.f32 %v1282, %v1300
  %v1317 = vadd.f32 %v1283, %v1301
  %v1318 = vadd.f32 %v1284, %v1302
  %v1319 = vadd.f32 %v1285, %v1303
  %v1320 = vadd.f32 %v1286, %v1304
  %v1321 = vadd.f32 %v1287, %v1305
  %v1322 = vadd.f32 %v1288, %v1306
  %v1323 = vadd.f32 %v1289, %v1307
  %v1324 = vadd.f32 %v1290, %v1308
  %v1325 = vadd.f32 %v1291, %v1309
  %v1326 = vadd.f32 %v1292, %v1310
  %v1327 = vadd.f32 %v1293, %v1311
  %v1328 = vrot.slane %v1212, 1
  %v1329 = vrot.slane %v1214, 1
  %v1330 = vrot.slane %v1216, 1
  %v1331 = vrot.slane %v1218, 1
  %v1332 = vrot.slane %v1220, 1
  %v1333 = vrot.slane %v1222, 1
  %v1334 = vrot.slane %v1224, 1
  %v1335 = vrot.slane %v1226, 1
  %v1336 = vrot.slane %v1213, 1
  %v1337 = vrot.slane %v1215, 1
  %v1338 = vrot.slane %v1217, 1
  %v1339 = vrot.slane %v1219, 1
  %v1340 = vrot.slane %v1221, 1
  %v1341 = vrot.slane %v1223, 1
  %v1342 = vrot.slane %v1225, 1
  %v1343 = vrot.slane %v1227, 1
  %v1344 = vsel %vm481, %v1328, %v1336
  %v1345 = vsel %vm481, %v1329, %v1337
  %v1346 = vsel %vm481, %v1330, %v1338
  %v1347 = vsel %vm481, %v1331, %v1339
  %v1348 = vsel %vm481, %v1332, %v1340
  %v1349 = vsel %vm481, %v1333, %v1341
  %v1350 = vsel %vm481, %v1334, %v1342
  %v1351 = vsel %vm481, %v1335, %v1343
  %v1352 = vsel %vm481, %v1336, %v1328
  %v1353 = vsel %vm481, %v1337, %v1329
  %v1354 = vsel %vm481, %v1338, %v1330
  %v1355 = vsel %vm481, %v1339, %v1331
  %v1356 = vsel %vm481, %v1340, %v1332
  %v1357 = vsel %vm481, %v1341, %v1333
  %v1358 = vsel %vm481, %v1342, %v1334
  %v1359 = vsel %vm481, %v1343, %v1335
  %v1360 = vld [vmem:[%s580 + $0x2] sm:$0x1]
  %v1361 = vperm.slane %v1360, 0
  %v1362 = vmul.f32 %v1344, %v1361
  %v1363 = vmul.f32 %v1352, %v1361
  %v1364 = vmul.f32 %v1345, %v1361
  %v1365 = vmul.f32 %v1353, %v1361
  %v1366 = vmul.f32 %v1346, %v1361
  %v1367 = vmul.f32 %v1354, %v1361
  %v1368 = vmul.f32 %v1347, %v1361
  %v1369 = vmul.f32 %v1355, %v1361
  %v1370 = vmul.f32 %v1348, %v1361
  %v1371 = vmul.f32 %v1356, %v1361
  %v1372 = vmul.f32 %v1349, %v1361
  %v1373 = vmul.f32 %v1357, %v1361
  %v1374 = vmul.f32 %v1350, %v1361
  %v1375 = vmul.f32 %v1358, %v1361
  %v1376 = vmul.f32 %v1351, %v1361
  %v1377 = vmul.f32 %v1359, %v1361
  %v1378 = vadd.f32 %v1312, %v1362
  %v1379 = vadd.f32 %v1313, %v1363
  %v1380 = vadd.f32 %v1314, %v1364
  %v1381 = vadd.f32 %v1315, %v1365
  %v1382 = vadd.f32 %v1316, %v1366
  %v1383 = vadd.f32 %v1317, %v1367
  %v1384 = vadd.f32 %v1318, %v1368
  %v1385 = vadd.f32 %v1319, %v1369
  %v1386 = vadd.f32 %v1320, %v1370
  %v1387 = vadd.f32 %v1321, %v1371
  %v1388 = vadd.f32 %v1322, %v1372
  %v1389 = vadd.f32 %v1323, %v1373
  %v1390 = vadd.f32 %v1324, %v1374
  %v1391 = vadd.f32 %v1325, %v1375
  %v1392 = vadd.f32 %v1326, %v1376
  %v1393 = vadd.f32 %v1327, %v1377
  %s1394 = scalar_lea.vmem [#allocation2], 144
  %v1395 = vld [vmem:[%s1394] sm:$0xff]
  %v1396 = vld [vmem:[%s1394 + $0x8] sm:$0xff]
  %v1397 = vld [vmem:[%s1394 + $0x10] sm:$0xff]
  %v1398 = vld [vmem:[%s1394 + $0x18] sm:$0xff]
  %v1399 = vld [vmem:[%s1394 + $0x20] sm:$0xff]
  %v1400 = vld [vmem:[%s1394 + $0x28] sm:$0xff]
  %v1401 = vld [vmem:[%s1394 + $0x30] sm:$0xff]
  %v1402 = vld [vmem:[%s1394 + $0x38] sm:$0xff]
  %v1403 = vld [vmem:[%s1394 + $0x40] sm:$0xff]
  %v1404 = vld [vmem:[%s1394 + $0x48] sm:$0xff]
  %v1405 = vld [vmem:[%s1394 + $0x50] sm:$0xff]
  %v1406 = vld [vmem:[%s1394 + $0x58] sm:$0xff]
  %v1407 = vld [vmem:[%s1394 + $0x60] sm:$0xff]
  %v1408 = vld [vmem:[%s1394 + $0x68] sm:$0xff]
  %v1409 = vld [vmem:[#allocation2] sm:$0xff]
  %v1410 = vld [vmem:[#allocation2 + $0x8] sm:$0xff]
  %v1411 = vrot.slane %v1395, 7
  %v1412 = vrot.slane %v1397, 7
  %v1413 = vrot.slane %v1399, 7
  %v1414 = vrot.slane %v1401, 7
  %v1415 = vrot.slane %v1403, 7
  %v1416 = vrot.slane %v1405, 7
  %v1417 = vrot.slane %v1407, 7
  %v1418 = vrot.slane %v1409, 7
  %v1419 = vrot.slane %v1396, 7
  %v1420 = vrot.slane %v1398, 7
  %v1421 = vrot.slane %v1400, 7
  %v1422 = vrot.slane %v1402, 7
  %v1423 = vrot.slane %v1404, 7
  %v1424 = vrot.slane %v1406, 7
  %v1425 = vrot.slane %v1408, 7
  %v1426 = vrot.slane %v1410, 7
  %v1427 = vsel %vm380, %v1411, %v1419
  %v1428 = vsel %vm380, %v1412, %v1420
  %v1429 = vsel %vm380, %v1413, %v1421
  %v1430 = vsel %vm380, %v1414, %v1422
  %v1431 = vsel %vm380, %v1415, %v1423
  %v1432 = vsel %vm380, %v1416, %v1424
  %v1433 = vsel %vm380, %v1417, %v1425
  %v1434 = vsel %vm380, %v1418, %v1426
  %v1435 = vsel %vm380, %v1419, %v1411
  %v1436 = vsel %vm380, %v1420, %v1412
  %v1437 = vsel %vm380, %v1421, %v1413
  %v1438 = vsel %vm380, %v1422, %v1414
  %v1439 = vsel %vm380, %v1423, %v1415
  %v1440 = vsel %vm380, %v1424, %v1416
  %v1441 = vsel %vm380, %v1425, %v1417
  %v1442 = vsel %vm380, %v1426, %v1418
  %v1443 = vld [vmem:[%s764] sm:$0x1]
  %v1444 = vperm.slane %v1443, 0
  %v1445 = vmul.f32 %v1435, %v1444
  %v1446 = vmul.f32 %v1427, %v1444
  %v1447 = vmul.f32 %v1436, %v1444
  %v1448 = vmul.f32 %v1428, %v1444
  %v1449 = vmul.f32 %v1437, %v1444
  %v1450 = vmul.f32 %v1429, %v1444
  %v1451 = vmul.f32 %v1438, %v1444
  %v1452 = vmul.f32 %v1430, %v1444
  %v1453 = vmul.f32 %v1439, %v1444
  %v1454 = vmul.f32 %v1431, %v1444
  %v1455 = vmul.f32 %v1440, %v1444
  %v1456 = vmul.f32 %v1432, %v1444
  %v1457 = vmul.f32 %v1441, %v1444
  %v1458 = vmul.f32 %v1433, %v1444
  %v1459 = vmul.f32 %v1442, %v1444
  %v1460 = vmul.f32 %v1434, %v1444
  %v1461 = vadd.f32 %v1378, %v1445
  %v1462 = vadd.f32 %v1379, %v1446
  %v1463 = vadd.f32 %v1380, %v1447
  %v1464 = vadd.f32 %v1381, %v1448
  %v1465 = vadd.f32 %v1382, %v1449
  %v1466 = vadd.f32 %v1383, %v1450
  %v1467 = vadd.f32 %v1384, %v1451
  %v1468 = vadd.f32 %v1385, %v1452
  %v1469 = vadd.f32 %v1386, %v1453
  %v1470 = vadd.f32 %v1387, %v1454
  %v1471 = vadd.f32 %v1388, %v1455
  %v1472 = vadd.f32 %v1389, %v1456
  %v1473 = vadd.f32 %v1390, %v1457
  %v1474 = vadd.f32 %v1391, %v1458
  %v1475 = vadd.f32 %v1392, %v1459
  %v1476 = vadd.f32 %v1393, %v1460
  %v1477 = vld [vmem:[%s764 + $0x1] sm:$0x1]
  %v1478 = vperm.slane %v1477, 0
  %v1479 = vmul.f32 %v1395, %v1478
  %v1480 = vmul.f32 %v1396, %v1478
  %v1481 = vmul.f32 %v1397, %v1478
  %v1482 = vmul.f32 %v1398, %v1478
  %v1483 = vmul.f32 %v1399, %v1478
  %v1484 = vmul.f32 %v1400, %v1478
  %v1485 = vmul.f32 %v1401, %v1478
  %v1486 = vmul.f32 %v1402, %v1478
  %v1487 = vmul.f32 %v1403, %v1478
  %v1488 = vmul.f32 %v1404, %v1478
  %v1489 = vmul.f32 %v1405, %v1478
  %v1490 = vmul.f32 %v1406, %v1478
  %v1491 = vmul.f32 %v1407, %v1478
  %v1492 = vmul.f32 %v1408, %v1478
  %v1493 = vmul.f32 %v1409, %v1478
  %v1494 = vmul.f32 %v1410, %v1478
  %v1495 = vadd.f32 %v1461, %v1479
  %v1496 = vadd.f32 %v1462, %v1480
  %v1497 = vadd.f32 %v1463, %v1481
  %v1498 = vadd.f32 %v1464, %v1482
  %v1499 = vadd.f32 %v1465, %v1483
  %v1500 = vadd.f32 %v1466, %v1484
  %v1501 = vadd.f32 %v1467, %v1485
  %v1502 = vadd.f32 %v1468, %v1486
  %v1503 = vadd.f32 %v1469, %v1487
  %v1504 = vadd.f32 %v1470, %v1488
  %v1505 = vadd.f32 %v1471, %v1489
  %v1506 = vadd.f32 %v1472, %v1490
  %v1507 = vadd.f32 %v1473, %v1491
  %v1508 = vadd.f32 %v1474, %v1492
  %v1509 = vadd.f32 %v1475, %v1493
  %v1510 = vadd.f32 %v1476, %v1494
  %v1511 = vrot.slane %v1395, 1
  %v1512 = vrot.slane %v1397, 1
  %v1513 = vrot.slane %v1399, 1
  %v1514 = vrot.slane %v1401, 1
  %v1515 = vrot.slane %v1403, 1
  %v1516 = vrot.slane %v1405, 1
  %v1517 = vrot.slane %v1407, 1
  %v1518 = vrot.slane %v1409, 1
  %v1519 = vrot.slane %v1396, 1
  %v1520 = vrot.slane %v1398, 1
  %v1521 = vrot.slane %v1400, 1
  %v1522 = vrot.slane %v1402, 1
  %v1523 = vrot.slane %v1404, 1
  %v1524 = vrot.slane %v1406, 1
  %v1525 = vrot.slane %v1408, 1
  %v1526 = vrot.slane %v1410, 1
  %v1527 = vsel %vm481, %v1511, %v1519
  %v1528 = vsel %vm481, %v1512, %v1520
  %v1529 = vsel %vm481, %v1513, %v1521
  %v1530 = vsel %vm481, %v1514, %v1522
  %v1531 = vsel %vm481, %v1515, %v1523
  %v1532 = vsel %vm481, %v1516, %v1524
  %v1533 = vsel %vm481, %v1517, %v1525
  %v1534 = vsel %vm481, %v1518, %v1526
  %v1535 = vsel %vm481, %v1519, %v1511
  %v1536 = vsel %vm481, %v1520, %v1512
  %v1537 = vsel %vm481, %v1521, %v1513
  %v1538 = vsel %vm481, %v1522, %v1514
  %v1539 = vsel %vm481, %v1523, %v1515
  %v1540 = vsel %vm481, %v1524, %v1516
  %v1541 = vsel %vm481, %v1525, %v1517
  %v1542 = vsel %vm481, %v1526, %v1518
  %v1543 = vld [vmem:[%s764 + $0x2] sm:$0x1]
  %v1544 = vperm.slane %v1543, 0
  %v1545 = vmul.f32 %v1527, %v1544
  %v1546 = vmul.f32 %v1535, %v1544
  %v1547 = vmul.f32 %v1528, %v1544
  %v1548 = vmul.f32 %v1536, %v1544
  %v1549 = vmul.f32 %v1529, %v1544
  %v1550 = vmul.f32 %v1537, %v1544
  %v1551 = vmul.f32 %v1530, %v1544
  %v1552 = vmul.f32 %v1538, %v1544
  %v1553 = vmul.f32 %v1531, %v1544
  %v1554 = vmul.f32 %v1539, %v1544
  %v1555 = vmul.f32 %v1532, %v1544
  %v1556 = vmul.f32 %v1540, %v1544
  %v1557 = vmul.f32 %v1533, %v1544
  %v1558 = vmul.f32 %v1541, %v1544
  %v1559 = vmul.f32 %v1534, %v1544
  %v1560 = vmul.f32 %v1542, %v1544
  %v1561 = vadd.f32 %v1495, %v1545
  %v1562 = vadd.f32 %v1496, %v1546
  %v1563 = vadd.f32 %v1497, %v1547
  %v1564 = vadd.f32 %v1498, %v1548
  %v1565 = vadd.f32 %v1499, %v1549
  %v1566 = vadd.f32 %v1500, %v1550
  %v1567 = vadd.f32 %v1501, %v1551
  %v1568 = vadd.f32 %v1502, %v1552
  %v1569 = vadd.f32 %v1503, %v1553
  %v1570 = vadd.f32 %v1504, %v1554
  %v1571 = vadd.f32 %v1505, %v1555
  %v1572 = vadd.f32 %v1506, %v1556
  %v1573 = vadd.f32 %v1507, %v1557
  %v1574 = vadd.f32 %v1508, %v1558
  %v1575 = vadd.f32 %v1509, %v1559
  %v1576 = vadd.f32 %v1510, %v1560
  %v1577 = vld [vmem:[%s4] sm:$0xff]
  %v1578 = vld [vmem:[%s4 + $0x8] sm:$0xff]
  %v1579 = vld [vmem:[%s4 + $0x10] sm:$0xff]
  %v1580 = vld [vmem:[%s4 + $0x18] sm:$0xff]
  %v1581 = vld [vmem:[%s4 + $0x20] sm:$0xff]
  %v1582 = vld [vmem:[%s4 + $0x28] sm:$0xff]
  %v1583 = vld [vmem:[%s4 + $0x30] sm:$0xff]
  %v1584 = vld [vmem:[%s4 + $0x38] sm:$0xff]
  %v1585 = vld [vmem:[%s4 + $0x40] sm:$0xff]
  %v1586 = vld [vmem:[%s4 + $0x48] sm:$0xff]
  %v1587 = vld [vmem:[%s4 + $0x50] sm:$0xff]
  %v1588 = vld [vmem:[%s4 + $0x58] sm:$0xff]
  %v1589 = vld [vmem:[%s4 + $0x60] sm:$0xff]
  %v1590 = vld [vmem:[%s4 + $0x68] sm:$0xff]
  %v1591 = vld [vmem:[%s4 + $0x70] sm:$0xff]
  %v1592 = vld [vmem:[%s4 + $0x78] sm:$0xff]
  %1593 = vmatpush.msra.mxu0 %v1592
  %1594 = vmatpush.msra.mxu0 %v1591
  %1595 = vmatpush.msra.mxu0 %v1590
  %1596 = vmatpush.msra.mxu0 %v1589
  %1597 = vmatpush.msra.mxu0 %v1588
  %1598 = vmatpush.msra.mxu0 %v1587
  %1599 = vmatpush.msra.mxu0 %v1586
  %1600 = vmatpush.msra.mxu0 %v1585
  %1601 = vmatpush.msra.mxu0 %v1584
  %1602 = vmatpush.msra.mxu0 %v1583
  %1603 = vmatpush.msra.mxu0 %v1582
  %1604 = vmatpush.msra.mxu0 %v1581
  %1605 = vmatpush.msra.mxu0 %v1580
  %1606 = vmatpush.msra.mxu0 %v1579
  %1607 = vmatpush.msra.mxu0 %v1578
  %1608 = vmatpush.msra.mxu0 %v1577
  %1609 = vmatmul.f32.gmra.mxu0 %v1561
  %v1610 = vpop.f32.mrf.mxu0
  %v1611 = vadd.f32 0.0, %v1610
  %1612 = vmatmul.f32.gmra.mxu0 %v1562
  %v1613 = vpop.f32.mrf.mxu0
  %v1614 = vadd.f32 0.0, %v1613
  %1615 = vmatmul.f32.gmra.mxu0 %v1563
  %v1616 = vpop.f32.mrf.mxu0
  %v1617 = vadd.f32 0.0, %v1616
  %1618 = vmatmul.f32.gmra.mxu0 %v1564
  %v1619 = vpop.f32.mrf.mxu0
  %v1620 = vadd.f32 0.0, %v1619
  %1621 = vmatmul.f32.gmra.mxu0 %v1565
  %v1622 = vpop.f32.mrf.mxu0
  %v1623 = vadd.f32 0.0, %v1622
  %1624 = vmatmul.f32.gmra.mxu0 %v1566
  %v1625 = vpop.f32.mrf.mxu0
  %v1626 = vadd.f32 0.0, %v1625
  %1627 = vmatmul.f32.gmra.mxu0 %v1567
  %v1628 = vpop.f32.mrf.mxu0
  %v1629 = vadd.f32 0.0, %v1628
  %1630 = vmatmul.f32.gmra.mxu0 %v1568
  %v1631 = vpop.f32.mrf.mxu0
  %v1632 = vadd.f32 0.0, %v1631
  %1633 = vmatmul.f32.gmra.mxu0 %v1569
  %v1634 = vpop.f32.mrf.mxu0
  %v1635 = vadd.f32 0.0, %v1634
  %1636 = vmatmul.f32.gmra.mxu0 %v1570
  %v1637 = vpop.f32.mrf.mxu0
  %v1638 = vadd.f32 0.0, %v1637
  %1639 = vmatmul.f32.gmra.mxu0 %v1571
  %v1640 = vpop.f32.mrf.mxu0
  %v1641 = vadd.f32 0.0, %v1640
  %1642 = vmatmul.f32.gmra.mxu0 %v1572
  %v1643 = vpop.f32.mrf.mxu0
  %v1644 = vadd.f32 0.0, %v1643
  %1645 = vmatmul.f32.gmra.mxu0 %v1573
  %v1646 = vpop.f32.mrf.mxu0
  %v1647 = vadd.f32 0.0, %v1646
  %1648 = vmatmul.f32.gmra.mxu0 %v1574
  %v1649 = vpop.f32.mrf.mxu0
  %v1650 = vadd.f32 0.0, %v1649
  %1651 = vmatmul.f32.gmra.mxu0 %v1575
  %v1652 = vpop.f32.mrf.mxu0
  %v1653 = vadd.f32 0.0, %v1652
  %1654 = vmatmul.f32.gmra.mxu0 %v1576
  %v1655 = vpop.f32.mrf.mxu0
  %v1656 = vadd.f32 0.0, %v1655
  %1657 = vdwg.mxu0
  %v1658 = vmax.f32 %v1611, 0.0
  %v1659 = vmax.f32 %v1614, 0.0
  %v1660 = vmax.f32 %v1617, 0.0
  %v1661 = vmax.f32 %v1620, 0.0
  %v1662 = vmax.f32 %v1623, 0.0
  %v1663 = vmax.f32 %v1626, 0.0
  %v1664 = vmax.f32 %v1629, 0.0
  %v1665 = vmax.f32 %v1632, 0.0
  %v1666 = vmax.f32 %v1635, 0.0
  %v1667 = vmax.f32 %v1638, 0.0
  %v1668 = vmax.f32 %v1641, 0.0
  %v1669 = vmax.f32 %v1644, 0.0
  %v1670 = vmax.f32 %v1647, 0.0
  %v1671 = vmax.f32 %v1650, 0.0
  %v1672 = vmax.f32 %v1653, 0.0
  %v1673 = vmax.f32 %v1656, 0.0
  %v1674 = vadd.f32 %v1658, %v1212
  %v1675 = vadd.f32 %v1659, %v1213
  %v1676 = vadd.f32 %v1660, %v1214
  %v1677 = vadd.f32 %v1661, %v1215
  %v1678 = vadd.f32 %v1662, %v1216
  %v1679 = vadd.f32 %v1663, %v1217
  %v1680 = vadd.f32 %v1664, %v1218
  %v1681 = vadd.f32 %v1665, %v1219
  %v1682 = vadd.f32 %v1666, %v1220
  %v1683 = vadd.f32 %v1667, %v1221
  %v1684 = vadd.f32 %v1668, %v1222
  %v1685 = vadd.f32 %v1669, %v1223
  %v1686 = vadd.f32 %v1670, %v1224
  %v1687 = vadd.f32 %v1671, %v1225
  %v1688 = vadd.f32 %v1672, %v1226
  %v1689 = vadd.f32 %v1673, %v1227
  %s1690 = scalar_lea.vmem [#allocation3], 128
  %1691 = vst [vmem:[%s1690] sm:$0xff] %v1674
  %1692 = vst [vmem:[%s1690 + $0x8] sm:$0xff] %v1675
  %1693 = vst [vmem:[%s1690 + $0x10] sm:$0xff] %v1676
  %1694 = vst [vmem:[%s1690 + $0x18] sm:$0xff] %v1677
  %1695 = vst [vmem:[%s1690 + $0x20] sm:$0xff] %v1678
  %1696 = vst [vmem:[%s1690 + $0x28] sm:$0xff] %v1679
  %1697 = vst [vmem:[%s1690 + $0x30] sm:$0xff] %v1680
  %1698 = vst [vmem:[%s1690 + $0x38] sm:$0xff] %v1681
  %1699 = vst [vmem:[%s1690 + $0x40] sm:$0xff] %v1682
  %1700 = vst [vmem:[%s1690 + $0x48] sm:$0xff] %v1683
  %1701 = vst [vmem:[%s1690 + $0x50] sm:$0xff] %v1684
  %1702 = vst [vmem:[%s1690 + $0x58] sm:$0xff] %v1685
  %1703 = vst [vmem:[%s1690 + $0x60] sm:$0xff] %v1686
  %1704 = vst [vmem:[%s1690 + $0x68] sm:$0xff] %v1687
  %1705 = vst [vmem:[%s1690 + $0x70] sm:$0xff] %v1688
  %1706 = vst [vmem:[%s1690 + $0x78] sm:$0xff] %v1689
  %s1707 = scalar_lea.vmem [#allocation3], 240
  %v1708 = vld [vmem:[%s1707] sm:$0xff]
  %v1709 = vld [vmem:[%s1707 + $0x8] sm:$0xff]
  %v1710 = vld [vmem:[#allocation3] sm:$0xff]
  %v1711 = vld [vmem:[#allocation3 + $0x8] sm:$0xff]
  %v1712 = vld [vmem:[#allocation3 + $0x10] sm:$0xff]
  %v1713 = vld [vmem:[#allocation3 + $0x18] sm:$0xff]
  %v1714 = vld [vmem:[#allocation3 + $0x20] sm:$0xff]
  %v1715 = vld [vmem:[#allocation3 + $0x28] sm:$0xff]
  %v1716 = vld [vmem:[#allocation3 + $0x30] sm:$0xff]
  %v1717 = vld [vmem:[#allocation3 + $0x38] sm:$0xff]
  %v1718 = vld [vmem:[#allocation3 + $0x40] sm:$0xff]
  %v1719 = vld [vmem:[#allocation3 + $0x48] sm:$0xff]
  %v1720 = vld [vmem:[#allocation3 + $0x50] sm:$0xff]
  %v1721 = vld [vmem:[#allocation3 + $0x58] sm:$0xff]
  %v1722 = vld [vmem:[#allocation3 + $0x60] sm:$0xff]
  %v1723 = vld [vmem:[#allocation3 + $0x68] sm:$0xff]
  %v1724 = vrot.slane %v1708, 7
  %v1725 = vrot.slane %v1710, 7
  %v1726 = vrot.slane %v1712, 7
  %v1727 = vrot.slane %v1714, 7
  %v1728 = vrot.slane %v1716, 7
  %v1729 = vrot.slane %v1718, 7
  %v1730 = vrot.slane %v1720, 7
  %v1731 = vrot.slane %v1722, 7
  %v1732 = vrot.slane %v1709, 7
  %v1733 = vrot.slane %v1711, 7
  %v1734 = vrot.slane %v1713, 7
  %v1735 = vrot.slane %v1715, 7
  %v1736 = vrot.slane %v1717, 7
  %v1737 = vrot.slane %v1719, 7
  %v1738 = vrot.slane %v1721, 7
  %v1739 = vrot.slane %v1723, 7
  %v1740 = vsel %vm380, %v1724, %v1732
  %v1741 = vsel %vm380, %v1725, %v1733
  %v1742 = vsel %vm380, %v1726, %v1734
  %v1743 = vsel %vm380, %v1727, %v1735
  %v1744 = vsel %vm380, %v1728, %v1736
  %v1745 = vsel %vm380, %v1729, %v1737
  %v1746 = vsel %vm380, %v1730, %v1738
  %v1747 = vsel %vm380, %v1731, %v1739
  %v1748 = vsel %vm380, %v1732, %v1724
  %v1749 = vsel %vm380, %v1733, %v1725
  %v1750 = vsel %vm380, %v1734, %v1726
  %v1751 = vsel %vm380, %v1735, %v1727
  %v1752 = vsel %vm380, %v1736, %v1728
  %v1753 = vsel %vm380, %v1737, %v1729
  %v1754 = vsel %vm380, %v1738, %v1730
  %v1755 = vsel %vm380, %v1739, %v1731
  %s1756 = scalar_lea.vmem %s3, 12
  %v1757 = vld [vmem:[%s1756] sm:$0x1]
  %v1758 = vperm.slane %v1757, 0
  %v1759 = vmul.f32 %v1748, %v1758
  %v1760 = vmul.f32 %v1740, %v1758
  %v1761 = vmul.f32 %v1749, %v1758
  %v1762 = vmul.f32 %v1741, %v1758
  %v1763 = vmul.f32 %v1750, %v1758
  %v1764 = vmul.f32 %v1742, %v1758
  %v1765 = vmul.f32 %v1751, %v1758
  %v1766 = vmul.f32 %v1743, %v1758
  %v1767 = vmul.f32 %v1752, %v1758
  %v1768 = vmul.f32 %v1744, %v1758
  %v1769 = vmul.f32 %v1753, %v1758
  %v1770 = vmul.f32 %v1745, %v1758
  %v1771 = vmul.f32 %v1754, %v1758
  %v1772 = vmul.f32 %v1746, %v1758
  %v1773 = vmul.f32 %v1755, %v1758
  %v1774 = vmul.f32 %v1747, %v1758
  %v1775 = vadd.f32 %v1759, 0.0
  %v1776 = vadd.f32 %v1760, 0.0
  %v1777 = vadd.f32 %v1761, 0.0
  %v1778 = vadd.f32 %v1762, 0.0
  %v1779 = vadd.f32 %v1763, 0.0
  %v1780 = vadd.f32 %v1764, 0.0
  %v1781 = vadd.f32 %v1765, 0.0
  %v1782 = vadd.f32 %v1766, 0.0
  %v1783 = vadd.f32 %v1767, 0.0
  %v1784 = vadd.f32 %v1768, 0.0
  %v1785 = vadd.f32 %v1769, 0.0
  %v1786 = vadd.f32 %v1770, 0.0
  %v1787 = vadd.f32 %v1771, 0.0
  %v1788 = vadd.f32 %v1772, 0.0
  %v1789 = vadd.f32 %v1773, 0.0
  %v1790 = vadd.f32 %v1774, 0.0
  %v1791 = vld [vmem:[%s1756 + $0x1] sm:$0x1]
  %v1792 = vperm.slane %v1791, 0
  %v1793 = vmul.f32 %v1708, %v1792
  %v1794 = vmul.f32 %v1709, %v1792
  %v1795 = vmul.f32 %v1710, %v1792
  %v1796 = vmul.f32 %v1711, %v1792
  %v1797 = vmul.f32 %v1712, %v1792
  %v1798 = vmul.f32 %v1713, %v1792
  %v1799 = vmul.f32 %v1714, %v1792
  %v1800 = vmul.f32 %v1715, %v1792
  %v1801 = vmul.f32 %v1716, %v1792
  %v1802 = vmul.f32 %v1717, %v1792
  %v1803 = vmul.f32 %v1718, %v1792
  %v1804 = vmul.f32 %v1719, %v1792
  %v1805 = vmul.f32 %v1720, %v1792
  %v1806 = vmul.f32 %v1721, %v1792
  %v1807 = vmul.f32 %v1722, %v1792
  %v1808 = vmul.f32 %v1723, %v1792
  %v1809 = vadd.f32 %v1775, %v1793
  %v1810 = vadd.f32 %v1776, %v1794
  %v1811 = vadd.f32 %v1777, %v1795
  %v1812 = vadd.f32 %v1778, %v1796
  %v1813 = vadd.f32 %v1779, %v1797
  %v1814 = vadd.f32 %v1780, %v1798
  %v1815 = vadd.f32 %v1781, %v1799
  %v1816 = vadd.f32 %v1782, %v1800
  %v1817 = vadd.f32 %v1783, %v1801
  %v1818 = vadd.f32 %v1784, %v1802
  %v1819 = vadd.f32 %v1785, %v1803
  %v1820 = vadd.f32 %v1786, %v1804
  %v1821 = vadd.f32 %v1787, %v1805
  %v1822 = vadd.f32 %v1788, %v1806
  %v1823 = vadd.f32 %v1789, %v1807
  %v1824 = vadd.f32 %v1790, %v1808
  %v1825 = vrot.slane %v1708, 1
  %v1826 = vrot.slane %v1710, 1
  %v1827 = vrot.slane %v1712, 1
  %v1828 = vrot.slane %v1714, 1
  %v1829 = vrot.slane %v1716, 1
  %v1830 = vrot.slane %v1718, 1
  %v1831 = vrot.slane %v1720, 1
  %v1832 = vrot.slane %v1722, 1
  %v1833 = vrot.slane %v1709, 1
  %v1834 = vrot.slane %v1711, 1
  %v1835 = vrot.slane %v1713, 1
  %v1836 = vrot.slane %v1715, 1
  %v1837 = vrot.slane %v1717, 1
  %v1838 = vrot.slane %v1719, 1
  %v1839 = vrot.slane %v1721, 1
  %v1840 = vrot.slane %v1723, 1
  %v1841 = vsel %vm481, %v1825, %v1833
  %v1842 = vsel %vm481, %v1826, %v1834
  %v1843 = vsel %vm481, %v1827, %v1835
  %v1844 = vsel %vm481, %v1828, %v1836
  %v1845 = vsel %vm481, %v1829, %v1837
  %v1846 = vsel %vm481, %v1830, %v1838
  %v1847 = vsel %vm481, %v1831, %v1839
  %v1848 = vsel %vm481, %v1832, %v1840
  %v1849 = vsel %vm481, %v1833, %v1825
  %v1850 = vsel %vm481, %v1834, %v1826
  %v1851 = vsel %vm481, %v1835, %v1827
  %v1852 = vsel %vm481, %v1836, %v1828
  %v1853 = vsel %vm481, %v1837, %v1829
  %v1854 = vsel %vm481, %v1838, %v1830
  %v1855 = vsel %vm481, %v1839, %v1831
  %v1856 = vsel %vm481, %v1840, %v1832
  %v1857 = vld [vmem:[%s1756 + $0x2] sm:$0x1]
  %v1858 = vperm.slane %v1857, 0
  %v1859 = vmul.f32 %v1841, %v1858
  %v1860 = vmul.f32 %v1849, %v1858
  %v1861 = vmul.f32 %v1842, %v1858
  %v1862 = vmul.f32 %v1850, %v1858
  %v1863 = vmul.f32 %v1843, %v1858
  %v1864 = vmul.f32 %v1851, %v1858
  %v1865 = vmul.f32 %v1844, %v1858
  %v1866 = vmul.f32 %v1852, %v1858
  %v1867 = vmul.f32 %v1845, %v1858
  %v1868 = vmul.f32 %v1853, %v1858
  %v1869 = vmul.f32 %v1846, %v1858
  %v1870 = vmul.f32 %v1854, %v1858
  %v1871 = vmul.f32 %v1847, %v1858
  %v1872 = vmul.f32 %v1855, %v1858
  %v1873 = vmul.f32 %v1848, %v1858
  %v1874 = vmul.f32 %v1856, %v1858
  %v1875 = vadd.f32 %v1809, %v1859
  %v1876 = vadd.f32 %v1810, %v1860
  %v1877 = vadd.f32 %v1811, %v1861
  %v1878 = vadd.f32 %v1812, %v1862
  %v1879 = vadd.f32 %v1813, %v1863
  %v1880 = vadd.f32 %v1814, %v1864
  %v1881 = vadd.f32 %v1815, %v1865
  %v1882 = vadd.f32 %v1816, %v1866
  %v1883 = vadd.f32 %v1817, %v1867
  %v1884 = vadd.f32 %v1818, %v1868
  %v1885 = vadd.f32 %v1819, %v1869
  %v1886 = vadd.f32 %v1820, %v1870
  %v1887 = vadd.f32 %v1821, %v1871
  %v1888 = vadd.f32 %v1822, %v1872
  %v1889 = vadd.f32 %v1823, %v1873
  %v1890 = vadd.f32 %v1824, %v1874
  %v1891 = vld [vmem:[#allocation3 + $0x70] sm:$0xff]
  %v1892 = vld [vmem:[#allocation3 + $0x78] sm:$0xff]
  %v1893 = vrot.slane %v1891, 7
  %v1894 = vrot.slane %v1892, 7
  %v1895 = vsel %vm380, %v1893, %v1894
  %v1896 = vsel %vm380, %v1894, %v1893
  %s1897 = scalar_lea.vmem %s3, 16
  %v1898 = vld [vmem:[%s1897] sm:$0x1]
  %v1899 = vperm.slane %v1898, 0
  %v1900 = vmul.f32 %v1749, %v1899
  %v1901 = vmul.f32 %v1741, %v1899
  %v1902 = vmul.f32 %v1750, %v1899
  %v1903 = vmul.f32 %v1742, %v1899
  %v1904 = vmul.f32 %v1751, %v1899
  %v1905 = vmul.f32 %v1743, %v1899
  %v1906 = vmul.f32 %v1752, %v1899
  %v1907 = vmul.f32 %v1744, %v1899
  %v1908 = vmul.f32 %v1753, %v1899
  %v1909 = vmul.f32 %v1745, %v1899
  %v1910 = vmul.f32 %v1754, %v1899
  %v1911 = vmul.f32 %v1746, %v1899
  %v1912 = vmul.f32 %v1755, %v1899
  %v1913 = vmul.f32 %v1747, %v1899
  %v1914 = vmul.f32 %v1896, %v1899
  %v1915 = vmul.f32 %v1895, %v1899
  %v1916 = vadd.f32 %v1875, %v1900
  %v1917 = vadd.f32 %v1876, %v1901
  %v1918 = vadd.f32 %v1877, %v1902
  %v1919 = vadd.f32 %v1878, %v1903
  %v1920 = vadd.f32 %v1879, %v1904
  %v1921 = vadd.f32 %v1880, %v1905
  %v1922 = vadd.f32 %v1881, %v1906
  %v1923 = vadd.f32 %v1882, %v1907
  %v1924 = vadd.f32 %v1883, %v1908
  %v1925 = vadd.f32 %v1884, %v1909
  %v1926 = vadd.f32 %v1885, %v1910
  %v1927 = vadd.f32 %v1886, %v1911
  %v1928 = vadd.f32 %v1887, %v1912
  %v1929 = vadd.f32 %v1888, %v1913
  %v1930 = vadd.f32 %v1889, %v1914
  %v1931 = vadd.f32 %v1890, %v1915
  %v1932 = vld [vmem:[%s1897 + $0x1] sm:$0x1]
  %v1933 = vperm.slane %v1932, 0
  %v1934 = vmul.f32 %v1710, %v1933
  %v1935 = vmul.f32 %v1711, %v1933
  %v1936 = vmul.f32 %v1712, %v1933
  %v1937 = vmul.f32 %v1713, %v1933
  %v1938 = vmul.f32 %v1714, %v1933
  %v1939 = vmul.f32 %v1715, %v1933
  %v1940 = vmul.f32 %v1716, %v1933
  %v1941 = vmul.f32 %v1717, %v1933
  %v1942 = vmul.f32 %v1718, %v1933
  %v1943 = vmul.f32 %v1719, %v1933
  %v1944 = vmul.f32 %v1720, %v1933
  %v1945 = vmul.f32 %v1721, %v1933
  %v1946 = vmul.f32 %v1722, %v1933
  %v1947 = vmul.f32 %v1723, %v1933
  %v1948 = vmul.f32 %v1891, %v1933
  %v1949 = vmul.f32 %v1892, %v1933
  %v1950 = vadd.f32 %v1916, %v1934
  %v1951 = vadd.f32 %v1917, %v1935
  %v1952 = vadd.f32 %v1918, %v1936
  %v1953 = vadd.f32 %v1919, %v1937
  %v1954 = vadd.f32 %v1920, %v1938
  %v1955 = vadd.f32 %v1921, %v1939
  %v1956 = vadd.f32 %v1922, %v1940
  %v1957 = vadd.f32 %v1923, %v1941
  %v1958 = vadd.f32 %v1924, %v1942
  %v1959 = vadd.f32 %v1925, %v1943
  %v1960 = vadd.f32 %v1926, %v1944
  %v1961 = vadd.f32 %v1927, %v1945
  %v1962 = vadd.f32 %v1928, %v1946
  %v1963 = vadd.f32 %v1929, %v1947
  %v1964 = vadd.f32 %v1930, %v1948
  %v1965 = vadd.f32 %v1931, %v1949
  %v1966 = vrot.slane %v1891, 1
  %v1967 = vrot.slane %v1892, 1
  %v1968 = vsel %vm481, %v1966, %v1967
  %v1969 = vsel %vm481, %v1967, %v1966
  %v1970 = vld [vmem:[%s1897 + $0x2] sm:$0x1]
  %v1971 = vperm.slane %v1970, 0
  %v1972 = vmul.f32 %v1842, %v1971
  %v1973 = vmul.f32 %v1850, %v1971
  %v1974 = vmul.f32 %v1843, %v1971
  %v1975 = vmul.f32 %v1851, %v1971
  %v1976 = vmul.f32 %v1844, %v1971
  %v1977 = vmul.f32 %v1852, %v1971
  %v1978 = vmul.f32 %v1845, %v1971
  %v1979 = vmul.f32 %v1853, %v1971
  %v1980 = vmul.f32 %v1846, %v1971
  %v1981 = vmul.f32 %v1854, %v1971
  %v1982 = vmul.f32 %v1847, %v1971
  %v1983 = vmul.f32 %v1855, %v1971
  %v1984 = vmul.f32 %v1848, %v1971
  %v1985 = vmul.f32 %v1856, %v1971
  %v1986 = vmul.f32 %v1968, %v1971
  %v1987 = vmul.f32 %v1969, %v1971
  %v1988 = vadd.f32 %v1950, %v1972
  %v1989 = vadd.f32 %v1951, %v1973
  %v1990 = vadd.f32 %v1952, %v1974
  %v1991 = vadd.f32 %v1953, %v1975
  %v1992 = vadd.f32 %v1954, %v1976
  %v1993 = vadd.f32 %v1955, %v1977
  %v1994 = vadd.f32 %v1956, %v1978
  %v1995 = vadd.f32 %v1957, %v1979
  %v1996 = vadd.f32 %v1958, %v1980
  %v1997 = vadd.f32 %v1959, %v1981
  %v1998 = vadd.f32 %v1960, %v1982
  %v1999 = vadd.f32 %v1961, %v1983
  %v2000 = vadd.f32 %v1962, %v1984
  %v2001 = vadd.f32 %v1963, %v1985
  %v2002 = vadd.f32 %v1964, %v1986
  %v2003 = vadd.f32 %v1965, %v1987
  %s2004 = scalar_lea.vmem [#allocation3], 16
  %v2005 = vld [vmem:[%s2004] sm:$0xff]
  %v2006 = vld [vmem:[%s2004 + $0x8] sm:$0xff]
  %v2007 = vld [vmem:[%s2004 + $0x10] sm:$0xff]
  %v2008 = vld [vmem:[%s2004 + $0x18] sm:$0xff]
  %v2009 = vld [vmem:[%s2004 + $0x20] sm:$0xff]
  %v2010 = vld [vmem:[%s2004 + $0x28] sm:$0xff]
  %v2011 = vld [vmem:[%s2004 + $0x30] sm:$0xff]
  %v2012 = vld [vmem:[%s2004 + $0x38] sm:$0xff]
  %v2013 = vld [vmem:[%s2004 + $0x40] sm:$0xff]
  %v2014 = vld [vmem:[%s2004 + $0x48] sm:$0xff]
  %v2015 = vld [vmem:[%s2004 + $0x50] sm:$0xff]
  %v2016 = vld [vmem:[%s2004 + $0x58] sm:$0xff]
  %v2017 = vld [vmem:[%s2004 + $0x60] sm:$0xff]
  %v2018 = vld [vmem:[%s2004 + $0x68] sm:$0xff]
  %v2019 = vld [vmem:[%s2004 + $0x70] sm:$0xff]
  %v2020 = vld [vmem:[%s2004 + $0x78] sm:$0xff]
  %v2021 = vrot.slane %v2005, 7
  %v2022 = vrot.slane %v2007, 7
  %v2023 = vrot.slane %v2009, 7
  %v2024 = vrot.slane %v2011, 7
  %v2025 = vrot.slane %v2013, 7
  %v2026 = vrot.slane %v2015, 7
  %v2027 = vrot.slane %v2017, 7
  %v2028 = vrot.slane %v2019, 7
  %v2029 = vrot.slane %v2006, 7
  %v2030 = vrot.slane %v2008, 7
  %v2031 = vrot.slane %v2010, 7
  %v2032 = vrot.slane %v2012, 7
  %v2033 = vrot.slane %v2014, 7
  %v2034 = vrot.slane %v2016, 7
  %v2035 = vrot.slane %v2018, 7
  %v2036 = vrot.slane %v2020, 7
  %v2037 = vsel %vm380, %v2021, %v2029
  %v2038 = vsel %vm380, %v2022, %v2030
  %v2039 = vsel %vm380, %v2023, %v2031
  %v2040 = vsel %vm380, %v2024, %v2032
  %v2041 = vsel %vm380, %v2025, %v2033
  %v2042 = vsel %vm380, %v2026, %v2034
  %v2043 = vsel %vm380, %v2027, %v2035
  %v2044 = vsel %vm380, %v2028, %v2036
  %v2045 = vsel %vm380, %v2029, %v2021
  %v2046 = vsel %vm380, %v2030, %v2022
  %v2047 = vsel %vm380, %v2031, %v2023
  %v2048 = vsel %vm380, %v2032, %v2024
  %v2049 = vsel %vm380, %v2033, %v2025
  %v2050 = vsel %vm380, %v2034, %v2026
  %v2051 = vsel %vm380, %v2035, %v2027
  %v2052 = vsel %vm380, %v2036, %v2028
  %s2053 = scalar_lea.vmem %s3, 20
  %v2054 = vld [vmem:[%s2053] sm:$0x1]
  %v2055 = vperm.slane %v2054, 0
  %v2056 = vmul.f32 %v2045, %v2055
  %v2057 = vmul.f32 %v2037, %v2055
  %v2058 = vmul.f32 %v2046, %v2055
  %v2059 = vmul.f32 %v2038, %v2055
  %v2060 = vmul.f32 %v2047, %v2055
  %v2061 = vmul.f32 %v2039, %v2055
  %v2062 = vmul.f32 %v2048, %v2055
  %v2063 = vmul.f32 %v2040, %v2055
  %v2064 = vmul.f32 %v2049, %v2055
  %v2065 = vmul.f32 %v2041, %v2055
  %v2066 = vmul.f32 %v2050, %v2055
  %v2067 = vmul.f32 %v2042, %v2055
  %v2068 = vmul.f32 %v2051, %v2055
  %v2069 = vmul.f32 %v2043, %v2055
  %v2070 = vmul.f32 %v2052, %v2055
  %v2071 = vmul.f32 %v2044, %v2055
  %v2072 = vadd.f32 %v1988, %v2056
  %v2073 = vadd.f32 %v1989, %v2057
  %v2074 = vadd.f32 %v1990, %v2058
  %v2075 = vadd.f32 %v1991, %v2059
  %v2076 = vadd.f32 %v1992, %v2060
  %v2077 = vadd.f32 %v1993, %v2061
  %v2078 = vadd.f32 %v1994, %v2062
  %v2079 = vadd.f32 %v1995, %v2063
  %v2080 = vadd.f32 %v1996, %v2064
  %v2081 = vadd.f32 %v1997, %v2065
  %v2082 = vadd.f32 %v1998, %v2066
  %v2083 = vadd.f32 %v1999, %v2067
  %v2084 = vadd.f32 %v2000, %v2068
  %v2085 = vadd.f32 %v2001, %v2069
  %v2086 = vadd.f32 %v2002, %v2070
  %v2087 = vadd.f32 %v2003, %v2071
  %v2088 = vld [vmem:[%s2053 + $0x1] sm:$0x1]
  %v2089 = vperm.slane %v2088, 0
  %v2090 = vmul.f32 %v2005, %v2089
  %v2091 = vmul.f32 %v2006, %v2089
  %v2092 = vmul.f32 %v2007, %v2089
  %v2093 = vmul.f32 %v2008, %v2089
  %v2094 = vmul.f32 %v2009, %v2089
  %v2095 = vmul.f32 %v2010, %v2089
  %v2096 = vmul.f32 %v2011, %v2089
  %v2097 = vmul.f32 %v2012, %v2089
  %v2098 = vmul.f32 %v2013, %v2089
  %v2099 = vmul.f32 %v2014, %v2089
  %v2100 = vmul.f32 %v2015, %v2089
  %v2101 = vmul.f32 %v2016, %v2089
  %v2102 = vmul.f32 %v2017, %v2089
  %v2103 = vmul.f32 %v2018, %v2089
  %v2104 = vmul.f32 %v2019, %v2089
  %v2105 = vmul.f32 %v2020, %v2089
  %v2106 = vadd.f32 %v2072, %v2090
  %v2107 = vadd.f32 %v2073, %v2091
  %v2108 = vadd.f32 %v2074, %v2092
  %v2109 = vadd.f32 %v2075, %v2093
  %v2110 = vadd.f32 %v2076, %v2094
  %v2111 = vadd.f32 %v2077, %v2095
  %v2112 = vadd.f32 %v2078, %v2096
  %v2113 = vadd.f32 %v2079, %v2097
  %v2114 = vadd.f32 %v2080, %v2098
  %v2115 = vadd.f32 %v2081, %v2099
  %v2116 = vadd.f32 %v2082, %v2100
  %v2117 = vadd.f32 %v2083, %v2101
  %v2118 = vadd.f32 %v2084, %v2102
  %v2119 = vadd.f32 %v2085, %v2103
  %v2120 = vadd.f32 %v2086, %v2104
  %v2121 = vadd.f32 %v2087, %v2105
  %v2122 = vrot.slane %v2005, 1
  %v2123 = vrot.slane %v2007, 1
  %v2124 = vrot.slane %v2009, 1
  %v2125 = vrot.slane %v2011, 1
  %v2126 = vrot.slane %v2013, 1
  %v2127 = vrot.slane %v2015, 1
  %v2128 = vrot.slane %v2017, 1
  %v2129 = vrot.slane %v2019, 1
  %v2130 = vrot.slane %v2006, 1
  %v2131 = vrot.slane %v2008, 1
  %v2132 = vrot.slane %v2010, 1
  %v2133 = vrot.slane %v2012, 1
  %v2134 = vrot.slane %v2014, 1
  %v2135 = vrot.slane %v2016, 1
  %v2136 = vrot.slane %v2018, 1
  %v2137 = vrot.slane %v2020, 1
  %v2138 = vsel %vm481, %v2122, %v2130
  %v2139 = vsel %vm481, %v2123, %v2131
  %v2140 = vsel %vm481, %v2124, %v2132
  %v2141 = vsel %vm481, %v2125, %v2133
  %v2142 = vsel %vm481, %v2126, %v2134
  %v2143 = vsel %vm481, %v2127, %v2135
  %v2144 = vsel %vm481, %v2128, %v2136
  %v2145 = vsel %vm481, %v2129, %v2137
  %v2146 = vsel %vm481, %v2130, %v2122
  %v2147 = vsel %vm481, %v2131, %v2123
  %v2148 = vsel %vm481, %v2132, %v2124
  %v2149 = vsel %vm481, %v2133, %v2125
  %v2150 = vsel %vm481, %v2134, %v2126
  %v2151 = vsel %vm481, %v2135, %v2127
  %v2152 = vsel %vm481, %v2136, %v2128
  %v2153 = vsel %vm481, %v2137, %v2129
  %v2154 = vld [vmem:[%s2053 + $0x2] sm:$0x1]
  %v2155 = vperm.slane %v2154, 0
  %v2156 = vmul.f32 %v2138, %v2155
  %v2157 = vmul.f32 %v2146, %v2155
  %v2158 = vmul.f32 %v2139, %v2155
  %v2159 = vmul.f32 %v2147, %v2155
  %v2160 = vmul.f32 %v2140, %v2155
  %v2161 = vmul.f32 %v2148, %v2155
  %v2162 = vmul.f32 %v2141, %v2155
  %v2163 = vmul.f32 %v2149, %v2155
  %v2164 = vmul.f32 %v2142, %v2155
  %v2165 = vmul.f32 %v2150, %v2155
  %v2166 = vmul.f32 %v2143, %v2155
  %v2167 = vmul.f32 %v2151, %v2155
  %v2168 = vmul.f32 %v2144, %v2155
  %v2169 = vmul.f32 %v2152, %v2155
  %v2170 = vmul.f32 %v2145, %v2155
  %v2171 = vmul.f32 %v2153, %v2155
  %v2172 = vadd.f32 %v2106, %v2156
  %v2173 = vadd.f32 %v2107, %v2157
  %v2174 = vadd.f32 %v2108, %v2158
  %v2175 = vadd.f32 %v2109, %v2159
  %v2176 = vadd.f32 %v2110, %v2160
  %v2177 = vadd.f32 %v2111, %v2161
  %v2178 = vadd.f32 %v2112, %v2162
  %v2179 = vadd.f32 %v2113, %v2163
  %v2180 = vadd.f32 %v2114, %v2164
  %v2181 = vadd.f32 %v2115, %v2165
  %v2182 = vadd.f32 %v2116, %v2166
  %v2183 = vadd.f32 %v2117, %v2167
  %v2184 = vadd.f32 %v2118, %v2168
  %v2185 = vadd.f32 %v2119, %v2169
  %v2186 = vadd.f32 %v2120, %v2170
  %v2187 = vadd.f32 %v2121, %v2171
  %s2188 = scalar_lea.vmem %s4, 128
  %v2189 = vld [vmem:[%s2188] sm:$0xff]
  %v2190 = vld [vmem:[%s2188 + $0x8] sm:$0xff]
  %v2191 = vld [vmem:[%s2188 + $0x10] sm:$0xff]
  %v2192 = vld [vmem:[%s2188 + $0x18] sm:$0xff]
  %v2193 = vld [vmem:[%s2188 + $0x20] sm:$0xff]
  %v2194 = vld [vmem:[%s2188 + $0x28] sm:$0xff]
  %v2195 = vld [vmem:[%s2188 + $0x30] sm:$0xff]
  %v2196 = vld [vmem:[%s2188 + $0x38] sm:$0xff]
  %v2197 = vld [vmem:[%s2188 + $0x40] sm:$0xff]
  %v2198 = vld [vmem:[%s2188 + $0x48] sm:$0xff]
  %v2199 = vld [vmem:[%s2188 + $0x50] sm:$0xff]
  %v2200 = vld [vmem:[%s2188 + $0x58] sm:$0xff]
  %v2201 = vld [vmem:[%s2188 + $0x60] sm:$0xff]
  %v2202 = vld [vmem:[%s2188 + $0x68] sm:$0xff]
  %v2203 = vld [vmem:[%s2188 + $0x70] sm:$0xff]
  %v2204 = vld [vmem:[%s2188 + $0x78] sm:$0xff]
  %2205 = vmatpush.msra.mxu0 %v2204
  %2206 = vmatpush.msra.mxu0 %v2203
  %2207 = vmatpush.msra.mxu0 %v2202
  %2208 = vmatpush.msra.mxu0 %v2201
  %2209 = vmatpush.msra.mxu0 %v2200
  %2210 = vmatpush.msra.mxu0 %v2199
  %2211 = vmatpush.msra.mxu0 %v2198
  %2212 = vmatpush.msra.mxu0 %v2197
  %2213 = vmatpush.msra.mxu0 %v2196
  %2214 = vmatpush.msra.mxu0 %v2195
  %2215 = vmatpush.msra.mxu0 %v2194
  %2216 = vmatpush.msra.mxu0 %v2193
  %2217 = vmatpush.msra.mxu0 %v2192
  %2218 = vmatpush.msra.mxu0 %v2191
  %2219 = vmatpush.msra.mxu0 %v2190
  %2220 = vmatpush.msra.mxu0 %v2189
  %2221 = vmatmul.f32.gmra.mxu0 %v2172
  %v2222 = vpop.f32.mrf.mxu0
  %v2223 = vadd.f32 0.0, %v2222
  %2224 = vmatmul.f32.gmra.mxu0 %v2173
  %v2225 = vpop.f32.mrf.mxu0
  %v2226 = vadd.f32 0.0, %v2225
  %2227 = vmatmul.f32.gmra.mxu0 %v2174
  %v2228 = vpop.f32.mrf.mxu0
  %v2229 = vadd.f32 0.0, %v2228
  %2230 = vmatmul.f32.gmra.mxu0 %v2175
  %v2231 = vpop.f32.mrf.mxu0
  %v2232 = vadd.f32 0.0, %v2231
  %2233 = vmatmul.f32.gmra.mxu0 %v2176
  %v2234 = vpop.f32.mrf.mxu0
  %v2235 = vadd.f32 0.0, %v2234
  %2236 = vmatmul.f32.gmra.mxu0 %v2177
  %v2237 = vpop.f32.mrf.mxu0
  %v2238 = vadd.f32 0.0, %v2237
  %2239 = vmatmul.f32.gmra.mxu0 %v2178
  %v2240 = vpop.f32.mrf.mxu0
  %v2241 = vadd.f32 0.0, %v2240
  %2242 = vmatmul.f32.gmra.mxu0 %v2179
  %v2243 = vpop.f32.mrf.mxu0
  %v2244 = vadd.f32 0.0, %v2243
  %2245 = vmatmul.f32.gmra.mxu0 %v2180
  %v2246 = vpop.f32.mrf.mxu0
  %v2247 = vadd.f32 0.0, %v2246
  %2248 = vmatmul.f32.gmra.mxu0 %v2181
  %v2249 = vpop.f32.mrf.mxu0
  %v2250 = vadd.f32 0.0, %v2249
  %2251 = vmatmul.f32.gmra.mxu0 %v2182
  %v2252 = vpop.f32.mrf.mxu0
  %v2253 = vadd.f32 0.0, %v2252
  %2254 = vmatmul.f32.gmra.mxu0 %v2183
  %v2255 = vpop.f32.mrf.mxu0
  %v2256 = vadd.f32 0.0, %v2255
  %2257 = vmatmul.f32.gmra.mxu0 %v2184
  %v2258 = vpop.f32.mrf.mxu0
  %v2259 = vadd.f32 0.0, %v2258
  %2260 = vmatmul.f32.gmra.mxu0 %v2185
  %v2261 = vpop.f32.mrf.mxu0
  %v2262 = vadd.f32 0.0, %v2261
  %2263 = vmatmul.f32.gmra.mxu0 %v2186
  %v2264 = vpop.f32.mrf.mxu0
  %v2265 = vadd.f32 0.0, %v2264
  %2266 = vmatmul.f32.gmra.mxu0 %v2187
  %v2267 = vpop.f32.mrf.mxu0
  %v2268 = vadd.f32 0.0, %v2267
  %2269 = vdwg.mxu0
  %v2270 = vmax.f32 %v2223, 0.0
  %v2271 = vmax.f32 %v2226, 0.0
  %v2272 = vmax.f32 %v2229, 0.0
  %v2273 = vmax.f32 %v2232, 0.0
  %v2274 = vmax.f32 %v2235, 0.0
  %v2275 = vmax.f32 %v2238, 0.0
  %v2276 = vmax.f32 %v2241, 0.0
  %v2277 = vmax.f32 %v2244, 0.0
  %v2278 = vmax.f32 %v2247, 0.0
  %v2279 = vmax.f32 %v2250, 0.0
  %v2280 = vmax.f32 %v2253, 0.0
  %v2281 = vmax.f32 %v2256, 0.0
  %v2282 = vmax.f32 %v2259, 0.0
  %v2283 = vmax.f32 %v2262, 0.0
  %v2284 = vmax.f32 %v2265, 0.0
  %v2285 = vmax.f32 %v2268, 0.0
  %v2286 = vadd.f32 %v2270, %v1710
  %v2287 = vadd.f32 %v2271, %v1711
  %v2288 = vadd.f32 %v2272, %v1712
  %v2289 = vadd.f32 %v2273, %v1713
  %v2290 = vadd.f32 %v2274, %v1714
  %v2291 = vadd.f32 %v2275, %v1715
  %v2292 = vadd.f32 %v2276, %v1716
  %v2293 = vadd.f32 %v2277, %v1717
  %v2294 = vadd.f32 %v2278, %v1718
  %v2295 = vadd.f32 %v2279, %v1719
  %v2296 = vadd.f32 %v2280, %v1720
  %v2297 = vadd.f32 %v2281, %v1721
  %v2298 = vadd.f32 %v2282, %v1722
  %v2299 = vadd.f32 %v2283, %v1723
  %v2300 = vadd.f32 %v2284, %v1891
  %v2301 = vadd.f32 %v2285, %v1892
  %2302 = vst [vmem:[#allocation2] sm:$0xff] %v2286
  %2303 = vst [vmem:[#allocation2 + $0x8] sm:$0xff] %v2287
  %2304 = vst [vmem:[#allocation2 + $0x10] sm:$0xff] %v2288
  %2305 = vst [vmem:[#allocation2 + $0x18] sm:$0xff] %v2289
  %2306 = vst [vmem:[#allocation2 + $0x20] sm:$0xff] %v2290
  %2307 = vst [vmem:[#allocation2 + $0x28] sm:$0xff] %v2291
  %2308 = vst [vmem:[#allocation2 + $0x30] sm:$0xff] %v2292
  %2309 = vst [vmem:[#allocation2 + $0x38] sm:$0xff] %v2293
  %2310 = vst [vmem:[#allocation2 + $0x40] sm:$0xff] %v2294
  %2311 = vst [vmem:[#allocation2 + $0x48] sm:$0xff] %v2295
  %2312 = vst [vmem:[#allocation2 + $0x50] sm:$0xff] %v2296
  %2313 = vst [vmem:[#allocation2 + $0x58] sm:$0xff] %v2297
  %2314 = vst [vmem:[#allocation2 + $0x60] sm:$0xff] %v2298
  %2315 = vst [vmem:[#allocation2 + $0x68] sm:$0xff] %v2299
  %2316 = vst [vmem:[#allocation2 + $0x70] sm:$0xff] %v2300
  %2317 = vst [vmem:[#allocation2 + $0x78] sm:$0xff] %v2301
  %s2318 = scalar_lea.vmem [#allocation3], 112
  %v2319 = vld [vmem:[%s2318] sm:$0xff]
  %v2320 = vld [vmem:[%s2318 + $0x8] sm:$0xff]
  %v2321 = vld [vmem:[%s2318 + $0x10] sm:$0xff]
  %v2322 = vld [vmem:[%s2318 + $0x18] sm:$0xff]
  %v2323 = vld [vmem:[%s2318 + $0x20] sm:$0xff]
  %v2324 = vld [vmem:[%s2318 + $0x28] sm:$0xff]
  %v2325 = vld [vmem:[%s2318 + $0x30] sm:$0xff]
  %v2326 = vld [vmem:[%s2318 + $0x38] sm:$0xff]
  %v2327 = vld [vmem:[%s2318 + $0x40] sm:$0xff]
  %v2328 = vld [vmem:[%s2318 + $0x48] sm:$0xff]
  %v2329 = vld [vmem:[%s2318 + $0x50] sm:$0xff]
  %v2330 = vld [vmem:[%s2318 + $0x58] sm:$0xff]
  %v2331 = vld [vmem:[%s2318 + $0x60] sm:$0xff]
  %v2332 = vld [vmem:[%s2318 + $0x68] sm:$0xff]
  %v2333 = vld [vmem:[%s2318 + $0x70] sm:$0xff]
  %v2334 = vld [vmem:[%s2318 + $0x78] sm:$0xff]
  %v2335 = vrot.slane %v2319, 7
  %v2336 = vrot.slane %v2321, 7
  %v2337 = vrot.slane %v2323, 7
  %v2338 = vrot.slane %v2325, 7
  %v2339 = vrot.slane %v2327, 7
  %v2340 = vrot.slane %v2329, 7
  %v2341 = vrot.slane %v2331, 7
  %v2342 = vrot.slane %v2333, 7
  %v2343 = vrot.slane %v2320, 7
  %v2344 = vrot.slane %v2322, 7
  %v2345 = vrot.slane %v2324, 7
  %v2346 = vrot.slane %v2326, 7
  %v2347 = vrot.slane %v2328, 7
  %v2348 = vrot.slane %v2330, 7
  %v2349 = vrot.slane %v2332, 7
  %v2350 = vrot.slane %v2334, 7
  %v2351 = vsel %vm380, %v2335, %v2343
  %v2352 = vsel %vm380, %v2336, %v2344
  %v2353 = vsel %vm380, %v2337, %v2345
  %v2354 = vsel %vm380, %v2338, %v2346
  %v2355 = vsel %vm380, %v2339, %v2347
  %v2356 = vsel %vm380, %v2340, %v2348
  %v2357 = vsel %vm380, %v2341, %v2349
  %v2358 = vsel %vm380, %v2342, %v2350
  %v2359 = vsel %vm380, %v2343, %v2335
  %v2360 = vsel %vm380, %v2344, %v2336
  %v2361 = vsel %vm380, %v2345, %v2337
  %v2362 = vsel %vm380, %v2346, %v2338
  %v2363 = vsel %vm380, %v2347, %v2339
  %v2364 = vsel %vm380, %v2348, %v2340
  %v2365 = vsel %vm380, %v2349, %v2341
  %v2366 = vsel %vm380, %v2350, %v2342
  %v2367 = vld [vmem:[%s1756] sm:$0x1]
  %v2368 = vperm.slane %v2367, 0
  %v2369 = vmul.f32 %v2359, %v2368
  %v2370 = vmul.f32 %v2351, %v2368
  %v2371 = vmul.f32 %v2360, %v2368
  %v2372 = vmul.f32 %v2352, %v2368
  %v2373 = vmul.f32 %v2361, %v2368
  %v2374 = vmul.f32 %v2353, %v2368
  %v2375 = vmul.f32 %v2362, %v2368
  %v2376 = vmul.f32 %v2354, %v2368
  %v2377 = vmul.f32 %v2363, %v2368
  %v2378 = vmul.f32 %v2355, %v2368
  %v2379 = vmul.f32 %v2364, %v2368
  %v2380 = vmul.f32 %v2356, %v2368
  %v2381 = vmul.f32 %v2365, %v2368
  %v2382 = vmul.f32 %v2357, %v2368
  %v2383 = vmul.f32 %v2366, %v2368
  %v2384 = vmul.f32 %v2358, %v2368
  %v2385 = vadd.f32 %v2369, 0.0
  %v2386 = vadd.f32 %v2370, 0.0
  %v2387 = vadd.f32 %v2371, 0.0
  %v2388 = vadd.f32 %v2372, 0.0
  %v2389 = vadd.f32 %v2373, 0.0
  %v2390 = vadd.f32 %v2374, 0.0
  %v2391 = vadd.f32 %v2375, 0.0
  %v2392 = vadd.f32 %v2376, 0.0
  %v2393 = vadd.f32 %v2377, 0.0
  %v2394 = vadd.f32 %v2378, 0.0
  %v2395 = vadd.f32 %v2379, 0.0
  %v2396 = vadd.f32 %v2380, 0.0
  %v2397 = vadd.f32 %v2381, 0.0
  %v2398 = vadd.f32 %v2382, 0.0
  %v2399 = vadd.f32 %v2383, 0.0
  %v2400 = vadd.f32 %v2384, 0.0
  %v2401 = vld [vmem:[%s1756 + $0x1] sm:$0x1]
  %v2402 = vperm.slane %v2401, 0
  %v2403 = vmul.f32 %v2319, %v2402
  %v2404 = vmul.f32 %v2320, %v2402
  %v2405 = vmul.f32 %v2321, %v2402
  %v2406 = vmul.f32 %v2322, %v2402
  %v2407 = vmul.f32 %v2323, %v2402
  %v2408 = vmul.f32 %v2324, %v2402
  %v2409 = vmul.f32 %v2325, %v2402
  %v2410 = vmul.f32 %v2326, %v2402
  %v2411 = vmul.f32 %v2327, %v2402
  %v2412 = vmul.f32 %v2328, %v2402
  %v2413 = vmul.f32 %v2329, %v2402
  %v2414 = vmul.f32 %v2330, %v2402
  %v2415 = vmul.f32 %v2331, %v2402
  %v2416 = vmul.f32 %v2332, %v2402
  %v2417 = vmul.f32 %v2333, %v2402
  %v2418 = vmul.f32 %v2334, %v2402
  %v2419 = vadd.f32 %v2385, %v2403
  %v2420 = vadd.f32 %v2386, %v2404
  %v2421 = vadd.f32 %v2387, %v2405
  %v2422 = vadd.f32 %v2388, %v2406
  %v2423 = vadd.f32 %v2389, %v2407
  %v2424 = vadd.f32 %v2390, %v2408
  %v2425 = vadd.f32 %v2391, %v2409
  %v2426 = vadd.f32 %v2392, %v2410
  %v2427 = vadd.f32 %v2393, %v2411
  %v2428 = vadd.f32 %v2394, %v2412
  %v2429 = vadd.f32 %v2395, %v2413
  %v2430 = vadd.f32 %v2396, %v2414
  %v2431 = vadd.f32 %v2397, %v2415
  %v2432 = vadd.f32 %v2398, %v2416
  %v2433 = vadd.f32 %v2399, %v2417
  %v2434 = vadd.f32 %v2400, %v2418
  %v2435 = vrot.slane %v2319, 1
  %v2436 = vrot.slane %v2321, 1
  %v2437 = vrot.slane %v2323, 1
  %v2438 = vrot.slane %v2325, 1
  %v2439 = vrot.slane %v2327, 1
  %v2440 = vrot.slane %v2329, 1
  %v2441 = vrot.slane %v2331, 1
  %v2442 = vrot.slane %v2333, 1
  %v2443 = vrot.slane %v2320, 1
  %v2444 = vrot.slane %v2322, 1
  %v2445 = vrot.slane %v2324, 1
  %v2446 = vrot.slane %v2326, 1
  %v2447 = vrot.slane %v2328, 1
  %v2448 = vrot.slane %v2330, 1
  %v2449 = vrot.slane %v2332, 1
  %v2450 = vrot.slane %v2334, 1
  %v2451 = vsel %vm481, %v2435, %v2443
  %v2452 = vsel %vm481, %v2436, %v2444
  %v2453 = vsel %vm481, %v2437, %v2445
  %v2454 = vsel %vm481, %v2438, %v2446
  %v2455 = vsel %vm481, %v2439, %v2447
  %v2456 = vsel %vm481, %v2440, %v2448
  %v2457 = vsel %vm481, %v2441, %v2449
  %v2458 = vsel %vm481, %v2442, %v2450
  %v2459 = vsel %vm481, %v2443, %v2435
  %v2460 = vsel %vm481, %v2444, %v2436
  %v2461 = vsel %vm481, %v2445, %v2437
  %v2462 = vsel %vm481, %v2446, %v2438
  %v2463 = vsel %vm481, %v2447, %v2439
  %v2464 = vsel %vm481, %v2448, %v2440
  %v2465 = vsel %vm481, %v2449, %v2441
  %v2466 = vsel %vm481, %v2450, %v2442
  %v2467 = vld [vmem:[%s1756 + $0x2] sm:$0x1]
  %v2468 = vperm.slane %v2467, 0
  %v2469 = vmul.f32 %v2451, %v2468
  %v2470 = vmul.f32 %v2459, %v2468
  %v2471 = vmul.f32 %v2452, %v2468
  %v2472 = vmul.f32 %v2460, %v2468
  %v2473 = vmul.f32 %v2453, %v2468
  %v2474 = vmul.f32 %v2461, %v2468
  %v2475 = vmul.f32 %v2454, %v2468
  %v2476 = vmul.f32 %v2462, %v2468
  %v2477 = vmul.f32 %v2455, %v2468
  %v2478 = vmul.f32 %v2463, %v2468
  %v2479 = vmul.f32 %v2456, %v2468
  %v2480 = vmul.f32 %v2464, %v2468
  %v2481 = vmul.f32 %v2457, %v2468
  %v2482 = vmul.f32 %v2465, %v2468
  %v2483 = vmul.f32 %v2458, %v2468
  %v2484 = vmul.f32 %v2466, %v2468
  %v2485 = vadd.f32 %v2419, %v2469
  %v2486 = vadd.f32 %v2420, %v2470
  %v2487 = vadd.f32 %v2421, %v2471
  %v2488 = vadd.f32 %v2422, %v2472
  %v2489 = vadd.f32 %v2423, %v2473
  %v2490 = vadd.f32 %v2424, %v2474
  %v2491 = vadd.f32 %v2425, %v2475
  %v2492 = vadd.f32 %v2426, %v2476
  %v2493 = vadd.f32 %v2427, %v2477
  %v2494 = vadd.f32 %v2428, %v2478
  %v2495 = vadd.f32 %v2429, %v2479
  %v2496 = vadd.f32 %v2430, %v2480
  %v2497 = vadd.f32 %v2431, %v2481
  %v2498 = vadd.f32 %v2432, %v2482
  %v2499 = vadd.f32 %v2433, %v2483
  %v2500 = vadd.f32 %v2434, %v2484
  %v2501 = vld [vmem:[%s1690] sm:$0xff]
  %v2502 = vld [vmem:[%s1690 + $0x8] sm:$0xff]
  %v2503 = vld [vmem:[%s1690 + $0x10] sm:$0xff]
  %v2504 = vld [vmem:[%s1690 + $0x18] sm:$0xff]
  %v2505 = vld [vmem:[%s1690 + $0x20] sm:$0xff]
  %v2506 = vld [vmem:[%s1690 + $0x28] sm:$0xff]
  %v2507 = vld [vmem:[%s1690 + $0x30] sm:$0xff]
  %v2508 = vld [vmem:[%s1690 + $0x38] sm:$0xff]
  %v2509 = vld [vmem:[%s1690 + $0x40] sm:$0xff]
  %v2510 = vld [vmem:[%s1690 + $0x48] sm:$0xff]
  %v2511 = vld [vmem:[%s1690 + $0x50] sm:$0xff]
  %v2512 = vld [vmem:[%s1690 + $0x58] sm:$0xff]
  %v2513 = vld [vmem:[%s1690 + $0x60] sm:$0xff]
  %v2514 = vld [vmem:[%s1690 + $0x68] sm:$0xff]
  %v2515 = vld [vmem:[%s1690 + $0x70] sm:$0xff]
  %v2516 = vld [vmem:[%s1690 + $0x78] sm:$0xff]
  %v2517 = vrot.slane %v2501, 7
  %v2518 = vrot.slane %v2503, 7
  %v2519 = vrot.slane %v2505, 7
  %v2520 = vrot.slane %v2507, 7
  %v2521 = vrot.slane %v2509, 7
  %v2522 = vrot.slane %v2511, 7
  %v2523 = vrot.slane %v2513, 7
  %v2524 = vrot.slane %v2515, 7
  %v2525 = vrot.slane %v2502, 7
  %v2526 = vrot.slane %v2504, 7
  %v2527 = vrot.slane %v2506, 7
  %v2528 = vrot.slane %v2508, 7
  %v2529 = vrot.slane %v2510, 7
  %v2530 = vrot.slane %v2512, 7
  %v2531 = vrot.slane %v2514, 7
  %v2532 = vrot.slane %v2516, 7
  %v2533 = vsel %vm380, %v2517, %v2525
  %v2534 = vsel %vm380, %v2518, %v2526
  %v2535 = vsel %vm380, %v2519, %v2527
  %v2536 = vsel %vm380, %v2520, %v2528
  %v2537 = vsel %vm380, %v2521, %v2529
  %v2538 = vsel %vm380, %v2522, %v2530
  %v2539 = vsel %vm380, %v2523, %v2531
  %v2540 = vsel %vm380, %v2524, %v2532
  %v2541 = vsel %vm380, %v2525, %v2517
  %v2542 = vsel %vm380, %v2526, %v2518
  %v2543 = vsel %vm380, %v2527, %v2519
  %v2544 = vsel %vm380, %v2528, %v2520
  %v2545 = vsel %vm380, %v2529, %v2521
  %v2546 = vsel %vm380, %v2530, %v2522
  %v2547 = vsel %vm380, %v2531, %v2523
  %v2548 = vsel %vm380, %v2532, %v2524
  %v2549 = vld [vmem:[%s1897] sm:$0x1]
  %v2550 = vperm.slane %v2549, 0
  %v2551 = vmul.f32 %v2541, %v2550
  %v2552 = vmul.f32 %v2533, %v2550
  %v2553 = vmul.f32 %v2542, %v2550
  %v2554 = vmul.f32 %v2534, %v2550
  %v2555 = vmul.f32 %v2543, %v2550
  %v2556 = vmul.f32 %v2535, %v2550
  %v2557 = vmul.f32 %v2544, %v2550
  %v2558 = vmul.f32 %v2536, %v2550
  %v2559 = vmul.f32 %v2545, %v2550
  %v2560 = vmul.f32 %v2537, %v2550
  %v2561 = vmul.f32 %v2546, %v2550
  %v2562 = vmul.f32 %v2538, %v2550
  %v2563 = vmul.f32 %v2547, %v2550
  %v2564 = vmul.f32 %v2539, %v2550
  %v2565 = vmul.f32 %v2548, %v2550
  %v2566 = vmul.f32 %v2540, %v2550
  %v2567 = vadd.f32 %v2485, %v2551
  %v2568 = vadd.f32 %v2486, %v2552
  %v2569 = vadd.f32 %v2487, %v2553
  %v2570 = vadd.f32 %v2488, %v2554
  %v2571 = vadd.f32 %v2489, %v2555
  %v2572 = vadd.f32 %v2490, %v2556
  %v2573 = vadd.f32 %v2491, %v2557
  %v2574 = vadd.f32 %v2492, %v2558
  %v2575 = vadd.f32 %v2493, %v2559
  %v2576 = vadd.f32 %v2494, %v2560
  %v2577 = vadd.f32 %v2495, %v2561
  %v2578 = vadd.f32 %v2496, %v2562
  %v2579 = vadd.f32 %v2497, %v2563
  %v2580 = vadd.f32 %v2498, %v2564
  %v2581 = vadd.f32 %v2499, %v2565
  %v2582 = vadd.f32 %v2500, %v2566
  %v2583 = vld [vmem:[%s1897 + $0x1] sm:$0x1]
  %v2584 = vperm.slane %v2583, 0
  %v2585 = vmul.f32 %v2501, %v2584
  %v2586 = vmul.f32 %v2502, %v2584
  %v2587 = vmul.f32 %v2503, %v2584
  %v2588 = vmul.f32 %v2504, %v2584
  %v2589 = vmul.f32 %v2505, %v2584
  %v2590 = vmul.f32 %v2506, %v2584
  %v2591 = vmul.f32 %v2507, %v2584
  %v2592 = vmul.f32 %v2508, %v2584
  %v2593 = vmul.f32 %v2509, %v2584
  %v2594 = vmul.f32 %v2510, %v2584
  %v2595 = vmul.f32 %v2511, %v2584
  %v2596 = vmul.f32 %v2512, %v2584
  %v2597 = vmul.f32 %v2513, %v2584
  %v2598 = vmul.f32 %v2514, %v2584
  %v2599 = vmul.f32 %v2515, %v2584
  %v2600 = vmul.f32 %v2516, %v2584
  %v2601 = vadd.f32 %v2567, %v2585
  %v2602 = vadd.f32 %v2568, %v2586
  %v2603 = vadd.f32 %v2569, %v2587
  %v2604 = vadd.f32 %v2570, %v2588
  %v2605 = vadd.f32 %v2571, %v2589
  %v2606 = vadd.f32 %v2572, %v2590
  %v2607 = vadd.f32 %v2573, %v2591
  %v2608 = vadd.f32 %v2574, %v2592
  %v2609 = vadd.f32 %v2575, %v2593
  %v2610 = vadd.f32 %v2576, %v2594
  %v2611 = vadd.f32 %v2577, %v2595
  %v2612 = vadd.f32 %v2578, %v2596
  %v2613 = vadd.f32 %v2579, %v2597
  %v2614 = vadd.f32 %v2580, %v2598
  %v2615 = vadd.f32 %v2581, %v2599
  %v2616 = vadd.f32 %v2582, %v2600
  %v2617 = vrot.slane %v2501, 1
  %v2618 = vrot.slane %v2503, 1
  %v2619 = vrot.slane %v2505, 1
  %v2620 = vrot.slane %v2507, 1
  %v2621 = vrot.slane %v2509, 1
  %v2622 = vrot.slane %v2511, 1
  %v2623 = vrot.slane %v2513, 1
  %v2624 = vrot.slane %v2515, 1
  %v2625 = vrot.slane %v2502, 1
  %v2626 = vrot.slane %v2504, 1
  %v2627 = vrot.slane %v2506, 1
  %v2628 = vrot.slane %v2508, 1
  %v2629 = vrot.slane %v2510, 1
  %v2630 = vrot.slane %v2512, 1
  %v2631 = vrot.slane %v2514, 1
  %v2632 = vrot.slane %v2516, 1
  %v2633 = vsel %vm481, %v2617, %v2625
  %v2634 = vsel %vm481, %v2618, %v2626
  %v2635 = vsel %vm481, %v2619, %v2627
  %v2636 = vsel %vm481, %v2620, %v2628
  %v2637 = vsel %vm481, %v2621, %v2629
  %v2638 = vsel %vm481, %v2622, %v2630
  %v2639 = vsel %vm481, %v2623, %v2631
  %v2640 = vsel %vm481, %v2624, %v2632
  %v2641 = vsel %vm481, %v2625, %v2617
  %v2642 = vsel %vm481, %v2626, %v2618
  %v2643 = vsel %vm481, %v2627, %v2619
  %v2644 = vsel %vm481, %v2628, %v2620
  %v2645 = vsel %vm481, %v2629, %v2621
  %v2646 = vsel %vm481, %v2630, %v2622
  %v2647 = vsel %vm481, %v2631, %v2623
  %v2648 = vsel %vm481, %v2632, %v2624
  %v2649 = vld [vmem:[%s1897 + $0x2] sm:$0x1]
  %v2650 = vperm.slane %v2649, 0
  %v2651 = vmul.f32 %v2633, %v2650
  %v2652 = vmul.f32 %v2641, %v2650
  %v2653 = vmul.f32 %v2634, %v2650
  %v2654 = vmul.f32 %v2642, %v2650
  %v2655 = vmul.f32 %v2635, %v2650
  %v2656 = vmul.f32 %v2643, %v2650
  %v2657 = vmul.f32 %v2636, %v2650
  %v2658 = vmul.f32 %v2644, %v2650
  %v2659 = vmul.f32 %v2637, %v2650
  %v2660 = vmul.f32 %v2645, %v2650
  %v2661 = vmul.f32 %v2638, %v2650
  %v2662 = vmul.f32 %v2646, %v2650
  %v2663 = vmul.f32 %v2639, %v2650
  %v2664 = vmul.f32 %v2647, %v2650
  %v2665 = vmul.f32 %v2640, %v2650
  %v2666 = vmul.f32 %v2648, %v2650
  %v2667 = vadd.f32 %v2601, %v2651
  %v2668 = vadd.f32 %v2602, %v2652
  %v2669 = vadd.f32 %v2603, %v2653
  %v2670 = vadd.f32 %v2604, %v2654
  %v2671 = vadd.f32 %v2605, %v2655
  %v2672 = vadd.f32 %v2606, %v2656
  %v2673 = vadd.f32 %v2607, %v2657
  %v2674 = vadd.f32 %v2608, %v2658
  %v2675 = vadd.f32 %v2609, %v2659
  %v2676 = vadd.f32 %v2610, %v2660
  %v2677 = vadd.f32 %v2611, %v2661
  %v2678 = vadd.f32 %v2612, %v2662
  %v2679 = vadd.f32 %v2613, %v2663
  %v2680 = vadd.f32 %v2614, %v2664
  %v2681 = vadd.f32 %v2615, %v2665
  %v2682 = vadd.f32 %v2616, %v2666
  %s2683 = scalar_lea.vmem [#allocation3], 144
  %v2684 = vld [vmem:[%s2683] sm:$0xff]
  %v2685 = vld [vmem:[%s2683 + $0x8] sm:$0xff]
  %v2686 = vld [vmem:[%s2683 + $0x10] sm:$0xff]
  %v2687 = vld [vmem:[%s2683 + $0x18] sm:$0xff]
  %v2688 = vld [vmem:[%s2683 + $0x20] sm:$0xff]
  %v2689 = vld [vmem:[%s2683 + $0x28] sm:$0xff]
  %v2690 = vld [vmem:[%s2683 + $0x30] sm:$0xff]
  %v2691 = vld [vmem:[%s2683 + $0x38] sm:$0xff]
  %v2692 = vld [vmem:[%s2683 + $0x40] sm:$0xff]
  %v2693 = vld [vmem:[%s2683 + $0x48] sm:$0xff]
  %v2694 = vld [vmem:[%s2683 + $0x50] sm:$0xff]
  %v2695 = vld [vmem:[%s2683 + $0x58] sm:$0xff]
  %v2696 = vld [vmem:[%s2683 + $0x60] sm:$0xff]
  %v2697 = vld [vmem:[%s2683 + $0x68] sm:$0xff]
  %v2698 = vld [vmem:[#allocation3] sm:$0xff]
  %v2699 = vld [vmem:[#allocation3 + $0x8] sm:$0xff]
  %v2700 = vrot.slane %v2684, 7
  %v2701 = vrot.slane %v2686, 7
  %v2702 = vrot.slane %v2688, 7
  %v2703 = vrot.slane %v2690, 7
  %v2704 = vrot.slane %v2692, 7
  %v2705 = vrot.slane %v2694, 7
  %v2706 = vrot.slane %v2696, 7
  %v2707 = vrot.slane %v2698, 7
  %v2708 = vrot.slane %v2685, 7
  %v2709 = vrot.slane %v2687, 7
  %v2710 = vrot.slane %v2689, 7
  %v2711 = vrot.slane %v2691, 7
  %v2712 = vrot.slane %v2693, 7
  %v2713 = vrot.slane %v2695, 7
  %v2714 = vrot.slane %v2697, 7
  %v2715 = vrot.slane %v2699, 7
  %v2716 = vsel %vm380, %v2700, %v2708
  %v2717 = vsel %vm380, %v2701, %v2709
  %v2718 = vsel %vm380, %v2702, %v2710
  %v2719 = vsel %vm380, %v2703, %v2711
  %v2720 = vsel %vm380, %v2704, %v2712
  %v2721 = vsel %vm380, %v2705, %v2713
  %v2722 = vsel %vm380, %v2706, %v2714
  %v2723 = vsel %vm380, %v2707, %v2715
  %v2724 = vsel %vm380, %v2708, %v2700
  %v2725 = vsel %vm380, %v2709, %v2701
  %v2726 = vsel %vm380, %v2710, %v2702
  %v2727 = vsel %vm380, %v2711, %v2703
  %v2728 = vsel %vm380, %v2712, %v2704
  %v2729 = vsel %vm380, %v2713, %v2705
  %v2730 = vsel %vm380, %v2714, %v2706
  %v2731 = vsel %vm380, %v2715, %v2707
  %v2732 = vld [vmem:[%s2053] sm:$0x1]
  %v2733 = vperm.slane %v2732, 0
  %v2734 = vmul.f32 %v2724, %v2733
  %v2735 = vmul.f32 %v2716, %v2733
  %v2736 = vmul.f32 %v2725, %v2733
  %v2737 = vmul.f32 %v2717, %v2733
  %v2738 = vmul.f32 %v2726, %v2733
  %v2739 = vmul.f32 %v2718, %v2733
  %v2740 = vmul.f32 %v2727, %v2733
  %v2741 = vmul.f32 %v2719, %v2733
  %v2742 = vmul.f32 %v2728, %v2733
  %v2743 = vmul.f32 %v2720, %v2733
  %v2744 = vmul.f32 %v2729, %v2733
  %v2745 = vmul.f32 %v2721, %v2733
  %v2746 = vmul.f32 %v2730, %v2733
  %v2747 = vmul.f32 %v2722, %v2733
  %v2748 = vmul.f32 %v2731, %v2733
  %v2749 = vmul.f32 %v2723, %v2733
  %v2750 = vadd.f32 %v2667, %v2734
  %v2751 = vadd.f32 %v2668, %v2735
  %v2752 = vadd.f32 %v2669, %v2736
  %v2753 = vadd.f32 %v2670, %v2737
  %v2754 = vadd.f32 %v2671, %v2738
  %v2755 = vadd.f32 %v2672, %v2739
  %v2756 = vadd.f32 %v2673, %v2740
  %v2757 = vadd.f32 %v2674, %v2741
  %v2758 = vadd.f32 %v2675, %v2742
  %v2759 = vadd.f32 %v2676, %v2743
  %v2760 = vadd.f32 %v2677, %v2744
  %v2761 = vadd.f32 %v2678, %v2745
  %v2762 = vadd.f32 %v2679, %v2746
  %v2763 = vadd.f32 %v2680, %v2747
  %v2764 = vadd.f32 %v2681, %v2748
  %v2765 = vadd.f32 %v2682, %v2749
  %v2766 = vld [vmem:[%s2053 + $0x1] sm:$0x1]
  %v2767 = vperm.slane %v2766, 0
  %v2768 = vmul.f32 %v2684, %v2767
  %v2769 = vmul.f32 %v2685, %v2767
  %v2770 = vmul.f32 %v2686, %v2767
  %v2771 = vmul.f32 %v2687, %v2767
  %v2772 = vmul.f32 %v2688, %v2767
  %v2773 = vmul.f32 %v2689, %v2767
  %v2774 = vmul.f32 %v2690, %v2767
  %v2775 = vmul.f32 %v2691, %v2767
  %v2776 = vmul.f32 %v2692, %v2767
  %v2777 = vmul.f32 %v2693, %v2767
  %v2778 = vmul.f32 %v2694, %v2767
  %v2779 = vmul.f32 %v2695, %v2767
  %v2780 = vmul.f32 %v2696, %v2767
  %v2781 = vmul.f32 %v2697, %v2767
  %v2782 = vmul.f32 %v2698, %v2767
  %v2783 = vmul.f32 %v2699, %v2767
  %v2784 = vadd.f32 %v2750, %v2768
  %v2785 = vadd.f32 %v2751, %v2769
  %v2786 = vadd.f32 %v2752, %v2770
  %v2787 = vadd.f32 %v2753, %v2771
  %v2788 = vadd.f32 %v2754, %v2772
  %v2789 = vadd.f32 %v2755, %v2773
  %v2790 = vadd.f32 %v2756, %v2774
  %v2791 = vadd.f32 %v2757, %v2775
  %v2792 = vadd.f32 %v2758, %v2776
  %v2793 = vadd.f32 %v2759, %v2777
  %v2794 = vadd.f32 %v2760, %v2778
  %v2795 = vadd.f32 %v2761, %v2779
  %v2796 = vadd.f32 %v2762, %v2780
  %v2797 = vadd.f32 %v2763, %v2781
  %v2798 = vadd.f32 %v2764, %v2782
  %v2799 = vadd.f32 %v2765, %v2783
  %v2800 = vrot.slane %v2684, 1
  %v2801 = vrot.slane %v2686, 1
  %v2802 = vrot.slane %v2688, 1
  %v2803 = vrot.slane %v2690, 1
  %v2804 = vrot.slane %v2692, 1
  %v2805 = vrot.slane %v2694, 1
  %v2806 = vrot.slane %v2696, 1
  %v2807 = vrot.slane %v2698, 1
  %v2808 = vrot.slane %v2685, 1
  %v2809 = vrot.slane %v2687, 1
  %v2810 = vrot.slane %v2689, 1
  %v2811 = vrot.slane %v2691, 1
  %v2812 = vrot.slane %v2693, 1
  %v2813 = vrot.slane %v2695, 1
  %v2814 = vrot.slane %v2697, 1
  %v2815 = vrot.slane %v2699, 1
  %v2816 = vsel %vm481, %v2800, %v2808
  %v2817 = vsel %vm481, %v2801, %v2809
  %v2818 = vsel %vm481, %v2802, %v2810
  %v2819 = vsel %vm481, %v2803, %v2811
  %v2820 = vsel %vm481, %v2804, %v2812
  %v2821 = vsel %vm481, %v2805, %v2813
  %v2822 = vsel %vm481, %v2806, %v2814
  %v2823 = vsel %vm481, %v2807, %v2815
  %v2824 = vsel %vm481, %v2808, %v2800
  %v2825 = vsel %vm481, %v2809, %v2801
  %v2826 = vsel %vm481, %v2810, %v2802
  %v2827 = vsel %vm481, %v2811, %v2803
  %v2828 = vsel %vm481, %v2812, %v2804
  %v2829 = vsel %vm481, %v2813, %v2805
  %v2830 = vsel %vm481, %v2814, %v2806
  %v2831 = vsel %vm481, %v2815, %v2807
  %v2832 = vld [vmem:[%s2053 + $0x2] sm:$0x1]
  %v2833 = vperm.slane %v2832, 0
  %v2834 = vmul.f32 %v2816, %v2833
  %v2835 = vmul.f32 %v2824, %v2833
  %v2836 = vmul.f32 %v2817, %v2833
  %v2837 = vmul.f32 %v2825, %v2833
  %v2838 = vmul.f32 %v2818, %v2833
  %v2839 = vmul.f32 %v2826, %v2833
  %v2840 = vmul.f32 %v2819, %v2833
  %v2841 = vmul.f32 %v2827, %v2833
  %v2842 = vmul.f32 %v2820, %v2833
  %v2843 = vmul.f32 %v2828, %v2833
  %v2844 = vmul.f32 %v2821, %v2833
  %v2845 = vmul.f32 %v2829, %v2833
  %v2846 = vmul.f32 %v2822, %v2833
  %v2847 = vmul.f32 %v2830, %v2833
  %v2848 = vmul.f32 %v2823, %v2833
  %v2849 = vmul.f32 %v2831, %v2833
  %v2850 = vadd.f32 %v2784, %v2834
  %v2851 = vadd.f32 %v2785, %v2835
  %v2852 = vadd.f32 %v2786, %v2836
  %v2853 = vadd.f32 %v2787, %v2837
  %v2854 = vadd.f32 %v2788, %v2838
  %v2855 = vadd.f32 %v2789, %v2839
  %v2856 = vadd.f32 %v2790, %v2840
  %v2857 = vadd.f32 %v2791, %v2841
  %v2858 = vadd.f32 %v2792, %v2842
  %v2859 = vadd.f32 %v2793, %v2843
  %v2860 = vadd.f32 %v2794, %v2844
  %v2861 = vadd.f32 %v2795, %v2845
  %v2862 = vadd.f32 %v2796, %v2846
  %v2863 = vadd.f32 %v2797, %v2847
  %v2864 = vadd.f32 %v2798, %v2848
  %v2865 = vadd.f32 %v2799, %v2849
  %v2866 = vld [vmem:[%s2188] sm:$0xff]
  %v2867 = vld [vmem:[%s2188 + $0x8] sm:$0xff]
  %v2868 = vld [vmem:[%s2188 + $0x10] sm:$0xff]
  %v2869 = vld [vmem:[%s2188 + $0x18] sm:$0xff]
  %v2870 = vld [vmem:[%s2188 + $0x20] sm:$0xff]
  %v2871 = vld [vmem:[%s2188 + $0x28] sm:$0xff]
  %v2872 = vld [vmem:[%s2188 + $0x30] sm:$0xff]
  %v2873 = vld [vmem:[%s2188 + $0x38] sm:$0xff]
  %v2874 = vld [vmem:[%s2188 + $0x40] sm:$0xff]
  %v2875 = vld [vmem:[%s2188 + $0x48] sm:$0xff]
  %v2876 = vld [vmem:[%s2188 + $0x50] sm:$0xff]
  %v2877 = vld [vmem:[%s2188 + $0x58] sm:$0xff]
  %v2878 = vld [vmem:[%s2188 + $0x60] sm:$0xff]
  %v2879 = vld [vmem:[%s2188 + $0x68] sm:$0xff]
  %v2880 = vld [vmem:[%s2188 + $0x70] sm:$0xff]
  %v2881 = vld [vmem:[%s2188 + $0x78] sm:$0xff]
  %2882 = vmatpush.msra.mxu0 %v2881
  %2883 = vmatpush.msra.mxu0 %v2880
  %2884 = vmatpush.msra.mxu0 %v2879
  %2885 = vmatpush.msra.mxu0 %v2878
  %2886 = vmatpush.msra.mxu0 %v2877
  %2887 = vmatpush.msra.mxu0 %v2876
  %2888 = vmatpush.msra.mxu0 %v2875
  %2889 = vmatpush.msra.mxu0 %v2874
  %2890 = vmatpush.msra.mxu0 %v2873
  %2891 = vmatpush.msra.mxu0 %v2872
  %2892 = vmatpush.msra.mxu0 %v2871
  %2893 = vmatpush.msra.mxu0 %v2870
  %2894 = vmatpush.msra.mxu0 %v2869
  %2895 = vmatpush.msra.mxu0 %v2868
  %2896 = vmatpush.msra.mxu0 %v2867
  %2897 = vmatpush.msra.mxu0 %v2866
  %2898 = vmatmul.f32.gmra.mxu0 %v2850
  %v2899 = vpop.f32.mrf.mxu0
  %v2900 = vadd.f32 0.0, %v2899
  %2901 = vmatmul.f32.gmra.mxu0 %v2851
  %v2902 = vpop.f32.mrf.mxu0
  %v2903 = vadd.f32 0.0, %v2902
  %2904 = vmatmul.f32.gmra.mxu0 %v2852
  %v2905 = vpop.f32.mrf.mxu0
  %v2906 = vadd.f32 0.0, %v2905
  %2907 = vmatmul.f32.gmra.mxu0 %v2853
  %v2908 = vpop.f32.mrf.mxu0
  %v2909 = vadd.f32 0.0, %v2908
  %2910 = vmatmul.f32.gmra.mxu0 %v2854
  %v2911 = vpop.f32.mrf.mxu0
  %v2912 = vadd.f32 0.0, %v2911
  %2913 = vmatmul.f32.gmra.mxu0 %v2855
  %v2914 = vpop.f32.mrf.mxu0
  %v2915 = vadd.f32 0.0, %v2914
  %2916 = vmatmul.f32.gmra.mxu0 %v2856
  %v2917 = vpop.f32.mrf.mxu0
  %v2918 = vadd.f32 0.0, %v2917
  %2919 = vmatmul.f32.gmra.mxu0 %v2857
  %v2920 = vpop.f32.mrf.mxu0
  %v2921 = vadd.f32 0.0, %v2920
  %2922 = vmatmul.f32.gmra.mxu0 %v2858
  %v2923 = vpop.f32.mrf.mxu0
  %v2924 = vadd.f32 0.0, %v2923
  %2925 = vmatmul.f32.gmra.mxu0 %v2859
  %v2926 = vpop.f32.mrf.mxu0
  %v2927 = vadd.f32 0.0, %v2926
  %2928 = vmatmul.f32.gmra.mxu0 %v2860
  %v2929 = vpop.f32.mrf.mxu0
  %v2930 = vadd.f32 0.0, %v2929
  %2931 = vmatmul.f32.gmra.mxu0 %v2861
  %v2932 = vpop.f32.mrf.mxu0
  %v2933 = vadd.f32 0.0, %v2932
  %2934 = vmatmul.f32.gmra.mxu0 %v2862
  %v2935 = vpop.f32.mrf.mxu0
  %v2936 = vadd.f32 0.0, %v2935
  %2937 = vmatmul.f32.gmra.mxu0 %v2863
  %v2938 = vpop.f32.mrf.mxu0
  %v2939 = vadd.f32 0.0, %v2938
  %2940 = vmatmul.f32.gmra.mxu0 %v2864
  %v2941 = vpop.f32.mrf.mxu0
  %v2942 = vadd.f32 0.0, %v2941
  %2943 = vmatmul.f32.gmra.mxu0 %v2865
  %v2944 = vpop.f32.mrf.mxu0
  %v2945 = vadd.f32 0.0, %v2944
  %2946 = vdwg.mxu0
  %v2947 = vmax.f32 %v2900, 0.0
  %v2948 = vmax.f32 %v2903, 0.0
  %v2949 = vmax.f32 %v2906, 0.0
  %v2950 = vmax.f32 %v2909, 0.0
  %v2951 = vmax.f32 %v2912, 0.0
  %v2952 = vmax.f32 %v2915, 0.0
  %v2953 = vmax.f32 %v2918, 0.0
  %v2954 = vmax.f32 %v2921, 0.0
  %v2955 = vmax.f32 %v2924, 0.0
  %v2956 = vmax.f32 %v2927, 0.0
  %v2957 = vmax.f32 %v2930, 0.0
  %v2958 = vmax.f32 %v2933, 0.0
  %v2959 = vmax.f32 %v2936, 0.0
  %v2960 = vmax.f32 %v2939, 0.0
  %v2961 = vmax.f32 %v2942, 0.0
  %v2962 = vmax.f32 %v2945, 0.0
  %v2963 = vadd.f32 %v2947, %v2501
  %v2964 = vadd.f32 %v2948, %v2502
  %v2965 = vadd.f32 %v2949, %v2503
  %v2966 = vadd.f32 %v2950, %v2504
  %v2967 = vadd.f32 %v2951, %v2505
  %v2968 = vadd.f32 %v2952, %v2506
  %v2969 = vadd.f32 %v2953, %v2507
  %v2970 = vadd.f32 %v2954, %v2508
  %v2971 = vadd.f32 %v2955, %v2509
  %v2972 = vadd.f32 %v2956, %v2510
  %v2973 = vadd.f32 %v2957, %v2511
  %v2974 = vadd.f32 %v2958, %v2512
  %v2975 = vadd.f32 %v2959, %v2513
  %v2976 = vadd.f32 %v2960, %v2514
  %v2977 = vadd.f32 %v2961, %v2515
  %v2978 = vadd.f32 %v2962, %v2516
  %2979 = vst [vmem:[%s1211] sm:$0xff] %v2963
  %2980 = vst [vmem:[%s1211 + $0x8] sm:$0xff] %v2964
  %2981 = vst [vmem:[%s1211 + $0x10] sm:$0xff] %v2965
  %2982 = vst [vmem:[%s1211 + $0x18] sm:$0xff] %v2966
  %2983 = vst [vmem:[%s1211 + $0x20] sm:$0xff] %v2967
  %2984 = vst [vmem:[%s1211 + $0x28] sm:$0xff] %v2968
  %2985 = vst [vmem:[%s1211 + $0x30] sm:$0xff] %v2969
  %2986 = vst [vmem:[%s1211 + $0x38] sm:$0xff] %v2970
  %2987 = vst [vmem:[%s1211 + $0x40] sm:$0xff] %v2971
  %2988 = vst [vmem:[%s1211 + $0x48] sm:$0xff] %v2972
  %2989 = vst [vmem:[%s1211 + $0x50] sm:$0xff] %v2973
  %2990 = vst [vmem:[%s1211 + $0x58] sm:$0xff] %v2974
  %2991 = vst [vmem:[%s1211 + $0x60] sm:$0xff] %v2975
  %2992 = vst [vmem:[%s1211 + $0x68] sm:$0xff] %v2976
  %2993 = vst [vmem:[%s1211 + $0x70] sm:$0xff] %v2977
  %2994 = vst [vmem:[%s1211 + $0x78] sm:$0xff] %v2978
  %v2995 = vld [vmem:[%s345] sm:$0xff]
  %v2996 = vld [vmem:[%s345 + $0x8] sm:$0xff]
  %v2997 = vld [vmem:[#allocation2] sm:$0xff]
  %v2998 = vld [vmem:[#allocation2 + $0x8] sm:$0xff]
  %v2999 = vld [vmem:[#allocation2 + $0x10] sm:$0xff]
  %v3000 = vld [vmem:[#allocation2 + $0x18] sm:$0xff]
  %v3001 = vld [vmem:[#allocation2 + $0x20] sm:$0xff]
  %v3002 = vld [vmem:[#allocation2 + $0x28] sm:$0xff]
  %v3003 = vld [vmem:[#allocation2 + $0x30] sm:$0xff]
  %v3004 = vld [vmem:[#allocation2 + $0x38] sm:$0xff]
  %v3005 = vld [vmem:[#allocation2 + $0x40] sm:$0xff]
  %v3006 = vld [vmem:[#allocation2 + $0x48] sm:$0xff]
  %v3007 = vld [vmem:[#allocation2 + $0x50] sm:$0xff]
  %v3008 = vld [vmem:[#allocation2 + $0x58] sm:$0xff]
  %v3009 = vld [vmem:[#allocation2 + $0x60] sm:$0xff]
  %v3010 = vld [vmem:[#allocation2 + $0x68] sm:$0xff]
  %v3011 = vrot.slane %v2995, 7
  %v3012 = vrot.slane %v2997, 7
  %v3013 = vrot.slane %v2999, 7
  %v3014 = vrot.slane %v3001, 7
  %v3015 = vrot.slane %v3003, 7
  %v3016 = vrot.slane %v3005, 7
  %v3017 = vrot.slane %v3007, 7
  %v3018 = vrot.slane %v3009, 7
  %v3019 = vrot.slane %v2996, 7
  %v3020 = vrot.slane %v2998, 7
  %v3021 = vrot.slane %v3000, 7
  %v3022 = vrot.slane %v3002, 7
  %v3023 = vrot.slane %v3004, 7
  %v3024 = vrot.slane %v3006, 7
  %v3025 = vrot.slane %v3008, 7
  %v3026 = vrot.slane %v3010, 7
  %v3027 = vsel %vm380, %v3011, %v3019
  %v3028 = vsel %vm380, %v3012, %v3020
  %v3029 = vsel %vm380, %v3013, %v3021
  %v3030 = vsel %vm380, %v3014, %v3022
  %v3031 = vsel %vm380, %v3015, %v3023
  %v3032 = vsel %vm380, %v3016, %v3024
  %v3033 = vsel %vm380, %v3017, %v3025
  %v3034 = vsel %vm380, %v3018, %v3026
  %v3035 = vsel %vm380, %v3019, %v3011
  %v3036 = vsel %vm380, %v3020, %v3012
  %v3037 = vsel %vm380, %v3021, %v3013
  %v3038 = vsel %vm380, %v3022, %v3014
  %v3039 = vsel %vm380, %v3023, %v3015
  %v3040 = vsel %vm380, %v3024, %v3016
  %v3041 = vsel %vm380, %v3025, %v3017
  %v3042 = vsel %vm380, %v3026, %v3018
  %s3043 = scalar_lea.vmem %s3, 24
  %v3044 = vld [vmem:[%s3043] sm:$0x1]
  %v3045 = vperm.slane %v3044, 0
  %v3046 = vmul.f32 %v3035, %v3045
  %v3047 = vmul.f32 %v3027, %v3045
  %v3048 = vmul.f32 %v3036, %v3045
  %v3049 = vmul.f32 %v3028, %v3045
  %v3050 = vmul.f32 %v3037, %v3045
  %v3051 = vmul.f32 %v3029, %v3045
  %v3052 = vmul.f32 %v3038, %v3045
  %v3053 = vmul.f32 %v3030, %v3045
  %v3054 = vmul.f32 %v3039, %v3045
  %v3055 = vmul.f32 %v3031, %v3045
  %v3056 = vmul.f32 %v3040, %v3045
  %v3057 = vmul.f32 %v3032, %v3045
  %v3058 = vmul.f32 %v3041, %v3045
  %v3059 = vmul.f32 %v3033, %v3045
  %v3060 = vmul.f32 %v3042, %v3045
  %v3061 = vmul.f32 %v3034, %v3045
  %v3062 = vadd.f32 %v3046, 0.0
  %v3063 = vadd.f32 %v3047, 0.0
  %v3064 = vadd.f32 %v3048, 0.0
  %v3065 = vadd.f32 %v3049, 0.0
  %v3066 = vadd.f32 %v3050, 0.0
  %v3067 = vadd.f32 %v3051, 0.0
  %v3068 = vadd.f32 %v3052, 0.0
  %v3069 = vadd.f32 %v3053, 0.0
  %v3070 = vadd.f32 %v3054, 0.0
  %v3071 = vadd.f32 %v3055, 0.0
  %v3072 = vadd.f32 %v3056, 0.0
  %v3073 = vadd.f32 %v3057, 0.0
  %v3074 = vadd.f32 %v3058, 0.0
  %v3075 = vadd.f32 %v3059, 0.0
  %v3076 = vadd.f32 %v3060, 0.0
  %v3077 = vadd.f32 %v3061, 0.0
  %v3078 = vld [vmem:[%s3043 + $0x1] sm:$0x1]
  %v3079 = vperm.slane %v3078, 0
  %v3080 = vmul.f32 %v2995, %v3079
  %v3081 = vmul.f32 %v2996, %v3079
  %v3082 = vmul.f32 %v2997, %v3079
  %v3083 = vmul.f32 %v2998, %v3079
  %v3084 = vmul.f32 %v2999, %v3079
  %v3085 = vmul.f32 %v3000, %v3079
  %v3086 = vmul.f32 %v3001, %v3079
  %v3087 = vmul.f32 %v3002, %v3079
  %v3088 = vmul.f32 %v3003, %v3079
  %v3089 = vmul.f32 %v3004, %v3079
  %v3090 = vmul.f32 %v3005, %v3079
  %v3091 = vmul.f32 %v3006, %v3079
  %v3092 = vmul.f32 %v3007, %v3079
  %v3093 = vmul.f32 %v3008, %v3079
  %v3094 = vmul.f32 %v3009, %v3079
  %v3095 = vmul.f32 %v3010, %v3079
  %v3096 = vadd.f32 %v3062, %v3080
  %v3097 = vadd.f32 %v3063, %v3081
  %v3098 = vadd.f32 %v3064, %v3082
  %v3099 = vadd.f32 %v3065, %v3083
  %v3100 = vadd.f32 %v3066, %v3084
  %v3101 = vadd.f32 %v3067, %v3085
  %v3102 = vadd.f32 %v3068, %v3086
  %v3103 = vadd.f32 %v3069, %v3087
  %v3104 = vadd.f32 %v3070, %v3088
  %v3105 = vadd.f32 %v3071, %v3089
  %v3106 = vadd.f32 %v3072, %v3090
  %v3107 = vadd.f32 %v3073, %v3091
  %v3108 = vadd.f32 %v3074, %v3092
  %v3109 = vadd.f32 %v3075, %v3093
  %v3110 = vadd.f32 %v3076, %v3094
  %v3111 = vadd.f32 %v3077, %v3095
  %v3112 = vrot.slane %v2995, 1
  %v3113 = vrot.slane %v2997, 1
  %v3114 = vrot.slane %v2999, 1
  %v3115 = vrot.slane %v3001, 1
  %v3116 = vrot.slane %v3003, 1
  %v3117 = vrot.slane %v3005, 1
  %v3118 = vrot.slane %v3007, 1
  %v3119 = vrot.slane %v3009, 1
  %v3120 = vrot.slane %v2996, 1
  %v3121 = vrot.slane %v2998, 1
  %v3122 = vrot.slane %v3000, 1
  %v3123 = vrot.slane %v3002, 1
  %v3124 = vrot.slane %v3004, 1
  %v3125 = vrot.slane %v3006, 1
  %v3126 = vrot.slane %v3008, 1
  %v3127 = vrot.slane %v3010, 1
  %v3128 = vsel %vm481, %v3112, %v3120
  %v3129 = vsel %vm481, %v3113, %v3121
  %v3130 = vsel %vm481, %v3114, %v3122
  %v3131 = vsel %vm481, %v3115, %v3123
  %v3132 = vsel %vm481, %v3116, %v3124
  %v3133 = vsel %vm481, %v3117, %v3125
  %v3134 = vsel %vm481, %v3118, %v3126
  %v3135 = vsel %vm481, %v3119, %v3127
  %v3136 = vsel %vm481, %v3120, %v3112
  %v3137 = vsel %vm481, %v3121, %v3113
  %v3138 = vsel %vm481, %v3122, %v3114
  %v3139 = vsel %vm481, %v3123, %v3115
  %v3140 = vsel %vm481, %v3124, %v3116
  %v3141 = vsel %vm481, %v3125, %v3117
  %v3142 = vsel %vm481, %v3126, %v3118
  %v3143 = vsel %vm481, %v3127, %v3119
  %v3144 = vld [vmem:[%s3043 + $0x2] sm:$0x1]
  %v3145 = vperm.slane %v3144, 0
  %v3146 = vmul.f32 %v3128, %v3145
  %v3147 = vmul.f32 %v3136, %v3145
  %v3148 = vmul.f32 %v3129, %v3145
  %v3149 = vmul.f32 %v3137, %v3145
  %v3150 = vmul.f32 %v3130, %v3145
  %v3151 = vmul.f32 %v3138, %v3145
  %v3152 = vmul.f32 %v3131, %v3145
  %v3153 = vmul.f32 %v3139, %v3145
  %v3154 = vmul.f32 %v3132, %v3145
  %v3155 = vmul.f32 %v3140, %v3145
  %v3156 = vmul.f32 %v3133, %v3145
  %v3157 = vmul.f32 %v3141, %v3145
  %v3158 = vmul.f32 %v3134, %v3145
  %v3159 = vmul.f32 %v3142, %v3145
  %v3160 = vmul.f32 %v3135, %v3145
  %v3161 = vmul.f32 %v3143, %v3145
  %v3162 = vadd.f32 %v3096, %v3146
  %v3163 = vadd.f32 %v3097, %v3147
  %v3164 = vadd.f32 %v3098, %v3148
  %v3165 = vadd.f32 %v3099, %v3149
  %v3166 = vadd.f32 %v3100, %v3150
  %v3167 = vadd.f32 %v3101, %v3151
  %v3168 = vadd.f32 %v3102, %v3152
  %v3169 = vadd.f32 %v3103, %v3153
  %v3170 = vadd.f32 %v3104, %v3154
  %v3171 = vadd.f32 %v3105, %v3155
  %v3172 = vadd.f32 %v3106, %v3156
  %v3173 = vadd.f32 %v3107, %v3157
  %v3174 = vadd.f32 %v3108, %v3158
  %v3175 = vadd.f32 %v3109, %v3159
  %v3176 = vadd.f32 %v3110, %v3160
  %v3177 = vadd.f32 %v3111, %v3161
  %v3178 = vld [vmem:[#allocation2 + $0x70] sm:$0xff]
  %v3179 = vld [vmem:[#allocation2 + $0x78] sm:$0xff]
  %v3180 = vrot.slane %v3178, 7
  %v3181 = vrot.slane %v3179, 7
  %v3182 = vsel %vm380, %v3180, %v3181
  %v3183 = vsel %vm380, %v3181, %v3180
  %s3184 = scalar_lea.vmem %s3, 28
  %v3185 = vld [vmem:[%s3184] sm:$0x1]
  %v3186 = vperm.slane %v3185, 0
  %v3187 = vmul.f32 %v3036, %v3186
  %v3188 = vmul.f32 %v3028, %v3186
  %v3189 = vmul.f32 %v3037, %v3186
  %v3190 = vmul.f32 %v3029, %v3186
  %v3191 = vmul.f32 %v3038, %v3186
  %v3192 = vmul.f32 %v3030, %v3186
  %v3193 = vmul.f32 %v3039, %v3186
  %v3194 = vmul.f32 %v3031, %v3186
  %v3195 = vmul.f32 %v3040, %v3186
  %v3196 = vmul.f32 %v3032, %v3186
  %v3197 = vmul.f32 %v3041, %v3186
  %v3198 = vmul.f32 %v3033, %v3186
  %v3199 = vmul.f32 %v3042, %v3186
  %v3200 = vmul.f32 %v3034, %v3186
  %v3201 = vmul.f32 %v3183, %v3186
  %v3202 = vmul.f32 %v3182, %v3186
  %v3203 = vadd.f32 %v3162, %v3187
  %v3204 = vadd.f32 %v3163, %v3188
  %v3205 = vadd.f32 %v3164, %v3189
  %v3206 = vadd.f32 %v3165, %v3190
  %v3207 = vadd.f32 %v3166, %v3191
  %v3208 = vadd.f32 %v3167, %v3192
  %v3209 = vadd.f32 %v3168, %v3193
  %v3210 = vadd.f32 %v3169, %v3194
  %v3211 = vadd.f32 %v3170, %v3195
  %v3212 = vadd.f32 %v3171, %v3196
  %v3213 = vadd.f32 %v3172, %v3197
  %v3214 = vadd.f32 %v3173, %v3198
  %v3215 = vadd.f32 %v3174, %v3199
  %v3216 = vadd.f32 %v3175, %v3200
  %v3217 = vadd.f32 %v3176, %v3201
  %v3218 = vadd.f32 %v3177, %v3202
  %v3219 = vld [vmem:[%s3184 + $0x1] sm:$0x1]
  %v3220 = vperm.slane %v3219, 0
  %v3221 = vmul.f32 %v2997, %v3220
  %v3222 = vmul.f32 %v2998, %v3220
  %v3223 = vmul.f32 %v2999, %v3220
  %v3224 = vmul.f32 %v3000, %v3220
  %v3225 = vmul.f32 %v3001, %v3220
  %v3226 = vmul.f32 %v3002, %v3220
  %v3227 = vmul.f32 %v3003, %v3220
  %v3228 = vmul.f32 %v3004, %v3220
  %v3229 = vmul.f32 %v3005, %v3220
  %v3230 = vmul.f32 %v3006, %v3220
  %v3231 = vmul.f32 %v3007, %v3220
  %v3232 = vmul.f32 %v3008, %v3220
  %v3233 = vmul.f32 %v3009, %v3220
  %v3234 = vmul.f32 %v3010, %v3220
  %v3235 = vmul.f32 %v3178, %v3220
  %v3236 = vmul.f32 %v3179, %v3220
  %v3237 = vadd.f32 %v3203, %v3221
  %v3238 = vadd.f32 %v3204, %v3222
  %v3239 = vadd.f32 %v3205, %v3223
  %v3240 = vadd.f32 %v3206, %v3224
  %v3241 = vadd.f32 %v3207, %v3225
  %v3242 = vadd.f32 %v3208, %v3226
  %v3243 = vadd.f32 %v3209, %v3227
  %v3244 = vadd.f32 %v3210, %v3228
  %v3245 = vadd.f32 %v3211, %v3229
  %v3246 = vadd.f32 %v3212, %v3230
  %v3247 = vadd.f32 %v3213, %v3231
  %v3248 = vadd.f32 %v3214, %v3232
  %v3249 = vadd.f32 %v3215, %v3233
  %v3250 = vadd.f32 %v3216, %v3234
  %v3251 = vadd.f32 %v3217, %v3235
  %v3252 = vadd.f32 %v3218, %v3236
  %v3253 = vrot.slane %v3178, 1
  %v3254 = vrot.slane %v3179, 1
  %v3255 = vsel %vm481, %v3253, %v3254
  %v3256 = vsel %vm481, %v3254, %v3253
  %v3257 = vld [vmem:[%s3184 + $0x2] sm:$0x1]
  %v3258 = vperm.slane %v3257, 0
  %v3259 = vmul.f32 %v3129, %v3258
  %v3260 = vmul.f32 %v3137, %v3258
  %v3261 = vmul.f32 %v3130, %v3258
  %v3262 = vmul.f32 %v3138, %v3258
  %v3263 = vmul.f32 %v3131, %v3258
  %v3264 = vmul.f32 %v3139, %v3258
  %v3265 = vmul.f32 %v3132, %v3258
  %v3266 = vmul.f32 %v3140, %v3258
  %v3267 = vmul.f32 %v3133, %v3258
  %v3268 = vmul.f32 %v3141, %v3258
  %v3269 = vmul.f32 %v3134, %v3258
  %v3270 = vmul.f32 %v3142, %v3258
  %v3271 = vmul.f32 %v3135, %v3258
  %v3272 = vmul.f32 %v3143, %v3258
  %v3273 = vmul.f32 %v3255, %v3258
  %v3274 = vmul.f32 %v3256, %v3258
  %v3275 = vadd.f32 %v3237, %v3259
  %v3276 = vadd.f32 %v3238, %v3260
  %v3277 = vadd.f32 %v3239, %v3261
  %v3278 = vadd.f32 %v3240, %v3262
  %v3279 = vadd.f32 %v3241, %v3263
  %v3280 = vadd.f32 %v3242, %v3264
  %v3281 = vadd.f32 %v3243, %v3265
  %v3282 = vadd.f32 %v3244, %v3266
  %v3283 = vadd.f32 %v3245, %v3267
  %v3284 = vadd.f32 %v3246, %v3268
  %v3285 = vadd.f32 %v3247, %v3269
  %v3286 = vadd.f32 %v3248, %v3270
  %v3287 = vadd.f32 %v3249, %v3271
  %v3288 = vadd.f32 %v3250, %v3272
  %v3289 = vadd.f32 %v3251, %v3273
  %v3290 = vadd.f32 %v3252, %v3274
  %v3291 = vld [vmem:[%s715] sm:$0xff]
  %v3292 = vld [vmem:[%s715 + $0x8] sm:$0xff]
  %v3293 = vld [vmem:[%s715 + $0x10] sm:$0xff]
  %v3294 = vld [vmem:[%s715 + $0x18] sm:$0xff]
  %v3295 = vld [vmem:[%s715 + $0x20] sm:$0xff]
  %v3296 = vld [vmem:[%s715 + $0x28] sm:$0xff]
  %v3297 = vld [vmem:[%s715 + $0x30] sm:$0xff]
  %v3298 = vld [vmem:[%s715 + $0x38] sm:$0xff]
  %v3299 = vld [vmem:[%s715 + $0x40] sm:$0xff]
  %v3300 = vld [vmem:[%s715 + $0x48] sm:$0xff]
  %v3301 = vld [vmem:[%s715 + $0x50] sm:$0xff]
  %v3302 = vld [vmem:[%s715 + $0x58] sm:$0xff]
  %v3303 = vld [vmem:[%s715 + $0x60] sm:$0xff]
  %v3304 = vld [vmem:[%s715 + $0x68] sm:$0xff]
  %v3305 = vld [vmem:[%s715 + $0x70] sm:$0xff]
  %v3306 = vld [vmem:[%s715 + $0x78] sm:$0xff]
  %v3307 = vrot.slane %v3291, 7
  %v3308 = vrot.slane %v3293, 7
  %v3309 = vrot.slane %v3295, 7
  %v3310 = vrot.slane %v3297, 7
  %v3311 = vrot.slane %v3299, 7
  %v3312 = vrot.slane %v3301, 7
  %v3313 = vrot.slane %v3303, 7
  %v3314 = vrot.slane %v3305, 7
  %v3315 = vrot.slane %v3292, 7
  %v3316 = vrot.slane %v3294, 7
  %v3317 = vrot.slane %v3296, 7
  %v3318 = vrot.slane %v3298, 7
  %v3319 = vrot.slane %v3300, 7
  %v3320 = vrot.slane %v3302, 7
  %v3321 = vrot.slane %v3304, 7
  %v3322 = vrot.slane %v3306, 7
  %v3323 = vsel %vm380, %v3307, %v3315
  %v3324 = vsel %vm380, %v3308, %v3316
  %v3325 = vsel %vm380, %v3309, %v3317
  %v3326 = vsel %vm380, %v3310, %v3318
  %v3327 = vsel %vm380, %v3311, %v3319
  %v3328 = vsel %vm380, %v3312, %v3320
  %v3329 = vsel %vm380, %v3313, %v3321
  %v3330 = vsel %vm380, %v3314, %v3322
  %v3331 = vsel %vm380, %v3315, %v3307
  %v3332 = vsel %vm380, %v3316, %v3308
  %v3333 = vsel %vm380, %v3317, %v3309
  %v3334 = vsel %vm380, %v3318, %v3310
  %v3335 = vsel %vm380, %v3319, %v3311
  %v3336 = vsel %vm380, %v3320, %v3312
  %v3337 = vsel %vm380, %v3321, %v3313
  %v3338 = vsel %vm380, %v3322, %v3314
  %s3339 = scalar_lea.vmem %s3, 32
  %v3340 = vld [vmem:[%s3339] sm:$0x1]
  %v3341 = vperm.slane %v3340, 0
  %v3342 = vmul.f32 %v3331, %v3341
  %v3343 = vmul.f32 %v3323, %v3341
  %v3344 = vmul.f32 %v3332, %v3341
  %v3345 = vmul.f32 %v3324, %v3341
  %v3346 = vmul.f32 %v3333, %v3341
  %v3347 = vmul.f32 %v3325, %v3341
  %v3348 = vmul.f32 %v3334, %v3341
  %v3349 = vmul.f32 %v3326, %v3341
  %v3350 = vmul.f32 %v3335, %v3341
  %v3351 = vmul.f32 %v3327, %v3341
  %v3352 = vmul.f32 %v3336, %v3341
  %v3353 = vmul.f32 %v3328, %v3341
  %v3354 = vmul.f32 %v3337, %v3341
  %v3355 = vmul.f32 %v3329, %v3341
  %v3356 = vmul.f32 %v3338, %v3341
  %v3357 = vmul.f32 %v3330, %v3341
  %v3358 = vadd.f32 %v3275, %v3342
  %v3359 = vadd.f32 %v3276, %v3343
  %v3360 = vadd.f32 %v3277, %v3344
  %v3361 = vadd.f32 %v3278, %v3345
  %v3362 = vadd.f32 %v3279, %v3346
  %v3363 = vadd.f32 %v3280, %v3347
  %v3364 = vadd.f32 %v3281, %v3348
  %v3365 = vadd.f32 %v3282, %v3349
  %v3366 = vadd.f32 %v3283, %v3350
  %v3367 = vadd.f32 %v3284, %v3351
  %v3368 = vadd.f32 %v3285, %v3352
  %v3369 = vadd.f32 %v3286, %v3353
  %v3370 = vadd.f32 %v3287, %v3354
  %v3371 = vadd.f32 %v3288, %v3355
  %v3372 = vadd.f32 %v3289, %v3356
  %v3373 = vadd.f32 %v3290, %v3357
  %v3374 = vld [vmem:[%s3339 + $0x1] sm:$0x1]
  %v3375 = vperm.slane %v3374, 0
  %v3376 = vmul.f32 %v3291, %v3375
  %v3377 = vmul.f32 %v3292, %v3375
  %v3378 = vmul.f32 %v3293, %v3375
  %v3379 = vmul.f32 %v3294, %v3375
  %v3380 = vmul.f32 %v3295, %v3375
  %v3381 = vmul.f32 %v3296, %v3375
  %v3382 = vmul.f32 %v3297, %v3375
  %v3383 = vmul.f32 %v3298, %v3375
  %v3384 = vmul.f32 %v3299, %v3375
  %v3385 = vmul.f32 %v3300, %v3375
  %v3386 = vmul.f32 %v3301, %v3375
  %v3387 = vmul.f32 %v3302, %v3375
  %v3388 = vmul.f32 %v3303, %v3375
  %v3389 = vmul.f32 %v3304, %v3375
  %v3390 = vmul.f32 %v3305, %v3375
  %v3391 = vmul.f32 %v3306, %v3375
  %v3392 = vadd.f32 %v3358, %v3376
  %v3393 = vadd.f32 %v3359, %v3377
  %v3394 = vadd.f32 %v3360, %v3378
  %v3395 = vadd.f32 %v3361, %v3379
  %v3396 = vadd.f32 %v3362, %v3380
  %v3397 = vadd.f32 %v3363, %v3381
  %v3398 = vadd.f32 %v3364, %v3382
  %v3399 = vadd.f32 %v3365, %v3383
  %v3400 = vadd.f32 %v3366, %v3384
  %v3401 = vadd.f32 %v3367, %v3385
  %v3402 = vadd.f32 %v3368, %v3386
  %v3403 = vadd.f32 %v3369, %v3387
  %v3404 = vadd.f32 %v3370, %v3388
  %v3405 = vadd.f32 %v3371, %v3389
  %v3406 = vadd.f32 %v3372, %v3390
  %v3407 = vadd.f32 %v3373, %v3391
  %v3408 = vrot.slane %v3291, 1
  %v3409 = vrot.slane %v3293, 1
  %v3410 = vrot.slane %v3295, 1
  %v3411 = vrot.slane %v3297, 1
  %v3412 = vrot.slane %v3299, 1
  %v3413 = vrot.slane %v3301, 1
  %v3414 = vrot.slane %v3303, 1
  %v3415 = vrot.slane %v3305, 1
  %v3416 = vrot.slane %v3292, 1
  %v3417 = vrot.slane %v3294, 1
  %v3418 = vrot.slane %v3296, 1
  %v3419 = vrot.slane %v3298, 1
  %v3420 = vrot.slane %v3300, 1
  %v3421 = vrot.slane %v3302, 1
  %v3422 = vrot.slane %v3304, 1
  %v3423 = vrot.slane %v3306, 1
  %v3424 = vsel %vm481, %v3408, %v3416
  %v3425 = vsel %vm481, %v3409, %v3417
  %v3426 = vsel %vm481, %v3410, %v3418
  %v3427 = vsel %vm481, %v3411, %v3419
  %v3428 = vsel %vm481, %v3412, %v3420
  %v3429 = vsel %vm481, %v3413, %v3421
  %v3430 = vsel %vm481, %v3414, %v3422
  %v3431 = vsel %vm481, %v3415, %v3423
  %v3432 = vsel %vm481, %v3416, %v3408
  %v3433 = vsel %vm481, %v3417, %v3409
  %v3434 = vsel %vm481, %v3418, %v3410
  %v3435 = vsel %vm481, %v3419, %v3411
  %v3436 = vsel %vm481, %v3420, %v3412
  %v3437 = vsel %vm481, %v3421, %v3413
  %v3438 = vsel %vm481, %v3422, %v3414
  %v3439 = vsel %vm481, %v3423, %v3415
  %v3440 = vld [vmem:[%s3339 + $0x2] sm:$0x1]
  %v3441 = vperm.slane %v3440, 0
  %v3442 = vmul.f32 %v3424, %v3441
  %v3443 = vmul.f32 %v3432, %v3441
  %v3444 = vmul.f32 %v3425, %v3441
  %v3445 = vmul.f32 %v3433, %v3441
  %v3446 = vmul.f32 %v3426, %v3441
  %v3447 = vmul.f32 %v3434, %v3441
  %v3448 = vmul.f32 %v3427, %v3441
  %v3449 = vmul.f32 %v3435, %v3441
  %v3450 = vmul.f32 %v3428, %v3441
  %v3451 = vmul.f32 %v3436, %v3441
  %v3452 = vmul.f32 %v3429, %v3441
  %v3453 = vmul.f32 %v3437, %v3441
  %v3454 = vmul.f32 %v3430, %v3441
  %v3455 = vmul.f32 %v3438, %v3441
  %v3456 = vmul.f32 %v3431, %v3441
  %v3457 = vmul.f32 %v3439, %v3441
  %v3458 = vadd.f32 %v3392, %v3442
  %v3459 = vadd.f32 %v3393, %v3443
  %v3460 = vadd.f32 %v3394, %v3444
  %v3461 = vadd.f32 %v3395, %v3445
  %v3462 = vadd.f32 %v3396, %v3446
  %v3463 = vadd.f32 %v3397, %v3447
  %v3464 = vadd.f32 %v3398, %v3448
  %v3465 = vadd.f32 %v3399, %v3449
  %v3466 = vadd.f32 %v3400, %v3450
  %v3467 = vadd.f32 %v3401, %v3451
  %v3468 = vadd.f32 %v3402, %v3452
  %v3469 = vadd.f32 %v3403, %v3453
  %v3470 = vadd.f32 %v3404, %v3454
  %v3471 = vadd.f32 %v3405, %v3455
  %v3472 = vadd.f32 %v3406, %v3456
  %v3473 = vadd.f32 %v3407, %v3457
  %s3474 = scalar_lea.vmem %s4, 256
  %v3475 = vld [vmem:[%s3474] sm:$0xff]
  %v3476 = vld [vmem:[%s3474 + $0x8] sm:$0xff]
  %v3477 = vld [vmem:[%s3474 + $0x10] sm:$0xff]
  %v3478 = vld [vmem:[%s3474 + $0x18] sm:$0xff]
  %v3479 = vld [vmem:[%s3474 + $0x20] sm:$0xff]
  %v3480 = vld [vmem:[%s3474 + $0x28] sm:$0xff]
  %v3481 = vld [vmem:[%s3474 + $0x30] sm:$0xff]
  %v3482 = vld [vmem:[%s3474 + $0x38] sm:$0xff]
  %v3483 = vld [vmem:[%s3474 + $0x40] sm:$0xff]
  %v3484 = vld [vmem:[%s3474 + $0x48] sm:$0xff]
  %v3485 = vld [vmem:[%s3474 + $0x50] sm:$0xff]
  %v3486 = vld [vmem:[%s3474 + $0x58] sm:$0xff]
  %v3487 = vld [vmem:[%s3474 + $0x60] sm:$0xff]
  %v3488 = vld [vmem:[%s3474 + $0x68] sm:$0xff]
  %v3489 = vld [vmem:[%s3474 + $0x70] sm:$0xff]
  %v3490 = vld [vmem:[%s3474 + $0x78] sm:$0xff]
  %3491 = vmatpush.msra.mxu0 %v3490
  %3492 = vmatpush.msra.mxu0 %v3489
  %3493 = vmatpush.msra.mxu0 %v3488
  %3494 = vmatpush.msra.mxu0 %v3487
  %3495 = vmatpush.msra.mxu0 %v3486
  %3496 = vmatpush.msra.mxu0 %v3485
  %3497 = vmatpush.msra.mxu0 %v3484
  %3498 = vmatpush.msra.mxu0 %v3483
  %3499 = vmatpush.msra.mxu0 %v3482
  %3500 = vmatpush.msra.mxu0 %v3481
  %3501 = vmatpush.msra.mxu0 %v3480
  %3502 = vmatpush.msra.mxu0 %v3479
  %3503 = vmatpush.msra.mxu0 %v3478
  %3504 = vmatpush.msra.mxu0 %v3477
  %3505 = vmatpush.msra.mxu0 %v3476
  %3506 = vmatpush.msra.mxu0 %v3475
  %3507 = vmatmul.f32.gmra.mxu0 %v3458
  %v3508 = vpop.f32.mrf.mxu0
  %v3509 = vadd.f32 0.0, %v3508
  %3510 = vmatmul.f32.gmra.mxu0 %v3459
  %v3511 = vpop.f32.mrf.mxu0
  %v3512 = vadd.f32 0.0, %v3511
  %3513 = vmatmul.f32.gmra.mxu0 %v3460
  %v3514 = vpop.f32.mrf.mxu0
  %v3515 = vadd.f32 0.0, %v3514
  %3516 = vmatmul.f32.gmra.mxu0 %v3461
  %v3517 = vpop.f32.mrf.mxu0
  %v3518 = vadd.f32 0.0, %v3517
  %3519 = vmatmul.f32.gmra.mxu0 %v3462
  %v3520 = vpop.f32.mrf.mxu0
  %v3521 = vadd.f32 0.0, %v3520
  %3522 = vmatmul.f32.gmra.mxu0 %v3463
  %v3523 = vpop.f32.mrf.mxu0
  %v3524 = vadd.f32 0.0, %v3523
  %3525 = vmatmul.f32.gmra.mxu0 %v3464
  %v3526 = vpop.f32.mrf.mxu0
  %v3527 = vadd.f32 0.0, %v3526
  %3528 = vmatmul.f32.gmra.mxu0 %v3465
  %v3529 = vpop.f32.mrf.mxu0
  %v3530 = vadd.f32 0.0, %v3529
  %3531 = vmatmul.f32.gmra.mxu0 %v3466
  %v3532 = vpop.f32.mrf.mxu0
  %v3533 = vadd.f32 0.0, %v3532
  %3534 = vmatmul.f32.gmra.mxu0 %v3467
  %v3535 = vpop.f32.mrf.mxu0
  %v3536 = vadd.f32 0.0, %v3535
  %3537 = vmatmul.f32.gmra.mxu0 %v3468
  %v3538 = vpop.f32.mrf.mxu0
  %v3539 = vadd.f32 0.0, %v3538
  %3540 = vmatmul.f32.gmra.mxu0 %v3469
  %v3541 = vpop.f32.mrf.mxu0
  %v3542 = vadd.f32 0.0, %v3541
  %3543 = vmatmul.f32.gmra.mxu0 %v3470
  %v3544 = vpop.f32.mrf.mxu0
  %v3545 = vadd.f32 0.0, %v3544
  %3546 = vmatmul.f32.gmra.mxu0 %v3471
  %v3547 = vpop.f32.mrf.mxu0
  %v3548 = vadd.f32 0.0, %v3547
  %3549 = vmatmul.f32.gmra.mxu0 %v3472
  %v3550 = vpop.f32.mrf.mxu0
  %v3551 = vadd.f32 0.0, %v3550
  %3552 = vmatmul.f32.gmra.mxu0 %v3473
  %v3553 = vpop.f32.mrf.mxu0
  %v3554 = vadd.f32 0.0, %v3553
  %3555 = vdwg.mxu0
  %v3556 = vmax.f32 %v3509, 0.0
  %v3557 = vmax.f32 %v3512, 0.0
  %v3558 = vmax.f32 %v3515, 0.0
  %v3559 = vmax.f32 %v3518, 0.0
  %v3560 = vmax.f32 %v3521, 0.0
  %v3561 = vmax.f32 %v3524, 0.0
  %v3562 = vmax.f32 %v3527, 0.0
  %v3563 = vmax.f32 %v3530, 0.0
  %v3564 = vmax.f32 %v3533, 0.0
  %v3565 = vmax.f32 %v3536, 0.0
  %v3566 = vmax.f32 %v3539, 0.0
  %v3567 = vmax.f32 %v3542, 0.0
  %v3568 = vmax.f32 %v3545, 0.0
  %v3569 = vmax.f32 %v3548, 0.0
  %v3570 = vmax.f32 %v3551, 0.0
  %v3571 = vmax.f32 %v3554, 0.0
  %v3572 = vadd.f32 %v3556, %v2997
  %v3573 = vadd.f32 %v3557, %v2998
  %v3574 = vadd.f32 %v3558, %v2999
  %v3575 = vadd.f32 %v3559, %v3000
  %v3576 = vadd.f32 %v3560, %v3001
  %v3577 = vadd.f32 %v3561, %v3002
  %v3578 = vadd.f32 %v3562, %v3003
  %v3579 = vadd.f32 %v3563, %v3004
  %v3580 = vadd.f32 %v3564, %v3005
  %v3581 = vadd.f32 %v3565, %v3006
  %v3582 = vadd.f32 %v3566, %v3007
  %v3583 = vadd.f32 %v3567, %v3008
  %v3584 = vadd.f32 %v3568, %v3009
  %v3585 = vadd.f32 %v3569, %v3010
  %v3586 = vadd.f32 %v3570, %v3178
  %v3587 = vadd.f32 %v3571, %v3179
  %3588 = vst [vmem:[#allocation3] sm:$0xff] %v3572
  %3589 = vst [vmem:[#allocation3 + $0x8] sm:$0xff] %v3573
  %3590 = vst [vmem:[#allocation3 + $0x10] sm:$0xff] %v3574
  %3591 = vst [vmem:[#allocation3 + $0x18] sm:$0xff] %v3575
  %3592 = vst [vmem:[#allocation3 + $0x20] sm:$0xff] %v3576
  %3593 = vst [vmem:[#allocation3 + $0x28] sm:$0xff] %v3577
  %3594 = vst [vmem:[#allocation3 + $0x30] sm:$0xff] %v3578
  %3595 = vst [vmem:[#allocation3 + $0x38] sm:$0xff] %v3579
  %3596 = vst [vmem:[#allocation3 + $0x40] sm:$0xff] %v3580
  %3597 = vst [vmem:[#allocation3 + $0x48] sm:$0xff] %v3581
  %3598 = vst [vmem:[#allocation3 + $0x50] sm:$0xff] %v3582
  %3599 = vst [vmem:[#allocation3 + $0x58] sm:$0xff] %v3583
  %3600 = vst [vmem:[#allocation3 + $0x60] sm:$0xff] %v3584
  %3601 = vst [vmem:[#allocation3 + $0x68] sm:$0xff] %v3585
  %3602 = vst [vmem:[#allocation3 + $0x70] sm:$0xff] %v3586
  %3603 = vst [vmem:[#allocation3 + $0x78] sm:$0xff] %v3587
  %v3604 = vld [vmem:[%s1028] sm:$0xff]
  %v3605 = vld [vmem:[%s1028 + $0x8] sm:$0xff]
  %v3606 = vld [vmem:[%s1028 + $0x10] sm:$0xff]
  %v3607 = vld [vmem:[%s1028 + $0x18] sm:$0xff]
  %v3608 = vld [vmem:[%s1028 + $0x20] sm:$0xff]
  %v3609 = vld [vmem:[%s1028 + $0x28] sm:$0xff]
  %v3610 = vld [vmem:[%s1028 + $0x30] sm:$0xff]
  %v3611 = vld [vmem:[%s1028 + $0x38] sm:$0xff]
  %v3612 = vld [vmem:[%s1028 + $0x40] sm:$0xff]
  %v3613 = vld [vmem:[%s1028 + $0x48] sm:$0xff]
  %v3614 = vld [vmem:[%s1028 + $0x50] sm:$0xff]
  %v3615 = vld [vmem:[%s1028 + $0x58] sm:$0xff]
  %v3616 = vld [vmem:[%s1028 + $0x60] sm:$0xff]
  %v3617 = vld [vmem:[%s1028 + $0x68] sm:$0xff]
  %v3618 = vld [vmem:[%s1028 + $0x70] sm:$0xff]
  %v3619 = vld [vmem:[%s1028 + $0x78] sm:$0xff]
  %v3620 = vrot.slane %v3604, 7
  %v3621 = vrot.slane %v3606, 7
  %v3622 = vrot.slane %v3608, 7
  %v3623 = vrot.slane %v3610, 7
  %v3624 = vrot.slane %v3612, 7
  %v3625 = vrot.slane %v3614, 7
  %v3626 = vrot.slane %v3616, 7
  %v3627 = vrot.slane %v3618, 7
  %v3628 = vrot.slane %v3605, 7
  %v3629 = vrot.slane %v3607, 7
  %v3630 = vrot.slane %v3609, 7
  %v3631 = vrot.slane %v3611, 7
  %v3632 = vrot.slane %v3613, 7
  %v3633 = vrot.slane %v3615, 7
  %v3634 = vrot.slane %v3617, 7
  %v3635 = vrot.slane %v3619, 7
  %v3636 = vsel %vm380, %v3620, %v3628
  %v3637 = vsel %vm380, %v3621, %v3629
  %v3638 = vsel %vm380, %v3622, %v3630
  %v3639 = vsel %vm380, %v3623, %v3631
  %v3640 = vsel %vm380, %v3624, %v3632
  %v3641 = vsel %vm380, %v3625, %v3633
  %v3642 = vsel %vm380, %v3626, %v3634
  %v3643 = vsel %vm380, %v3627, %v3635
  %v3644 = vsel %vm380, %v3628, %v3620
  %v3645 = vsel %vm380, %v3629, %v3621
  %v3646 = vsel %vm380, %v3630, %v3622
  %v3647 = vsel %vm380, %v3631, %v3623
  %v3648 = vsel %vm380, %v3632, %v3624
  %v3649 = vsel %vm380, %v3633, %v3625
  %v3650 = vsel %vm380, %v3634, %v3626
  %v3651 = vsel %vm380, %v3635, %v3627
  %v3652 = vld [vmem:[%s3043] sm:$0x1]
  %v3653 = vperm.slane %v3652, 0
  %v3654 = vmul.f32 %v3644, %v3653
  %v3655 = vmul.f32 %v3636, %v3653
  %v3656 = vmul.f32 %v3645, %v3653
  %v3657 = vmul.f32 %v3637, %v3653
  %v3658 = vmul.f32 %v3646, %v3653
  %v3659 = vmul.f32 %v3638, %v3653
  %v3660 = vmul.f32 %v3647, %v3653
  %v3661 = vmul.f32 %v3639, %v3653
  %v3662 = vmul.f32 %v3648, %v3653
  %v3663 = vmul.f32 %v3640, %v3653
  %v3664 = vmul.f32 %v3649, %v3653
  %v3665 = vmul.f32 %v3641, %v3653
  %v3666 = vmul.f32 %v3650, %v3653
  %v3667 = vmul.f32 %v3642, %v3653
  %v3668 = vmul.f32 %v3651, %v3653
  %v3669 = vmul.f32 %v3643, %v3653
  %v3670 = vadd.f32 %v3654, 0.0
  %v3671 = vadd.f32 %v3655, 0.0
  %v3672 = vadd.f32 %v3656, 0.0
  %v3673 = vadd.f32 %v3657, 0.0
  %v3674 = vadd.f32 %v3658, 0.0
  %v3675 = vadd.f32 %v3659, 0.0
  %v3676 = vadd.f32 %v3660, 0.0
  %v3677 = vadd.f32 %v3661, 0.0
  %v3678 = vadd.f32 %v3662, 0.0
  %v3679 = vadd.f32 %v3663, 0.0
  %v3680 = vadd.f32 %v3664, 0.0
  %v3681 = vadd.f32 %v3665, 0.0
  %v3682 = vadd.f32 %v3666, 0.0
  %v3683 = vadd.f32 %v3667, 0.0
  %v3684 = vadd.f32 %v3668, 0.0
  %v3685 = vadd.f32 %v3669, 0.0
  %v3686 = vld [vmem:[%s3043 + $0x1] sm:$0x1]
  %v3687 = vperm.slane %v3686, 0
  %v3688 = vmul.f32 %v3604, %v3687
  %v3689 = vmul.f32 %v3605, %v3687
  %v3690 = vmul.f32 %v3606, %v3687
  %v3691 = vmul.f32 %v3607, %v3687
  %v3692 = vmul.f32 %v3608, %v3687
  %v3693 = vmul.f32 %v3609, %v3687
  %v3694 = vmul.f32 %v3610, %v3687
  %v3695 = vmul.f32 %v3611, %v3687
  %v3696 = vmul.f32 %v3612, %v3687
  %v3697 = vmul.f32 %v3613, %v3687
  %v3698 = vmul.f32 %v3614, %v3687
  %v3699 = vmul.f32 %v3615, %v3687
  %v3700 = vmul.f32 %v3616, %v3687
  %v3701 = vmul.f32 %v3617, %v3687
  %v3702 = vmul.f32 %v3618, %v3687
  %v3703 = vmul.f32 %v3619, %v3687
  %v3704 = vadd.f32 %v3670, %v3688
  %v3705 = vadd.f32 %v3671, %v3689
  %v3706 = vadd.f32 %v3672, %v3690
  %v3707 = vadd.f32 %v3673, %v3691
  %v3708 = vadd.f32 %v3674, %v3692
  %v3709 = vadd.f32 %v3675, %v3693
  %v3710 = vadd.f32 %v3676, %v3694
  %v3711 = vadd.f32 %v3677, %v3695
  %v3712 = vadd.f32 %v3678, %v3696
  %v3713 = vadd.f32 %v3679, %v3697
  %v3714 = vadd.f32 %v3680, %v3698
  %v3715 = vadd.f32 %v3681, %v3699
  %v3716 = vadd.f32 %v3682, %v3700
  %v3717 = vadd.f32 %v3683, %v3701
  %v3718 = vadd.f32 %v3684, %v3702
  %v3719 = vadd.f32 %v3685, %v3703
  %v3720 = vrot.slane %v3604, 1
  %v3721 = vrot.slane %v3606, 1
  %v3722 = vrot.slane %v3608, 1
  %v3723 = vrot.slane %v3610, 1
  %v3724 = vrot.slane %v3612, 1
  %v3725 = vrot.slane %v3614, 1
  %v3726 = vrot.slane %v3616, 1
  %v3727 = vrot.slane %v3618, 1
  %v3728 = vrot.slane %v3605, 1
  %v3729 = vrot.slane %v3607, 1
  %v3730 = vrot.slane %v3609, 1
  %v3731 = vrot.slane %v3611, 1
  %v3732 = vrot.slane %v3613, 1
  %v3733 = vrot.slane %v3615, 1
  %v3734 = vrot.slane %v3617, 1
  %v3735 = vrot.slane %v3619, 1
  %v3736 = vsel %vm481, %v3720, %v3728
  %v3737 = vsel %vm481, %v3721, %v3729
  %v3738 = vsel %vm481, %v3722, %v3730
  %v3739 = vsel %vm481, %v3723, %v3731
  %v3740 = vsel %vm481, %v3724, %v3732
  %v3741 = vsel %vm481, %v3725, %v3733
  %v3742 = vsel %vm481, %v3726, %v3734
  %v3743 = vsel %vm481, %v3727, %v3735
  %v3744 = vsel %vm481, %v3728, %v3720
  %v3745 = vsel %vm481, %v3729, %v3721
  %v3746 = vsel %vm481, %v3730, %v3722
  %v3747 = vsel %vm481, %v3731, %v3723
  %v3748 = vsel %vm481, %v3732, %v3724
  %v3749 = vsel %vm481, %v3733, %v3725
  %v3750 = vsel %vm481, %v3734, %v3726
  %v3751 = vsel %vm481, %v3735, %v3727
  %v3752 = vld [vmem:[%s3043 + $0x2] sm:$0x1]
  %v3753 = vperm.slane %v3752, 0
  %v3754 = vmul.f32 %v3736, %v3753
  %v3755 = vmul.f32 %v3744, %v3753
  %v3756 = vmul.f32 %v3737, %v3753
  %v3757 = vmul.f32 %v3745, %v3753
  %v3758 = vmul.f32 %v3738, %v3753
  %v3759 = vmul.f32 %v3746, %v3753
  %v3760 = vmul.f32 %v3739, %v3753
  %v3761 = vmul.f32 %v3747, %v3753
  %v3762 = vmul.f32 %v3740, %v3753
  %v3763 = vmul.f32 %v3748, %v3753
  %v3764 = vmul.f32 %v3741, %v3753
  %v3765 = vmul.f32 %v3749, %v3753
  %v3766 = vmul.f32 %v3742, %v3753
  %v3767 = vmul.f32 %v3750, %v3753
  %v3768 = vmul.f32 %v3743, %v3753
  %v3769 = vmul.f32 %v3751, %v3753
  %v3770 = vadd.f32 %v3704, %v3754
  %v3771 = vadd.f32 %v3705, %v3755
  %v3772 = vadd.f32 %v3706, %v3756
  %v3773 = vadd.f32 %v3707, %v3757
  %v3774 = vadd.f32 %v3708, %v3758
  %v3775 = vadd.f32 %v3709, %v3759
  %v3776 = vadd.f32 %v3710, %v3760
  %v3777 = vadd.f32 %v3711, %v3761
  %v3778 = vadd.f32 %v3712, %v3762
  %v3779 = vadd.f32 %v3713, %v3763
  %v3780 = vadd.f32 %v3714, %v3764
  %v3781 = vadd.f32 %v3715, %v3765
  %v3782 = vadd.f32 %v3716, %v3766
  %v3783 = vadd.f32 %v3717, %v3767
  %v3784 = vadd.f32 %v3718, %v3768
  %v3785 = vadd.f32 %v3719, %v3769
  %v3786 = vld [vmem:[%s1211] sm:$0xff]
  %v3787 = vld [vmem:[%s1211 + $0x8] sm:$0xff]
  %v3788 = vld [vmem:[%s1211 + $0x10] sm:$0xff]
  %v3789 = vld [vmem:[%s1211 + $0x18] sm:$0xff]
  %v3790 = vld [vmem:[%s1211 + $0x20] sm:$0xff]
  %v3791 = vld [vmem:[%s1211 + $0x28] sm:$0xff]
  %v3792 = vld [vmem:[%s1211 + $0x30] sm:$0xff]
  %v3793 = vld [vmem:[%s1211 + $0x38] sm:$0xff]
  %v3794 = vld [vmem:[%s1211 + $0x40] sm:$0xff]
  %v3795 = vld [vmem:[%s1211 + $0x48] sm:$0xff]
  %v3796 = vld [vmem:[%s1211 + $0x50] sm:$0xff]
  %v3797 = vld [vmem:[%s1211 + $0x58] sm:$0xff]
  %v3798 = vld [vmem:[%s1211 + $0x60] sm:$0xff]
  %v3799 = vld [vmem:[%s1211 + $0x68] sm:$0xff]
  %v3800 = vld [vmem:[%s1211 + $0x70] sm:$0xff]
  %v3801 = vld [vmem:[%s1211 + $0x78] sm:$0xff]
  %v3802 = vrot.slane %v3786, 7
  %v3803 = vrot.slane %v3788, 7
  %v3804 = vrot.slane %v3790, 7
  %v3805 = vrot.slane %v3792, 7
  %v3806 = vrot.slane %v3794, 7
  %v3807 = vrot.slane %v3796, 7
  %v3808 = vrot.slane %v3798, 7
  %v3809 = vrot.slane %v3800, 7
  %v3810 = vrot.slane %v3787, 7
  %v3811 = vrot.slane %v3789, 7
  %v3812 = vrot.slane %v3791, 7
  %v3813 = vrot.slane %v3793, 7
  %v3814 = vrot.slane %v3795, 7
  %v3815 = vrot.slane %v3797, 7
  %v3816 = vrot.slane %v3799, 7
  %v3817 = vrot.slane %v3801, 7
  %v3818 = vsel %vm380, %v3802, %v3810
  %v3819 = vsel %vm380, %v3803, %v3811
  %v3820 = vsel %vm380, %v3804, %v3812
  %v3821 = vsel %vm380, %v3805, %v3813
  %v3822 = vsel %vm380, %v3806, %v3814
  %v3823 = vsel %vm380, %v3807, %v3815
  %v3824 = vsel %vm380, %v3808, %v3816
  %v3825 = vsel %vm380, %v3809, %v3817
  %v3826 = vsel %vm380, %v3810, %v3802
  %v3827 = vsel %vm380, %v3811, %v3803
  %v3828 = vsel %vm380, %v3812, %v3804
  %v3829 = vsel %vm380, %v3813, %v3805
  %v3830 = vsel %vm380, %v3814, %v3806
  %v3831 = vsel %vm380, %v3815, %v3807
  %v3832 = vsel %vm380, %v3816, %v3808
  %v3833 = vsel %vm380, %v3817, %v3809
  %v3834 = vld [vmem:[%s3184] sm:$0x1]
  %v3835 = vperm.slane %v3834, 0
  %v3836 = vmul.f32 %v3826, %v3835
  %v3837 = vmul.f32 %v3818, %v3835
  %v3838 = vmul.f32 %v3827, %v3835
  %v3839 = vmul.f32 %v3819, %v3835
  %v3840 = vmul.f32 %v3828, %v3835
  %v3841 = vmul.f32 %v3820, %v3835
  %v3842 = vmul.f32 %v3829, %v3835
  %v3843 = vmul.f32 %v3821, %v3835
  %v3844 = vmul.f32 %v3830, %v3835
  %v3845 = vmul.f32 %v3822, %v3835
  %v3846 = vmul.f32 %v3831, %v3835
  %v3847 = vmul.f32 %v3823, %v3835
  %v3848 = vmul.f32 %v3832, %v3835
  %v3849 = vmul.f32 %v3824, %v3835
  %v3850 = vmul.f32 %v3833, %v3835
  %v3851 = vmul.f32 %v3825, %v3835
  %v3852 = vadd.f32 %v3770, %v3836
  %v3853 = vadd.f32 %v3771, %v3837
  %v3854 = vadd.f32 %v3772, %v3838
  %v3855 = vadd.f32 %v3773, %v3839
  %v3856 = vadd.f32 %v3774, %v3840
  %v3857 = vadd.f32 %v3775, %v3841
  %v3858 = vadd.f32 %v3776, %v3842
  %v3859 = vadd.f32 %v3777, %v3843
  %v3860 = vadd.f32 %v3778, %v3844
  %v3861 = vadd.f32 %v3779, %v3845
  %v3862 = vadd.f32 %v3780, %v3846
  %v3863 = vadd.f32 %v3781, %v3847
  %v3864 = vadd.f32 %v3782, %v3848
  %v3865 = vadd.f32 %v3783, %v3849
  %v3866 = vadd.f32 %v3784, %v3850
  %v3867 = vadd.f32 %v3785, %v3851
  %v3868 = vld [vmem:[%s3184 + $0x1] sm:$0x1]
  %v3869 = vperm.slane %v3868, 0
  %v3870 = vmul.f32 %v3786, %v3869
  %v3871 = vmul.f32 %v3787, %v3869
  %v3872 = vmul.f32 %v3788, %v3869
  %v3873 = vmul.f32 %v3789, %v3869
  %v3874 = vmul.f32 %v3790, %v3869
  %v3875 = vmul.f32 %v3791, %v3869
  %v3876 = vmul.f32 %v3792, %v3869
  %v3877 = vmul.f32 %v3793, %v3869
  %v3878 = vmul.f32 %v3794, %v3869
  %v3879 = vmul.f32 %v3795, %v3869
  %v3880 = vmul.f32 %v3796, %v3869
  %v3881 = vmul.f32 %v3797, %v3869
  %v3882 = vmul.f32 %v3798, %v3869
  %v3883 = vmul.f32 %v3799, %v3869
  %v3884 = vmul.f32 %v3800, %v3869
  %v3885 = vmul.f32 %v3801, %v3869
  %v3886 = vadd.f32 %v3852, %v3870
  %v3887 = vadd.f32 %v3853, %v3871
  %v3888 = vadd.f32 %v3854, %v3872
  %v3889 = vadd.f32 %v3855, %v3873
  %v3890 = vadd.f32 %v3856, %v3874
  %v3891 = vadd.f32 %v3857, %v3875
  %v3892 = vadd.f32 %v3858, %v3876
  %v3893 = vadd.f32 %v3859, %v3877
  %v3894 = vadd.f32 %v3860, %v3878
  %v3895 = vadd.f32 %v3861, %v3879
  %v3896 = vadd.f32 %v3862, %v3880
  %v3897 = vadd.f32 %v3863, %v3881
  %v3898 = vadd.f32 %v3864, %v3882
  %v3899 = vadd.f32 %v3865, %v3883
  %v3900 = vadd.f32 %v3866, %v3884
  %v3901 = vadd.f32 %v3867, %v3885
  %v3902 = vrot.slane %v3786, 1
  %v3903 = vrot.slane %v3788, 1
  %v3904 = vrot.slane %v3790, 1
  %v3905 = vrot.slane %v3792, 1
  %v3906 = vrot.slane %v3794, 1
  %v3907 = vrot.slane %v3796, 1
  %v3908 = vrot.slane %v3798, 1
  %v3909 = vrot.slane %v3800, 1
  %v3910 = vrot.slane %v3787, 1
  %v3911 = vrot.slane %v3789, 1
  %v3912 = vrot.slane %v3791, 1
  %v3913 = vrot.slane %v3793, 1
  %v3914 = vrot.slane %v3795, 1
  %v3915 = vrot.slane %v3797, 1
  %v3916 = vrot.slane %v3799, 1
  %v3917 = vrot.slane %v3801, 1
  %v3918 = vsel %vm481, %v3902, %v3910
  %v3919 = vsel %vm481, %v3903, %v3911
  %v3920 = vsel %vm481, %v3904, %v3912
  %v3921 = vsel %vm481, %v3905, %v3913
  %v3922 = vsel %vm481, %v3906, %v3914
  %v3923 = vsel %vm481, %v3907, %v3915
  %v3924 = vsel %vm481, %v3908, %v3916
  %v3925 = vsel %vm481, %v3909, %v3917
  %v3926 = vsel %vm481, %v3910, %v3902
  %v3927 = vsel %vm481, %v3911, %v3903
  %v3928 = vsel %vm481, %v3912, %v3904
  %v3929 = vsel %vm481, %v3913, %v3905
  %v3930 = vsel %vm481, %v3914, %v3906
  %v3931 = vsel %vm481, %v3915, %v3907
  %v3932 = vsel %vm481, %v3916, %v3908
  %v3933 = vsel %vm481, %v3917, %v3909
  %v3934 = vld [vmem:[%s3184 + $0x2] sm:$0x1]
  %v3935 = vperm.slane %v3934, 0
  %v3936 = vmul.f32 %v3918, %v3935
  %v3937 = vmul.f32 %v3926, %v3935
  %v3938 = vmul.f32 %v3919, %v3935
  %v3939 = vmul.f32 %v3927, %v3935
  %v3940 = vmul.f32 %v3920, %v3935
  %v3941 = vmul.f32 %v3928, %v3935
  %v3942 = vmul.f32 %v3921, %v3935
  %v3943 = vmul.f32 %v3929, %v3935
  %v3944 = vmul.f32 %v3922, %v3935
  %v3945 = vmul.f32 %v3930, %v3935
  %v3946 = vmul.f32 %v3923, %v3935
  %v3947 = vmul.f32 %v3931, %v3935
  %v3948 = vmul.f32 %v3924, %v3935
  %v3949 = vmul.f32 %v3932, %v3935
  %v3950 = vmul.f32 %v3925, %v3935
  %v3951 = vmul.f32 %v3933, %v3935
  %v3952 = vadd.f32 %v3886, %v3936
  %v3953 = vadd.f32 %v3887, %v3937
  %v3954 = vadd.f32 %v3888, %v3938
  %v3955 = vadd.f32 %v3889, %v3939
  %v3956 = vadd.f32 %v3890, %v3940
  %v3957 = vadd.f32 %v3891, %v3941
  %v3958 = vadd.f32 %v3892, %v3942
  %v3959 = vadd.f32 %v3893, %v3943
  %v3960 = vadd.f32 %v3894, %v3944
  %v3961 = vadd.f32 %v3895, %v3945
  %v3962 = vadd.f32 %v3896, %v3946
  %v3963 = vadd.f32 %v3897, %v3947
  %v3964 = vadd.f32 %v3898, %v3948
  %v3965 = vadd.f32 %v3899, %v3949
  %v3966 = vadd.f32 %v3900, %v3950
  %v3967 = vadd.f32 %v3901, %v3951
  %v3968 = vld [vmem:[%s1394] sm:$0xff]
  %v3969 = vld [vmem:[%s1394 + $0x8] sm:$0xff]
  %v3970 = vld [vmem:[%s1394 + $0x10] sm:$0xff]
  %v3971 = vld [vmem:[%s1394 + $0x18] sm:$0xff]
  %v3972 = vld [vmem:[%s1394 + $0x20] sm:$0xff]
  %v3973 = vld [vmem:[%s1394 + $0x28] sm:$0xff]
  %v3974 = vld [vmem:[%s1394 + $0x30] sm:$0xff]
  %v3975 = vld [vmem:[%s1394 + $0x38] sm:$0xff]
  %v3976 = vld [vmem:[%s1394 + $0x40] sm:$0xff]
  %v3977 = vld [vmem:[%s1394 + $0x48] sm:$0xff]
  %v3978 = vld [vmem:[%s1394 + $0x50] sm:$0xff]
  %v3979 = vld [vmem:[%s1394 + $0x58] sm:$0xff]
  %v3980 = vld [vmem:[%s1394 + $0x60] sm:$0xff]
  %v3981 = vld [vmem:[%s1394 + $0x68] sm:$0xff]
  %v3982 = vld [vmem:[#allocation2] sm:$0xff]
  %v3983 = vld [vmem:[#allocation2 + $0x8] sm:$0xff]
  %v3984 = vrot.slane %v3968, 7
  %v3985 = vrot.slane %v3970, 7
  %v3986 = vrot.slane %v3972, 7
  %v3987 = vrot.slane %v3974, 7
  %v3988 = vrot.slane %v3976, 7
  %v3989 = vrot.slane %v3978, 7
  %v3990 = vrot.slane %v3980, 7
  %v3991 = vrot.slane %v3982, 7
  %v3992 = vrot.slane %v3969, 7
  %v3993 = vrot.slane %v3971, 7
  %v3994 = vrot.slane %v3973, 7
  %v3995 = vrot.slane %v3975, 7
  %v3996 = vrot.slane %v3977, 7
  %v3997 = vrot.slane %v3979, 7
  %v3998 = vrot.slane %v3981, 7
  %v3999 = vrot.slane %v3983, 7
  %v4000 = vsel %vm380, %v3984, %v3992
  %v4001 = vsel %vm380, %v3985, %v3993
  %v4002 = vsel %vm380, %v3986, %v3994
  %v4003 = vsel %vm380, %v3987, %v3995
  %v4004 = vsel %vm380, %v3988, %v3996
  %v4005 = vsel %vm380, %v3989, %v3997
  %v4006 = vsel %vm380, %v3990, %v3998
  %v4007 = vsel %vm380, %v3991, %v3999
  %v4008 = vsel %vm380, %v3992, %v3984
  %v4009 = vsel %vm380, %v3993, %v3985
  %v4010 = vsel %vm380, %v3994, %v3986
  %v4011 = vsel %vm380, %v3995, %v3987
  %v4012 = vsel %vm380, %v3996, %v3988
  %v4013 = vsel %vm380, %v3997, %v3989
  %v4014 = vsel %vm380, %v3998, %v3990
  %v4015 = vsel %vm380, %v3999, %v3991
  %v4016 = vld [vmem:[%s3339] sm:$0x1]
  %v4017 = vperm.slane %v4016, 0
  %v4018 = vmul.f32 %v4008, %v4017
  %v4019 = vmul.f32 %v4000, %v4017
  %v4020 = vmul.f32 %v4009, %v4017
  %v4021 = vmul.f32 %v4001, %v4017
  %v4022 = vmul.f32 %v4010, %v4017
  %v4023 = vmul.f32 %v4002, %v4017
  %v4024 = vmul.f32 %v4011, %v4017
  %v4025 = vmul.f32 %v4003, %v4017
  %v4026 = vmul.f32 %v4012, %v4017
  %v4027 = vmul.f32 %v4004, %v4017
  %v4028 = vmul.f32 %v4013, %v4017
  %v4029 = vmul.f32 %v4005, %v4017
  %v4030 = vmul.f32 %v4014, %v4017
  %v4031 = vmul.f32 %v4006, %v4017
  %v4032 = vmul.f32 %v4015, %v4017
  %v4033 = vmul.f32 %v4007, %v4017
  %v4034 = vadd.f32 %v3952, %v4018
  %v4035 = vadd.f32 %v3953, %v4019
  %v4036 = vadd.f32 %v3954, %v4020
  %v4037 = vadd.f32 %v3955, %v4021
  %v4038 = vadd.f32 %v3956, %v4022
  %v4039 = vadd.f32 %v3957, %v4023
  %v4040 = vadd.f32 %v3958, %v4024
  %v4041 = vadd.f32 %v3959, %v4025
  %v4042 = vadd.f32 %v3960, %v4026
  %v4043 = vadd.f32 %v3961, %v4027
  %v4044 = vadd.f32 %v3962, %v4028
  %v4045 = vadd.f32 %v3963, %v4029
  %v4046 = vadd.f32 %v3964, %v4030
  %v4047 = vadd.f32 %v3965, %v4031
  %v4048 = vadd.f32 %v3966, %v4032
  %v4049 = vadd.f32 %v3967, %v4033
  %v4050 = vld [vmem:[%s3339 + $0x1] sm:$0x1]
  %v4051 = vperm.slane %v4050, 0
  %v4052 = vmul.f32 %v3968, %v4051
  %v4053 = vmul.f32 %v3969, %v4051
  %v4054 = vmul.f32 %v3970, %v4051
  %v4055 = vmul.f32 %v3971, %v4051
  %v4056 = vmul.f32 %v3972, %v4051
  %v4057 = vmul.f32 %v3973, %v4051
  %v4058 = vmul.f32 %v3974, %v4051
  %v4059 = vmul.f32 %v3975, %v4051
  %v4060 = vmul.f32 %v3976, %v4051
  %v4061 = vmul.f32 %v3977, %v4051
  %v4062 = vmul.f32 %v3978, %v4051
  %v4063 = vmul.f32 %v3979, %v4051
  %v4064 = vmul.f32 %v3980, %v4051
  %v4065 = vmul.f32 %v3981, %v4051
  %v4066 = vmul.f32 %v3982, %v4051
  %v4067 = vmul.f32 %v3983, %v4051
  %v4068 = vadd.f32 %v4034, %v4052
  %v4069 = vadd.f32 %v4035, %v4053
  %v4070 = vadd.f32 %v4036, %v4054
  %v4071 = vadd.f32 %v4037, %v4055
  %v4072 = vadd.f32 %v4038, %v4056
  %v4073 = vadd.f32 %v4039, %v4057
  %v4074 = vadd.f32 %v4040, %v4058
  %v4075 = vadd.f32 %v4041, %v4059
  %v4076 = vadd.f32 %v4042, %v4060
  %v4077 = vadd.f32 %v4043, %v4061
  %v4078 = vadd.f32 %v4044, %v4062
  %v4079 = vadd.f32 %v4045, %v4063
  %v4080 = vadd.f32 %v4046, %v4064
  %v4081 = vadd.f32 %v4047, %v4065
  %v4082 = vadd.f32 %v4048, %v4066
  %v4083 = vadd.f32 %v4049, %v4067
  %v4084 = vrot.slane %v3968, 1
  %v4085 = vrot.slane %v3970, 1
  %v4086 = vrot.slane %v3972, 1
  %v4087 = vrot.slane %v3974, 1
  %v4088 = vrot.slane %v3976, 1
  %v4089 = vrot.slane %v3978, 1
  %v4090 = vrot.slane %v3980, 1
  %v4091 = vrot.slane %v3982, 1
  %v4092 = vrot.slane %v3969, 1
  %v4093 = vrot.slane %v3971, 1
  %v4094 = vrot.slane %v3973, 1
  %v4095 = vrot.slane %v3975, 1
  %v4096 = vrot.slane %v3977, 1
  %v4097 = vrot.slane %v3979, 1
  %v4098 = vrot.slane %v3981, 1
  %v4099 = vrot.slane %v3983, 1
  %v4100 = vsel %vm481, %v4084, %v4092
  %v4101 = vsel %vm481, %v4085, %v4093
  %v4102 = vsel %vm481, %v4086, %v4094
  %v4103 = vsel %vm481, %v4087, %v4095
  %v4104 = vsel %vm481, %v4088, %v4096
  %v4105 = vsel %vm481, %v4089, %v4097
  %v4106 = vsel %vm481, %v4090, %v4098
  %v4107 = vsel %vm481, %v4091, %v4099
  %v4108 = vsel %vm481, %v4092, %v4084
  %v4109 = vsel %vm481, %v4093, %v4085
  %v4110 = vsel %vm481, %v4094, %v4086
  %v4111 = vsel %vm481, %v4095, %v4087
  %v4112 = vsel %vm481, %v4096, %v4088
  %v4113 = vsel %vm481, %v4097, %v4089
  %v4114 = vsel %vm481, %v4098, %v4090
  %v4115 = vsel %vm481, %v4099, %v4091
  %v4116 = vld [vmem:[%s3339 + $0x2] sm:$0x1]
  %v4117 = vperm.slane %v4116, 0
  %v4118 = vmul.f32 %v4100, %v4117
  %v4119 = vmul.f32 %v4108, %v4117
  %v4120 = vmul.f32 %v4101, %v4117
  %v4121 = vmul.f32 %v4109, %v4117
  %v4122 = vmul.f32 %v4102, %v4117
  %v4123 = vmul.f32 %v4110, %v4117
  %v4124 = vmul.f32 %v4103, %v4117
  %v4125 = vmul.f32 %v4111, %v4117
  %v4126 = vmul.f32 %v4104, %v4117
  %v4127 = vmul.f32 %v4112, %v4117
  %v4128 = vmul.f32 %v4105, %v4117
  %v4129 = vmul.f32 %v4113, %v4117
  %v4130 = vmul.f32 %v4106, %v4117
  %v4131 = vmul.f32 %v4114, %v4117
  %v4132 = vmul.f32 %v4107, %v4117
  %v4133 = vmul.f32 %v4115, %v4117
  %v4134 = vadd.f32 %v4068, %v4118
  %v4135 = vadd.f32 %v4069, %v4119
  %v4136 = vadd.f32 %v4070, %v4120
  %v4137 = vadd.f32 %v4071, %v4121
  %v4138 = vadd.f32 %v4072, %v4122
  %v4139 = vadd.f32 %v4073, %v4123
  %v4140 = vadd.f32 %v4074, %v4124
  %v4141 = vadd.f32 %v4075, %v4125
  %v4142 = vadd.f32 %v4076, %v4126
  %v4143 = vadd.f32 %v4077, %v4127
  %v4144 = vadd.f32 %v4078, %v4128
  %v4145 = vadd.f32 %v4079, %v4129
  %v4146 = vadd.f32 %v4080, %v4130
  %v4147 = vadd.f32 %v4081, %v4131
  %v4148 = vadd.f32 %v4082, %v4132
  %v4149 = vadd.f32 %v4083, %v4133
  %v4150 = vld [vmem:[%s3474] sm:$0xff]
  %v4151 = vld [vmem:[%s3474 + $0x8] sm:$0xff]
  %v4152 = vld [vmem:[%s3474 + $0x10] sm:$0xff]
  %v4153 = vld [vmem:[%s3474 + $0x18] sm:$0xff]
  %v4154 = vld [vmem:[%s3474 + $0x20] sm:$0xff]
  %v4155 = vld [vmem:[%s3474 + $0x28] sm:$0xff]
  %v4156 = vld [vmem:[%s3474 + $0x30] sm:$0xff]
  %v4157 = vld [vmem:[%s3474 + $0x38] sm:$0xff]
  %v4158 = vld [vmem:[%s3474 + $0x40] sm:$0xff]
  %v4159 = vld [vmem:[%s3474 + $0x48] sm:$0xff]
  %v4160 = vld [vmem:[%s3474 + $0x50] sm:$0xff]
  %v4161 = vld [vmem:[%s3474 + $0x58] sm:$0xff]
  %v4162 = vld [vmem:[%s3474 + $0x60] sm:$0xff]
  %v4163 = vld [vmem:[%s3474 + $0x68] sm:$0xff]
  %v4164 = vld [vmem:[%s3474 + $0x70] sm:$0xff]
  %v4165 = vld [vmem:[%s3474 + $0x78] sm:$0xff]
  %4166 = vmatpush.msra.mxu0 %v4165
  %4167 = vmatpush.msra.mxu0 %v4164
  %4168 = vmatpush.msra.mxu0 %v4163
  %4169 = vmatpush.msra.mxu0 %v4162
  %4170 = vmatpush.msra.mxu0 %v4161
  %4171 = vmatpush.msra.mxu0 %v4160
  %4172 = vmatpush.msra.mxu0 %v4159
  %4173 = vmatpush.msra.mxu0 %v4158
  %4174 = vmatpush.msra.mxu0 %v4157
  %4175 = vmatpush.msra.mxu0 %v4156
  %4176 = vmatpush.msra.mxu0 %v4155
  %4177 = vmatpush.msra.mxu0 %v4154
  %4178 = vmatpush.msra.mxu0 %v4153
  %4179 = vmatpush.msra.mxu0 %v4152
  %4180 = vmatpush.msra.mxu0 %v4151
  %4181 = vmatpush.msra.mxu0 %v4150
  %4182 = vmatmul.f32.gmra.mxu0 %v4134
  %v4183 = vpop.f32.mrf.mxu0
  %v4184 = vadd.f32 0.0, %v4183
  %4185 = vmatmul.f32.gmra.mxu0 %v4135
  %v4186 = vpop.f32.mrf.mxu0
  %v4187 = vadd.f32 0.0, %v4186
  %4188 = vmatmul.f32.gmra.mxu0 %v4136
  %v4189 = vpop.f32.mrf.mxu0
  %v4190 = vadd.f32 0.0, %v4189
  %4191 = vmatmul.f32.gmra.mxu0 %v4137
  %v4192 = vpop.f32.mrf.mxu0
  %v4193 = vadd.f32 0.0, %v4192
  %4194 = vmatmul.f32.gmra.mxu0 %v4138
  %v4195 = vpop.f32.mrf.mxu0
  %v4196 = vadd.f32 0.0, %v4195
  %4197 = vmatmul.f32.gmra.mxu0 %v4139
  %v4198 = vpop.f32.mrf.mxu0
  %v4199 = vadd.f32 0.0, %v4198
  %4200 = vmatmul.f32.gmra.mxu0 %v4140
  %v4201 = vpop.f32.mrf.mxu0
  %v4202 = vadd.f32 0.0, %v4201
  %4203 = vmatmul.f32.gmra.mxu0 %v4141
  %v4204 = vpop.f32.mrf.mxu0
  %v4205 = vadd.f32 0.0, %v4204
  %4206 = vmatmul.f32.gmra.mxu0 %v4142
  %v4207 = vpop.f32.mrf.mxu0
  %v4208 = vadd.f32 0.0, %v4207
  %4209 = vmatmul.f32.gmra.mxu0 %v4143
  %v4210 = vpop.f32.mrf.mxu0
  %v4211 = vadd.f32 0.0, %v4210
  %4212 = vmatmul.f32.gmra.mxu0 %v4144
  %v4213 = vpop.f32.mrf.mxu0
  %v4214 = vadd.f32 0.0, %v4213
  %4215 = vmatmul.f32.gmra.mxu0 %v4145
  %v4216 = vpop.f32.mrf.mxu0
  %v4217 = vadd.f32 0.0, %v4216
  %4218 = vmatmul.f32.gmra.mxu0 %v4146
  %v4219 = vpop.f32.mrf.mxu0
  %v4220 = vadd.f32 0.0, %v4219
  %4221 = vmatmul.f32.gmra.mxu0 %v4147
  %v4222 = vpop.f32.mrf.mxu0
  %v4223 = vadd.f32 0.0, %v4222
  %4224 = vmatmul.f32.gmra.mxu0 %v4148
  %v4225 = vpop.f32.mrf.mxu0
  %v4226 = vadd.f32 0.0, %v4225
  %4227 = vmatmul.f32.gmra.mxu0 %v4149
  %v4228 = vpop.f32.mrf.mxu0
  %v4229 = vadd.f32 0.0, %v4228
  %4230 = vdwg.mxu0
  %v4231 = vmax.f32 %v4184, 0.0
  %v4232 = vmax.f32 %v4187, 0.0
  %v4233 = vmax.f32 %v4190, 0.0
  %v4234 = vmax.f32 %v4193, 0.0
  %v4235 = vmax.f32 %v4196, 0.0
  %v4236 = vmax.f32 %v4199, 0.0
  %v4237 = vmax.f32 %v4202, 0.0
  %v4238 = vmax.f32 %v4205, 0.0
  %v4239 = vmax.f32 %v4208, 0.0
  %v4240 = vmax.f32 %v4211, 0.0
  %v4241 = vmax.f32 %v4214, 0.0
  %v4242 = vmax.f32 %v4217, 0.0
  %v4243 = vmax.f32 %v4220, 0.0
  %v4244 = vmax.f32 %v4223, 0.0
  %v4245 = vmax.f32 %v4226, 0.0
  %v4246 = vmax.f32 %v4229, 0.0
  %v4247 = vadd.f32 %v4231, %v3786
  %v4248 = vadd.f32 %v4232, %v3787
  %v4249 = vadd.f32 %v4233, %v3788
  %v4250 = vadd.f32 %v4234, %v3789
  %v4251 = vadd.f32 %v4235, %v3790
  %v4252 = vadd.f32 %v4236, %v3791
  %v4253 = vadd.f32 %v4237, %v3792
  %v4254 = vadd.f32 %v4238, %v3793
  %v4255 = vadd.f32 %v4239, %v3794
  %v4256 = vadd.f32 %v4240, %v3795
  %v4257 = vadd.f32 %v4241, %v3796
  %v4258 = vadd.f32 %v4242, %v3797
  %v4259 = vadd.f32 %v4243, %v3798
  %v4260 = vadd.f32 %v4244, %v3799
  %v4261 = vadd.f32 %v4245, %v3800
  %v4262 = vadd.f32 %v4246, %v3801
  %4263 = vst [vmem:[%s1690] sm:$0xff] %v4247
  %4264 = vst [vmem:[%s1690 + $0x8] sm:$0xff] %v4248
  %4265 = vst [vmem:[%s1690 + $0x10] sm:$0xff] %v4249
  %4266 = vst [vmem:[%s1690 + $0x18] sm:$0xff] %v4250
  %4267 = vst [vmem:[%s1690 + $0x20] sm:$0xff] %v4251
  %4268 = vst [vmem:[%s1690 + $0x28] sm:$0xff] %v4252
  %4269 = vst [vmem:[%s1690 + $0x30] sm:$0xff] %v4253
  %4270 = vst [vmem:[%s1690 + $0x38] sm:$0xff] %v4254
  %4271 = vst [vmem:[%s1690 + $0x40] sm:$0xff] %v4255
  %4272 = vst [vmem:[%s1690 + $0x48] sm:$0xff] %v4256
  %4273 = vst [vmem:[%s1690 + $0x50] sm:$0xff] %v4257
  %4274 = vst [vmem:[%s1690 + $0x58] sm:$0xff] %v4258
  %4275 = vst [vmem:[%s1690 + $0x60] sm:$0xff] %v4259
  %4276 = vst [vmem:[%s1690 + $0x68] sm:$0xff] %v4260
  %4277 = vst [vmem:[%s1690 + $0x70] sm:$0xff] %v4261
  %4278 = vst [vmem:[%s1690 + $0x78] sm:$0xff] %v4262
  %v4279 = vld [vmem:[#allocation3] sm:$0xff]
  %v4280 = vld [vmem:[#allocation3 + $0x8] sm:$0xff]
  %v4281 = vld [vmem:[#allocation3 + $0x10] sm:$0xff]
  %v4282 = vld [vmem:[#allocation3 + $0x18] sm:$0xff]
  %v4283 = vld [vmem:[#allocation3 + $0x20] sm:$0xff]
  %v4284 = vld [vmem:[#allocation3 + $0x28] sm:$0xff]
  %v4285 = vld [vmem:[#allocation3 + $0x30] sm:$0xff]
  %v4286 = vld [vmem:[#allocation3 + $0x38] sm:$0xff]
  %v4287 = vld [vmem:[#allocation3 + $0x40] sm:$0xff]
  %v4288 = vld [vmem:[#allocation3 + $0x48] sm:$0xff]
  %v4289 = vld [vmem:[#allocation3 + $0x50] sm:$0xff]
  %v4290 = vld [vmem:[#allocation3 + $0x58] sm:$0xff]
  %v4291 = vld [vmem:[#allocation3 + $0x60] sm:$0xff]
  %v4292 = vld [vmem:[#allocation3 + $0x68] sm:$0xff]
  %vm4308 = vcmask 1040384
  %v4309 = vrot.slane 0.0, 7
  %v4310 = vsel %vm4308, %v4309, %v4309
  %v4311 = vrot.slane %v4279, 7
  %v4312 = vrot.slane %v4280, 7
  %v4313 = vsel %vm4308, %v4311, %v4312
  %v4314 = vrot.slane %v4281, 7
  %v4315 = vrot.slane %v4282, 7
  %v4316 = vsel %vm4308, %v4314, %v4315
  %v4317 = vrot.slane %v4283, 7
  %v4318 = vrot.slane %v4284, 7
  %v4319 = vsel %vm4308, %v4317, %v4318
  %v4320 = vrot.slane %v4285, 7
  %v4321 = vrot.slane %v4286, 7
  %v4322 = vsel %vm4308, %v4320, %v4321
  %v4323 = vrot.slane %v4287, 7
  %v4324 = vrot.slane %v4288, 7
  %v4325 = vsel %vm4308, %v4323, %v4324
  %v4326 = vrot.slane %v4289, 7
  %v4327 = vrot.slane %v4290, 7
  %v4328 = vsel %vm4308, %v4326, %v4327
  %v4329 = vrot.slane %v4291, 7
  %v4330 = vrot.slane %v4292, 7
  %v4331 = vsel %vm4308, %v4329, %v4330
  %v4348 = vsel %vm4308, 0.0, %v4309
  %v4349 = vsel %vm4308, 0.0, %v4311
  %v4350 = vsel %vm4308, 0.0, %v4314
  %v4351 = vsel %vm4308, 0.0, %v4317
  %v4352 = vsel %vm4308, 0.0, %v4320
  %v4353 = vsel %vm4308, 0.0, %v4323
  %v4354 = vsel %vm4308, 0.0, %v4326
  %v4355 = vsel %vm4308, 0.0, %v4329
  %v4356 = vld [vmem:[%s5] sm:$0xf]
  %s4357 = scalar_lea.vmem %s5, 4
  %v4358 = vld [vmem:[%s4357] sm:$0xf]
  %4359 = vmatpush.xpose.msra.mxu0 %v4292
  %4360 = vmatpush.xpose.msra.mxu0 %v4291
  %4361 = vmatpush.xpose.msra.mxu0 %v4290
  %4362 = vmatpush.xpose.msra.mxu0 %v4289
  %4363 = vmatpush.xpose.msra.mxu0 %v4288
  %4364 = vmatpush.xpose.msra.mxu0 %v4287
  %4365 = vmatpush.xpose.msra.mxu0 %v4286
  %4366 = vmatpush.xpose.msra.mxu0 %v4285
  %4367 = vmatpush.xpose.msra.mxu0 %v4284
  %4368 = vmatpush.xpose.msra.mxu0 %v4283
  %4369 = vmatpush.xpose.msra.mxu0 %v4282
  %4370 = vmatpush.xpose.msra.mxu0 %v4281
  %4371 = vmatpush.xpose.msra.mxu0 %v4280
  %4372 = vmatpush.xpose.msra.mxu0 %v4279
  %4373 = vmatpush.xpose.msra.mxu0 0.0
  %4374 = vmatpush.xpose.msra.mxu0 0.0
  %4375 = vmatmul.f32.gmra.mxu0 %v4358
  %v4376 = vpop.f32.mrf.mxu0
  %v4377 = vadd.f32 0.0, %v4376
  %4378 = vdwg.mxu0
  %4379 = vmatpush.xpose.msra.mxu0 %v4331
  %4380 = vmatpush.xpose.msra.mxu0 %v4355
  %4381 = vmatpush.xpose.msra.mxu0 %v4328
  %4382 = vmatpush.xpose.msra.mxu0 %v4354
  %4383 = vmatpush.xpose.msra.mxu0 %v4325
  %4384 = vmatpush.xpose.msra.mxu0 %v4353
  %4385 = vmatpush.xpose.msra.mxu0 %v4322
  %4386 = vmatpush.xpose.msra.mxu0 %v4352
  %4387 = vmatpush.xpose.msra.mxu0 %v4319
  %4388 = vmatpush.xpose.msra.mxu0 %v4351
  %4389 = vmatpush.xpose.msra.mxu0 %v4316
  %4390 = vmatpush.xpose.msra.mxu0 %v4350
  %4391 = vmatpush.xpose.msra.mxu0 %v4313
  %4392 = vmatpush.xpose.msra.mxu0 %v4349
  %4393 = vmatpush.xpose.msra.mxu0 %v4310
  %4394 = vmatpush.xpose.msra.mxu0 %v4348
  %4395 = vmatmul.f32.gmra.mxu0 %v4356
  %v4396 = vpop.f32.mrf.mxu0
  %v4397 = vadd.f32 %v4377, %v4396
  %4398 = vdwg.mxu0
  %vm4399 = vcmask 1046528
  %v4400 = vrot.slane 0.0, 1
  %v4401 = vsel %vm4399, %v4400, %v4400
  %v4402 = vrot.slane %v4279, 1
  %v4403 = vrot.slane %v4280, 1
  %v4404 = vsel %vm4399, %v4402, %v4403
  %v4405 = vrot.slane %v4281, 1
  %v4406 = vrot.slane %v4282, 1
  %v4407 = vsel %vm4399, %v4405, %v4406
  %v4408 = vrot.slane %v4283, 1
  %v4409 = vrot.slane %v4284, 1
  %v4410 = vsel %vm4399, %v4408, %v4409
  %v4411 = vrot.slane %v4285, 1
  %v4412 = vrot.slane %v4286, 1
  %v4413 = vsel %vm4399, %v4411, %v4412
  %v4414 = vrot.slane %v4287, 1
  %v4415 = vrot.slane %v4288, 1
  %v4416 = vsel %vm4399, %v4414, %v4415
  %v4417 = vrot.slane %v4289, 1
  %v4418 = vrot.slane %v4290, 1
  %v4419 = vsel %vm4399, %v4417, %v4418
  %v4420 = vrot.slane %v4291, 1
  %v4421 = vrot.slane %v4292, 1
  %v4422 = vsel %vm4399, %v4420, %v4421
  %v4439 = vsel %vm4399, %v4400, 0.0
  %v4440 = vsel %vm4399, %v4403, 0.0
  %v4441 = vsel %vm4399, %v4406, 0.0
  %v4442 = vsel %vm4399, %v4409, 0.0
  %v4443 = vsel %vm4399, %v4412, 0.0
  %v4444 = vsel %vm4399, %v4415, 0.0
  %v4445 = vsel %vm4399, %v4418, 0.0
  %v4446 = vsel %vm4399, %v4421, 0.0
  %s4447 = scalar_lea.vmem %s5, 8
  %v4448 = vld [vmem:[%s4447] sm:$0xf]
  %4449 = vmatpush.xpose.msra.mxu0 %v4446
  %4450 = vmatpush.xpose.msra.mxu0 %v4422
  %4451 = vmatpush.xpose.msra.mxu0 %v4445
  %4452 = vmatpush.xpose.msra.mxu0 %v4419
  %4453 = vmatpush.xpose.msra.mxu0 %v4444
  %4454 = vmatpush.xpose.msra.mxu0 %v4416
  %4455 = vmatpush.xpose.msra.mxu0 %v4443
  %4456 = vmatpush.xpose.msra.mxu0 %v4413
  %4457 = vmatpush.xpose.msra.mxu0 %v4442
  %4458 = vmatpush.xpose.msra.mxu0 %v4410
  %4459 = vmatpush.xpose.msra.mxu0 %v4441
  %4460 = vmatpush.xpose.msra.mxu0 %v4407
  %4461 = vmatpush.xpose.msra.mxu0 %v4440
  %4462 = vmatpush.xpose.msra.mxu0 %v4404
  %4463 = vmatpush.xpose.msra.mxu0 %v4439
  %4464 = vmatpush.xpose.msra.mxu0 %v4401
  %4465 = vmatmul.f32.gmra.mxu0 %v4448
  %v4466 = vpop.f32.mrf.mxu0
  %v4467 = vadd.f32 0.0, %v4466
  %4468 = vdwg.mxu0
  %v4469 = vadd.f32 %v4397, %v4467
  %v4470 = vld [vmem:[#allocation3] sm:$0xff]
  %v4471 = vld [vmem:[#allocation3 + $0x8] sm:$0xff]
  %v4472 = vld [vmem:[#allocation3 + $0x10] sm:$0xff]
  %v4473 = vld [vmem:[#allocation3 + $0x18] sm:$0xff]
  %v4474 = vld [vmem:[#allocation3 + $0x20] sm:$0xff]
  %v4475 = vld [vmem:[#allocation3 + $0x28] sm:$0xff]
  %v4476 = vld [vmem:[#allocation3 + $0x30] sm:$0xff]
  %v4477 = vld [vmem:[#allocation3 + $0x38] sm:$0xff]
  %v4478 = vld [vmem:[#allocation3 + $0x40] sm:$0xff]
  %v4479 = vld [vmem:[#allocation3 + $0x48] sm:$0xff]
  %v4480 = vld [vmem:[#allocation3 + $0x50] sm:$0xff]
  %v4481 = vld [vmem:[#allocation3 + $0x58] sm:$0xff]
  %v4482 = vld [vmem:[#allocation3 + $0x60] sm:$0xff]
  %v4483 = vld [vmem:[#allocation3 + $0x68] sm:$0xff]
  %v4484 = vld [vmem:[#allocation3 + $0x70] sm:$0xff]
  %v4485 = vld [vmem:[#allocation3 + $0x78] sm:$0xff]
  %v4502 = vrot.slane %v4470, 7
  %v4503 = vrot.slane %v4471, 7
  %v4504 = vsel %vm4308, %v4502, %v4503
  %v4505 = vrot.slane %v4472, 7
  %v4506 = vrot.slane %v4473, 7
  %v4507 = vsel %vm4308, %v4505, %v4506
  %v4508 = vrot.slane %v4474, 7
  %v4509 = vrot.slane %v4475, 7
  %v4510 = vsel %vm4308, %v4508, %v4509
  %v4511 = vrot.slane %v4476, 7
  %v4512 = vrot.slane %v4477, 7
  %v4513 = vsel %vm4308, %v4511, %v4512
  %v4514 = vrot.slane %v4478, 7
  %v4515 = vrot.slane %v4479, 7
  %v4516 = vsel %vm4308, %v4514, %v4515
  %v4517 = vrot.slane %v4480, 7
  %v4518 = vrot.slane %v4481, 7
  %v4519 = vsel %vm4308, %v4517, %v4518
  %v4520 = vrot.slane %v4482, 7
  %v4521 = vrot.slane %v4483, 7
  %v4522 = vsel %vm4308, %v4520, %v4521
  %v4523 = vrot.slane %v4484, 7
  %v4524 = vrot.slane %v4485, 7
  %v4525 = vsel %vm4308, %v4523, %v4524
  %v4542 = vsel %vm4308, 0.0, %v4502
  %v4543 = vsel %vm4308, 0.0, %v4505
  %v4544 = vsel %vm4308, 0.0, %v4508
  %v4545 = vsel %vm4308, 0.0, %v4511
  %v4546 = vsel %vm4308, 0.0, %v4514
  %v4547 = vsel %vm4308, 0.0, %v4517
  %v4548 = vsel %vm4308, 0.0, %v4520
  %v4549 = vsel %vm4308, 0.0, %v4523
  %s4550 = scalar_lea.vmem %s5, 12
  %v4551 = vld [vmem:[%s4550] sm:$0xf]
  %4552 = vmatpush.xpose.msra.mxu0 %v4525
  %4553 = vmatpush.xpose.msra.mxu0 %v4549
  %4554 = vmatpush.xpose.msra.mxu0 %v4522
  %4555 = vmatpush.xpose.msra.mxu0 %v4548
  %4556 = vmatpush.xpose.msra.mxu0 %v4519
  %4557 = vmatpush.xpose.msra.mxu0 %v4547
  %4558 = vmatpush.xpose.msra.mxu0 %v4516
  %4559 = vmatpush.xpose.msra.mxu0 %v4546
  %4560 = vmatpush.xpose.msra.mxu0 %v4513
  %4561 = vmatpush.xpose.msra.mxu0 %v4545
  %4562 = vmatpush.xpose.msra.mxu0 %v4510
  %4563 = vmatpush.xpose.msra.mxu0 %v4544
  %4564 = vmatpush.xpose.msra.mxu0 %v4507
  %4565 = vmatpush.xpose.msra.mxu0 %v4543
  %4566 = vmatpush.xpose.msra.mxu0 %v4504
  %4567 = vmatpush.xpose.msra.mxu0 %v4542
  %4568 = vmatmul.f32.gmra.mxu0 %v4551
  %v4569 = vpop.f32.mrf.mxu0
  %v4570 = vadd.f32 0.0, %v4569
  %4571 = vdwg.mxu0
  %v4572 = vadd.f32 %v4469, %v4570
  %s4573 = scalar_lea.vmem %s5, 16
  %v4574 = vld [vmem:[%s4573] sm:$0xf]
  %4575 = vmatpush.xpose.msra.mxu0 %v4485
  %4576 = vmatpush.xpose.msra.mxu0 %v4484
  %4577 = vmatpush.xpose.msra.mxu0 %v4483
  %4578 = vmatpush.xpose.msra.mxu0 %v4482
  %4579 = vmatpush.xpose.msra.mxu0 %v4481
  %4580 = vmatpush.xpose.msra.mxu0 %v4480
  %4581 = vmatpush.xpose.msra.mxu0 %v4479
  %4582 = vmatpush.xpose.msra.mxu0 %v4478
  %4583 = vmatpush.xpose.msra.mxu0 %v4477
  %4584 = vmatpush.xpose.msra.mxu0 %v4476
  %4585 = vmatpush.xpose.msra.mxu0 %v4475
  %4586 = vmatpush.xpose.msra.mxu0 %v4474
  %4587 = vmatpush.xpose.msra.mxu0 %v4473
  %4588 = vmatpush.xpose.msra.mxu0 %v4472
  %4589 = vmatpush.xpose.msra.mxu0 %v4471
  %4590 = vmatpush.xpose.msra.mxu0 %v4470
  %4591 = vmatmul.f32.gmra.mxu0 %v4574
  %v4592 = vpop.f32.mrf.mxu0
  %v4593 = vadd.f32 0.0, %v4592
  %4594 = vdwg.mxu0
  %v4595 = vadd.f32 %v4572, %v4593
  %v4596 = vrot.slane %v4470, 1
  %v4597 = vrot.slane %v4471, 1
  %v4598 = vsel %vm4399, %v4596, %v4597
  %v4599 = vrot.slane %v4472, 1
  %v4600 = vrot.slane %v4473, 1
  %v4601 = vsel %vm4399, %v4599, %v4600
  %v4602 = vrot.slane %v4474, 1
  %v4603 = vrot.slane %v4475, 1
  %v4604 = vsel %vm4399, %v4602, %v4603
  %v4605 = vrot.slane %v4476, 1
  %v4606 = vrot.slane %v4477, 1
  %v4607 = vsel %vm4399, %v4605, %v4606
  %v4608 = vrot.slane %v4478, 1
  %v4609 = vrot.slane %v4479, 1
  %v4610 = vsel %vm4399, %v4608, %v4609
  %v4611 = vrot.slane %v4480, 1
  %v4612 = vrot.slane %v4481, 1
  %v4613 = vsel %vm4399, %v4611, %v4612
  %v4614 = vrot.slane %v4482, 1
  %v4615 = vrot.slane %v4483, 1
  %v4616 = vsel %vm4399, %v4614, %v4615
  %v4617 = vrot.slane %v4484, 1
  %v4618 = vrot.slane %v4485, 1
  %v4619 = vsel %vm4399, %v4617, %v4618
  %v4636 = vsel %vm4399, %v4597, 0.0
  %v4637 = vsel %vm4399, %v4600, 0.0
  %v4638 = vsel %vm4399, %v4603, 0.0
  %v4639 = vsel %vm4399, %v4606, 0.0
  %v4640 = vsel %vm4399, %v4609, 0.0
  %v4641 = vsel %vm4399, %v4612, 0.0
  %v4642 = vsel %vm4399, %v4615, 0.0
  %v4643 = vsel %vm4399, %v4618, 0.0
  %s4644 = scalar_lea.vmem %s5, 20
  %v4645 = vld [vmem:[%s4644] sm:$0xf]
  %4646 = vmatpush.xpose.msra.mxu0 %v4643
  %4647 = vmatpush.xpose.msra.mxu0 %v4619
  %4648 = vmatpush.xpose.msra.mxu0 %v4642
  %4649 = vmatpush.xpose.msra.mxu0 %v4616
  %4650 = vmatpush.xpose.msra.mxu0 %v4641
  %4651 = vmatpush.xpose.msra.mxu0 %v4613
  %4652 = vmatpush.xpose.msra.mxu0 %v4640
  %4653 = vmatpush.xpose.msra.mxu0 %v4610
  %4654 = vmatpush.xpose.msra.mxu0 %v4639
  %4655 = vmatpush.xpose.msra.mxu0 %v4607
  %4656 = vmatpush.xpose.msra.mxu0 %v4638
  %4657 = vmatpush.xpose.msra.mxu0 %v4604
  %4658 = vmatpush.xpose.msra.mxu0 %v4637
  %4659 = vmatpush.xpose.msra.mxu0 %v4601
  %4660 = vmatpush.xpose.msra.mxu0 %v4636
  %4661 = vmatpush.xpose.msra.mxu0 %v4598
  %4662 = vmatmul.f32.gmra.mxu0 %v4645
  %v4663 = vpop.f32.mrf.mxu0
  %v4664 = vadd.f32 0.0, %v4663
  %4665 = vdwg.mxu0
  %v4666 = vadd.f32 %v4595, %v4664
  %v4667 = vld [vmem:[%s2004] sm:$0xff]
  %v4668 = vld [vmem:[%s2004 + $0x8] sm:$0xff]
  %v4669 = vld [vmem:[%s2004 + $0x10] sm:$0xff]
  %v4670 = vld [vmem:[%s2004 + $0x18] sm:$0xff]
  %v4671 = vld [vmem:[%s2004 + $0x20] sm:$0xff]
  %v4672 = vld [vmem:[%s2004 + $0x28] sm:$0xff]
  %v4673 = vld [vmem:[%s2004 + $0x30] sm:$0xff]
  %v4674 = vld [vmem:[%s2004 + $0x38] sm:$0xff]
  %v4675 = vld [vmem:[%s2004 + $0x40] sm:$0xff]
  %v4676 = vld [vmem:[%s2004 + $0x48] sm:$0xff]
  %v4677 = vld [vmem:[%s2004 + $0x50] sm:$0xff]
  %v4678 = vld [vmem:[%s2004 + $0x58] sm:$0xff]
  %v4679 = vld [vmem:[%s2004 + $0x60] sm:$0xff]
  %v4680 = vld [vmem:[%s2004 + $0x68] sm:$0xff]
  %v4681 = vld [vmem:[%s2004 + $0x70] sm:$0xff]
  %v4682 = vld [vmem:[%s2004 + $0x78] sm:$0xff]
  %v4699 = vrot.slane %v4667, 7
  %v4700 = vrot.slane %v4668, 7
  %v4701 = vsel %vm4308, %v4699, %v4700
  %v4702 = vrot.slane %v4669, 7
  %v4703 = vrot.slane %v4670, 7
  %v4704 = vsel %vm4308, %v4702, %v4703
  %v4705 = vrot.slane %v4671, 7
  %v4706 = vrot.slane %v4672, 7
  %v4707 = vsel %vm4308, %v4705, %v4706
  %v4708 = vrot.slane %v4673, 7
  %v4709 = vrot.slane %v4674, 7
  %v4710 = vsel %vm4308, %v4708, %v4709
  %v4711 = vrot.slane %v4675, 7
  %v4712 = vrot.slane %v4676, 7
  %v4713 = vsel %vm4308, %v4711, %v4712
  %v4714 = vrot.slane %v4677, 7
  %v4715 = vrot.slane %v4678, 7
  %v4716 = vsel %vm4308, %v4714, %v4715
  %v4717 = vrot.slane %v4679, 7
  %v4718 = vrot.slane %v4680, 7
  %v4719 = vsel %vm4308, %v4717, %v4718
  %v4720 = vrot.slane %v4681, 7
  %v4721 = vrot.slane %v4682, 7
  %v4722 = vsel %vm4308, %v4720, %v4721
  %v4739 = vsel %vm4308, 0.0, %v4699
  %v4740 = vsel %vm4308, 0.0, %v4702
  %v4741 = vsel %vm4308, 0.0, %v4705
  %v4742 = vsel %vm4308, 0.0, %v4708
  %v4743 = vsel %vm4308, 0.0, %v4711
  %v4744 = vsel %vm4308, 0.0, %v4714
  %v4745 = vsel %vm4308, 0.0, %v4717
  %v4746 = vsel %vm4308, 0.0, %v4720
  %s4747 = scalar_lea.vmem %s5, 24
  %v4748 = vld [vmem:[%s4747] sm:$0xf]
  %4749 = vmatpush.xpose.msra.mxu0 %v4722
  %4750 = vmatpush.xpose.msra.mxu0 %v4746
  %4751 = vmatpush.xpose.msra.mxu0 %v4719
  %4752 = vmatpush.xpose.msra.mxu0 %v4745
  %4753 = vmatpush.xpose.msra.mxu0 %v4716
  %4754 = vmatpush.xpose.msra.mxu0 %v4744
  %4755 = vmatpush.xpose.msra.mxu0 %v4713
  %4756 = vmatpush.xpose.msra.mxu0 %v4743
  %4757 = vmatpush.xpose.msra.mxu0 %v4710
  %4758 = vmatpush.xpose.msra.mxu0 %v4742
  %4759 = vmatpush.xpose.msra.mxu0 %v4707
  %4760 = vmatpush.xpose.msra.mxu0 %v4741
  %4761 = vmatpush.xpose.msra.mxu0 %v4704
  %4762 = vmatpush.xpose.msra.mxu0 %v4740
  %4763 = vmatpush.xpose.msra.mxu0 %v4701
  %4764 = vmatpush.xpose.msra.mxu0 %v4739
  %4765 = vmatmul.f32.gmra.mxu0 %v4748
  %v4766 = vpop.f32.mrf.mxu0
  %v4767 = vadd.f32 0.0, %v4766
  %4768 = vdwg.mxu0
  %v4769 = vadd.f32 %v4666, %v4767
  %s4770 = scalar_lea.vmem %s5, 28
  %v4771 = vld [vmem:[%s4770] sm:$0xf]
  %4772 = vmatpush.xpose.msra.mxu0 %v4682
  %4773 = vmatpush.xpose.msra.mxu0 %v4681
  %4774 = vmatpush.xpose.msra.mxu0 %v4680
  %4775 = vmatpush.xpose.msra.mxu0 %v4679
  %4776 = vmatpush.xpose.msra.mxu0 %v4678
  %4777 = vmatpush.xpose.msra.mxu0 %v4677
  %4778 = vmatpush.xpose.msra.mxu0 %v4676
  %4779 = vmatpush.xpose.msra.mxu0 %v4675
  %4780 = vmatpush.xpose.msra.mxu0 %v4674
  %4781 = vmatpush.xpose.msra.mxu0 %v4673
  %4782 = vmatpush.xpose.msra.mxu0 %v4672
  %4783 = vmatpush.xpose.msra.mxu0 %v4671
  %4784 = vmatpush.xpose.msra.mxu0 %v4670
  %4785 = vmatpush.xpose.msra.mxu0 %v4669
  %4786 = vmatpush.xpose.msra.mxu0 %v4668
  %4787 = vmatpush.xpose.msra.mxu0 %v4667
  %4788 = vmatmul.f32.gmra.mxu0 %v4771
  %v4789 = vpop.f32.mrf.mxu0
  %v4790 = vadd.f32 0.0, %v4789
  %4791 = vdwg.mxu0
  %v4792 = vadd.f32 %v4769, %v4790
  %v4793 = vrot.slane %v4667, 1
  %v4794 = vrot.slane %v4668, 1
  %v4795 = vsel %vm4399, %v4793, %v4794
  %v4796 = vrot.slane %v4669, 1
  %v4797 = vrot.slane %v4670, 1
  %v4798 = vsel %vm4399, %v4796, %v4797
  %v4799 = vrot.slane %v4671, 1
  %v4800 = vrot.slane %v4672, 1
  %v4801 = vsel %vm4399, %v4799, %v4800
  %v4802 = vrot.slane %v4673, 1
  %v4803 = vrot.slane %v4674, 1
  %v4804 = vsel %vm4399, %v4802, %v4803
  %v4805 = vrot.slane %v4675, 1
  %v4806 = vrot.slane %v4676, 1
  %v4807 = vsel %vm4399, %v4805, %v4806
  %v4808 = vrot.slane %v4677, 1
  %v4809 = vrot.slane %v4678, 1
  %v4810 = vsel %vm4399, %v4808, %v4809
  %v4811 = vrot.slane %v4679, 1
  %v4812 = vrot.slane %v4680, 1
  %v4813 = vsel %vm4399, %v4811, %v4812
  %v4814 = vrot.slane %v4681, 1
  %v4815 = vrot.slane %v4682, 1
  %v4816 = vsel %vm4399, %v4814, %v4815
  %v4833 = vsel %vm4399, %v4794, 0.0
  %v4834 = vsel %vm4399, %v4797, 0.0
  %v4835 = vsel %vm4399, %v4800, 0.0
  %v4836 = vsel %vm4399, %v4803, 0.0
  %v4837 = vsel %vm4399, %v4806, 0.0
  %v4838 = vsel %vm4399, %v4809, 0.0
  %v4839 = vsel %vm4399, %v4812, 0.0
  %v4840 = vsel %vm4399, %v4815, 0.0
  %s4841 = scalar_lea.vmem %s5, 32
  %v4842 = vld [vmem:[%s4841] sm:$0xf]
  %4843 = vmatpush.xpose.msra.mxu0 %v4840
  %4844 = vmatpush.xpose.msra.mxu0 %v4816
  %4845 = vmatpush.xpose.msra.mxu0 %v4839
  %4846 = vmatpush.xpose.msra.mxu0 %v4813
  %4847 = vmatpush.xpose.msra.mxu0 %v4838
  %4848 = vmatpush.xpose.msra.mxu0 %v4810
  %4849 = vmatpush.xpose.msra.mxu0 %v4837
  %4850 = vmatpush.xpose.msra.mxu0 %v4807
  %4851 = vmatpush.xpose.msra.mxu0 %v4836
  %4852 = vmatpush.xpose.msra.mxu0 %v4804
  %4853 = vmatpush.xpose.msra.mxu0 %v4835
  %4854 = vmatpush.xpose.msra.mxu0 %v4801
  %4855 = vmatpush.xpose.msra.mxu0 %v4834
  %4856 = vmatpush.xpose.msra.mxu0 %v4798
  %4857 = vmatpush.xpose.msra.mxu0 %v4833
  %4858 = vmatpush.xpose.msra.mxu0 %v4795
  %4859 = vmatmul.f32.gmra.mxu0 %v4842
  %v4860 = vpop.f32.mrf.mxu0
  %v4861 = vadd.f32 0.0, %v4860
  %4862 = vdwg.mxu0
  %v4863 = vadd.f32 %v4792, %v4861
  %v4864 = vld [vmem:[%s2318] sm:$0xff]
  %v4865 = vld [vmem:[%s2318 + $0x8] sm:$0xff]
  %v4866 = vld [vmem:[%s2318 + $0x10] sm:$0xff]
  %v4867 = vld [vmem:[%s2318 + $0x18] sm:$0xff]
  %v4868 = vld [vmem:[%s2318 + $0x20] sm:$0xff]
  %v4869 = vld [vmem:[%s2318 + $0x28] sm:$0xff]
  %v4870 = vld [vmem:[%s2318 + $0x30] sm:$0xff]
  %v4871 = vld [vmem:[%s2318 + $0x38] sm:$0xff]
  %v4872 = vld [vmem:[%s2318 + $0x40] sm:$0xff]
  %v4873 = vld [vmem:[%s2318 + $0x48] sm:$0xff]
  %v4874 = vld [vmem:[%s2318 + $0x50] sm:$0xff]
  %v4875 = vld [vmem:[%s2318 + $0x58] sm:$0xff]
  %v4876 = vld [vmem:[%s2318 + $0x60] sm:$0xff]
  %v4877 = vld [vmem:[%s2318 + $0x68] sm:$0xff]
  %v4878 = vld [vmem:[%s2318 + $0x70] sm:$0xff]
  %v4879 = vld [vmem:[%s2318 + $0x78] sm:$0xff]
  %v4896 = vrot.slane %v4864, 7
  %v4897 = vrot.slane %v4865, 7
  %v4898 = vsel %vm4308, %v4896, %v4897
  %v4899 = vrot.slane %v4866, 7
  %v4900 = vrot.slane %v4867, 7
  %v4901 = vsel %vm4308, %v4899, %v4900
  %v4902 = vrot.slane %v4868, 7
  %v4903 = vrot.slane %v4869, 7
  %v4904 = vsel %vm4308, %v4902, %v4903
  %v4905 = vrot.slane %v4870, 7
  %v4906 = vrot.slane %v4871, 7
  %v4907 = vsel %vm4308, %v4905, %v4906
  %v4908 = vrot.slane %v4872, 7
  %v4909 = vrot.slane %v4873, 7
  %v4910 = vsel %vm4308, %v4908, %v4909
  %v4911 = vrot.slane %v4874, 7
  %v4912 = vrot.slane %v4875, 7
  %v4913 = vsel %vm4308, %v4911, %v4912
  %v4914 = vrot.slane %v4876, 7
  %v4915 = vrot.slane %v4877, 7
  %v4916 = vsel %vm4308, %v4914, %v4915
  %v4917 = vrot.slane %v4878, 7
  %v4918 = vrot.slane %v4879, 7
  %v4919 = vsel %vm4308, %v4917, %v4918
  %v4936 = vsel %vm4308, 0.0, %v4896
  %v4937 = vsel %vm4308, 0.0, %v4899
  %v4938 = vsel %vm4308, 0.0, %v4902
  %v4939 = vsel %vm4308, 0.0, %v4905
  %v4940 = vsel %vm4308, 0.0, %v4908
  %v4941 = vsel %vm4308, 0.0, %v4911
  %v4942 = vsel %vm4308, 0.0, %v4914
  %v4943 = vsel %vm4308, 0.0, %v4917
  %4944 = vmatpush.xpose.msra.mxu0 %v4879
  %4945 = vmatpush.xpose.msra.mxu0 %v4878
  %4946 = vmatpush.xpose.msra.mxu0 %v4877
  %4947 = vmatpush.xpose.msra.mxu0 %v4876
  %4948 = vmatpush.xpose.msra.mxu0 %v4875
  %4949 = vmatpush.xpose.msra.mxu0 %v4874
  %4950 = vmatpush.xpose.msra.mxu0 %v4873
  %4951 = vmatpush.xpose.msra.mxu0 %v4872
  %4952 = vmatpush.xpose.msra.mxu0 %v4871
  %4953 = vmatpush.xpose.msra.mxu0 %v4870
  %4954 = vmatpush.xpose.msra.mxu0 %v4869
  %4955 = vmatpush.xpose.msra.mxu0 %v4868
  %4956 = vmatpush.xpose.msra.mxu0 %v4867
  %4957 = vmatpush.xpose.msra.mxu0 %v4866
  %4958 = vmatpush.xpose.msra.mxu0 %v4865
  %4959 = vmatpush.xpose.msra.mxu0 %v4864
  %4960 = vmatmul.f32.gmra.mxu0 %v4358
  %v4961 = vpop.f32.mrf.mxu0
  %v4962 = vadd.f32 0.0, %v4961
  %4963 = vdwg.mxu0
  %4964 = vmatpush.xpose.msra.mxu0 %v4919
  %4965 = vmatpush.xpose.msra.mxu0 %v4943
  %4966 = vmatpush.xpose.msra.mxu0 %v4916
  %4967 = vmatpush.xpose.msra.mxu0 %v4942
  %4968 = vmatpush.xpose.msra.mxu0 %v4913
  %4969 = vmatpush.xpose.msra.mxu0 %v4941
  %4970 = vmatpush.xpose.msra.mxu0 %v4910
  %4971 = vmatpush.xpose.msra.mxu0 %v4940
  %4972 = vmatpush.xpose.msra.mxu0 %v4907
  %4973 = vmatpush.xpose.msra.mxu0 %v4939
  %4974 = vmatpush.xpose.msra.mxu0 %v4904
  %4975 = vmatpush.xpose.msra.mxu0 %v4938
  %4976 = vmatpush.xpose.msra.mxu0 %v4901
  %4977 = vmatpush.xpose.msra.mxu0 %v4937
  %4978 = vmatpush.xpose.msra.mxu0 %v4898
  %4979 = vmatpush.xpose.msra.mxu0 %v4936
  %4980 = vmatmul.f32.gmra.mxu0 %v4356
  %v4981 = vpop.f32.mrf.mxu0
  %v4982 = vadd.f32 %v4962, %v4981
  %4983 = vdwg.mxu0
  %v4984 = vrot.slane %v4864, 1
  %v4985 = vrot.slane %v4865, 1
  %v4986 = vsel %vm4399, %v4984, %v4985
  %v4987 = vrot.slane %v4866, 1
  %v4988 = vrot.slane %v4867, 1
  %v4989 = vsel %vm4399, %v4987, %v4988
  %v4990 = vrot.slane %v4868, 1
  %v4991 = vrot.slane %v4869, 1
  %v4992 = vsel %vm4399, %v4990, %v4991
  %v4993 = vrot.slane %v4870, 1
  %v4994 = vrot.slane %v4871, 1
  %v4995 = vsel %vm4399, %v4993, %v4994
  %v4996 = vrot.slane %v4872, 1
  %v4997 = vrot.slane %v4873, 1
  %v4998 = vsel %vm4399, %v4996, %v4997
  %v4999 = vrot.slane %v4874, 1
  %v5000 = vrot.slane %v4875, 1
  %v5001 = vsel %vm4399, %v4999, %v5000
  %v5002 = vrot.slane %v4876, 1
  %v5003 = vrot.slane %v4877, 1
  %v5004 = vsel %vm4399, %v5002, %v5003
  %v5005 = vrot.slane %v4878, 1
  %v5006 = vrot.slane %v4879, 1
  %v5007 = vsel %vm4399, %v5005, %v5006
  %v5024 = vsel %vm4399, %v4985, 0.0
  %v5025 = vsel %vm4399, %v4988, 0.0
  %v5026 = vsel %vm4399, %v4991, 0.0
  %v5027 = vsel %vm4399, %v4994, 0.0
  %v5028 = vsel %vm4399, %v4997, 0.0
  %v5029 = vsel %vm4399, %v5000, 0.0
  %v5030 = vsel %vm4399, %v5003, 0.0
  %v5031 = vsel %vm4399, %v5006, 0.0
  %5032 = vmatpush.xpose.msra.mxu0 %v5031
  %5033 = vmatpush.xpose.msra.mxu0 %v5007
  %5034 = vmatpush.xpose.msra.mxu0 %v5030
  %5035 = vmatpush.xpose.msra.mxu0 %v5004
  %5036 = vmatpush.xpose.msra.mxu0 %v5029
  %5037 = vmatpush.xpose.msra.mxu0 %v5001
  %5038 = vmatpush.xpose.msra.mxu0 %v5028
  %5039 = vmatpush.xpose.msra.mxu0 %v4998
  %5040 = vmatpush.xpose.msra.mxu0 %v5027
  %5041 = vmatpush.xpose.msra.mxu0 %v4995
  %5042 = vmatpush.xpose.msra.mxu0 %v5026
  %5043 = vmatpush.xpose.msra.mxu0 %v4992
  %5044 = vmatpush.xpose.msra.mxu0 %v5025
  %5045 = vmatpush.xpose.msra.mxu0 %v4989
  %5046 = vmatpush.xpose.msra.mxu0 %v5024
  %5047 = vmatpush.xpose.msra.mxu0 %v4986
  %5048 = vmatmul.f32.gmra.mxu0 %v4448
  %v5049 = vpop.f32.mrf.mxu0
  %v5050 = vadd.f32 0.0, %v5049
  %5051 = vdwg.mxu0
  %v5052 = vadd.f32 %v4982, %v5050
  %v5053 = vld [vmem:[%s1690] sm:$0xff]
  %v5054 = vld [vmem:[%s1690 + $0x8] sm:$0xff]
  %v5055 = vld [vmem:[%s1690 + $0x10] sm:$0xff]
  %v5056 = vld [vmem:[%s1690 + $0x18] sm:$0xff]
  %v5057 = vld [vmem:[%s1690 + $0x20] sm:$0xff]
  %v5058 = vld [vmem:[%s1690 + $0x28] sm:$0xff]
  %v5059 = vld [vmem:[%s1690 + $0x30] sm:$0xff]
  %v5060 = vld [vmem:[%s1690 + $0x38] sm:$0xff]
  %v5061 = vld [vmem:[%s1690 + $0x40] sm:$0xff]
  %v5062 = vld [vmem:[%s1690 + $0x48] sm:$0xff]
  %v5063 = vld [vmem:[%s1690 + $0x50] sm:$0xff]
  %v5064 = vld [vmem:[%s1690 + $0x58] sm:$0xff]
  %v5065 = vld [vmem:[%s1690 + $0x60] sm:$0xff]
  %v5066 = vld [vmem:[%s1690 + $0x68] sm:$0xff]
  %v5067 = vld [vmem:[%s1690 + $0x70] sm:$0xff]
  %v5068 = vld [vmem:[%s1690 + $0x78] sm:$0xff]
  %v5085 = vrot.slane %v5053, 7
  %v5086 = vrot.slane %v5054, 7
  %v5087 = vsel %vm4308, %v5085, %v5086
  %v5088 = vrot.slane %v5055, 7
  %v5089 = vrot.slane %v5056, 7
  %v5090 = vsel %vm4308, %v5088, %v5089
  %v5091 = vrot.slane %v5057, 7
  %v5092 = vrot.slane %v5058, 7
  %v5093 = vsel %vm4308, %v5091, %v5092
  %v5094 = vrot.slane %v5059, 7
  %v5095 = vrot.slane %v5060, 7
  %v5096 = vsel %vm4308, %v5094, %v5095
  %v5097 = vrot.slane %v5061, 7
  %v5098 = vrot.slane %v5062, 7
  %v5099 = vsel %vm4308, %v5097, %v5098
  %v5100 = vrot.slane %v5063, 7
  %v5101 = vrot.slane %v5064, 7
  %v5102 = vsel %vm4308, %v5100, %v5101
  %v5103 = vrot.slane %v5065, 7
  %v5104 = vrot.slane %v5066, 7
  %v5105 = vsel %vm4308, %v5103, %v5104
  %v5106 = vrot.slane %v5067, 7
  %v5107 = vrot.slane %v5068, 7
  %v5108 = vsel %vm4308, %v5106, %v5107
  %v5125 = vsel %vm4308, 0.0, %v5085
  %v5126 = vsel %vm4308, 0.0, %v5088
  %v5127 = vsel %vm4308, 0.0, %v5091
  %v5128 = vsel %vm4308, 0.0, %v5094
  %v5129 = vsel %vm4308, 0.0, %v5097
  %v5130 = vsel %vm4308, 0.0, %v5100
  %v5131 = vsel %vm4308, 0.0, %v5103
  %v5132 = vsel %vm4308, 0.0, %v5106
  %5133 = vmatpush.xpose.msra.mxu0 %v5108
  %5134 = vmatpush.xpose.msra.mxu0 %v5132
  %5135 = vmatpush.xpose.msra.mxu0 %v5105
  %5136 = vmatpush.xpose.msra.mxu0 %v5131
  %5137 = vmatpush.xpose.msra.mxu0 %v5102
  %5138 = vmatpush.xpose.msra.mxu0 %v5130
  %5139 = vmatpush.xpose.msra.mxu0 %v5099
  %5140 = vmatpush.xpose.msra.mxu0 %v5129
  %5141 = vmatpush.xpose.msra.mxu0 %v5096
  %5142 = vmatpush.xpose.msra.mxu0 %v5128
  %5143 = vmatpush.xpose.msra.mxu0 %v5093
  %5144 = vmatpush.xpose.msra.mxu0 %v5127
  %5145 = vmatpush.xpose.msra.mxu0 %v5090
  %5146 = vmatpush.xpose.msra.mxu0 %v5126
  %5147 = vmatpush.xpose.msra.mxu0 %v5087
  %5148 = vmatpush.xpose.msra.mxu0 %v5125
  %5149 = vmatmul.f32.gmra.mxu0 %v4551
  %v5150 = vpop.f32.mrf.mxu0
  %v5151 = vadd.f32 0.0, %v5150
  %5152 = vdwg.mxu0
  %v5153 = vadd.f32 %v5052, %v5151
  %5154 = vmatpush.xpose.msra.mxu0 %v5068
  %5155 = vmatpush.xpose.msra.mxu0 %v5067
  %5156 = vmatpush.xpose.msra.mxu0 %v5066
  %5157 = vmatpush.xpose.msra.mxu0 %v5065
  %5158 = vmatpush.xpose.msra.mxu0 %v5064
  %5159 = vmatpush.xpose.msra.mxu0 %v5063
  %5160 = vmatpush.xpose.msra.mxu0 %v5062
  %5161 = vmatpush.xpose.msra.mxu0 %v5061
  %5162 = vmatpush.xpose.msra.mxu0 %v5060
  %5163 = vmatpush.xpose.msra.mxu0 %v5059
  %5164 = vmatpush.xpose.msra.mxu0 %v5058
  %5165 = vmatpush.xpose.msra.mxu0 %v5057
  %5166 = vmatpush.xpose.msra.mxu0 %v5056
  %5167 = vmatpush.xpose.msra.mxu0 %v5055
  %5168 = vmatpush.xpose.msra.mxu0 %v5054
  %5169 = vmatpush.xpose.msra.mxu0 %v5053
  %5170 = vmatmul.f32.gmra.mxu0 %v4574
  %v5171 = vpop.f32.mrf.mxu0
  %v5172 = vadd.f32 0.0, %v5171
  %5173 = vdwg.mxu0
  %v5174 = vadd.f32 %v5153, %v5172
  %v5175 = vrot.slane %v5053, 1
  %v5176 = vrot.slane %v5054, 1
  %v5177 = vsel %vm4399, %v5175, %v5176
  %v5178 = vrot.slane %v5055, 1
  %v5179 = vrot.slane %v5056, 1
  %v5180 = vsel %vm4399, %v5178, %v5179
  %v5181 = vrot.slane %v5057, 1
  %v5182 = vrot.slane %v5058, 1
  %v5183 = vsel %vm4399, %v5181, %v5182
  %v5184 = vrot.slane %v5059, 1
  %v5185 = vrot.slane %v5060, 1
  %v5186 = vsel %vm4399, %v5184, %v5185
  %v5187 = vrot.slane %v5061, 1
  %v5188 = vrot.slane %v5062, 1
  %v5189 = vsel %vm4399, %v5187, %v5188
  %v5190 = vrot.slane %v5063, 1
  %v5191 = vrot.slane %v5064, 1
  %v5192 = vsel %vm4399, %v5190, %v5191
  %v5193 = vrot.slane %v5065, 1
  %v5194 = vrot.slane %v5066, 1
  %v5195 = vsel %vm4399, %v5193, %v5194
  %v5196 = vrot.slane %v5067, 1
  %v5197 = vrot.slane %v5068, 1
  %v5198 = vsel %vm4399, %v5196, %v5197
  %v5215 = vsel %vm4399, %v5176, 0.0
  %v5216 = vsel %vm4399, %v5179, 0.0
  %v5217 = vsel %vm4399, %v5182, 0.0
  %v5218 = vsel %vm4399, %v5185, 0.0
  %v5219 = vsel %vm4399, %v5188, 0.0
  %v5220 = vsel %vm4399, %v5191, 0.0
  %v5221 = vsel %vm4399, %v5194, 0.0
  %v5222 = vsel %vm4399, %v5197, 0.0
  %5223 = vmatpush.xpose.msra.mxu0 %v5222
  %5224 = vmatpush.xpose.msra.mxu0 %v5198
  %5225 = vmatpush.xpose.msra.mxu0 %v5221
  %5226 = vmatpush.xpose.msra.mxu0 %v5195
  %5227 = vmatpush.xpose.msra.mxu0 %v5220
  %5228 = vmatpush.xpose.msra.mxu0 %v5192
  %5229 = vmatpush.xpose.msra.mxu0 %v5219
  %5230 = vmatpush.xpose.msra.mxu0 %v5189
  %5231 = vmatpush.xpose.msra.mxu0 %v5218
  %5232 = vmatpush.xpose.msra.mxu0 %v5186
  %5233 = vmatpush.xpose.msra.mxu0 %v5217
  %5234 = vmatpush.xpose.msra.mxu0 %v5183
  %5235 = vmatpush.xpose.msra.mxu0 %v5216
  %5236 = vmatpush.xpose.msra.mxu0 %v5180
  %5237 = vmatpush.xpose.msra.mxu0 %v5215
  %5238 = vmatpush.xpose.msra.mxu0 %v5177
  %5239 = vmatmul.f32.gmra.mxu0 %v4645
  %v5240 = vpop.f32.mrf.mxu0
  %v5241 = vadd.f32 0.0, %v5240
  %5242 = vdwg.mxu0
  %v5243 = vadd.f32 %v5174, %v5241
  %v5244 = vld [vmem:[%s2683] sm:$0xff]
  %v5245 = vld [vmem:[%s2683 + $0x8] sm:$0xff]
  %v5246 = vld [vmem:[%s2683 + $0x10] sm:$0xff]
  %v5247 = vld [vmem:[%s2683 + $0x18] sm:$0xff]
  %v5248 = vld [vmem:[%s2683 + $0x20] sm:$0xff]
  %v5249 = vld [vmem:[%s2683 + $0x28] sm:$0xff]
  %v5250 = vld [vmem:[%s2683 + $0x30] sm:$0xff]
  %v5251 = vld [vmem:[%s2683 + $0x38] sm:$0xff]
  %v5252 = vld [vmem:[%s2683 + $0x40] sm:$0xff]
  %v5253 = vld [vmem:[%s2683 + $0x48] sm:$0xff]
  %v5254 = vld [vmem:[%s2683 + $0x50] sm:$0xff]
  %v5255 = vld [vmem:[%s2683 + $0x58] sm:$0xff]
  %v5256 = vld [vmem:[%s2683 + $0x60] sm:$0xff]
  %v5257 = vld [vmem:[%s2683 + $0x68] sm:$0xff]
  %v5272 = vrot.slane %v5244, 7
  %v5273 = vrot.slane %v5245, 7
  %v5274 = vsel %vm4308, %v5272, %v5273
  %v5275 = vrot.slane %v5246, 7
  %v5276 = vrot.slane %v5247, 7
  %v5277 = vsel %vm4308, %v5275, %v5276
  %v5278 = vrot.slane %v5248, 7
  %v5279 = vrot.slane %v5249, 7
  %v5280 = vsel %vm4308, %v5278, %v5279
  %v5281 = vrot.slane %v5250, 7
  %v5282 = vrot.slane %v5251, 7
  %v5283 = vsel %vm4308, %v5281, %v5282
  %v5284 = vrot.slane %v5252, 7
  %v5285 = vrot.slane %v5253, 7
  %v5286 = vsel %vm4308, %v5284, %v5285
  %v5287 = vrot.slane %v5254, 7
  %v5288 = vrot.slane %v5255, 7
  %v5289 = vsel %vm4308, %v5287, %v5288
  %v5290 = vrot.slane %v5256, 7
  %v5291 = vrot.slane %v5257, 7
  %v5292 = vsel %vm4308, %v5290, %v5291
  %v5307 = vsel %vm4308, 0.0, %v5272
  %v5308 = vsel %vm4308, 0.0, %v5275
  %v5309 = vsel %vm4308, 0.0, %v5278
  %v5310 = vsel %vm4308, 0.0, %v5281
  %v5311 = vsel %vm4308, 0.0, %v5284
  %v5312 = vsel %vm4308, 0.0, %v5287
  %v5313 = vsel %vm4308, 0.0, %v5290
  %5314 = vmatpush.xpose.msra.mxu0 %v4310
  %5315 = vmatpush.xpose.msra.mxu0 %v4348
  %5316 = vmatpush.xpose.msra.mxu0 %v5292
  %5317 = vmatpush.xpose.msra.mxu0 %v5313
  %5318 = vmatpush.xpose.msra.mxu0 %v5289
  %5319 = vmatpush.xpose.msra.mxu0 %v5312
  %5320 = vmatpush.xpose.msra.mxu0 %v5286
  %5321 = vmatpush.xpose.msra.mxu0 %v5311
  %5322 = vmatpush.xpose.msra.mxu0 %v5283
  %5323 = vmatpush.xpose.msra.mxu0 %v5310
  %5324 = vmatpush.xpose.msra.mxu0 %v5280
  %5325 = vmatpush.xpose.msra.mxu0 %v5309
  %5326 = vmatpush.xpose.msra.mxu0 %v5277
  %5327 = vmatpush.xpose.msra.mxu0 %v5308
  %5328 = vmatpush.xpose.msra.mxu0 %v5274
  %5329 = vmatpush.xpose.msra.mxu0 %v5307
  %5330 = vmatmul.f32.gmra.mxu0 %v4748
  %v5331 = vpop.f32.mrf.mxu0
  %v5332 = vadd.f32 0.0, %v5331
  %5333 = vdwg.mxu0
  %v5334 = vadd.f32 %v5243, %v5332
  %5335 = vmatpush.xpose.msra.mxu0 0.0
  %5336 = vmatpush.xpose.msra.mxu0 0.0
  %5337 = vmatpush.xpose.msra.mxu0 %v5257
  %5338 = vmatpush.xpose.msra.mxu0 %v5256
  %5339 = vmatpush.xpose.msra.mxu0 %v5255
  %5340 = vmatpush.xpose.msra.mxu0 %v5254
  %5341 = vmatpush.xpose.msra.mxu0 %v5253
  %5342 = vmatpush.xpose.msra.mxu0 %v5252
  %5343 = vmatpush.xpose.msra.mxu0 %v5251
  %5344 = vmatpush.xpose.msra.mxu0 %v5250
  %5345 = vmatpush.xpose.msra.mxu0 %v5249
  %5346 = vmatpush.xpose.msra.mxu0 %v5248
  %5347 = vmatpush.xpose.msra.mxu0 %v5247
  %5348 = vmatpush.xpose.msra.mxu0 %v5246
  %5349 = vmatpush.xpose.msra.mxu0 %v5245
  %5350 = vmatpush.xpose.msra.mxu0 %v5244
  %5351 = vmatmul.f32.gmra.mxu0 %v4771
  %v5352 = vpop.f32.mrf.mxu0
  %v5353 = vadd.f32 0.0, %v5352
  %5354 = vdwg.mxu0
  %v5355 = vadd.f32 %v5334, %v5353
  %v5356 = vrot.slane %v5244, 1
  %v5357 = vrot.slane %v5245, 1
  %v5358 = vsel %vm4399, %v5356, %v5357
  %v5359 = vrot.slane %v5246, 1
  %v5360 = vrot.slane %v5247, 1
  %v5361 = vsel %vm4399, %v5359, %v5360
  %v5362 = vrot.slane %v5248, 1
  %v5363 = vrot.slane %v5249, 1
  %v5364 = vsel %vm4399, %v5362, %v5363
  %v5365 = vrot.slane %v5250, 1
  %v5366 = vrot.slane %v5251, 1
  %v5367 = vsel %vm4399, %v5365, %v5366
  %v5368 = vrot.slane %v5252, 1
  %v5369 = vrot.slane %v5253, 1
  %v5370 = vsel %vm4399, %v5368, %v5369
  %v5371 = vrot.slane %v5254, 1
  %v5372 = vrot.slane %v5255, 1
  %v5373 = vsel %vm4399, %v5371, %v5372
  %v5374 = vrot.slane %v5256, 1
  %v5375 = vrot.slane %v5257, 1
  %v5376 = vsel %vm4399, %v5374, %v5375
  %v5391 = vsel %vm4399, %v5357, 0.0
  %v5392 = vsel %vm4399, %v5360, 0.0
  %v5393 = vsel %vm4399, %v5363, 0.0
  %v5394 = vsel %vm4399, %v5366, 0.0
  %v5395 = vsel %vm4399, %v5369, 0.0
  %v5396 = vsel %vm4399, %v5372, 0.0
  %v5397 = vsel %vm4399, %v5375, 0.0
  %5398 = vmatpush.xpose.msra.mxu0 %v4439
  %5399 = vmatpush.xpose.msra.mxu0 %v4401
  %5400 = vmatpush.xpose.msra.mxu0 %v5397
  %5401 = vmatpush.xpose.msra.mxu0 %v5376
  %5402 = vmatpush.xpose.msra.mxu0 %v5396
  %5403 = vmatpush.xpose.msra.mxu0 %v5373
  %5404 = vmatpush.xpose.msra.mxu0 %v5395
  %5405 = vmatpush.xpose.msra.mxu0 %v5370
  %5406 = vmatpush.xpose.msra.mxu0 %v5394
  %5407 = vmatpush.xpose.msra.mxu0 %v5367
  %5408 = vmatpush.xpose.msra.mxu0 %v5393
  %5409 = vmatpush.xpose.msra.mxu0 %v5364
  %5410 = vmatpush.xpose.msra.mxu0 %v5392
  %5411 = vmatpush.xpose.msra.mxu0 %v5361
  %5412 = vmatpush.xpose.msra.mxu0 %v5391
  %5413 = vmatpush.xpose.msra.mxu0 %v5358
  %5414 = vmatmul.f32.gmra.mxu0 %v4842
  %v5415 = vpop.f32.mrf.mxu0
  %v5416 = vadd.f32 0.0, %v5415
  %5417 = vdwg.mxu0
  %v5418 = vadd.f32 %v5355, %v5416
  %v5419 = vld [vmem:[%s6] sm:$0xf]
  %5421 = vset.pattern.permute.xlu0 0
  %5422 = vperm.xlu0 %5421, %v5419
  %v5423 = vpop.permute.xlu0 %5422
  %v5425 = vadd.f32 %v4863, %v5423
  %v5426 = vadd.f32 %v5418, %v5423
  %v5429 = vrot.slane %v5426, 4
  %v5430 = vsel %vm164, %v5425, %v5429
  %5432 = vst [vmem:[%s7] sm:$0xff] %v5430
  // Predicated region
  $region30: #{cnn_layer_forward_impl.1} parent=0 // pred_check
    _
  $region31: #{cnn_layer_forward_impl.1} parent=0 // pred_check_branch
    %5434 = sbr.rel (0) target = $region33
  $region32: #{cnn_layer_forward_impl.1} parent=0 // pred_region
    _
  $region33: #{cnn_layer_forward_impl.1} parent=0 // pred_fallthru
    _
  // Predicated region
  $region34: #{cnn_layer_forward_impl.1} parent=0 // pred_check
    _
  $region35: #{cnn_layer_forward_impl.1} parent=0 // pred_check_branch
    %5436 = sbr.rel (0) target = $region37
  $region36: #{cnn_layer_forward_impl.1} parent=0 // pred_region
    _
  $region37: #{cnn_layer_forward_impl.1} parent=0 // pred_fallthru
    _

</llo_original>
